<compile_context>
chip_gen: v7x
topology: tpu7x:2x2x1
jax: 0.10.0
libtpu: 0.0.40
codegen_flags: <defaults>
</compile_context>

<pallas_src>
import functools

import numpy as np

import jax
import jax.numpy as jnp
from jax.experimental import pallas as pl
from jax.experimental.pallas import tpu as pltpu

_VMEM = functools.partial(pl.BlockSpec, memory_space=pltpu.MemorySpace.VMEM)

NFM, NFP, OUT_DIM = 78, 33, 128   # num_features_mol, num_features_pro, output_dim
LANE, SUB = 128, 8


def _rup(v, m):
    return ((v + m - 1) // m) * m


# ---------------- padded layout constants (all widths multiples of 128 lanes) -----------
MOL_IN_PAD = _rup(NFM, LANE)                      # 78  -> 128
MOL1_C, MOL1_CP = NFM, _rup(NFM, LANE)            # GAT1: heads=2, 78  -> 128/head (width 256)
MOL2_C, MOL2_CP = 2 * NFM, _rup(2 * NFM, LANE)    # GAT2: heads=2, 156 -> 256/head (width 512)
MOL3_C, MOL3_CP = 4 * NFM, _rup(4 * NFM, LANE)    # GAT3: heads=1, 312 -> 384
PRO_IN_PAD = _rup(NFP, LANE)                      # 33  -> 128
PRO1_CP = _rup(NFP, LANE)                         # GCN out: 33 -> 128
PRO2_C, PRO2_CP = 2 * NFP, _rup(2 * NFP, LANE)    # GAT2: heads=2, 66  -> 128/head (width 256)
PRO3_C, PRO3_CP = 4 * NFP, _rup(4 * NFP, LANE)    # GAT3: heads=1, 132 -> 256
OUT_PAD = LANE                                    # n_output=1 -> 128 (lane-dense final store)
ATT_COLS = LANE                                   # attention-logit matmul output width

# ---------------- slab layouts (all offsets 16-sublane / 128-lane aligned) --------------
# GNN slab (VMEM resident, bf16): name -> (row_off, col_off, rows, cols)
GNN_LAYOUT = {
    "mc1_w":   (0,    0,   128, 256),
    "pc1_w":   (0,    256, 128, 128),
    "pc2_w":   (0,    384, 128, 256),
    "mc3_w":   (128,  0,   512, 384),
    "mc2_att": (128,  384, 512, 128),
    "mc1_att": (128,  512, 256, 128),
    "pc2_att": (384,  512, 256, 128),
    "mc2_w":   (640,  0,   256, 512),
    "pc3_att": (640,  512, 256, 128),
    "mc3_att": (896,  0,   384, 128),
    "pc3_w":   (896,  128, 256, 256),
}
GNN_SLAB_SHAPE = (1280, 640)          # 1.56 MiB bf16

# FC slab (HBM, async-prefetched, bf16): name -> (chunk, row_off, col_off, rows, cols)
FC_LAYOUT = {
    "mfc1_w": (0, 0,   0,   384,  1024),
    "pfc1_w": (0, 384, 0,   256,  1024),
    "fc1_w":  (0, 640, 0,   256,  1024),
    "fc2_w":  (1, 0,   0,   1024, 512),
    "mfc2_w": (1, 0,   512, 1024, 128),
    "pfc2_w": (1, 0,   640, 1024, 128),
    "out_w":  (1, 0,   768, 512,  128),
}
FC_SLAB_SHAPE = (2, 1024, 1024)       # 4 MiB bf16 (two 2 MiB DMA chunks)

# Bias slab (VMEM resident, f32, shape (1, BIAS_SLAB_W)): name -> (col_off, width)
BIAS_LAYOUT = {
    "mc1_b":  (0,    256), "mc2_b":  (256,  512), "mc3_b":  (768,  384),
    "pc1_b":  (1152, 128), "pc2_b":  (1280, 256), "pc3_b":  (1536, 256),
    "mfc1_b": (1792, 1024), "mfc2_b": (2816, 128),
    "pfc1_b": (2944, 1024), "pfc2_b": (3968, 128),
    "fc1_b":  (4096, 1024), "fc2_b":  (5120, 512), "out_b":  (5632, 128),
}
BIAS_SLAB_W = 5760


# ----------------------------- in-kernel helpers (values, not refs) ---------------------
def _bdot(a, b):
    # bf16 MXU matmul with f32 accumulation (weights are stored bf16).
    return jnp.dot(a.astype(jnp.bfloat16), b.astype(jnp.bfloat16),
                   preferred_element_type=jnp.float32)


def _gat(x, w, att, bias, mask, *, heads, c_pad, relu):
    """PyG GATConv (eval): per-head linear, LeakyReLU(0.2) logits, masked softmax over
    incoming edges (self loops included in `mask`), weighted aggregation, concat, bias."""
    h = _bdot(x, w)                              # (N, heads*c_pad) f32
    e = _bdot(h, att)                            # (N, 128): col 2h = src term, 2h+1 = dst term
    et = jnp.transpose(e)                        # one well-formed (N,128)->(128,N) transpose
    outs = []
    for hd in range(heads):
        hh = h[:, hd * c_pad:(hd + 1) * c_pad]   # 128-aligned per-head slice
        logits = e[:, 2 * hd + 1:2 * hd + 2] + et[2 * hd:2 * hd + 1, :]   # [i,j]=dst_i+src_j
        logits = jnp.where(logits >= 0.0, logits, 0.2 * logits)           # LeakyReLU(0.2)
        # Single (deliberate) masking mechanism: -1e30 fill => exp underflows to exactly 0.
        # Padded rows carry a self loop, so no row is ever fully masked.
        logits = jnp.where(mask, logits, -1e30)
        m = jnp.max(logits, axis=-1, keepdims=True)
        p = jnp.exp(logits - m)
        alpha = p / jnp.sum(p, axis=-1, keepdims=True)                    # exact f32 softmax
        # f32 aggregation matmul keeps attention weights at full precision (tiny matmul)
        outs.append(jnp.dot(alpha, hh, preferred_element_type=jnp.float32))
    y = (outs[0] if heads == 1 else jnp.concatenate(outs, axis=-1)) + bias
    return jnp.maximum(y, 0.0) if relu else y


def _gcn(x, w, bias, adj_w, *, relu):
    """PyG GCNConv with edge weights: D^-1/2 (A_w + I) D^-1/2 X W + b (self loops in adj_w).
    Factored as dinv * (A_w @ (dinv * h)): no transposes, no (N,N) normalized temp."""
    h = _bdot(x, w)
    deg = jnp.sum(adj_w, axis=-1, keepdims=True)
    dinv = jnp.where(deg > 0.0, jax.lax.rsqrt(deg), 0.0)
    y = dinv * jnp.dot(adj_w, dinv * h, preferred_element_type=jnp.float32) + bias
    return jnp.maximum(y, 0.0) if relu else y


def _lin(x, w, bias, act="none"):
    y = _bdot(x, w) + bias
    if act == "relu":
        return jnp.maximum(y, 0.0)
    if act == "sigmoid":
        return 1.0 / (1.0 + jnp.exp(-y))         # exact f32 sigmoid
    return y


# ----------------------------- the single fused kernel ----------------------------------
def _cpi_gat_kernel(mol_x, mol_adj, mol_pool, pro_x, pro_adj_mask, pro_adj_w, pro_pool,
                    gnn_ref, bias_ref, fc_hbm, o_ref, fc_vmem, fc_sem):
    # Kick off the HBM->VMEM prefetch of the big FC-weight slab immediately; it overlaps
    # with the 5 graph-conv layers below and is waited on just before each FC group.
    cp0 = pltpu.make_async_copy(fc_hbm.at[0], fc_vmem.at[0], fc_sem.at[0])
    cp1 = pltpu.make_async_copy(fc_hbm.at[1], fc_vmem.at[1], fc_sem.at[1])
    cp0.start()
    cp1.start()

    def gw(name):                                # static, tile-aligned slab slices (free)
        r, c, nr, nc = GNN_LAYOUT[name]
        return gnn_ref[r:r + nr, c:c + nc]

    def bia(name):
        off, width = BIAS_LAYOUT[name]
        return bias_ref[:, off:off + width]

    def fw(name):
        k, r, c, nr, nc = FC_LAYOUT[name]
        return fc_vmem[k, r:r + nr, c:c + nc]

    # ---- molecule branch: GAT x3 ----
    mol_mask = mol_adj[...] > 0.0                # computed once, reused by all layers
    x = _gat(mol_x[...], gw("mc1_w"), gw("mc1_att"), bia("mc1_b"), mol_mask,
             heads=2, c_pad=MOL1_CP, relu=True)
    x = _gat(x, gw("mc2_w"), gw("mc2_att"), bia("mc2_b"), mol_mask,
             heads=2, c_pad=MOL2_CP, relu=True)
    x = _gat(x, gw("mc3_w"), gw("mc3_att"), bia("mc3_b"), mol_mask,
             heads=1, c_pad=MOL3_CP, relu=False)

    # ---- protein branch: GCN -> GAT x2 ----
    pro_mask = pro_adj_mask[...] > 0.0
    xt = _gcn(pro_x[...], gw("pc1_w"), bia("pc1_b"), pro_adj_w[...], relu=True)
    xt = _gat(xt, gw("pc2_w"), gw("pc2_att"), bia("pc2_b"), pro_mask,
              heads=2, c_pad=PRO2_CP, relu=True)
    xt = _gat(xt, gw("pc3_w"), gw("pc3_att"), bia("pc3_b"), pro_mask,
              heads=1, c_pad=PRO3_CP, relu=True)

    # ---- global mean pool (f32 aggregation matmuls) ----
    x = jnp.dot(mol_pool[...], x, preferred_element_type=jnp.float32)    # (B_pad, 384)
    xt = jnp.dot(pro_pool[...], xt, preferred_element_type=jnp.float32)  # (B_pad, 256)

    # ---- FC stacks (dropout = identity in eval); waits sit right before first use ----
    cp0.wait()                                   # chunk 0: mfc1_w / pfc1_w / fc1_w
    x = _lin(x, fw("mfc1_w"), bia("mfc1_b"), act="relu")
    xt = _lin(xt, fw("pfc1_w"), bia("pfc1_b"), act="relu")
    cp1.wait()                                   # chunk 1: mfc2_w / pfc2_w / fc2_w / out_w
    x = _lin(x, fw("mfc2_w"), bia("mfc2_b"))
    xt = _lin(xt, fw("pfc2_w"), bia("pfc2_b"))

    # ---- combined head ----
    xc = jnp.concatenate([x, xt], axis=-1)       # (B_pad, 256), both halves 128-wide
    xc = _lin(xc, fw("fc1_w"), bia("fc1_b"), act="relu")
    xc = _lin(xc, fw("fc2_w"), bia("fc2_b"), act="relu")
    o_ref[...] = _lin(xc, fw("out_w"), bia("out_b"), act="sigmoid")      # (B_pad, 128)


def cpi_gat_forward(gnn_slab, bias_slab, fc_slab, mol_x, mol_adj, mol_pool,
                    pro_x, pro_adj_mask, pro_adj_w, pro_pool, n_graphs):
    args = (mol_x, mol_adj, mol_pool, pro_x, pro_adj_mask, pro_adj_w, pro_pool,
            gnn_slab, bias_slab, fc_slab)
    b_pad = mol_pool.shape[0]
    out = pl.pallas_call(
        _cpi_gat_kernel,
        out_shape=jax.ShapeDtypeStruct((b_pad, OUT_PAD), jnp.float32),
        in_specs=[_VMEM()] * 9 + [pl.BlockSpec(memory_space=pl.ANY)],   # FC slab stays in HBM
        out_specs=_VMEM(),
        scratch_shapes=[pltpu.VMEM(FC_SLAB_SHAPE, jnp.bfloat16),        # prefetch destination
                        pltpu.SemaphoreType.DMA((2,))],
        compiler_params=pltpu.CompilerParams(vmem_limit_bytes=32 * 1024 * 1024),
    )(*args)
    return out[:n_graphs, :1]


# ----------------------------- parameters (logical init + slab packing) -----------------
def init_params(key):
    ks = iter(jax.random.split(key, 64))

    def w(shape, scale=0.1):
        return (scale * jax.random.normal(next(ks), shape)).astype(jnp.float32)

    def z(n):
        return jnp.zeros((n,), jnp.float32)

    p = {}
    p["mol_conv1"] = dict(w=w((NFM, 2 * NFM)), a_src=w((2, NFM)), a_dst=w((2, NFM)), b=z(2 * NFM))
    p["mol_conv2"] = dict(w=w((2 * NFM, 4 * NFM)), a_src=w((2, 2 * NFM)), a_dst=w((2, 2 * NFM)), b=z(4 * NFM))
    p["mol_conv3"] = dict(w=w((4 * NFM, 4 * NFM)), a_src=w((1, 4 * NFM)), a_dst=w((1, 4 * NFM)), b=z(4 * NFM))
    p["mol_fc_g1"] = dict(w=w((4 * NFM, 1024)), b=z(1024))
    p["mol_fc_g2"] = dict(w=w((1024, OUT_DIM)), b=z(OUT_DIM))
    p["pro_conv1"] = dict(w=w((NFP, NFP)), b=z(NFP))
    p["pro_conv2"] = dict(w=w((NFP, 4 * NFP)), a_src=w((2, 2 * NFP)), a_dst=w((2, 2 * NFP)), b=z(4 * NFP))
    p["pro_conv3"] = dict(w=w((4 * NFP, 4 * NFP)), a_src=w((1, 4 * NFP)), a_dst=w((1, 4 * NFP)), b=z(4 * NFP))
    p["pro_fc_g1"] = dict(w=w((4 * NFP, 1024)), b=z(1024))
    p["pro_fc_g2"] = dict(w=w((1024, OUT_DIM)), b=z(OUT_DIM))
    p["fc1"] = dict(w=w((2 * OUT_DIM, 1024)), b=z(1024))
    p["fc2"] = dict(w=w((1024, 512)), b=z(512))
    p["out"] = dict(w=w((512, 1)), b=z(1))
    return p


def _head_idx(heads, c, c_pad):
    """Logical feature index -> 128-aligned padded column for a heads*c concat layout."""
    idx = np.concatenate([np.arange(hd * c_pad, hd * c_pad + c) for hd in range(heads)])
    return jnp.asarray(idx, jnp.int32)


def _pad_w(wm, in_idx, in_pad, out_idx, out_pad):
    wp = jnp.zeros((in_pad, out_pad), jnp.float32)
    return wp.at[in_idx[:, None], out_idx[None, :]].set(wm)


def _pad_b(b, out_idx, out_pad):
    return jnp.zeros((1, out_pad), jnp.float32).at[0, out_idx].set(b)


def _pad_att(a_src, a_dst, heads, c, c_pad):
    m = jnp.zeros((heads * c_pad, ATT_COLS), jnp.float32)
    for hd in range(heads):
        m = m.at[hd * c_pad:hd * c_pad + c, 2 * hd].set(a_src[hd])
        m = m.at[hd * c_pad:hd * c_pad + c, 2 * hd + 1].set(a_dst[hd])
    return m


def pad_params(p):
    """Pack all weights/biases into 3 coalesced slabs (bf16 GNN, f32 bias, bf16 FC)."""
    mol_in = _head_idx(1, NFM, MOL_IN_PAD)
    mol1 = _head_idx(2, MOL1_C, MOL1_CP)
    mol2 = _head_idx(2, MOL2_C, MOL2_CP)
    mol3 = _head_idx(1, MOL3_C, MOL3_CP)
    pro_in = _head_idx(1, NFP, PRO_IN_PAD)
    pro1 = _head_idx(1, NFP, PRO1_CP)
    pro2 = _head_idx(2, PRO2_C, PRO2_CP)
    pro3 = _head_idx(1, PRO3_C, PRO3_CP)
    id1024 = jnp.arange(1024, dtype=jnp.int32)
    id512 = jnp.arange(512, dtype=jnp.int32)
    id256 = jnp.arange(2 * OUT_DIM, dtype=jnp.int32)
    id128 = jnp.arange(OUT_DIM, dtype=jnp.int32)
    id1 = jnp.arange(1, dtype=jnp.int32)

    w, b = {}, {}
    c = p["mol_conv1"]
    w["mc1_w"] = _pad_w(c["w"], mol_in, MOL_IN_PAD, mol1, 2 * MOL1_CP)
    w["mc1_att"] = _pad_att(c["a_src"], c["a_dst"], 2, MOL1_C, MOL1_CP)
    b["mc1_b"] = _pad_b(c["b"], mol1, 2 * MOL1_CP)
    c = p["mol_conv2"]
    w["mc2_w"] = _pad_w(c["w"], mol1, 2 * MOL1_CP, mol2, 2 * MOL2_CP)
    w["mc2_att"] = _pad_att(c["a_src"], c["a_dst"], 2, MOL2_C, MOL2_CP)
    b["mc2_b"] = _pad_b(c["b"], mol2, 2 * MOL2_CP)
    c = p["mol_conv3"]
    w["mc3_w"] = _pad_w(c["w"], mol2, 2 * MOL2_CP, mol3, MOL3_CP)
    w["mc3_att"] = _pad_att(c["a_src"], c["a_dst"], 1, MOL3_C, MOL3_CP)
    b["mc3_b"] = _pad_b(c["b"], mol3, MOL3_CP)
    w["mfc1_w"] = _pad_w(p["mol_fc_g1"]["w"], mol3, MOL3_CP, id1024, 1024)
    b["mfc1_b"] = _pad_b(p["mol_fc_g1"]["b"], id1024, 1024)
    w["mfc2_w"] = _pad_w(p["mol_fc_g2"]["w"], id1024, 1024, id128, OUT_DIM)
    b["mfc2_b"] = _pad_b(p["mol_fc_g2"]["b"], id128, OUT_DIM)

    w["pc1_w"] = _pad_w(p["pro_conv1"]["w"], pro_in, PRO_IN_PAD, pro1, PRO1_CP)
    b["pc1_b"] = _pad_b(p["pro_conv1"]["b"], pro1, PRO1_CP)
    c = p["pro_conv2"]
    w["pc2_w"] = _pad_w(c["w"], pro1, PRO1_CP, pro2, 2 * PRO2_CP)
    w["pc2_att"] = _pad_att(c["a_src"], c["a_dst"], 2, PRO2_C, PRO2_CP)
    b["pc2_b"] = _pad_b(c["b"], pro2, 2 * PRO2_CP)
    c = p["pro_conv3"]
    w["pc3_w"] = _pad_w(c["w"], pro2, 2 * PRO2_CP, pro3, PRO3_CP)
    w["pc3_att"] = _pad_att(c["a_src"], c["a_dst"], 1, PRO3_C, PRO3_CP)
    b["pc3_b"] = _pad_b(c["b"], pro3, PRO3_CP)
    w["pfc1_w"] = _pad_w(p["pro_fc_g1"]["w"], pro3, PRO3_CP, id1024, 1024)
    b["pfc1_b"] = _pad_b(p["pro_fc_g1"]["b"], id1024, 1024)
    w["pfc2_w"] = _pad_w(p["pro_fc_g2"]["w"], id1024, 1024, id128, OUT_DIM)
    b["pfc2_b"] = _pad_b(p["pro_fc_g2"]["b"], id128, OUT_DIM)

    w["fc1_w"] = _pad_w(p["fc1"]["w"], id256, 2 * OUT_DIM, id1024, 1024)
    b["fc1_b"] = _pad_b(p["fc1"]["b"], id1024, 1024)
    w["fc2_w"] = _pad_w(p["fc2"]["w"], id1024, 1024, id512, 512)
    b["fc2_b"] = _pad_b(p["fc2"]["b"], id512, 512)
    w["out_w"] = _pad_w(p["out"]["w"], id512, 512, id1, OUT_PAD)
    b["out_b"] = _pad_b(p["out"]["b"], id1, OUT_PAD)

    gnn = jnp.zeros(GNN_SLAB_SHAPE, jnp.float32)
    for name, (r, c0, nr, nc) in GNN_LAYOUT.items():
        assert w[name].shape == (nr, nc), (name, w[name].shape)
        gnn = gnn.at[r:r + nr, c0:c0 + nc].set(w[name])

    fc = jnp.zeros(FC_SLAB_SHAPE, jnp.float32)
    for name, (k, r, c0, nr, nc) in FC_LAYOUT.items():
        assert w[name].shape == (nr, nc), (name, w[name].shape)
        fc = fc.at[k, r:r + nr, c0:c0 + nc].set(w[name])

    bias = jnp.zeros((1, BIAS_SLAB_W), jnp.float32)
    for name, (off, width) in BIAS_LAYOUT.items():
        assert b[name].shape == (1, width), (name, b[name].shape)
        bias = bias.at[:, off:off + width].set(b[name])

    return gnn.astype(jnp.bfloat16), bias, fc.astype(jnp.bfloat16)


# ----------------------------- synthetic graph inputs -----------------------------------
def ring_edges(nodes_per_graph, n_graphs):
    src, dst = [], []
    for g in range(n_graphs):
        off = g * nodes_per_graph
        for i in range(nodes_per_graph):
            j = (i + 1) % nodes_per_graph
            src += [off + i, off + j]
            dst += [off + j, off + i]
    return jnp.array([src, dst], dtype=jnp.int32)


def dense_adj(edge_index, n, edge_weight=None):
    src, dst = edge_index[0], edge_index[1]
    w = jnp.ones(src.shape, jnp.float32) if edge_weight is None else edge_weight
    return jnp.zeros((n, n), jnp.float32).at[dst, src].add(w)


def pool_matrix(batch, n_graphs):
    onehot = (batch[None, :] == jnp.arange(n_graphs)[:, None]).astype(jnp.float32)
    cnt = jnp.sum(onehot, axis=1, keepdims=True)
    return onehot / jnp.maximum(cnt, 1.0)


def pad_nodes_feat(x, n_pad, f_pad):
    return jnp.zeros((n_pad, f_pad), jnp.float32).at[:x.shape[0], :x.shape[1]].set(x)


def pad_adj(adj, n_pad):
    # identity on the padded diagonal keeps the masked softmax well defined for pad nodes
    return jnp.eye(n_pad, dtype=jnp.float32).at[:adj.shape[0], :adj.shape[1]].set(adj)


def pad_pool(pool, b_pad, n_pad):
    return jnp.zeros((b_pad, n_pad), jnp.float32).at[:pool.shape[0], :pool.shape[1]].set(pool)


if __name__ == "__main__":
    key = jax.random.PRNGKey(0)
    k_par, k_mx, k_px, k_w = jax.random.split(key, 4)
    params = init_params(k_par)
    gnn_slab, bias_slab, fc_slab = pad_params(params)

    B = 2
    N_MOL_PER, N_PRO_PER = 8, 10
    n_mol, n_pro = B * N_MOL_PER, B * N_PRO_PER
    n_mol_pad, n_pro_pad, b_pad = _rup(n_mol, SUB), _rup(n_pro, SUB), _rup(B, SUB)

    mol_x = jax.random.normal(k_mx, (n_mol, NFM), jnp.float32)
    pro_x = jax.random.normal(k_px, (n_pro, NFP), jnp.float32)

    mol_ei = ring_edges(N_MOL_PER, B)
    pro_ei = ring_edges(N_PRO_PER, B)
    pro_w = jax.nn.softplus(jax.random.normal(k_w, (pro_ei.shape[1],), jnp.float32))

    mol_adj = jnp.minimum(dense_adj(mol_ei, n_mol) + jnp.eye(n_mol), 1.0)        # GAT mask + self loops
    pro_adj_mask = jnp.minimum(dense_adj(pro_ei, n_pro) + jnp.eye(n_pro), 1.0)   # GAT mask + self loops
    pro_adj_w = dense_adj(pro_ei, n_pro, pro_w) + jnp.eye(n_pro)                 # GCN weighted adj + I

    mol_batch = jnp.repeat(jnp.arange(B, dtype=jnp.int32), N_MOL_PER)
    pro_batch = jnp.repeat(jnp.arange(B, dtype=jnp.int32), N_PRO_PER)

    # pad: nodes -> multiple of 8, features -> 128 lanes, graphs -> 8
    mol_x_p = pad_nodes_feat(mol_x, n_mol_pad, MOL_IN_PAD).astype(jnp.bfloat16)
    pro_x_p = pad_nodes_feat(pro_x, n_pro_pad, PRO_IN_PAD).astype(jnp.bfloat16)
    mol_adj_p = pad_adj(mol_adj, n_mol_pad)
    pro_adj_mask_p = pad_adj(pro_adj_mask, n_pro_pad)
    pro_adj_w_p = pad_adj(pro_adj_w, n_pro_pad)
    mol_pool_p = pad_pool(pool_matrix(mol_batch, B), b_pad, n_mol_pad)
    pro_pool_p = pad_pool(pool_matrix(pro_batch, B), b_pad, n_pro_pad)

    fwd = jax.jit(cpi_gat_forward, static_argnames=("n_graphs",))
    out = fwd(gnn_slab, bias_slab, fc_slab, mol_x_p, mol_adj_p, mol_pool_p,
              pro_x_p, pro_adj_mask_p, pro_adj_w_p, pro_pool_p, n_graphs=B)
    out = jax.block_until_ready(out)
    assert out.shape == (B, 1), out.shape
    assert bool(jnp.all(jnp.isfinite(out))) and bool(jnp.all((out >= 0) & (out <= 1)))
    print("KERNEL_OK")
</pallas_src>

<mosaic_0001>
module attributes {stable_mosaic.version = 11 : i64} {
  func.func @_cpi_gat_kernel(%arg0: memref<16x128xbf16, #tpu.memory_space<vmem>>, %arg1: memref<16x16xf32, #tpu.memory_space<vmem>>, %arg2: memref<8x16xf32, #tpu.memory_space<vmem>>, %arg3: memref<24x128xbf16, #tpu.memory_space<vmem>>, %arg4: memref<24x24xf32, #tpu.memory_space<vmem>>, %arg5: memref<24x24xf32, #tpu.memory_space<vmem>>, %arg6: memref<8x24xf32, #tpu.memory_space<vmem>>, %arg7: memref<1280x640xbf16, #tpu.memory_space<vmem>>, %arg8: memref<1x5760xf32, #tpu.memory_space<vmem>>, %arg9: memref<2x1024x1024xbf16, #tpu.memory_space<any>>, %arg10: memref<8x128xf32, #tpu.memory_space<vmem>>, %arg11: memref<2x1024x1024xbf16, #tpu.memory_space<vmem>>, %arg12: memref<2x!tpu.dma_semaphore, #tpu.memory_space<semaphore_mem>>) attributes {dimension_semantics = [], scalar_prefetch = 0 : i64, scratch_operands = 2 : i64, tpu.core_type = #tpu.core_type<tc>} {
    %c0_i32 = arith.constant 0 : i32
    %c0_i32_0 = arith.constant 0 : i32
    %c0_i32_1 = arith.constant 0 : i32
    %c0_i32_2 = arith.constant 0 : i32
    %c0_i32_3 = arith.constant 0 : i32
    %0 = tpu.memref_slice %arg9[%c0_i32, %c0_i32_2, %c0_i32_3] : memref<2x1024x1024xbf16, #tpu.memory_space<any>> -> memref<1x1024x1024xbf16, #tpu.memory_space<any>>
    %1 = tpu.memref_squeeze %0 : memref<1x1024x1024xbf16, #tpu.memory_space<any>> -> memref<1024x1024xbf16, #tpu.memory_space<any>>
    %c0_i32_4 = arith.constant 0 : i32
    %c0_i32_5 = arith.constant 0 : i32
    %2 = tpu.memref_slice %arg11[%c0_i32_0, %c0_i32_4, %c0_i32_5] : memref<2x1024x1024xbf16, #tpu.memory_space<vmem>> -> memref<1x1024x1024xbf16, #tpu.memory_space<vmem>>
    %3 = tpu.memref_squeeze %2 : memref<1x1024x1024xbf16, #tpu.memory_space<vmem>> -> memref<1024x1024xbf16, #tpu.memory_space<vmem>>
    %4 = tpu.memref_slice %arg12[%c0_i32_1] : memref<2x!tpu.dma_semaphore, #tpu.memory_space<semaphore_mem>> -> memref<1x!tpu.dma_semaphore, #tpu.memory_space<semaphore_mem>>
    %5 = tpu.memref_squeeze %4 : memref<1x!tpu.dma_semaphore, #tpu.memory_space<semaphore_mem>> -> memref<!tpu.dma_semaphore, #tpu.memory_space<semaphore_mem>>
    tpu.enqueue_dma source(%1 : memref<1024x1024xbf16, #tpu.memory_space<any>>) target(%3 : memref<1024x1024xbf16, #tpu.memory_space<vmem>>) target_semaphore(%5 : memref<!tpu.dma_semaphore, #tpu.memory_space<semaphore_mem>>)
    %c1_i32 = arith.constant 1 : i32
    %c1_i32_6 = arith.constant 1 : i32
    %c1_i32_7 = arith.constant 1 : i32
    %c0_i32_8 = arith.constant 0 : i32
    %c0_i32_9 = arith.constant 0 : i32
    %6 = tpu.memref_slice %arg9[%c1_i32, %c0_i32_8, %c0_i32_9] : memref<2x1024x1024xbf16, #tpu.memory_space<any>> -> memref<1x1024x1024xbf16, #tpu.memory_space<any>>
    %7 = tpu.memref_squeeze %6 : memref<1x1024x1024xbf16, #tpu.memory_space<any>> -> memref<1024x1024xbf16, #tpu.memory_space<any>>
    %c0_i32_10 = arith.constant 0 : i32
    %c0_i32_11 = arith.constant 0 : i32
    %8 = tpu.memref_slice %arg11[%c1_i32_6, %c0_i32_10, %c0_i32_11] : memref<2x1024x1024xbf16, #tpu.memory_space<vmem>> -> memref<1x1024x1024xbf16, #tpu.memory_space<vmem>>
    %9 = tpu.memref_squeeze %8 : memref<1x1024x1024xbf16, #tpu.memory_space<vmem>> -> memref<1024x1024xbf16, #tpu.memory_space<vmem>>
    %10 = tpu.memref_slice %arg12[%c1_i32_7] : memref<2x!tpu.dma_semaphore, #tpu.memory_space<semaphore_mem>> -> memref<1x!tpu.dma_semaphore, #tpu.memory_space<semaphore_mem>>
    %11 = tpu.memref_squeeze %10 : memref<1x!tpu.dma_semaphore, #tpu.memory_space<semaphore_mem>> -> memref<!tpu.dma_semaphore, #tpu.memory_space<semaphore_mem>>
    tpu.enqueue_dma source(%7 : memref<1024x1024xbf16, #tpu.memory_space<any>>) target(%9 : memref<1024x1024xbf16, #tpu.memory_space<vmem>>) target_semaphore(%11 : memref<!tpu.dma_semaphore, #tpu.memory_space<semaphore_mem>>)
    %c0 = arith.constant 0 : index
    %c0_12 = arith.constant 0 : index
    %12 = vector.load %arg1[%c0, %c0_12] : memref<16x16xf32, #tpu.memory_space<vmem>>, vector<16x16xf32>
    %cst = arith.constant 0.000000e+00 : f32
    %13 = vector.broadcast %cst : f32 to vector<16x16xf32>
    %14 = arith.cmpf ogt, %12, %13 : vector<16x16xf32>
    %c0_13 = arith.constant 0 : index
    %c0_14 = arith.constant 0 : index
    %15 = vector.load %arg0[%c0_13, %c0_14] : memref<16x128xbf16, #tpu.memory_space<vmem>>, vector<16x128xbf16>
    %c0_15 = arith.constant 0 : index
    %c0_16 = arith.constant 0 : index
    %16 = vector.load %arg7[%c0_15, %c0_16] : memref<1280x640xbf16, #tpu.memory_space<vmem>>, vector<128x256xbf16>
    %c128 = arith.constant 128 : index
    %c512 = arith.constant 512 : index
    %17 = vector.load %arg7[%c128, %c512] : memref<1280x640xbf16, #tpu.memory_space<vmem>>, vector<256x128xbf16>
    %c0_17 = arith.constant 0 : index
    %c0_18 = arith.constant 0 : index
    %18 = vector.load %arg8[%c0_17, %c0_18] : memref<1x5760xf32, #tpu.memory_space<vmem>>, vector<1x256xf32>
    %cst_19 = arith.constant dense<0.000000e+00> : vector<16x256xf32>
    %19 = tpu.matmul %15, %16, %cst_19 {dimension_numbers = #tpu.dot_dimension_numbers<[1], [0], [0], [1], [0, 0, 1, 1], [], []>} : vector<16x128xbf16>, vector<128x256xbf16>, vector<16x256xf32> -> vector<16x256xf32>
    %20 = arith.truncf %19 : vector<16x256xf32> to vector<16x256xbf16>
    %cst_20 = arith.constant dense<0.000000e+00> : vector<16x128xf32>
    %21 = tpu.matmul %20, %17, %cst_20 {dimension_numbers = #tpu.dot_dimension_numbers<[1], [0], [0], [1], [0, 0, 1, 1], [], []>} : vector<16x256xbf16>, vector<256x128xbf16>, vector<16x128xf32> -> vector<16x128xf32>
    %22 = tpu.transpose %21, [1, 0] : vector<16x128xf32> -> vector<128x16xf32>
    %23 = vector.extract_strided_slice %19 {offsets = [0, 0], sizes = [16, 128], strides = [1, 1]} : vector<16x256xf32> to vector<16x128xf32>
    %24 = vector.extract_strided_slice %21 {offsets = [0, 1], sizes = [16, 1], strides = [1, 1]} : vector<16x128xf32> to vector<16x1xf32>
    %25 = vector.extract_strided_slice %22 {offsets = [0, 0], sizes = [1, 16], strides = [1, 1]} : vector<128x16xf32> to vector<1x16xf32>
    %26 = vector.broadcast %24 : vector<16x1xf32> to vector<16x16xf32>
    %27 = vector.broadcast %25 : vector<1x16xf32> to vector<16x16xf32>
    %28 = arith.addf %26, %27 : vector<16x16xf32>
    %cst_21 = arith.constant 0.000000e+00 : f32
    %29 = vector.broadcast %cst_21 : f32 to vector<16x16xf32>
    %30 = arith.cmpf oge, %28, %29 : vector<16x16xf32>
    %cst_22 = arith.constant 2.000000e-01 : f32
    %31 = vector.broadcast %cst_22 : f32 to vector<16x16xf32>
    %32 = arith.mulf %31, %28 : vector<16x16xf32>
    %33 = arith.select %30, %28, %32 : vector<16x16xi1>, vector<16x16xf32>
    %cst_23 = arith.constant -1.000000e+30 : f32
    %34 = vector.broadcast %cst_23 : f32 to vector<16x16xf32>
    %35 = arith.select %14, %33, %34 : vector<16x16xi1>, vector<16x16xf32>
    %cst_24 = arith.constant dense<0xFF800000> : vector<16xf32>
    %36 = vector.multi_reduction <maximumf>, %35, %cst_24 [1] : vector<16x16xf32> to vector<16xf32>
    %37 = vector.shape_cast %36 : vector<16xf32> to vector<16x1xf32>
    %38 = vector.broadcast %37 : vector<16x1xf32> to vector<16x16xf32>
    %39 = arith.subf %35, %38 : vector<16x16xf32>
    %40 = math.exp %39 : vector<16x16xf32>
    %cst_25 = arith.constant dense<0.000000e+00> : vector<16xf32>
    %41 = vector.multi_reduction <add>, %40, %cst_25 [1] : vector<16x16xf32> to vector<16xf32>
    %42 = vector.shape_cast %41 : vector<16xf32> to vector<16x1xf32>
    %43 = vector.broadcast %42 : vector<16x1xf32> to vector<16x16xf32>
    %44 = arith.divf %40, %43 : vector<16x16xf32>
    %cst_26 = arith.constant dense<0.000000e+00> : vector<16x128xf32>
    %45 = tpu.matmul %44, %23, %cst_26 {dimension_numbers = #tpu.dot_dimension_numbers<[1], [0], [0], [1], [0, 0, 1, 1], [], []>} : vector<16x16xf32>, vector<16x128xf32>, vector<16x128xf32> -> vector<16x128xf32>
    %46 = vector.extract_strided_slice %19 {offsets = [0, 128], sizes = [16, 128], strides = [1, 1]} : vector<16x256xf32> to vector<16x128xf32>
    %47 = vector.extract_strided_slice %21 {offsets = [0, 3], sizes = [16, 1], strides = [1, 1]} : vector<16x128xf32> to vector<16x1xf32>
    %48 = vector.extract_strided_slice %22 {offsets = [2, 0], sizes = [1, 16], strides = [1, 1]} : vector<128x16xf32> to vector<1x16xf32>
    %49 = vector.broadcast %47 : vector<16x1xf32> to vector<16x16xf32>
    %50 = vector.broadcast %48 : vector<1x16xf32> to vector<16x16xf32>
    %51 = arith.addf %49, %50 : vector<16x16xf32>
    %cst_27 = arith.constant 0.000000e+00 : f32
    %52 = vector.broadcast %cst_27 : f32 to vector<16x16xf32>
    %53 = arith.cmpf oge, %51, %52 : vector<16x16xf32>
    %cst_28 = arith.constant 2.000000e-01 : f32
    %54 = vector.broadcast %cst_28 : f32 to vector<16x16xf32>
    %55 = arith.mulf %54, %51 : vector<16x16xf32>
    %56 = arith.select %53, %51, %55 : vector<16x16xi1>, vector<16x16xf32>
    %cst_29 = arith.constant -1.000000e+30 : f32
    %57 = vector.broadcast %cst_29 : f32 to vector<16x16xf32>
    %58 = arith.select %14, %56, %57 : vector<16x16xi1>, vector<16x16xf32>
    %cst_30 = arith.constant dense<0xFF800000> : vector<16xf32>
    %59 = vector.multi_reduction <maximumf>, %58, %cst_30 [1] : vector<16x16xf32> to vector<16xf32>
    %60 = vector.shape_cast %59 : vector<16xf32> to vector<16x1xf32>
    %61 = vector.broadcast %60 : vector<16x1xf32> to vector<16x16xf32>
    %62 = arith.subf %58, %61 : vector<16x16xf32>
    %63 = math.exp %62 : vector<16x16xf32>
    %cst_31 = arith.constant dense<0.000000e+00> : vector<16xf32>
    %64 = vector.multi_reduction <add>, %63, %cst_31 [1] : vector<16x16xf32> to vector<16xf32>
    %65 = vector.shape_cast %64 : vector<16xf32> to vector<16x1xf32>
    %66 = vector.broadcast %65 : vector<16x1xf32> to vector<16x16xf32>
    %67 = arith.divf %63, %66 : vector<16x16xf32>
    %cst_32 = arith.constant dense<0.000000e+00> : vector<16x128xf32>
    %68 = tpu.matmul %67, %46, %cst_32 {dimension_numbers = #tpu.dot_dimension_numbers<[1], [0], [0], [1], [0, 0, 1, 1], [], []>} : vector<16x16xf32>, vector<16x128xf32>, vector<16x128xf32> -> vector<16x128xf32>
    %69 = tpu.concatenate %45, %68 in 1 : vector<16x128xf32>, vector<16x128xf32> -> vector<16x256xf32>
    %70 = vector.broadcast %18 : vector<1x256xf32> to vector<16x256xf32>
    %71 = arith.addf %69, %70 : vector<16x256xf32>
    %cst_33 = arith.constant 0.000000e+00 : f32
    %72 = vector.broadcast %cst_33 : f32 to vector<16x256xf32>
    %73 = arith.maximumf %71, %72 : vector<16x256xf32>
    %c640 = arith.constant 640 : index
    %c0_34 = arith.constant 0 : index
    %74 = vector.load %arg7[%c640, %c0_34] : memref<1280x640xbf16, #tpu.memory_space<vmem>>, vector<256x512xbf16>
    %c128_35 = arith.constant 128 : index
    %c384 = arith.constant 384 : index
    %75 = vector.load %arg7[%c128_35, %c384] : memref<1280x640xbf16, #tpu.memory_space<vmem>>, vector<512x128xbf16>
    %c0_36 = arith.constant 0 : index
    %c256 = arith.constant 256 : index
    %76 = vector.load %arg8[%c0_36, %c256] : memref<1x5760xf32, #tpu.memory_space<vmem>>, vector<1x512xf32>
    %77 = arith.truncf %73 : vector<16x256xf32> to vector<16x256xbf16>
    %cst_37 = arith.constant dense<0.000000e+00> : vector<16x512xf32>
    %78 = tpu.matmul %77, %74, %cst_37 {dimension_numbers = #tpu.dot_dimension_numbers<[1], [0], [0], [1], [0, 0, 1, 1], [], []>} : vector<16x256xbf16>, vector<256x512xbf16>, vector<16x512xf32> -> vector<16x512xf32>
    %79 = arith.truncf %78 : vector<16x512xf32> to vector<16x512xbf16>
    %cst_38 = arith.constant dense<0.000000e+00> : vector<16x128xf32>
    %80 = tpu.matmul %79, %75, %cst_38 {dimension_numbers = #tpu.dot_dimension_numbers<[1], [0], [0], [1], [0, 0, 1, 1], [], []>} : vector<16x512xbf16>, vector<512x128xbf16>, vector<16x128xf32> -> vector<16x128xf32>
    %81 = tpu.transpose %80, [1, 0] : vector<16x128xf32> -> vector<128x16xf32>
    %82 = vector.extract_strided_slice %78 {offsets = [0, 0], sizes = [16, 256], strides = [1, 1]} : vector<16x512xf32> to vector<16x256xf32>
    %83 = vector.extract_strided_slice %80 {offsets = [0, 1], sizes = [16, 1], strides = [1, 1]} : vector<16x128xf32> to vector<16x1xf32>
    %84 = vector.extract_strided_slice %81 {offsets = [0, 0], sizes = [1, 16], strides = [1, 1]} : vector<128x16xf32> to vector<1x16xf32>
    %85 = vector.broadcast %83 : vector<16x1xf32> to vector<16x16xf32>
    %86 = vector.broadcast %84 : vector<1x16xf32> to vector<16x16xf32>
    %87 = arith.addf %85, %86 : vector<16x16xf32>
    %cst_39 = arith.constant 0.000000e+00 : f32
    %88 = vector.broadcast %cst_39 : f32 to vector<16x16xf32>
    %89 = arith.cmpf oge, %87, %88 : vector<16x16xf32>
    %cst_40 = arith.constant 2.000000e-01 : f32
    %90 = vector.broadcast %cst_40 : f32 to vector<16x16xf32>
    %91 = arith.mulf %90, %87 : vector<16x16xf32>
    %92 = arith.select %89, %87, %91 : vector<16x16xi1>, vector<16x16xf32>
    %cst_41 = arith.constant -1.000000e+30 : f32
    %93 = vector.broadcast %cst_41 : f32 to vector<16x16xf32>
    %94 = arith.select %14, %92, %93 : vector<16x16xi1>, vector<16x16xf32>
    %cst_42 = arith.constant dense<0xFF800000> : vector<16xf32>
    %95 = vector.multi_reduction <maximumf>, %94, %cst_42 [1] : vector<16x16xf32> to vector<16xf32>
    %96 = vector.shape_cast %95 : vector<16xf32> to vector<16x1xf32>
    %97 = vector.broadcast %96 : vector<16x1xf32> to vector<16x16xf32>
    %98 = arith.subf %94, %97 : vector<16x16xf32>
    %99 = math.exp %98 : vector<16x16xf32>
    %cst_43 = arith.constant dense<0.000000e+00> : vector<16xf32>
    %100 = vector.multi_reduction <add>, %99, %cst_43 [1] : vector<16x16xf32> to vector<16xf32>
    %101 = vector.shape_cast %100 : vector<16xf32> to vector<16x1xf32>
    %102 = vector.broadcast %101 : vector<16x1xf32> to vector<16x16xf32>
    %103 = arith.divf %99, %102 : vector<16x16xf32>
    %cst_44 = arith.constant dense<0.000000e+00> : vector<16x256xf32>
    %104 = tpu.matmul %103, %82, %cst_44 {dimension_numbers = #tpu.dot_dimension_numbers<[1], [0], [0], [1], [0, 0, 1, 1], [], []>} : vector<16x16xf32>, vector<16x256xf32>, vector<16x256xf32> -> vector<16x256xf32>
    %105 = vector.extract_strided_slice %78 {offsets = [0, 256], sizes = [16, 256], strides = [1, 1]} : vector<16x512xf32> to vector<16x256xf32>
    %106 = vector.extract_strided_slice %80 {offsets = [0, 3], sizes = [16, 1], strides = [1, 1]} : vector<16x128xf32> to vector<16x1xf32>
    %107 = vector.extract_strided_slice %81 {offsets = [2, 0], sizes = [1, 16], strides = [1, 1]} : vector<128x16xf32> to vector<1x16xf32>
    %108 = vector.broadcast %106 : vector<16x1xf32> to vector<16x16xf32>
    %109 = vector.broadcast %107 : vector<1x16xf32> to vector<16x16xf32>
    %110 = arith.addf %108, %109 : vector<16x16xf32>
    %cst_45 = arith.constant 0.000000e+00 : f32
    %111 = vector.broadcast %cst_45 : f32 to vector<16x16xf32>
    %112 = arith.cmpf oge, %110, %111 : vector<16x16xf32>
    %cst_46 = arith.constant 2.000000e-01 : f32
    %113 = vector.broadcast %cst_46 : f32 to vector<16x16xf32>
    %114 = arith.mulf %113, %110 : vector<16x16xf32>
    %115 = arith.select %112, %110, %114 : vector<16x16xi1>, vector<16x16xf32>
    %cst_47 = arith.constant -1.000000e+30 : f32
    %116 = vector.broadcast %cst_47 : f32 to vector<16x16xf32>
    %117 = arith.select %14, %115, %116 : vector<16x16xi1>, vector<16x16xf32>
    %cst_48 = arith.constant dense<0xFF800000> : vector<16xf32>
    %118 = vector.multi_reduction <maximumf>, %117, %cst_48 [1] : vector<16x16xf32> to vector<16xf32>
    %119 = vector.shape_cast %118 : vector<16xf32> to vector<16x1xf32>
    %120 = vector.broadcast %119 : vector<16x1xf32> to vector<16x16xf32>
    %121 = arith.subf %117, %120 : vector<16x16xf32>
    %122 = math.exp %121 : vector<16x16xf32>
    %cst_49 = arith.constant dense<0.000000e+00> : vector<16xf32>
    %123 = vector.multi_reduction <add>, %122, %cst_49 [1] : vector<16x16xf32> to vector<16xf32>
    %124 = vector.shape_cast %123 : vector<16xf32> to vector<16x1xf32>
    %125 = vector.broadcast %124 : vector<16x1xf32> to vector<16x16xf32>
    %126 = arith.divf %122, %125 : vector<16x16xf32>
    %cst_50 = arith.constant dense<0.000000e+00> : vector<16x256xf32>
    %127 = tpu.matmul %126, %105, %cst_50 {dimension_numbers = #tpu.dot_dimension_numbers<[1], [0], [0], [1], [0, 0, 1, 1], [], []>} : vector<16x16xf32>, vector<16x256xf32>, vector<16x256xf32> -> vector<16x256xf32>
    %128 = tpu.concatenate %104, %127 in 1 : vector<16x256xf32>, vector<16x256xf32> -> vector<16x512xf32>
    %129 = vector.broadcast %76 : vector<1x512xf32> to vector<16x512xf32>
    %130 = arith.addf %128, %129 : vector<16x512xf32>
    %cst_51 = arith.constant 0.000000e+00 : f32
    %131 = vector.broadcast %cst_51 : f32 to vector<16x512xf32>
    %132 = arith.maximumf %130, %131 : vector<16x512xf32>
    %c128_52 = arith.constant 128 : index
    %c0_53 = arith.constant 0 : index
    %133 = vector.load %arg7[%c128_52, %c0_53] : memref<1280x640xbf16, #tpu.memory_space<vmem>>, vector<512x384xbf16>
    %c896 = arith.constant 896 : index
    %c0_54 = arith.constant 0 : index
    %134 = vector.load %arg7[%c896, %c0_54] : memref<1280x640xbf16, #tpu.memory_space<vmem>>, vector<384x128xbf16>
    %c0_55 = arith.constant 0 : index
    %c768 = arith.constant 768 : index
    %135 = vector.load %arg8[%c0_55, %c768] : memref<1x5760xf32, #tpu.memory_space<vmem>>, vector<1x384xf32>
    %136 = arith.truncf %132 : vector<16x512xf32> to vector<16x512xbf16>
    %cst_56 = arith.constant dense<0.000000e+00> : vector<16x384xf32>
    %137 = tpu.matmul %136, %133, %cst_56 {dimension_numbers = #tpu.dot_dimension_numbers<[1], [0], [0], [1], [0, 0, 1, 1], [], []>} : vector<16x512xbf16>, vector<512x384xbf16>, vector<16x384xf32> -> vector<16x384xf32>
    %138 = arith.truncf %137 : vector<16x384xf32> to vector<16x384xbf16>
    %cst_57 = arith.constant dense<0.000000e+00> : vector<16x128xf32>
    %139 = tpu.matmul %138, %134, %cst_57 {dimension_numbers = #tpu.dot_dimension_numbers<[1], [0], [0], [1], [0, 0, 1, 1], [], []>} : vector<16x384xbf16>, vector<384x128xbf16>, vector<16x128xf32> -> vector<16x128xf32>
    %140 = tpu.transpose %139, [1, 0] : vector<16x128xf32> -> vector<128x16xf32>
    %141 = vector.extract_strided_slice %139 {offsets = [0, 1], sizes = [16, 1], strides = [1, 1]} : vector<16x128xf32> to vector<16x1xf32>
    %142 = vector.extract_strided_slice %140 {offsets = [0, 0], sizes = [1, 16], strides = [1, 1]} : vector<128x16xf32> to vector<1x16xf32>
    %143 = vector.broadcast %141 : vector<16x1xf32> to vector<16x16xf32>
    %144 = vector.broadcast %142 : vector<1x16xf32> to vector<16x16xf32>
    %145 = arith.addf %143, %144 : vector<16x16xf32>
    %cst_58 = arith.constant 0.000000e+00 : f32
    %146 = vector.broadcast %cst_58 : f32 to vector<16x16xf32>
    %147 = arith.cmpf oge, %145, %146 : vector<16x16xf32>
    %cst_59 = arith.constant 2.000000e-01 : f32
    %148 = vector.broadcast %cst_59 : f32 to vector<16x16xf32>
    %149 = arith.mulf %148, %145 : vector<16x16xf32>
    %150 = arith.select %147, %145, %149 : vector<16x16xi1>, vector<16x16xf32>
    %cst_60 = arith.constant -1.000000e+30 : f32
    %151 = vector.broadcast %cst_60 : f32 to vector<16x16xf32>
    %152 = arith.select %14, %150, %151 : vector<16x16xi1>, vector<16x16xf32>
    %cst_61 = arith.constant dense<0xFF800000> : vector<16xf32>
    %153 = vector.multi_reduction <maximumf>, %152, %cst_61 [1] : vector<16x16xf32> to vector<16xf32>
    %154 = vector.shape_cast %153 : vector<16xf32> to vector<16x1xf32>
    %155 = vector.broadcast %154 : vector<16x1xf32> to vector<16x16xf32>
    %156 = arith.subf %152, %155 : vector<16x16xf32>
    %157 = math.exp %156 : vector<16x16xf32>
    %cst_62 = arith.constant dense<0.000000e+00> : vector<16xf32>
    %158 = vector.multi_reduction <add>, %157, %cst_62 [1] : vector<16x16xf32> to vector<16xf32>
    %159 = vector.shape_cast %158 : vector<16xf32> to vector<16x1xf32>
    %160 = vector.broadcast %159 : vector<16x1xf32> to vector<16x16xf32>
    %161 = arith.divf %157, %160 : vector<16x16xf32>
    %cst_63 = arith.constant dense<0.000000e+00> : vector<16x384xf32>
    %162 = tpu.matmul %161, %137, %cst_63 {dimension_numbers = #tpu.dot_dimension_numbers<[1], [0], [0], [1], [0, 0, 1, 1], [], []>} : vector<16x16xf32>, vector<16x384xf32>, vector<16x384xf32> -> vector<16x384xf32>
    %163 = vector.broadcast %135 : vector<1x384xf32> to vector<16x384xf32>
    %164 = arith.addf %162, %163 : vector<16x384xf32>
    %c0_64 = arith.constant 0 : index
    %c0_65 = arith.constant 0 : index
    %165 = vector.load %arg4[%c0_64, %c0_65] : memref<24x24xf32, #tpu.memory_space<vmem>>, vector<24x24xf32>
    %cst_66 = arith.constant 0.000000e+00 : f32
    %166 = vector.broadcast %cst_66 : f32 to vector<24x24xf32>
    %167 = arith.cmpf ogt, %165, %166 : vector<24x24xf32>
    %c0_67 = arith.constant 0 : index
    %c0_68 = arith.constant 0 : index
    %168 = vector.load %arg3[%c0_67, %c0_68] : memref<24x128xbf16, #tpu.memory_space<vmem>>, vector<24x128xbf16>
    %c0_69 = arith.constant 0 : index
    %c256_70 = arith.constant 256 : index
    %169 = vector.load %arg7[%c0_69, %c256_70] : memref<1280x640xbf16, #tpu.memory_space<vmem>>, vector<128x128xbf16>
    %c0_71 = arith.constant 0 : index
    %c1152 = arith.constant 1152 : index
    %170 = vector.load %arg8[%c0_71, %c1152] : memref<1x5760xf32, #tpu.memory_space<vmem>>, vector<1x128xf32>
    %c0_72 = arith.constant 0 : index
    %c0_73 = arith.constant 0 : index
    %171 = vector.load %arg5[%c0_72, %c0_73] : memref<24x24xf32, #tpu.memory_space<vmem>>, vector<24x24xf32>
    %cst_74 = arith.constant dense<0.000000e+00> : vector<24x128xf32>
    %172 = tpu.matmul %168, %169, %cst_74 {dimension_numbers = #tpu.dot_dimension_numbers<[1], [0], [0], [1], [0, 0, 1, 1], [], []>} : vector<24x128xbf16>, vector<128x128xbf16>, vector<24x128xf32> -> vector<24x128xf32>
    %cst_75 = arith.constant dense<0.000000e+00> : vector<24xf32>
    %173 = vector.multi_reduction <add>, %171, %cst_75 [1] : vector<24x24xf32> to vector<24xf32>
    %174 = vector.shape_cast %173 : vector<24xf32> to vector<24x1xf32>
    %cst_76 = arith.constant 0.000000e+00 : f32
    %175 = vector.broadcast %cst_76 : f32 to vector<24x1xf32>
    %176 = arith.cmpf ogt, %174, %175 : vector<24x1xf32>
    %177 = math.rsqrt %174 : vector<24x1xf32>
    %cst_77 = arith.constant 0.000000e+00 : f32
    %178 = vector.broadcast %cst_77 : f32 to vector<24x1xf32>
    %179 = arith.select %176, %177, %178 : vector<24x1xi1>, vector<24x1xf32>
    %180 = vector.broadcast %179 : vector<24x1xf32> to vector<24x128xf32>
    %181 = arith.mulf %180, %172 : vector<24x128xf32>
    %cst_78 = arith.constant dense<0.000000e+00> : vector<24x128xf32>
    %182 = tpu.matmul %171, %181, %cst_78 {dimension_numbers = #tpu.dot_dimension_numbers<[1], [0], [0], [1], [0, 0, 1, 1], [], []>} : vector<24x24xf32>, vector<24x128xf32>, vector<24x128xf32> -> vector<24x128xf32>
    %183 = vector.broadcast %179 : vector<24x1xf32> to vector<24x128xf32>
    %184 = arith.mulf %183, %182 : vector<24x128xf32>
    %185 = vector.broadcast %170 : vector<1x128xf32> to vector<24x128xf32>
    %186 = arith.addf %184, %185 : vector<24x128xf32>
    %cst_79 = arith.constant 0.000000e+00 : f32
    %187 = vector.broadcast %cst_79 : f32 to vector<24x128xf32>
    %188 = arith.maximumf %186, %187 : vector<24x128xf32>
    %c0_80 = arith.constant 0 : index
    %c384_81 = arith.constant 384 : index
    %189 = vector.load %arg7[%c0_80, %c384_81] : memref<1280x640xbf16, #tpu.memory_space<vmem>>, vector<128x256xbf16>
    %c384_82 = arith.constant 384 : index
    %c512_83 = arith.constant 512 : index
    %190 = vector.load %arg7[%c384_82, %c512_83] : memref<1280x640xbf16, #tpu.memory_space<vmem>>, vector<256x128xbf16>
    %c0_84 = arith.constant 0 : index
    %c1280 = arith.constant 1280 : index
    %191 = vector.load %arg8[%c0_84, %c1280] : memref<1x5760xf32, #tpu.memory_space<vmem>>, vector<1x256xf32>
    %192 = arith.truncf %188 : vector<24x128xf32> to vector<24x128xbf16>
    %cst_85 = arith.constant dense<0.000000e+00> : vector<24x256xf32>
    %193 = tpu.matmul %192, %189, %cst_85 {dimension_numbers = #tpu.dot_dimension_numbers<[1], [0], [0], [1], [0, 0, 1, 1], [], []>} : vector<24x128xbf16>, vector<128x256xbf16>, vector<24x256xf32> -> vector<24x256xf32>
    %194 = arith.truncf %193 : vector<24x256xf32> to vector<24x256xbf16>
    %cst_86 = arith.constant dense<0.000000e+00> : vector<24x128xf32>
    %195 = tpu.matmul %194, %190, %cst_86 {dimension_numbers = #tpu.dot_dimension_numbers<[1], [0], [0], [1], [0, 0, 1, 1], [], []>} : vector<24x256xbf16>, vector<256x128xbf16>, vector<24x128xf32> -> vector<24x128xf32>
    %196 = tpu.transpose %195, [1, 0] : vector<24x128xf32> -> vector<128x24xf32>
    %197 = vector.extract_strided_slice %193 {offsets = [0, 0], sizes = [24, 128], strides = [1, 1]} : vector<24x256xf32> to vector<24x128xf32>
    %198 = vector.extract_strided_slice %195 {offsets = [0, 1], sizes = [24, 1], strides = [1, 1]} : vector<24x128xf32> to vector<24x1xf32>
    %199 = vector.extract_strided_slice %196 {offsets = [0, 0], sizes = [1, 24], strides = [1, 1]} : vector<128x24xf32> to vector<1x24xf32>
    %200 = vector.broadcast %198 : vector<24x1xf32> to vector<24x24xf32>
    %201 = vector.broadcast %199 : vector<1x24xf32> to vector<24x24xf32>
    %202 = arith.addf %200, %201 : vector<24x24xf32>
    %cst_87 = arith.constant 0.000000e+00 : f32
    %203 = vector.broadcast %cst_87 : f32 to vector<24x24xf32>
    %204 = arith.cmpf oge, %202, %203 : vector<24x24xf32>
    %cst_88 = arith.constant 2.000000e-01 : f32
    %205 = vector.broadcast %cst_88 : f32 to vector<24x24xf32>
    %206 = arith.mulf %205, %202 : vector<24x24xf32>
    %207 = arith.select %204, %202, %206 : vector<24x24xi1>, vector<24x24xf32>
    %cst_89 = arith.constant -1.000000e+30 : f32
    %208 = vector.broadcast %cst_89 : f32 to vector<24x24xf32>
    %209 = arith.select %167, %207, %208 : vector<24x24xi1>, vector<24x24xf32>
    %cst_90 = arith.constant dense<0xFF800000> : vector<24xf32>
    %210 = vector.multi_reduction <maximumf>, %209, %cst_90 [1] : vector<24x24xf32> to vector<24xf32>
    %211 = vector.shape_cast %210 : vector<24xf32> to vector<24x1xf32>
    %212 = vector.broadcast %211 : vector<24x1xf32> to vector<24x24xf32>
    %213 = arith.subf %209, %212 : vector<24x24xf32>
    %214 = math.exp %213 : vector<24x24xf32>
    %cst_91 = arith.constant dense<0.000000e+00> : vector<24xf32>
    %215 = vector.multi_reduction <add>, %214, %cst_91 [1] : vector<24x24xf32> to vector<24xf32>
    %216 = vector.shape_cast %215 : vector<24xf32> to vector<24x1xf32>
    %217 = vector.broadcast %216 : vector<24x1xf32> to vector<24x24xf32>
    %218 = arith.divf %214, %217 : vector<24x24xf32>
    %cst_92 = arith.constant dense<0.000000e+00> : vector<24x128xf32>
    %219 = tpu.matmul %218, %197, %cst_92 {dimension_numbers = #tpu.dot_dimension_numbers<[1], [0], [0], [1], [0, 0, 1, 1], [], []>} : vector<24x24xf32>, vector<24x128xf32>, vector<24x128xf32> -> vector<24x128xf32>
    %220 = vector.extract_strided_slice %193 {offsets = [0, 128], sizes = [24, 128], strides = [1, 1]} : vector<24x256xf32> to vector<24x128xf32>
    %221 = vector.extract_strided_slice %195 {offsets = [0, 3], sizes = [24, 1], strides = [1, 1]} : vector<24x128xf32> to vector<24x1xf32>
    %222 = vector.extract_strided_slice %196 {offsets = [2, 0], sizes = [1, 24], strides = [1, 1]} : vector<128x24xf32> to vector<1x24xf32>
    %223 = vector.broadcast %221 : vector<24x1xf32> to vector<24x24xf32>
    %224 = vector.broadcast %222 : vector<1x24xf32> to vector<24x24xf32>
    %225 = arith.addf %223, %224 : vector<24x24xf32>
    %cst_93 = arith.constant 0.000000e+00 : f32
    %226 = vector.broadcast %cst_93 : f32 to vector<24x24xf32>
    %227 = arith.cmpf oge, %225, %226 : vector<24x24xf32>
    %cst_94 = arith.constant 2.000000e-01 : f32
    %228 = vector.broadcast %cst_94 : f32 to vector<24x24xf32>
    %229 = arith.mulf %228, %225 : vector<24x24xf32>
    %230 = arith.select %227, %225, %229 : vector<24x24xi1>, vector<24x24xf32>
    %cst_95 = arith.constant -1.000000e+30 : f32
    %231 = vector.broadcast %cst_95 : f32 to vector<24x24xf32>
    %232 = arith.select %167, %230, %231 : vector<24x24xi1>, vector<24x24xf32>
    %cst_96 = arith.constant dense<0xFF800000> : vector<24xf32>
    %233 = vector.multi_reduction <maximumf>, %232, %cst_96 [1] : vector<24x24xf32> to vector<24xf32>
    %234 = vector.shape_cast %233 : vector<24xf32> to vector<24x1xf32>
    %235 = vector.broadcast %234 : vector<24x1xf32> to vector<24x24xf32>
    %236 = arith.subf %232, %235 : vector<24x24xf32>
    %237 = math.exp %236 : vector<24x24xf32>
    %cst_97 = arith.constant dense<0.000000e+00> : vector<24xf32>
    %238 = vector.multi_reduction <add>, %237, %cst_97 [1] : vector<24x24xf32> to vector<24xf32>
    %239 = vector.shape_cast %238 : vector<24xf32> to vector<24x1xf32>
    %240 = vector.broadcast %239 : vector<24x1xf32> to vector<24x24xf32>
    %241 = arith.divf %237, %240 : vector<24x24xf32>
    %cst_98 = arith.constant dense<0.000000e+00> : vector<24x128xf32>
    %242 = tpu.matmul %241, %220, %cst_98 {dimension_numbers = #tpu.dot_dimension_numbers<[1], [0], [0], [1], [0, 0, 1, 1], [], []>} : vector<24x24xf32>, vector<24x128xf32>, vector<24x128xf32> -> vector<24x128xf32>
    %243 = tpu.concatenate %219, %242 in 1 : vector<24x128xf32>, vector<24x128xf32> -> vector<24x256xf32>
    %244 = vector.broadcast %191 : vector<1x256xf32> to vector<24x256xf32>
    %245 = arith.addf %243, %244 : vector<24x256xf32>
    %cst_99 = arith.constant 0.000000e+00 : f32
    %246 = vector.broadcast %cst_99 : f32 to vector<24x256xf32>
    %247 = arith.maximumf %245, %246 : vector<24x256xf32>
    %c896_100 = arith.constant 896 : index
    %c128_101 = arith.constant 128 : index
    %248 = vector.load %arg7[%c896_100, %c128_101] : memref<1280x640xbf16, #tpu.memory_space<vmem>>, vector<256x256xbf16>
    %c640_102 = arith.constant 640 : index
    %c512_103 = arith.constant 512 : index
    %249 = vector.load %arg7[%c640_102, %c512_103] : memref<1280x640xbf16, #tpu.memory_space<vmem>>, vector<256x128xbf16>
    %c0_104 = arith.constant 0 : index
    %c1536 = arith.constant 1536 : index
    %250 = vector.load %arg8[%c0_104, %c1536] : memref<1x5760xf32, #tpu.memory_space<vmem>>, vector<1x256xf32>
    %251 = arith.truncf %247 : vector<24x256xf32> to vector<24x256xbf16>
    %cst_105 = arith.constant dense<0.000000e+00> : vector<24x256xf32>
    %252 = tpu.matmul %251, %248, %cst_105 {dimension_numbers = #tpu.dot_dimension_numbers<[1], [0], [0], [1], [0, 0, 1, 1], [], []>} : vector<24x256xbf16>, vector<256x256xbf16>, vector<24x256xf32> -> vector<24x256xf32>
    %253 = arith.truncf %252 : vector<24x256xf32> to vector<24x256xbf16>
    %cst_106 = arith.constant dense<0.000000e+00> : vector<24x128xf32>
    %254 = tpu.matmul %253, %249, %cst_106 {dimension_numbers = #tpu.dot_dimension_numbers<[1], [0], [0], [1], [0, 0, 1, 1], [], []>} : vector<24x256xbf16>, vector<256x128xbf16>, vector<24x128xf32> -> vector<24x128xf32>
    %255 = tpu.transpose %254, [1, 0] : vector<24x128xf32> -> vector<128x24xf32>
    %256 = vector.extract_strided_slice %254 {offsets = [0, 1], sizes = [24, 1], strides = [1, 1]} : vector<24x128xf32> to vector<24x1xf32>
    %257 = vector.extract_strided_slice %255 {offsets = [0, 0], sizes = [1, 24], strides = [1, 1]} : vector<128x24xf32> to vector<1x24xf32>
    %258 = vector.broadcast %256 : vector<24x1xf32> to vector<24x24xf32>
    %259 = vector.broadcast %257 : vector<1x24xf32> to vector<24x24xf32>
    %260 = arith.addf %258, %259 : vector<24x24xf32>
    %cst_107 = arith.constant 0.000000e+00 : f32
    %261 = vector.broadcast %cst_107 : f32 to vector<24x24xf32>
    %262 = arith.cmpf oge, %260, %261 : vector<24x24xf32>
    %cst_108 = arith.constant 2.000000e-01 : f32
    %263 = vector.broadcast %cst_108 : f32 to vector<24x24xf32>
    %264 = arith.mulf %263, %260 : vector<24x24xf32>
    %265 = arith.select %262, %260, %264 : vector<24x24xi1>, vector<24x24xf32>
    %cst_109 = arith.constant -1.000000e+30 : f32
    %266 = vector.broadcast %cst_109 : f32 to vector<24x24xf32>
    %267 = arith.select %167, %265, %266 : vector<24x24xi1>, vector<24x24xf32>
    %cst_110 = arith.constant dense<0xFF800000> : vector<24xf32>
    %268 = vector.multi_reduction <maximumf>, %267, %cst_110 [1] : vector<24x24xf32> to vector<24xf32>
    %269 = vector.shape_cast %268 : vector<24xf32> to vector<24x1xf32>
    %270 = vector.broadcast %269 : vector<24x1xf32> to vector<24x24xf32>
    %271 = arith.subf %267, %270 : vector<24x24xf32>
    %272 = math.exp %271 : vector<24x24xf32>
    %cst_111 = arith.constant dense<0.000000e+00> : vector<24xf32>
    %273 = vector.multi_reduction <add>, %272, %cst_111 [1] : vector<24x24xf32> to vector<24xf32>
    %274 = vector.shape_cast %273 : vector<24xf32> to vector<24x1xf32>
    %275 = vector.broadcast %274 : vector<24x1xf32> to vector<24x24xf32>
    %276 = arith.divf %272, %275 : vector<24x24xf32>
    %cst_112 = arith.constant dense<0.000000e+00> : vector<24x256xf32>
    %277 = tpu.matmul %276, %252, %cst_112 {dimension_numbers = #tpu.dot_dimension_numbers<[1], [0], [0], [1], [0, 0, 1, 1], [], []>} : vector<24x24xf32>, vector<24x256xf32>, vector<24x256xf32> -> vector<24x256xf32>
    %278 = vector.broadcast %250 : vector<1x256xf32> to vector<24x256xf32>
    %279 = arith.addf %277, %278 : vector<24x256xf32>
    %cst_113 = arith.constant 0.000000e+00 : f32
    %280 = vector.broadcast %cst_113 : f32 to vector<24x256xf32>
    %281 = arith.maximumf %279, %280 : vector<24x256xf32>
    %c0_114 = arith.constant 0 : index
    %c0_115 = arith.constant 0 : index
    %282 = vector.load %arg2[%c0_114, %c0_115] : memref<8x16xf32, #tpu.memory_space<vmem>>, vector<8x16xf32>
    %cst_116 = arith.constant dense<0.000000e+00> : vector<8x384xf32>
    %283 = tpu.matmul %282, %164, %cst_116 {dimension_numbers = #tpu.dot_dimension_numbers<[1], [0], [0], [1], [0, 0, 1, 1], [], []>} : vector<8x16xf32>, vector<16x384xf32>, vector<8x384xf32> -> vector<8x384xf32>
    %c0_117 = arith.constant 0 : index
    %c0_118 = arith.constant 0 : index
    %284 = vector.load %arg6[%c0_117, %c0_118] : memref<8x24xf32, #tpu.memory_space<vmem>>, vector<8x24xf32>
    %cst_119 = arith.constant dense<0.000000e+00> : vector<8x256xf32>
    %285 = tpu.matmul %284, %281, %cst_119 {dimension_numbers = #tpu.dot_dimension_numbers<[1], [0], [0], [1], [0, 0, 1, 1], [], []>} : vector<8x24xf32>, vector<24x256xf32>, vector<8x256xf32> -> vector<8x256xf32>
    %c0_i32_120 = arith.constant 0 : i32
    %c0_i32_121 = arith.constant 0 : i32
    %c0_i32_122 = arith.constant 0 : i32
    %c0_i32_123 = arith.constant 0 : i32
    %c0_i32_124 = arith.constant 0 : i32
    %286 = tpu.memref_slice %arg9[%c0_i32_120, %c0_i32_123, %c0_i32_124] : memref<2x1024x1024xbf16, #tpu.memory_space<any>> -> memref<1x1024x1024xbf16, #tpu.memory_space<any>>
    %287 = tpu.memref_squeeze %286 : memref<1x1024x1024xbf16, #tpu.memory_space<any>> -> memref<1024x1024xbf16, #tpu.memory_space<any>>
    %c0_i32_125 = arith.constant 0 : i32
    %c0_i32_126 = arith.constant 0 : i32
    %288 = tpu.memref_slice %arg11[%c0_i32_121, %c0_i32_125, %c0_i32_126] : memref<2x1024x1024xbf16, #tpu.memory_space<vmem>> -> memref<1x1024x1024xbf16, #tpu.memory_space<vmem>>
    %289 = tpu.memref_squeeze %288 : memref<1x1024x1024xbf16, #tpu.memory_space<vmem>> -> memref<1024x1024xbf16, #tpu.memory_space<vmem>>
    %290 = tpu.memref_slice %arg12[%c0_i32_122] : memref<2x!tpu.dma_semaphore, #tpu.memory_space<semaphore_mem>> -> memref<1x!tpu.dma_semaphore, #tpu.memory_space<semaphore_mem>>
    %291 = tpu.memref_squeeze %290 : memref<1x!tpu.dma_semaphore, #tpu.memory_space<semaphore_mem>> -> memref<!tpu.dma_semaphore, #tpu.memory_space<semaphore_mem>>
    tpu.wait_dma2 semaphore(%291 : memref<!tpu.dma_semaphore, #tpu.memory_space<semaphore_mem>>) src(%287 : memref<1024x1024xbf16, #tpu.memory_space<any>>) dst(%289 : memref<1024x1024xbf16, #tpu.memory_space<vmem>>)
    %c0_127 = arith.constant 0 : index
    %c0_128 = arith.constant 0 : index
    %c0_129 = arith.constant 0 : index
    %292 = vector.load %arg11[%c0_127, %c0_128, %c0_129] : memref<2x1024x1024xbf16, #tpu.memory_space<vmem>>, vector<1x384x1024xbf16>
    %293 = vector.shape_cast %292 : vector<1x384x1024xbf16> to vector<384x1024xbf16>
    %c0_130 = arith.constant 0 : index
    %c1792 = arith.constant 1792 : index
    %294 = vector.load %arg8[%c0_130, %c1792] : memref<1x5760xf32, #tpu.memory_space<vmem>>, vector<1x1024xf32>
    %295 = arith.truncf %283 : vector<8x384xf32> to vector<8x384xbf16>
    %cst_131 = arith.constant dense<0.000000e+00> : vector<8x1024xf32>
    %296 = tpu.matmul %295, %293, %cst_131 {dimension_numbers = #tpu.dot_dimension_numbers<[1], [0], [0], [1], [0, 0, 1, 1], [], []>} : vector<8x384xbf16>, vector<384x1024xbf16>, vector<8x1024xf32> -> vector<8x1024xf32>
    %297 = vector.broadcast %294 : vector<1x1024xf32> to vector<8x1024xf32>
    %298 = arith.addf %296, %297 : vector<8x1024xf32>
    %cst_132 = arith.constant 0.000000e+00 : f32
    %299 = vector.broadcast %cst_132 : f32 to vector<8x1024xf32>
    %300 = arith.maximumf %298, %299 : vector<8x1024xf32>
    %c0_133 = arith.constant 0 : index
    %c384_134 = arith.constant 384 : index
    %c0_135 = arith.constant 0 : index
    %301 = vector.load %arg11[%c0_133, %c384_134, %c0_135] : memref<2x1024x1024xbf16, #tpu.memory_space<vmem>>, vector<1x256x1024xbf16>
    %302 = vector.shape_cast %301 : vector<1x256x1024xbf16> to vector<256x1024xbf16>
    %c0_136 = arith.constant 0 : index
    %c2944 = arith.constant 2944 : index
    %303 = vector.load %arg8[%c0_136, %c2944] : memref<1x5760xf32, #tpu.memory_space<vmem>>, vector<1x1024xf32>
    %304 = arith.truncf %285 : vector<8x256xf32> to vector<8x256xbf16>
    %cst_137 = arith.constant dense<0.000000e+00> : vector<8x1024xf32>
    %305 = tpu.matmul %304, %302, %cst_137 {dimension_numbers = #tpu.dot_dimension_numbers<[1], [0], [0], [1], [0, 0, 1, 1], [], []>} : vector<8x256xbf16>, vector<256x1024xbf16>, vector<8x1024xf32> -> vector<8x1024xf32>
    %306 = vector.broadcast %303 : vector<1x1024xf32> to vector<8x1024xf32>
    %307 = arith.addf %305, %306 : vector<8x1024xf32>
    %cst_138 = arith.constant 0.000000e+00 : f32
    %308 = vector.broadcast %cst_138 : f32 to vector<8x1024xf32>
    %309 = arith.maximumf %307, %308 : vector<8x1024xf32>
    %c1_i32_139 = arith.constant 1 : i32
    %c1_i32_140 = arith.constant 1 : i32
    %c1_i32_141 = arith.constant 1 : i32
    %c0_i32_142 = arith.constant 0 : i32
    %c0_i32_143 = arith.constant 0 : i32
    %310 = tpu.memref_slice %arg9[%c1_i32_139, %c0_i32_142, %c0_i32_143] : memref<2x1024x1024xbf16, #tpu.memory_space<any>> -> memref<1x1024x1024xbf16, #tpu.memory_space<any>>
    %311 = tpu.memref_squeeze %310 : memref<1x1024x1024xbf16, #tpu.memory_space<any>> -> memref<1024x1024xbf16, #tpu.memory_space<any>>
    %c0_i32_144 = arith.constant 0 : i32
    %c0_i32_145 = arith.constant 0 : i32
    %312 = tpu.memref_slice %arg11[%c1_i32_140, %c0_i32_144, %c0_i32_145] : memref<2x1024x1024xbf16, #tpu.memory_space<vmem>> -> memref<1x1024x1024xbf16, #tpu.memory_space<vmem>>
    %313 = tpu.memref_squeeze %312 : memref<1x1024x1024xbf16, #tpu.memory_space<vmem>> -> memref<1024x1024xbf16, #tpu.memory_space<vmem>>
    %314 = tpu.memref_slice %arg12[%c1_i32_141] : memref<2x!tpu.dma_semaphore, #tpu.memory_space<semaphore_mem>> -> memref<1x!tpu.dma_semaphore, #tpu.memory_space<semaphore_mem>>
    %315 = tpu.memref_squeeze %314 : memref<1x!tpu.dma_semaphore, #tpu.memory_space<semaphore_mem>> -> memref<!tpu.dma_semaphore, #tpu.memory_space<semaphore_mem>>
    tpu.wait_dma2 semaphore(%315 : memref<!tpu.dma_semaphore, #tpu.memory_space<semaphore_mem>>) src(%311 : memref<1024x1024xbf16, #tpu.memory_space<any>>) dst(%313 : memref<1024x1024xbf16, #tpu.memory_space<vmem>>)
    %c1 = arith.constant 1 : index
    %c0_146 = arith.constant 0 : index
    %c512_147 = arith.constant 512 : index
    %316 = vector.load %arg11[%c1, %c0_146, %c512_147] : memref<2x1024x1024xbf16, #tpu.memory_space<vmem>>, vector<1x1024x128xbf16>
    %317 = vector.shape_cast %316 : vector<1x1024x128xbf16> to vector<1024x128xbf16>
    %c0_148 = arith.constant 0 : index
    %c2816 = arith.constant 2816 : index
    %318 = vector.load %arg8[%c0_148, %c2816] : memref<1x5760xf32, #tpu.memory_space<vmem>>, vector<1x128xf32>
    %319 = arith.truncf %300 : vector<8x1024xf32> to vector<8x1024xbf16>
    %cst_149 = arith.constant dense<0.000000e+00> : vector<8x128xf32>
    %320 = tpu.matmul %319, %317, %cst_149 {dimension_numbers = #tpu.dot_dimension_numbers<[1], [0], [0], [1], [0, 0, 1, 1], [], []>} : vector<8x1024xbf16>, vector<1024x128xbf16>, vector<8x128xf32> -> vector<8x128xf32>
    %321 = vector.broadcast %318 : vector<1x128xf32> to vector<8x128xf32>
    %322 = arith.addf %320, %321 : vector<8x128xf32>
    %c1_150 = arith.constant 1 : index
    %c0_151 = arith.constant 0 : index
    %c640_152 = arith.constant 640 : index
    %323 = vector.load %arg11[%c1_150, %c0_151, %c640_152] : memref<2x1024x1024xbf16, #tpu.memory_space<vmem>>, vector<1x1024x128xbf16>
    %324 = vector.shape_cast %323 : vector<1x1024x128xbf16> to vector<1024x128xbf16>
    %c0_153 = arith.constant 0 : index
    %c3968 = arith.constant 3968 : index
    %325 = vector.load %arg8[%c0_153, %c3968] : memref<1x5760xf32, #tpu.memory_space<vmem>>, vector<1x128xf32>
    %326 = arith.truncf %309 : vector<8x1024xf32> to vector<8x1024xbf16>
    %cst_154 = arith.constant dense<0.000000e+00> : vector<8x128xf32>
    %327 = tpu.matmul %326, %324, %cst_154 {dimension_numbers = #tpu.dot_dimension_numbers<[1], [0], [0], [1], [0, 0, 1, 1], [], []>} : vector<8x1024xbf16>, vector<1024x128xbf16>, vector<8x128xf32> -> vector<8x128xf32>
    %328 = vector.broadcast %325 : vector<1x128xf32> to vector<8x128xf32>
    %329 = arith.addf %327, %328 : vector<8x128xf32>
    %330 = tpu.concatenate %322, %329 in 1 : vector<8x128xf32>, vector<8x128xf32> -> vector<8x256xf32>
    %c0_155 = arith.constant 0 : index
    %c640_156 = arith.constant 640 : index
    %c0_157 = arith.constant 0 : index
    %331 = vector.load %arg11[%c0_155, %c640_156, %c0_157] : memref<2x1024x1024xbf16, #tpu.memory_space<vmem>>, vector<1x256x1024xbf16>
    %332 = vector.shape_cast %331 : vector<1x256x1024xbf16> to vector<256x1024xbf16>
    %c0_158 = arith.constant 0 : index
    %c4096 = arith.constant 4096 : index
    %333 = vector.load %arg8[%c0_158, %c4096] : memref<1x5760xf32, #tpu.memory_space<vmem>>, vector<1x1024xf32>
    %334 = arith.truncf %330 : vector<8x256xf32> to vector<8x256xbf16>
    %cst_159 = arith.constant dense<0.000000e+00> : vector<8x1024xf32>
    %335 = tpu.matmul %334, %332, %cst_159 {dimension_numbers = #tpu.dot_dimension_numbers<[1], [0], [0], [1], [0, 0, 1, 1], [], []>} : vector<8x256xbf16>, vector<256x1024xbf16>, vector<8x1024xf32> -> vector<8x1024xf32>
    %336 = vector.broadcast %333 : vector<1x1024xf32> to vector<8x1024xf32>
    %337 = arith.addf %335, %336 : vector<8x1024xf32>
    %cst_160 = arith.constant 0.000000e+00 : f32
    %338 = vector.broadcast %cst_160 : f32 to vector<8x1024xf32>
    %339 = arith.maximumf %337, %338 : vector<8x1024xf32>
    %c1_161 = arith.constant 1 : index
    %c0_162 = arith.constant 0 : index
    %c0_163 = arith.constant 0 : index
    %340 = vector.load %arg11[%c1_161, %c0_162, %c0_163] : memref<2x1024x1024xbf16, #tpu.memory_space<vmem>>, vector<1x1024x512xbf16>
    %341 = vector.shape_cast %340 : vector<1x1024x512xbf16> to vector<1024x512xbf16>
    %c0_164 = arith.constant 0 : index
    %c5120 = arith.constant 5120 : index
    %342 = vector.load %arg8[%c0_164, %c5120] : memref<1x5760xf32, #tpu.memory_space<vmem>>, vector<1x512xf32>
    %343 = arith.truncf %339 : vector<8x1024xf32> to vector<8x1024xbf16>
    %cst_165 = arith.constant dense<0.000000e+00> : vector<8x512xf32>
    %344 = tpu.matmul %343, %341, %cst_165 {dimension_numbers = #tpu.dot_dimension_numbers<[1], [0], [0], [1], [0, 0, 1, 1], [], []>} : vector<8x1024xbf16>, vector<1024x512xbf16>, vector<8x512xf32> -> vector<8x512xf32>
    %345 = vector.broadcast %342 : vector<1x512xf32> to vector<8x512xf32>
    %346 = arith.addf %344, %345 : vector<8x512xf32>
    %cst_166 = arith.constant 0.000000e+00 : f32
    %347 = vector.broadcast %cst_166 : f32 to vector<8x512xf32>
    %348 = arith.maximumf %346, %347 : vector<8x512xf32>
    %c1_167 = arith.constant 1 : index
    %c0_168 = arith.constant 0 : index
    %c768_169 = arith.constant 768 : index
    %349 = vector.load %arg11[%c1_167, %c0_168, %c768_169] : memref<2x1024x1024xbf16, #tpu.memory_space<vmem>>, vector<1x512x128xbf16>
    %350 = vector.shape_cast %349 : vector<1x512x128xbf16> to vector<512x128xbf16>
    %c0_170 = arith.constant 0 : index
    %c5632 = arith.constant 5632 : index
    %351 = vector.load %arg8[%c0_170, %c5632] : memref<1x5760xf32, #tpu.memory_space<vmem>>, vector<1x128xf32>
    %352 = arith.truncf %348 : vector<8x512xf32> to vector<8x512xbf16>
    %cst_171 = arith.constant dense<0.000000e+00> : vector<8x128xf32>
    %353 = tpu.matmul %352, %350, %cst_171 {dimension_numbers = #tpu.dot_dimension_numbers<[1], [0], [0], [1], [0, 0, 1, 1], [], []>} : vector<8x512xbf16>, vector<512x128xbf16>, vector<8x128xf32> -> vector<8x128xf32>
    %354 = vector.broadcast %351 : vector<1x128xf32> to vector<8x128xf32>
    %355 = arith.addf %353, %354 : vector<8x128xf32>
    %cst_172 = arith.constant 0.000000e+00 : f32
    %356 = vector.broadcast %cst_172 : f32 to vector<8x128xf32>
    %357 = arith.subf %356, %355 : vector<8x128xf32>
    %358 = math.exp %357 : vector<8x128xf32>
    %cst_173 = arith.constant 1.000000e+00 : f32
    %359 = vector.broadcast %cst_173 : f32 to vector<8x128xf32>
    %360 = arith.addf %359, %358 : vector<8x128xf32>
    %cst_174 = arith.constant 1.000000e+00 : f32
    %361 = vector.broadcast %cst_174 : f32 to vector<8x128xf32>
    %362 = arith.divf %361, %360 : vector<8x128xf32>
    %c0_175 = arith.constant 0 : index
    %c0_176 = arith.constant 0 : index
    %363 = vector.load %arg10[%c0_175, %c0_176] : memref<8x128xf32, #tpu.memory_space<vmem>>, vector<8x128xf32>
    tpu.vector_store %arg10[%c0_175, %c0_176], %362 {strides = array<i32>} : memref<8x128xf32, #tpu.memory_space<vmem>>, vector<8x128xf32>,
    return
  }
}

</mosaic_0001>

<llo_original>
// kernel: cpi_gat_forward.1
$region0: #{cpi_gat_forward.1}
  #allocation0 [shape = 'u32[]', space=smem, size = 0x4, offset = 0x4, fixed_abs, tag = 'smem constant byte address 0x4 - core index']
  #allocation1 [shape = 'u32[144,128]{1,0:T(1,128)}', space=vmem, size = 0x12000, scoped, tag = 'internal scratch']
  #allocation2 [shape = 'bf16[2,1024,1024]{2,1,0:T(16,128)(2,1)}', space=vmem, size = 0x400000, scoped, tag = 'scratch operand']
  #allocation3 [shape = 's32[2]{0}', space=sflag, size = 0x8, scoped, tag = 'scratch operand']
  #allocation18 [shape = 's32[]', space=sflag, size = 0x4, offset = 0, fixed_abs, tag = 'sflag constant byte address 0x0 - dummy sync flag']
  #allocation20 [shape = 's32[]', space=sflag, size = 0x4, offset = 0, fixed_abs, tag = 'sflag constant byte address 0x0 - dummy sync flag']
  %s0 = inlined_call_operand.hbm [shape: bf16[16,128], index: 0, kind: input, shape index: {}]
  %s1 = inlined_call_operand.hbm [shape: f32[16,16], index: 1, kind: input, shape index: {}]
  %s2 = inlined_call_operand.hbm [shape: f32[8,16], index: 2, kind: input, shape index: {}]
  %s3 = inlined_call_operand.hbm [shape: bf16[24,128], index: 3, kind: input, shape index: {}]
  %s4 = inlined_call_operand.hbm [shape: f32[24,24], index: 4, kind: input, shape index: {}]
  %s5 = inlined_call_operand.hbm [shape: f32[24,24], index: 5, kind: input, shape index: {}]
  %s6 = inlined_call_operand.hbm [shape: f32[8,24], index: 6, kind: input, shape index: {}]
  %s7 = inlined_call_operand.hbm [shape: bf16[1280,640], index: 7, kind: input, shape index: {}]
  %s8 = inlined_call_operand.hbm [shape: f32[1,5760], index: 8, kind: input, shape index: {}]
  %s9 = inlined_call_operand.hbm [shape: bf16[2,1024,1024], index: 9, kind: input, shape index: {}]
  %s10 = inlined_call_operand.vmem [shape: f32[8,128], index: 10, kind: output, shape index: {}]
  %s11 = sld [smem:[#allocation0]]
  $region82: #{cpi_gat_forward.1} parent=0
    _
  %s13 = ssub.s32 1, %s11
  %s14 = scalar_select 0, %s13, %s11
  $region1: #{cpi_gat_forward.1} parent=0
    #allocation4 [shape = 'u8[4096]{0}', space=vmem, size = 0x1000, scoped, tag = 'input window, operand 0, single buffered']
    #allocation5 [shape = 's32[1]{0}', space=sflag, size = 0x4, scoped, tag = 'scoped memory for cpi_gat_forward.1']
    #allocation6 [shape = 'u8[8192]{0}', space=vmem, size = 0x2000, scoped, tag = 'input window, operand 1, single buffered']
    #allocation7 [shape = 's32[1]{0}', space=sflag, size = 0x4, scoped, tag = 'scoped memory for cpi_gat_forward.1']
    #allocation8 [shape = 'u8[4096]{0}', space=vmem, size = 0x1000, scoped, tag = 'input window, operand 2, single buffered']
    #allocation9 [shape = 'u8[6144]{0}', space=vmem, size = 0x1800, scoped, tag = 'input window, operand 3, single buffered']
    #allocation10 [shape = 's32[1]{0}', space=sflag, size = 0x4, scoped, tag = 'scoped memory for cpi_gat_forward.1']
    #allocation11 [shape = 'u8[12288]{0}', space=vmem, size = 0x3000, scoped, tag = 'input window, operand 4, single buffered']
    #allocation12 [shape = 'u8[12288]{0}', space=vmem, size = 0x3000, scoped, tag = 'input window, operand 5, single buffered']
    #allocation13 [shape = 's32[1]{0}', space=sflag, size = 0x4, scoped, tag = 'scoped memory for cpi_gat_forward.1']
    #allocation14 [shape = 'u8[4096]{0}', space=vmem, size = 0x1000, scoped, tag = 'input window, operand 6, single buffered']
    #allocation15 [shape = 'u8[1638400]{0}', space=vmem, size = 0x190000, scoped, tag = 'input window, operand 7, single buffered']
    #allocation16 [shape = 's32[1]{0}', space=sflag, size = 0x4, scoped, tag = 'scoped memory for cpi_gat_forward.1']
    #allocation17 [shape = 'u8[23040]{0}', space=vmem, size = 0x5c00, scoped, tag = 'input window, operand 8, single buffered']
    #allocation19 [shape = 'u32[9]{0}', space=smem, size = 0x24, scoped, tag = 'DMA stride descriptor']
    #allocation21 [shape = 'u32[9]{0}', space=smem, size = 0x24, scoped, tag = 'DMA stride descriptor']
    %15 = vsyncpa [#allocation5], 0
    %16 = vsyncpa [#allocation7], 0
    %17 = vsyncpa [#allocation10], 0
    %18 = vsyncpa [#allocation13], 0
    %19 = vsyncpa [#allocation16], 0
    // Predicated region
    $region2: #{cpi_gat_forward.1} parent=1 // pred_check
      _
    $region3: #{cpi_gat_forward.1} parent=1 // pred_check_branch
      %21 = sbr.rel (0) target = $region5
    $region4: #{cpi_gat_forward.1} parent=1 // pred_region
      %s23 = ssub.s32 128, 128
      %24 = vsyncadd [#allocation5], %s23
      %s25 = sshll.u32 [#allocation4], 4
      %s26 = int_to_ptr.vmem [resolvable:$true] %s25
      %31 = dma.hbm_to_vmem [thread:$0]  %s0, 128, %s26, [#allocation5], 64, 64, 4
    $region5: #{cpi_gat_forward.1} parent=1 // pred_fallthru
      _
    // Predicated region
    $region6: #{cpi_gat_forward.1} parent=1 // pred_check
      _
    $region7: #{cpi_gat_forward.1} parent=1 // pred_check_branch
      %33 = sbr.rel (0) target = $region9
    $region8: #{cpi_gat_forward.1} parent=1 // pred_region
      %s35 = ssub.s32 256, 256
      %36 = vsyncadd [#allocation7], %s35
      %s37 = sshll.u32 [#allocation6], 4
      %s38 = int_to_ptr.vmem [resolvable:$true] %s37
      %43 = dma.hbm_to_vmem [thread:$0]  %s1, 256, %s38, [#allocation7], 128, 128, 8
    $region9: #{cpi_gat_forward.1} parent=1 // pred_fallthru
      _
    // Predicated region
    $region10: #{cpi_gat_forward.1} parent=1 // pred_check
      _
    $region11: #{cpi_gat_forward.1} parent=1 // pred_check_branch
      %45 = sbr.rel (0) target = $region13
    $region12: #{cpi_gat_forward.1} parent=1 // pred_region
      %s47 = ssub.s32 128, 128
      %48 = vsyncadd [#allocation7], %s47
      %s50 = sshll.u32 [#allocation8], 4
      %s51 = int_to_ptr.vmem [resolvable:$true] %s50
      %53 = dma.hbm_to_vmem [thread:$0]  %s2, 128, %s51, [#allocation7]
    $region13: #{cpi_gat_forward.1} parent=1 // pred_fallthru
      _
    // Predicated region
    $region14: #{cpi_gat_forward.1} parent=1 // pred_check
      _
    $region15: #{cpi_gat_forward.1} parent=1 // pred_check_branch
      %55 = sbr.rel (0) target = $region17
    $region16: #{cpi_gat_forward.1} parent=1 // pred_region
      %s57 = ssub.s32 192, 192
      %58 = vsyncadd [#allocation10], %s57
      %s59 = sshll.u32 [#allocation9], 4
      %s60 = int_to_ptr.vmem [resolvable:$true] %s59
      %65 = dma.hbm_to_vmem [thread:$0]  %s3, 192, %s60, [#allocation10], 64, 64, 4
    $region17: #{cpi_gat_forward.1} parent=1 // pred_fallthru
      _
    // Predicated region
    $region18: #{cpi_gat_forward.1} parent=1 // pred_check
      _
    $region19: #{cpi_gat_forward.1} parent=1 // pred_check_branch
      %67 = sbr.rel (0) target = $region21
    $region20: #{cpi_gat_forward.1} parent=1 // pred_region
      %s69 = ssub.s32 384, 384
      %70 = vsyncadd [#allocation10], %s69
      %s71 = sshll.u32 [#allocation11], 4
      %s72 = int_to_ptr.vmem [resolvable:$true] %s71
      %77 = dma.hbm_to_vmem [thread:$0]  %s4, 384, %s72, [#allocation10], 128, 128, 8
    $region21: #{cpi_gat_forward.1} parent=1 // pred_fallthru
      _
    // Predicated region
    $region22: #{cpi_gat_forward.1} parent=1 // pred_check
      _
    $region23: #{cpi_gat_forward.1} parent=1 // pred_check_branch
      %79 = sbr.rel (0) target = $region25
    $region24: #{cpi_gat_forward.1} parent=1 // pred_region
      %s81 = ssub.s32 384, 384
      %82 = vsyncadd [#allocation13], %s81
      %s83 = sshll.u32 [#allocation12], 4
      %s84 = int_to_ptr.vmem [resolvable:$true] %s83
      %89 = dma.hbm_to_vmem [thread:$0]  %s5, 384, %s84, [#allocation13], 128, 128, 8
    $region25: #{cpi_gat_forward.1} parent=1 // pred_fallthru
      _
    // Predicated region
    $region26: #{cpi_gat_forward.1} parent=1 // pred_check
      _
    $region27: #{cpi_gat_forward.1} parent=1 // pred_check_branch
      %91 = sbr.rel (0) target = $region29
    $region28: #{cpi_gat_forward.1} parent=1 // pred_region
      %s93 = ssub.s32 128, 128
      %94 = vsyncadd [#allocation13], %s93
      %s96 = sshll.u32 [#allocation14], 4
      %s97 = int_to_ptr.vmem [resolvable:$true] %s96
      %99 = dma.hbm_to_vmem [thread:$0]  %s6, 128, %s97, [#allocation13]
    $region29: #{cpi_gat_forward.1} parent=1 // pred_fallthru
      _
    // Predicated region
    $region30: #{cpi_gat_forward.1} parent=1 // pred_check
      _
    $region31: #{cpi_gat_forward.1} parent=1 // pred_check_branch
      %101 = sbr.rel (0) target = $region33
    $region32: #{cpi_gat_forward.1} parent=1 // pred_region
      %s103 = ssub.s32 51200, 51200
      %104 = vsyncadd [#allocation16], %s103
      %s105 = sshll.u32 [#allocation15], 4
      %s106 = int_to_ptr.vmem [resolvable:$true] %s105
      %111 = dma.hbm_to_vmem [thread:$0]  %s7, 51200, %s106, [#allocation16], 320, 320, 20
    $region33: #{cpi_gat_forward.1} parent=1 // pred_fallthru
      _
    // Predicated region
    $region34: #{cpi_gat_forward.1} parent=1 // pred_check
      _
    $region35: #{cpi_gat_forward.1} parent=1 // pred_check_branch
      %113 = sbr.rel (0) target = $region37
    $region36: #{cpi_gat_forward.1} parent=1 // pred_region
      %s115 = ssub.s32 720, 720
      %116 = vsyncadd [#allocation16], %s115
      %s118 = sshll.u32 [#allocation17], 4
      %s119 = int_to_ptr.vmem [resolvable:$true] %s118
      %121 = dma.hbm_to_vmem [thread:$0]  %s8, 720, %s119, [#allocation16]
    $region37: #{cpi_gat_forward.1} parent=1 // pred_fallthru
      _
    // Predicated region
    $region38: #{cpi_gat_forward.1} parent=1 // pred_check
      _
    $region39: #{cpi_gat_forward.1} parent=1 // pred_check_branch
      %123 = sbr.rel (0) target = $region41
    $region40: #{cpi_gat_forward.1} parent=1 // pred_region
      %124 = dma.done [#allocation5], 128
    $region41: #{cpi_gat_forward.1} parent=1 // pred_fallthru
      _
    // Predicated region
    $region42: #{cpi_gat_forward.1} parent=1 // pred_check
      _
    $region43: #{cpi_gat_forward.1} parent=1 // pred_check_branch
      %126 = sbr.rel (0) target = $region45
    $region44: #{cpi_gat_forward.1} parent=1 // pred_region
      %127 = dma.done [#allocation7], 256
    $region45: #{cpi_gat_forward.1} parent=1 // pred_fallthru
      _
    // Predicated region
    $region46: #{cpi_gat_forward.1} parent=1 // pred_check
      _
    $region47: #{cpi_gat_forward.1} parent=1 // pred_check_branch
      %129 = sbr.rel (0) target = $region49
    $region48: #{cpi_gat_forward.1} parent=1 // pred_region
      %130 = dma.done [#allocation7], 128
    $region49: #{cpi_gat_forward.1} parent=1 // pred_fallthru
      _
    // Predicated region
    $region50: #{cpi_gat_forward.1} parent=1 // pred_check
      _
    $region51: #{cpi_gat_forward.1} parent=1 // pred_check_branch
      %132 = sbr.rel (0) target = $region53
    $region52: #{cpi_gat_forward.1} parent=1 // pred_region
      %133 = dma.done [#allocation10], 192
    $region53: #{cpi_gat_forward.1} parent=1 // pred_fallthru
      _
    // Predicated region
    $region54: #{cpi_gat_forward.1} parent=1 // pred_check
      _
    $region55: #{cpi_gat_forward.1} parent=1 // pred_check_branch
      %135 = sbr.rel (0) target = $region57
    $region56: #{cpi_gat_forward.1} parent=1 // pred_region
      %136 = dma.done [#allocation10], 384
    $region57: #{cpi_gat_forward.1} parent=1 // pred_fallthru
      _
    // Predicated region
    $region58: #{cpi_gat_forward.1} parent=1 // pred_check
      _
    $region59: #{cpi_gat_forward.1} parent=1 // pred_check_branch
      %138 = sbr.rel (0) target = $region61
    $region60: #{cpi_gat_forward.1} parent=1 // pred_region
      %139 = dma.done [#allocation13], 384
    $region61: #{cpi_gat_forward.1} parent=1 // pred_fallthru
      _
    // Predicated region
    $region62: #{cpi_gat_forward.1} parent=1 // pred_check
      _
    $region63: #{cpi_gat_forward.1} parent=1 // pred_check_branch
      %141 = sbr.rel (0) target = $region65
    $region64: #{cpi_gat_forward.1} parent=1 // pred_region
      %142 = dma.done [#allocation13], 128
    $region65: #{cpi_gat_forward.1} parent=1 // pred_fallthru
      _
    // Predicated region
    $region66: #{cpi_gat_forward.1} parent=1 // pred_check
      _
    $region67: #{cpi_gat_forward.1} parent=1 // pred_check_branch
      %144 = sbr.rel (0) target = $region69
    $region68: #{cpi_gat_forward.1} parent=1 // pred_region
      %145 = dma.done [#allocation16], 51200
    $region69: #{cpi_gat_forward.1} parent=1 // pred_fallthru
      _
    // Predicated region
    $region70: #{cpi_gat_forward.1} parent=1 // pred_check
      _
    $region71: #{cpi_gat_forward.1} parent=1 // pred_check_branch
      %147 = sbr.rel (0) target = $region73
    $region72: #{cpi_gat_forward.1} parent=1 // pred_region
      %148 = dma.done [#allocation16], 720
    $region73: #{cpi_gat_forward.1} parent=1 // pred_fallthru
      _
    %s151 = sshll.u32 1, 14
    %s152 = sxor.u32 4294967295, %s151
    %s154 = sld [smem:[#allocation0]]
    %s155 = sadd.s32 2, %s154
    %s157 = sshll.u32 7, 26
    %s158 = sxor.u32 4294967295, %s157
    %s159 = sand.u32 0, %s158
    %s160 = sshll.u32 %s155, 26
    %s161 = sor.u32 %s159, %s160
    %s162 = sshll.u32 [#allocation2], 4
    %s163 = int_to_ptr.vmem [resolvable:$true] %s162
    %166 = sst [smem:[#allocation19]] 1024
    %s167 = scalar_lea.smem [#allocation19], 1
    %168 = sst [smem:[%s167]] 1024
    %s169 = scalar_lea.smem [#allocation19], 2
    %170 = sst [smem:[%s169]] 8
    %s171 = scalar_lea.smem [#allocation19], 3
    %172 = sst [smem:[%s171]] 64
    %s173 = scalar_lea.smem [#allocation19], 4
    %174 = sst [smem:[%s173]] 128
    %s175 = scalar_lea.smem [#allocation19], 5
    %176 = sst [smem:[%s175]] 2
    %s177 = scalar_lea.smem [#allocation19], 6
    %178 = sst [smem:[%s177]] 512
    %s179 = scalar_lea.smem [#allocation19], 7
    %180 = sst [smem:[%s179]] 64
    %s181 = scalar_lea.smem [#allocation19], 8
    %182 = sst [smem:[%s181]] 4
    %184 = dma.general %s9, 65536, %s163, [#allocation3], [#allocation18], [#allocation19], %s161, 0
    %s185 = scalar_lea.hbm %s9, 65536
    %s186 = scalar_lea.vmem [#allocation2], 4096
    %s187 = scalar_lea.sflag [#allocation3], 1
    %s189 = sshll.u32 1, 14
    %s190 = sxor.u32 4294967295, %s189
    %s192 = sadd.s32 2, %s154
    %s194 = sshll.u32 7, 26
    %s195 = sxor.u32 4294967295, %s194
    %s196 = sand.u32 0, %s195
    %s197 = sshll.u32 %s192, 26
    %s198 = sor.u32 %s196, %s197
    %s199 = sshll.u32 %s186, 4
    %s200 = int_to_ptr.vmem [resolvable:$true] %s199
    %203 = sst [smem:[#allocation21]] 1024
    %s204 = scalar_lea.smem [#allocation21], 1
    %205 = sst [smem:[%s204]] 1024
    %s206 = scalar_lea.smem [#allocation21], 2
    %207 = sst [smem:[%s206]] 8
    %s208 = scalar_lea.smem [#allocation21], 3
    %209 = sst [smem:[%s208]] 64
    %s210 = scalar_lea.smem [#allocation21], 4
    %211 = sst [smem:[%s210]] 128
    %s212 = scalar_lea.smem [#allocation21], 5
    %213 = sst [smem:[%s212]] 2
    %s214 = scalar_lea.smem [#allocation21], 6
    %215 = sst [smem:[%s214]] 512
    %s216 = scalar_lea.smem [#allocation21], 7
    %217 = sst [smem:[%s216]] 64
    %s218 = scalar_lea.smem [#allocation21], 8
    %219 = sst [smem:[%s218]] 4
    %221 = dma.general %s185, 65536, %s200, %s187, [#allocation20], [#allocation21], %s198, 0
    %v222 = vld [vmem:[#allocation6] sm:$0xff]
    %v223 = vld [vmem:[#allocation6 + $0x8] sm:$0xff]
    %vm224 = vcmp.gt.f32.partialorder %v222, 0.0
    %vm225 = vcmp.gt.f32.partialorder %v223, 0.0
    %v226 = vld [vmem:[#allocation4] sm:$0xf]
    %v227 = vld [vmem:[#allocation4 + $0x4] sm:$0xf]
    %v228 = vld [vmem:[#allocation15] sm:$0xff]
    %v229 = vld [vmem:[#allocation15 + $0x14] sm:$0xff]
    %v230 = vld [vmem:[#allocation15 + $0x28] sm:$0xff]
    %v231 = vld [vmem:[#allocation15 + $0x3c] sm:$0xff]
    %v232 = vld [vmem:[#allocation15 + $0x50] sm:$0xff]
    %v233 = vld [vmem:[#allocation15 + $0x64] sm:$0xff]
    %v234 = vld [vmem:[#allocation15 + $0x78] sm:$0xff]
    %v235 = vld [vmem:[#allocation15 + $0x8c] sm:$0xff]
    %v236 = vld [vmem:[#allocation15 + $0xa0] sm:$0xff]
    %v237 = vld [vmem:[#allocation15 + $0xb4] sm:$0xff]
    %v238 = vld [vmem:[#allocation15 + $0xc8] sm:$0xff]
    %v239 = vld [vmem:[#allocation15 + $0xdc] sm:$0xff]
    %v240 = vld [vmem:[#allocation15 + $0xf0] sm:$0xff]
    %v241 = vld [vmem:[#allocation15 + $0x104] sm:$0xff]
    %v242 = vld [vmem:[#allocation15 + $0x118] sm:$0xff]
    %v243 = vld [vmem:[#allocation15 + $0x12c] sm:$0xff]
    %v244 = vld [vmem:[#allocation15 + $0x150] sm:$0xf]
    %v245 = vld [vmem:[#allocation15 + $0x164] sm:$0xf]
    %v246 = vld [vmem:[#allocation15 + $0x178] sm:$0xf]
    %v247 = vld [vmem:[#allocation15 + $0x18c] sm:$0xf]
    %v248 = vld [vmem:[#allocation15 + $0x1a0] sm:$0xf]
    %v249 = vld [vmem:[#allocation15 + $0x1b4] sm:$0xf]
    %v250 = vld [vmem:[#allocation15 + $0x1c8] sm:$0xf]
    %v251 = vld [vmem:[#allocation15 + $0x1dc] sm:$0xf]
    %v252 = vld [vmem:[#allocation15 + $0x1f0] sm:$0xf]
    %v253 = vld [vmem:[#allocation15 + $0x204] sm:$0xf]
    %v254 = vld [vmem:[#allocation15 + $0x218] sm:$0xf]
    %v255 = vld [vmem:[#allocation15 + $0x22c] sm:$0xf]
    %v256 = vld [vmem:[#allocation15 + $0x240] sm:$0xf]
    %v257 = vld [vmem:[#allocation15 + $0x254] sm:$0xf]
    %v258 = vld [vmem:[#allocation15 + $0x268] sm:$0xf]
    %v259 = vld [vmem:[#allocation15 + $0x27c] sm:$0xf]
    %v260 = vld [vmem:[#allocation15 + $0x290] sm:$0xf]
    %v261 = vld [vmem:[#allocation15 + $0x2a4] sm:$0xf]
    %v262 = vld [vmem:[#allocation15 + $0x2b8] sm:$0xf]
    %v263 = vld [vmem:[#allocation15 + $0x2cc] sm:$0xf]
    %v264 = vld [vmem:[#allocation15 + $0x2e0] sm:$0xf]
    %v265 = vld [vmem:[#allocation15 + $0x2f4] sm:$0xf]
    %v266 = vld [vmem:[#allocation15 + $0x308] sm:$0xf]
    %v267 = vld [vmem:[#allocation15 + $0x31c] sm:$0xf]
    %v268 = vld [vmem:[#allocation15 + $0x330] sm:$0xf]
    %v269 = vld [vmem:[#allocation15 + $0x344] sm:$0xf]
    %v270 = vld [vmem:[#allocation15 + $0x358] sm:$0xf]
    %v271 = vld [vmem:[#allocation15 + $0x36c] sm:$0xf]
    %v272 = vld [vmem:[#allocation15 + $0x380] sm:$0xf]
    %v273 = vld [vmem:[#allocation15 + $0x394] sm:$0xf]
    %v274 = vld [vmem:[#allocation15 + $0x3a8] sm:$0xf]
    %v275 = vld [vmem:[#allocation15 + $0x3bc] sm:$0xf]
    %v276 = vld [vmem:[#allocation17] sm:$0x3]
    %v279 = vunpack.c.l.b16 %v226
    %v280 = vunpack.c.l.b16 %v227
    %v281 = vpack.c.b16 %v280, %v279
    %v299 = vunpack.c.l.b16 %v228
    %v300 = vunpack.c.h.b16 %v228
    %v301 = vunpack.c.l.b16 %v229
    %v302 = vunpack.c.h.b16 %v229
    %v303 = vunpack.c.l.b16 %v230
    %v304 = vunpack.c.h.b16 %v230
    %v305 = vunpack.c.l.b16 %v231
    %v306 = vunpack.c.h.b16 %v231
    %v307 = vunpack.c.l.b16 %v232
    %v308 = vunpack.c.h.b16 %v232
    %v309 = vunpack.c.l.b16 %v233
    %v310 = vunpack.c.h.b16 %v233
    %v311 = vunpack.c.l.b16 %v234
    %v312 = vunpack.c.h.b16 %v234
    %v313 = vunpack.c.l.b16 %v235
    %v314 = vunpack.c.h.b16 %v235
    %v315 = vunpack.c.l.b16 %v236
    %v316 = vunpack.c.h.b16 %v236
    %v317 = vunpack.c.l.b16 %v237
    %v318 = vunpack.c.h.b16 %v237
    %v319 = vunpack.c.l.b16 %v238
    %v320 = vunpack.c.h.b16 %v238
    %v321 = vunpack.c.l.b16 %v239
    %v322 = vunpack.c.h.b16 %v239
    %v323 = vunpack.c.l.b16 %v240
    %v324 = vunpack.c.h.b16 %v240
    %v325 = vunpack.c.l.b16 %v241
    %v326 = vunpack.c.h.b16 %v241
    %v327 = vunpack.c.l.b16 %v242
    %v328 = vunpack.c.h.b16 %v242
    %v329 = vunpack.c.l.b16 %v243
    %v330 = vunpack.c.h.b16 %v243
    %v331 = vpack.c.b16 %v301, %v299
    %v332 = vpack.c.b16 %v302, %v300
    %v333 = vpack.c.b16 %v305, %v303
    %v334 = vpack.c.b16 %v306, %v304
    %v335 = vpack.c.b16 %v309, %v307
    %v336 = vpack.c.b16 %v310, %v308
    %v337 = vpack.c.b16 %v313, %v311
    %v338 = vpack.c.b16 %v314, %v312
    %v339 = vpack.c.b16 %v317, %v315
    %v340 = vpack.c.b16 %v318, %v316
    %v341 = vpack.c.b16 %v321, %v319
    %v342 = vpack.c.b16 %v322, %v320
    %v343 = vpack.c.b16 %v325, %v323
    %v344 = vpack.c.b16 %v326, %v324
    %v345 = vpack.c.b16 %v329, %v327
    %v346 = vpack.c.b16 %v330, %v328
    %363 = vmatprep.subr.bf16.mxu0 %v332
    %364 = vmatpush1.bf16.msra.mxu0 %v331
    %365 = vmatprep.subr.bf16.mxu0 %v334
    %366 = vmatpush1.bf16.msra.mxu0 %v333
    %367 = vmatprep.subr.bf16.mxu0 %v336
    %368 = vmatpush1.bf16.msra.mxu0 %v335
    %369 = vmatprep.subr.bf16.mxu0 %v338
    %370 = vmatpush1.bf16.msra.mxu0 %v337
    %371 = vmatprep.subr.bf16.mxu0 %v340
    %372 = vmatpush1.bf16.msra.mxu0 %v339
    %373 = vmatprep.subr.bf16.mxu0 %v342
    %374 = vmatpush1.bf16.msra.mxu0 %v341
    %375 = vmatprep.subr.bf16.mxu0 %v344
    %376 = vmatpush1.bf16.msra.mxu0 %v343
    %377 = vmatprep.subr.bf16.mxu0 %v346
    %378 = vmatpush1.bf16.msra.mxu0 %v345
    %379 = vmatprep.subr.bf16.mxu0 0
    %380 = vmatpush1.bf16.msra.mxu0 0
    %381 = vmatprep.subr.bf16.mxu0 0
    %382 = vmatpush1.bf16.msra.mxu0 0
    %383 = vmatprep.subr.bf16.mxu0 0
    %384 = vmatpush1.bf16.msra.mxu0 0
    %385 = vmatprep.subr.bf16.mxu0 0
    %386 = vmatpush1.bf16.msra.mxu0 0
    %387 = vmatprep.subr.bf16.mxu0 0
    %388 = vmatpush1.bf16.msra.mxu0 0
    %389 = vmatprep.subr.bf16.mxu0 0
    %390 = vmatpush1.bf16.msra.mxu0 0
    %391 = vmatprep.subr.bf16.mxu0 0
    %392 = vmatpush1.bf16.msra.mxu0 0
    %393 = vmatprep.subr.bf16.mxu0 0
    %394 = vmatpush1.bf16.msra.mxu0 0
    %395 = vmatprep.mubr.bf16.mxu0 0
    %396 = vmatmul.mubr.bf16.gmra.mrb[0].mxu0 %v281
    %v397 = vpop.f32.mrb[0].mxu0
    %v398 = vadd.f32 0.0, %v397
    %v399 = vpop.f32.mrb[0].mxu0
    %v400 = vadd.f32 0.0, %v399
    %v401 = vpop.f32.mrb[0].mxu0
    %v402 = vadd.f32 0.0, %v401
    %v403 = vpop.f32.mrb[0].mxu0
    %v404 = vadd.f32 0.0, %v403
    %405 = vdwg.mxu0
    %v406 = vpack.c.bf16 %v402, %v398
    %v407 = vpack.c.bf16 %v404, %v400
    %v440 = vunpack.c.l.b16 %v244
    %v441 = vunpack.c.l.b16 %v245
    %v442 = vunpack.c.l.b16 %v246
    %v443 = vunpack.c.l.b16 %v247
    %v444 = vunpack.c.l.b16 %v248
    %v445 = vunpack.c.l.b16 %v249
    %v446 = vunpack.c.l.b16 %v250
    %v447 = vunpack.c.l.b16 %v251
    %v448 = vunpack.c.l.b16 %v252
    %v449 = vunpack.c.l.b16 %v253
    %v450 = vunpack.c.l.b16 %v254
    %v451 = vunpack.c.l.b16 %v255
    %v452 = vunpack.c.l.b16 %v256
    %v453 = vunpack.c.l.b16 %v257
    %v454 = vunpack.c.l.b16 %v258
    %v455 = vunpack.c.l.b16 %v259
    %v456 = vunpack.c.l.b16 %v260
    %v457 = vunpack.c.l.b16 %v261
    %v458 = vunpack.c.l.b16 %v262
    %v459 = vunpack.c.l.b16 %v263
    %v460 = vunpack.c.l.b16 %v264
    %v461 = vunpack.c.l.b16 %v265
    %v462 = vunpack.c.l.b16 %v266
    %v463 = vunpack.c.l.b16 %v267
    %v464 = vunpack.c.l.b16 %v268
    %v465 = vunpack.c.l.b16 %v269
    %v466 = vunpack.c.l.b16 %v270
    %v467 = vunpack.c.l.b16 %v271
    %v468 = vunpack.c.l.b16 %v272
    %v469 = vunpack.c.l.b16 %v273
    %v470 = vunpack.c.l.b16 %v274
    %v471 = vunpack.c.l.b16 %v275
    %v472 = vpack.c.b16 %v441, %v440
    %v473 = vpack.c.b16 %v443, %v442
    %v474 = vpack.c.b16 %v445, %v444
    %v475 = vpack.c.b16 %v447, %v446
    %v476 = vpack.c.b16 %v449, %v448
    %v477 = vpack.c.b16 %v451, %v450
    %v478 = vpack.c.b16 %v453, %v452
    %v479 = vpack.c.b16 %v455, %v454
    %v480 = vpack.c.b16 %v457, %v456
    %v481 = vpack.c.b16 %v459, %v458
    %v482 = vpack.c.b16 %v461, %v460
    %v483 = vpack.c.b16 %v463, %v462
    %v484 = vpack.c.b16 %v465, %v464
    %v485 = vpack.c.b16 %v467, %v466
    %v486 = vpack.c.b16 %v469, %v468
    %v487 = vpack.c.b16 %v471, %v470
    %504 = vmatprep.subr.bf16.mxu0 0
    %505 = vmatpush1.bf16.msra.mxu0 %v472
    %506 = vmatprep.subr.bf16.mxu0 0
    %507 = vmatpush1.bf16.msra.mxu0 %v473
    %508 = vmatprep.subr.bf16.mxu0 0
    %509 = vmatpush1.bf16.msra.mxu0 %v474
    %510 = vmatprep.subr.bf16.mxu0 0
    %511 = vmatpush1.bf16.msra.mxu0 %v475
    %512 = vmatprep.subr.bf16.mxu0 0
    %513 = vmatpush1.bf16.msra.mxu0 %v476
    %514 = vmatprep.subr.bf16.mxu0 0
    %515 = vmatpush1.bf16.msra.mxu0 %v477
    %516 = vmatprep.subr.bf16.mxu0 0
    %517 = vmatpush1.bf16.msra.mxu0 %v478
    %518 = vmatprep.subr.bf16.mxu0 0
    %519 = vmatpush1.bf16.msra.mxu0 %v479
    %520 = vmatprep.subr.bf16.mxu0 0
    %521 = vmatpush1.bf16.msra.mxu0 %v480
    %522 = vmatprep.subr.bf16.mxu0 0
    %523 = vmatpush1.bf16.msra.mxu0 %v481
    %524 = vmatprep.subr.bf16.mxu0 0
    %525 = vmatpush1.bf16.msra.mxu0 %v482
    %526 = vmatprep.subr.bf16.mxu0 0
    %527 = vmatpush1.bf16.msra.mxu0 %v483
    %528 = vmatprep.subr.bf16.mxu0 0
    %529 = vmatpush1.bf16.msra.mxu0 %v484
    %530 = vmatprep.subr.bf16.mxu0 0
    %531 = vmatpush1.bf16.msra.mxu0 %v485
    %532 = vmatprep.subr.bf16.mxu0 0
    %533 = vmatpush1.bf16.msra.mxu0 %v486
    %534 = vmatprep.subr.bf16.mxu0 0
    %535 = vmatpush1.bf16.msra.mxu0 %v487
    %536 = vmatprep.mubr.bf16.mxu0 %v407
    %537 = vmatmul.mubr.bf16.gmra.mrb[0].mxu0 %v406
    %v538 = vpop.f32.mrb[0].mxu0
    %v539 = vadd.f32 0.0, %v538
    %v540 = vpop.f32.mrb[0].mxu0
    %v541 = vpop.f32.mrb[0].mxu0
    %v542 = vadd.f32 0.0, %v541
    %v543 = vpop.f32.mrb[0].mxu0
    %544 = vdwg.mxu0
    %545 = vxpose.xlu0.b32.start [1/16] %v539, 128
    %546 = vxpose.xlu0.b32.cont [2/16] %v542, 128
    %547 = vxpose.xlu0.b32.cont [3/16] 0.0, 128
    %548 = vxpose.xlu0.b32.cont [4/16] 0.0, 128
    %549 = vxpose.xlu0.b32.cont [5/16] 0.0, 128
    %550 = vxpose.xlu0.b32.cont [6/16] 0.0, 128
    %551 = vxpose.xlu0.b32.cont [7/16] 0.0, 128
    %552 = vxpose.xlu0.b32.cont [8/16] 0.0, 128
    %553 = vxpose.xlu0.b32.cont [9/16] 0.0, 128
    %554 = vxpose.xlu0.b32.cont [10/16] 0.0, 128
    %555 = vxpose.xlu0.b32.cont [11/16] 0.0, 128
    %556 = vxpose.xlu0.b32.cont [12/16] 0.0, 128
    %557 = vxpose.xlu0.b32.cont [13/16] 0.0, 128
    %558 = vxpose.xlu0.b32.cont [14/16] 0.0, 128
    %559 = vxpose.xlu0.b32.cont [15/16] 0.0, 128
    %560 = vxpose.xlu0.b32.end [16/16] 0.0, 128
    %v561 = vpop.trf.xlu0
    %v562 = vpop.trf.xlu0
    %v563 = vpop.trf.xlu0
    %v564 = vpop.trf.xlu0
    %v565 = vpop.trf.xlu0
    %v566 = vpop.trf.xlu0
    %v567 = vpop.trf.xlu0
    %v568 = vpop.trf.xlu0
    %v569 = vpop.trf.xlu0
    %v570 = vpop.trf.xlu0
    %v571 = vpop.trf.xlu0
    %v572 = vpop.trf.xlu0
    %v573 = vpop.trf.xlu0
    %v574 = vpop.trf.xlu0
    %v575 = vpop.trf.xlu0
    %v576 = vpop.trf.xlu0
    %578 = vset.pattern.permute.xlu0 1
    %579 = vperm.xlu0 %578, %v539
    %v580 = vpop.permute.xlu0 %579
    %583 = vset.pattern.permute.xlu0 1
    %584 = vperm.xlu0 %583, %v542
    %v585 = vpop.permute.xlu0 %584
    %v587 = vlaneseq
    %v588 = vshrl.u32 %v587, 7
    %v589 = vsub.s32 0, %v588
    %v590 = vrot.slane %v561, %v589
    %v591 = vadd.f32 %v580, %v590
    %v592 = vadd.f32 %v585, %v590
    %vm593 = vcmp.ge.f32.partialorder %v591, 0.0
    %vm594 = vcmp.ge.f32.partialorder %v592, 0.0
    %v595 = vmul.f32 %v591, 0.2
    %v596 = vmul.f32 %v592, 0.2
    %v597 = vsel %vm593, %v591, %v595
    %v598 = vsel %vm594, %v592, %v596
    %v599 = vsel %vm224, %v597, -1e+30
    %v600 = vsel %vm225, %v598, -1e+30
    %vm601 = vcmask 130048
    %v602 = vsel %vm601, %v599, -inf
    %603 = vmax.xlane.f32.xlu0 %v602
    %v604 = vpop.xlane.xlu0 %603
    %v605 = vsel %vm601, %v600, -inf
    %606 = vmax.xlane.f32.xlu0 %v605
    %v607 = vpop.xlane.xlu0 %606
    %v608 = vsub.f32 %v599, %v604
    %v609 = vsub.f32 %v600, %v607
    %v610 = vmul.f32 %v608, 1.442695
    %v611 = vpow.pop %v610
    %v612 = vmul.f32 %v609, 1.442695
    %v613 = vpow.pop %v612
    %v614 = vsel %vm601, %v611, 0.0
    %615 = vadd.xlane.f32.xlu0 %v614
    %v616 = vpop.xlane.xlu0 %615
    %v617 = vsel %vm601, %v613, 0.0
    %618 = vadd.xlane.f32.xlu0 %v617
    %v619 = vpop.xlane.xlu0 %618
    %v620 = vrcp.pop %v616
    %v621 = vmul.f32 %v611, %v620
    %v622 = vrcp.pop %v619
    %v623 = vmul.f32 %v613, %v622
    %v625 = vsel %vm601, %v621, 0
    %v628 = vsel %vm601, %v623, 0
    %630 = vmatprep.subr.mxu0 0.0
    %631 = vmatpush1.msra.mxu0 %v398
    %632 = vmatprep.subr.mxu0 0.0
    %633 = vmatpush1.msra.mxu0 %v402
    %634 = vmatprep.subr.mxu0 0.0
    %635 = vmatpush1.msra.mxu0 0.0
    %636 = vmatprep.subr.mxu0 0.0
    %637 = vmatpush1.msra.mxu0 0.0
    %638 = vmatprep.subr.mxu0 0.0
    %639 = vmatpush1.msra.mxu0 0.0
    %640 = vmatprep.subr.mxu0 0.0
    %641 = vmatpush1.msra.mxu0 0.0
    %642 = vmatprep.subr.mxu0 0.0
    %643 = vmatpush1.msra.mxu0 0.0
    %644 = vmatprep.subr.mxu0 0.0
    %645 = vmatpush1.msra.mxu0 0.0
    %646 = vmatprep.subr.mxu0 0.0
    %647 = vmatpush1.msra.mxu0 0.0
    %648 = vmatprep.subr.mxu0 0.0
    %649 = vmatpush1.msra.mxu0 0.0
    %650 = vmatprep.subr.mxu0 0.0
    %651 = vmatpush1.msra.mxu0 0.0
    %652 = vmatprep.subr.mxu0 0.0
    %653 = vmatpush1.msra.mxu0 0.0
    %654 = vmatprep.subr.mxu0 0.0
    %655 = vmatpush1.msra.mxu0 0.0
    %656 = vmatprep.subr.mxu0 0.0
    %657 = vmatpush1.msra.mxu0 0.0
    %658 = vmatprep.subr.mxu0 0.0
    %659 = vmatpush1.msra.mxu0 0.0
    %660 = vmatprep.subr.mxu0 0.0
    %661 = vmatpush1.msra.mxu0 0.0
    %662 = vmatprep.subr.mxu0 0.0
    %663 = vmatpush1.msra.mxu0 0.0
    %664 = vmatprep.subr.mxu0 0.0
    %665 = vmatpush1.msra.mxu0 0.0
    %666 = vmatprep.subr.mxu0 0.0
    %667 = vmatpush1.msra.mxu0 0.0
    %668 = vmatprep.subr.mxu0 0.0
    %669 = vmatpush1.msra.mxu0 0.0
    %670 = vmatprep.subr.mxu0 0.0
    %671 = vmatpush1.msra.mxu0 0.0
    %672 = vmatprep.subr.mxu0 0.0
    %673 = vmatpush1.msra.mxu0 0.0
    %674 = vmatprep.subr.mxu0 0.0
    %675 = vmatpush1.msra.mxu0 0.0
    %676 = vmatprep.subr.mxu0 0.0
    %677 = vmatpush1.msra.mxu0 0.0
    %678 = vmatprep.subr.mxu0 0.0
    %679 = vmatpush1.msra.mxu0 0.0
    %680 = vmatprep.subr.mxu0 0.0
    %681 = vmatpush1.msra.mxu0 0.0
    %682 = vmatprep.subr.mxu0 0.0
    %683 = vmatpush1.msra.mxu0 0.0
    %684 = vmatprep.subr.mxu0 0.0
    %685 = vmatpush1.msra.mxu0 0.0
    %686 = vmatprep.subr.mxu0 0.0
    %687 = vmatpush1.msra.mxu0 0.0
    %688 = vmatprep.subr.mxu0 0.0
    %689 = vmatpush1.msra.mxu0 0.0
    %690 = vmatprep.subr.mxu0 0.0
    %691 = vmatpush1.msra.mxu0 0.0
    %692 = vmatprep.subr.mxu0 0.0
    %693 = vmatpush1.msra.mxu0 0.0
    %694 = vmatprep.mubr.f32.mxu0 0.0
    %695 = vmatmul.mubr.f32.gmra.mrb[0].mxu0 %v625
    %v696 = vpop.f32.mrb[0].mxu0
    %v697 = vadd.f32 0.0, %v696
    %v698 = vpop.f32.mrb[0].mxu0
    %699 = vmatprep.mubr.f32.mxu0 0.0
    %700 = vmatmul.mubr.f32.gmra.mrb[0].mxu0 %v628
    %v701 = vpop.f32.mrb[0].mxu0
    %v702 = vadd.f32 0.0, %v701
    %v703 = vpop.f32.mrb[0].mxu0
    %704 = vdwg.mxu0
    %705 = vset.pattern.permute.xlu0 3
    %706 = vperm.xlu0 %705, %v539
    %v707 = vpop.permute.xlu0 %706
    %709 = vset.pattern.permute.xlu0 3
    %710 = vperm.xlu0 %709, %v542
    %v711 = vpop.permute.xlu0 %710
    %v713 = vlaneseq
    %v714 = vshrl.u32 %v713, 7
    %v715 = vsub.s32 2, %v714
    %v716 = vrot.slane %v561, %v715
    %v717 = vadd.f32 %v707, %v716
    %v718 = vadd.f32 %v711, %v716
    %vm719 = vcmp.ge.f32.partialorder %v717, 0.0
    %vm720 = vcmp.ge.f32.partialorder %v718, 0.0
    %v721 = vmul.f32 %v717, 0.2
    %v722 = vmul.f32 %v718, 0.2
    %v723 = vsel %vm719, %v717, %v721
    %v724 = vsel %vm720, %v718, %v722
    %v725 = vsel %vm224, %v723, -1e+30
    %v726 = vsel %vm225, %v724, -1e+30
    %v727 = vsel %vm601, %v725, -inf
    %728 = vmax.xlane.f32.xlu0 %v727
    %v729 = vpop.xlane.xlu0 %728
    %v730 = vsel %vm601, %v726, -inf
    %731 = vmax.xlane.f32.xlu0 %v730
    %v732 = vpop.xlane.xlu0 %731
    %v733 = vsub.f32 %v725, %v729
    %v734 = vsub.f32 %v726, %v732
    %v735 = vmul.f32 %v733, 1.442695
    %v736 = vpow.pop %v735
    %v737 = vmul.f32 %v734, 1.442695
    %v738 = vpow.pop %v737
    %v739 = vsel %vm601, %v736, 0.0
    %740 = vadd.xlane.f32.xlu0 %v739
    %v741 = vpop.xlane.xlu0 %740
    %v742 = vsel %vm601, %v738, 0.0
    %743 = vadd.xlane.f32.xlu0 %v742
    %v744 = vpop.xlane.xlu0 %743
    %v745 = vrcp.pop %v741
    %v746 = vmul.f32 %v736, %v745
    %v747 = vrcp.pop %v744
    %v748 = vmul.f32 %v738, %v747
    %v750 = vsel %vm601, %v746, 0
    %v753 = vsel %vm601, %v748, 0
    %755 = vmatprep.subr.mxu0 0.0
    %756 = vmatpush1.msra.mxu0 %v400
    %757 = vmatprep.subr.mxu0 0.0
    %758 = vmatpush1.msra.mxu0 %v404
    %759 = vmatprep.subr.mxu0 0.0
    %760 = vmatpush1.msra.mxu0 0.0
    %761 = vmatprep.subr.mxu0 0.0
    %762 = vmatpush1.msra.mxu0 0.0
    %763 = vmatprep.subr.mxu0 0.0
    %764 = vmatpush1.msra.mxu0 0.0
    %765 = vmatprep.subr.mxu0 0.0
    %766 = vmatpush1.msra.mxu0 0.0
    %767 = vmatprep.subr.mxu0 0.0
    %768 = vmatpush1.msra.mxu0 0.0
    %769 = vmatprep.subr.mxu0 0.0
    %770 = vmatpush1.msra.mxu0 0.0
    %771 = vmatprep.subr.mxu0 0.0
    %772 = vmatpush1.msra.mxu0 0.0
    %773 = vmatprep.subr.mxu0 0.0
    %774 = vmatpush1.msra.mxu0 0.0
    %775 = vmatprep.subr.mxu0 0.0
    %776 = vmatpush1.msra.mxu0 0.0
    %777 = vmatprep.subr.mxu0 0.0
    %778 = vmatpush1.msra.mxu0 0.0
    %779 = vmatprep.subr.mxu0 0.0
    %780 = vmatpush1.msra.mxu0 0.0
    %781 = vmatprep.subr.mxu0 0.0
    %782 = vmatpush1.msra.mxu0 0.0
    %783 = vmatprep.subr.mxu0 0.0
    %784 = vmatpush1.msra.mxu0 0.0
    %785 = vmatprep.subr.mxu0 0.0
    %786 = vmatpush1.msra.mxu0 0.0
    %787 = vmatprep.subr.mxu0 0.0
    %788 = vmatpush1.msra.mxu0 0.0
    %789 = vmatprep.subr.mxu0 0.0
    %790 = vmatpush1.msra.mxu0 0.0
    %791 = vmatprep.subr.mxu0 0.0
    %792 = vmatpush1.msra.mxu0 0.0
    %793 = vmatprep.subr.mxu0 0.0
    %794 = vmatpush1.msra.mxu0 0.0
    %795 = vmatprep.subr.mxu0 0.0
    %796 = vmatpush1.msra.mxu0 0.0
    %797 = vmatprep.subr.mxu0 0.0
    %798 = vmatpush1.msra.mxu0 0.0
    %799 = vmatprep.subr.mxu0 0.0
    %800 = vmatpush1.msra.mxu0 0.0
    %801 = vmatprep.subr.mxu0 0.0
    %802 = vmatpush1.msra.mxu0 0.0
    %803 = vmatprep.subr.mxu0 0.0
    %804 = vmatpush1.msra.mxu0 0.0
    %805 = vmatprep.subr.mxu0 0.0
    %806 = vmatpush1.msra.mxu0 0.0
    %807 = vmatprep.subr.mxu0 0.0
    %808 = vmatpush1.msra.mxu0 0.0
    %809 = vmatprep.subr.mxu0 0.0
    %810 = vmatpush1.msra.mxu0 0.0
    %811 = vmatprep.subr.mxu0 0.0
    %812 = vmatpush1.msra.mxu0 0.0
    %813 = vmatprep.subr.mxu0 0.0
    %814 = vmatpush1.msra.mxu0 0.0
    %815 = vmatprep.subr.mxu0 0.0
    %816 = vmatpush1.msra.mxu0 0.0
    %817 = vmatprep.subr.mxu0 0.0
    %818 = vmatpush1.msra.mxu0 0.0
    %819 = vmatprep.mubr.f32.mxu0 0.0
    %820 = vmatmul.mubr.f32.gmra.mrb[0].mxu0 %v750
    %v821 = vpop.f32.mrb[0].mxu0
    %v822 = vadd.f32 0.0, %v821
    %v823 = vpop.f32.mrb[0].mxu0
    %824 = vmatprep.mubr.f32.mxu0 0.0
    %825 = vmatmul.mubr.f32.gmra.mrb[0].mxu0 %v753
    %v826 = vpop.f32.mrb[0].mxu0
    %v827 = vadd.f32 0.0, %v826
    %v828 = vpop.f32.mrb[0].mxu0
    %829 = vdwg.mxu0
    %v831 = vlaneseq
    %v832 = vshrl.u32 %v831, 7
    %v833 = vsub.s32 0, %v832
    %v834 = vrot.slane %v276, %v833
    %v835 = vlaneseq
    %v836 = vshrl.u32 %v835, 7
    %v837 = vsub.s32 1, %v836
    %v838 = vrot.slane %v276, %v837
    %v841 = vadd.f32 %v697, %v834
    %v842 = vadd.f32 %v822, %v838
    %v843 = vadd.f32 %v702, %v834
    %v844 = vadd.f32 %v827, %v838
    %v845 = vmax.f32 %v841, 0.0
    %v846 = vmax.f32 %v842, 0.0
    %v847 = vmax.f32 %v843, 0.0
    %v848 = vmax.f32 %v844, 0.0
    %v849 = vld [vmem:[#allocation15 + $0x640] sm:$0xff]
    %v850 = vld [vmem:[#allocation15 + $0x648] sm:$0xff]
    %v851 = vld [vmem:[#allocation15 + $0x654] sm:$0xff]
    %v852 = vld [vmem:[#allocation15 + $0x65c] sm:$0xff]
    %v853 = vld [vmem:[#allocation15 + $0x668] sm:$0xff]
    %v854 = vld [vmem:[#allocation15 + $0x670] sm:$0xff]
    %v855 = vld [vmem:[#allocation15 + $0x67c] sm:$0xff]
    %v856 = vld [vmem:[#allocation15 + $0x684] sm:$0xff]
    %v857 = vld [vmem:[#allocation15 + $0x690] sm:$0xff]
    %v858 = vld [vmem:[#allocation15 + $0x698] sm:$0xff]
    %v859 = vld [vmem:[#allocation15 + $0x6a4] sm:$0xff]
    %v860 = vld [vmem:[#allocation15 + $0x6ac] sm:$0xff]
    %v861 = vld [vmem:[#allocation15 + $0x6b8] sm:$0xff]
    %v862 = vld [vmem:[#allocation15 + $0x6c0] sm:$0xff]
    %v863 = vld [vmem:[#allocation15 + $0x6cc] sm:$0xff]
    %v864 = vld [vmem:[#allocation15 + $0x6d4] sm:$0xff]
    %v865 = vld [vmem:[#allocation15 + $0x6e0] sm:$0xff]
    %v866 = vld [vmem:[#allocation15 + $0x6e8] sm:$0xff]
    %v867 = vld [vmem:[#allocation15 + $0x6f4] sm:$0xff]
    %v868 = vld [vmem:[#allocation15 + $0x6fc] sm:$0xff]
    %v869 = vld [vmem:[#allocation15 + $0x708] sm:$0xff]
    %v870 = vld [vmem:[#allocation15 + $0x710] sm:$0xff]
    %v871 = vld [vmem:[#allocation15 + $0x71c] sm:$0xff]
    %v872 = vld [vmem:[#allocation15 + $0x724] sm:$0xff]
    %v873 = vld [vmem:[#allocation15 + $0x730] sm:$0xff]
    %v874 = vld [vmem:[#allocation15 + $0x738] sm:$0xff]
    %v875 = vld [vmem:[#allocation15 + $0x744] sm:$0xff]
    %v876 = vld [vmem:[#allocation15 + $0x74c] sm:$0xff]
    %v877 = vld [vmem:[#allocation15 + $0x758] sm:$0xff]
    %v878 = vld [vmem:[#allocation15 + $0x760] sm:$0xff]
    %v879 = vld [vmem:[#allocation15 + $0x76c] sm:$0xff]
    %v880 = vld [vmem:[#allocation15 + $0x774] sm:$0xff]
    %v881 = vld [vmem:[#allocation15 + $0x780] sm:$0xff]
    %v882 = vld [vmem:[#allocation15 + $0x788] sm:$0xff]
    %v883 = vld [vmem:[#allocation15 + $0x794] sm:$0xff]
    %v884 = vld [vmem:[#allocation15 + $0x79c] sm:$0xff]
    %v885 = vld [vmem:[#allocation15 + $0x7a8] sm:$0xff]
    %v886 = vld [vmem:[#allocation15 + $0x7b0] sm:$0xff]
    %v887 = vld [vmem:[#allocation15 + $0x7bc] sm:$0xff]
    %v888 = vld [vmem:[#allocation15 + $0x7c4] sm:$0xff]
    %v889 = vld [vmem:[#allocation15 + $0x7d0] sm:$0xff]
    %v890 = vld [vmem:[#allocation15 + $0x7d8] sm:$0xff]
    %v891 = vld [vmem:[#allocation15 + $0x7e4] sm:$0xff]
    %v892 = vld [vmem:[#allocation15 + $0x7ec] sm:$0xff]
    %v893 = vld [vmem:[#allocation15 + $0x7f8] sm:$0xff]
    %v894 = vld [vmem:[#allocation15 + $0x800] sm:$0xff]
    %v895 = vld [vmem:[#allocation15 + $0x80c] sm:$0xff]
    %v896 = vld [vmem:[#allocation15 + $0x814] sm:$0xff]
    %v897 = vld [vmem:[#allocation15 + $0x820] sm:$0xff]
    %v898 = vld [vmem:[#allocation15 + $0x828] sm:$0xff]
    %v899 = vld [vmem:[#allocation15 + $0x834] sm:$0xff]
    %v900 = vld [vmem:[#allocation15 + $0x83c] sm:$0xff]
    %v901 = vld [vmem:[#allocation15 + $0x848] sm:$0xff]
    %v902 = vld [vmem:[#allocation15 + $0x850] sm:$0xff]
    %v903 = vld [vmem:[#allocation15 + $0x85c] sm:$0xff]
    %v904 = vld [vmem:[#allocation15 + $0x864] sm:$0xff]
    %v905 = vld [vmem:[#allocation15 + $0x870] sm:$0xff]
    %v906 = vld [vmem:[#allocation15 + $0x878] sm:$0xff]
    %v907 = vld [vmem:[#allocation15 + $0x884] sm:$0xff]
    %v908 = vld [vmem:[#allocation15 + $0x88c] sm:$0xff]
    %v909 = vld [vmem:[#allocation15 + $0x898] sm:$0xff]
    %v910 = vld [vmem:[#allocation15 + $0x8a0] sm:$0xff]
    %v911 = vld [vmem:[#allocation15 + $0x8ac] sm:$0xff]
    %v912 = vld [vmem:[#allocation15 + $0x8b4] sm:$0xff]
    %v913 = vld [vmem:[#allocation15 + $0x14c] sm:$0xf]
    %v914 = vld [vmem:[#allocation15 + $0x160] sm:$0xf]
    %v915 = vld [vmem:[#allocation15 + $0x174] sm:$0xf]
    %v916 = vld [vmem:[#allocation15 + $0x188] sm:$0xf]
    %v917 = vld [vmem:[#allocation15 + $0x19c] sm:$0xf]
    %v918 = vld [vmem:[#allocation15 + $0x1b0] sm:$0xf]
    %v919 = vld [vmem:[#allocation15 + $0x1c4] sm:$0xf]
    %v920 = vld [vmem:[#allocation15 + $0x1d8] sm:$0xf]
    %v921 = vld [vmem:[#allocation15 + $0x1ec] sm:$0xf]
    %v922 = vld [vmem:[#allocation15 + $0x200] sm:$0xf]
    %v923 = vld [vmem:[#allocation15 + $0x214] sm:$0xf]
    %v924 = vld [vmem:[#allocation15 + $0x228] sm:$0xf]
    %v925 = vld [vmem:[#allocation15 + $0x23c] sm:$0xf]
    %v926 = vld [vmem:[#allocation15 + $0x250] sm:$0xf]
    %v927 = vld [vmem:[#allocation15 + $0x264] sm:$0xf]
    %v928 = vld [vmem:[#allocation15 + $0x278] sm:$0xf]
    %v929 = vld [vmem:[#allocation15 + $0x28c] sm:$0xf]
    %v930 = vld [vmem:[#allocation15 + $0x2a0] sm:$0xf]
    %v931 = vld [vmem:[#allocation15 + $0x2b4] sm:$0xf]
    %v932 = vld [vmem:[#allocation15 + $0x2c8] sm:$0xf]
    %v933 = vld [vmem:[#allocation15 + $0x2dc] sm:$0xf]
    %v934 = vld [vmem:[#allocation15 + $0x2f0] sm:$0xf]
    %v935 = vld [vmem:[#allocation15 + $0x304] sm:$0xf]
    %v936 = vld [vmem:[#allocation15 + $0x318] sm:$0xf]
    %v937 = vld [vmem:[#allocation15 + $0x32c] sm:$0xf]
    %v938 = vld [vmem:[#allocation15 + $0x340] sm:$0xf]
    %v939 = vld [vmem:[#allocation15 + $0x354] sm:$0xf]
    %v940 = vld [vmem:[#allocation15 + $0x368] sm:$0xf]
    %v941 = vld [vmem:[#allocation15 + $0x37c] sm:$0xf]
    %v942 = vld [vmem:[#allocation15 + $0x390] sm:$0xf]
    %v943 = vld [vmem:[#allocation15 + $0x3a4] sm:$0xf]
    %v944 = vld [vmem:[#allocation15 + $0x3b8] sm:$0xf]
    %v945 = vld [vmem:[#allocation15 + $0x3cc] sm:$0xf]
    %v946 = vld [vmem:[#allocation15 + $0x3e0] sm:$0xf]
    %v947 = vld [vmem:[#allocation15 + $0x3f4] sm:$0xf]
    %v948 = vld [vmem:[#allocation15 + $0x408] sm:$0xf]
    %v949 = vld [vmem:[#allocation15 + $0x41c] sm:$0xf]
    %v950 = vld [vmem:[#allocation15 + $0x430] sm:$0xf]
    %v951 = vld [vmem:[#allocation15 + $0x444] sm:$0xf]
    %v952 = vld [vmem:[#allocation15 + $0x458] sm:$0xf]
    %v953 = vld [vmem:[#allocation15 + $0x46c] sm:$0xf]
    %v954 = vld [vmem:[#allocation15 + $0x480] sm:$0xf]
    %v955 = vld [vmem:[#allocation15 + $0x494] sm:$0xf]
    %v956 = vld [vmem:[#allocation15 + $0x4a8] sm:$0xf]
    %v957 = vld [vmem:[#allocation15 + $0x4bc] sm:$0xf]
    %v958 = vld [vmem:[#allocation15 + $0x4d0] sm:$0xf]
    %v959 = vld [vmem:[#allocation15 + $0x4e4] sm:$0xf]
    %v960 = vld [vmem:[#allocation15 + $0x4f8] sm:$0xf]
    %v961 = vld [vmem:[#allocation15 + $0x50c] sm:$0xf]
    %v962 = vld [vmem:[#allocation15 + $0x520] sm:$0xf]
    %v963 = vld [vmem:[#allocation15 + $0x534] sm:$0xf]
    %v964 = vld [vmem:[#allocation15 + $0x548] sm:$0xf]
    %v965 = vld [vmem:[#allocation15 + $0x55c] sm:$0xf]
    %v966 = vld [vmem:[#allocation15 + $0x570] sm:$0xf]
    %v967 = vld [vmem:[#allocation15 + $0x584] sm:$0xf]
    %v968 = vld [vmem:[#allocation15 + $0x598] sm:$0xf]
    %v969 = vld [vmem:[#allocation15 + $0x5ac] sm:$0xf]
    %v970 = vld [vmem:[#allocation15 + $0x5c0] sm:$0xf]
    %v971 = vld [vmem:[#allocation15 + $0x5d4] sm:$0xf]
    %v972 = vld [vmem:[#allocation15 + $0x5e8] sm:$0xf]
    %v973 = vld [vmem:[#allocation15 + $0x5fc] sm:$0xf]
    %v974 = vld [vmem:[#allocation15 + $0x610] sm:$0xf]
    %v975 = vld [vmem:[#allocation15 + $0x624] sm:$0xf]
    %v976 = vld [vmem:[#allocation15 + $0x638] sm:$0xf]
    %v977 = vld [vmem:[#allocation17 + $0x2] sm:$0xf]
    %v978 = vpack.c.bf16 %v847, %v845
    %v979 = vpack.c.bf16 %v848, %v846
    %v1044 = vunpack.c.l.b16 %v849
    %v1045 = vunpack.c.h.b16 %v849
    %v1046 = vunpack.c.l.b16 %v850
    %v1047 = vunpack.c.h.b16 %v850
    %v1048 = vunpack.c.l.b16 %v851
    %v1049 = vunpack.c.h.b16 %v851
    %v1050 = vunpack.c.l.b16 %v852
    %v1051 = vunpack.c.h.b16 %v852
    %v1052 = vunpack.c.l.b16 %v853
    %v1053 = vunpack.c.h.b16 %v853
    %v1054 = vunpack.c.l.b16 %v854
    %v1055 = vunpack.c.h.b16 %v854
    %v1056 = vunpack.c.l.b16 %v855
    %v1057 = vunpack.c.h.b16 %v855
    %v1058 = vunpack.c.l.b16 %v856
    %v1059 = vunpack.c.h.b16 %v856
    %v1060 = vunpack.c.l.b16 %v857
    %v1061 = vunpack.c.h.b16 %v857
    %v1062 = vunpack.c.l.b16 %v858
    %v1063 = vunpack.c.h.b16 %v858
    %v1064 = vunpack.c.l.b16 %v859
    %v1065 = vunpack.c.h.b16 %v859
    %v1066 = vunpack.c.l.b16 %v860
    %v1067 = vunpack.c.h.b16 %v860
    %v1068 = vunpack.c.l.b16 %v861
    %v1069 = vunpack.c.h.b16 %v861
    %v1070 = vunpack.c.l.b16 %v862
    %v1071 = vunpack.c.h.b16 %v862
    %v1072 = vunpack.c.l.b16 %v863
    %v1073 = vunpack.c.h.b16 %v863
    %v1074 = vunpack.c.l.b16 %v864
    %v1075 = vunpack.c.h.b16 %v864
    %v1076 = vunpack.c.l.b16 %v865
    %v1077 = vunpack.c.h.b16 %v865
    %v1078 = vunpack.c.l.b16 %v866
    %v1079 = vunpack.c.h.b16 %v866
    %v1080 = vunpack.c.l.b16 %v867
    %v1081 = vunpack.c.h.b16 %v867
    %v1082 = vunpack.c.l.b16 %v868
    %v1083 = vunpack.c.h.b16 %v868
    %v1084 = vunpack.c.l.b16 %v869
    %v1085 = vunpack.c.h.b16 %v869
    %v1086 = vunpack.c.l.b16 %v870
    %v1087 = vunpack.c.h.b16 %v870
    %v1088 = vunpack.c.l.b16 %v871
    %v1089 = vunpack.c.h.b16 %v871
    %v1090 = vunpack.c.l.b16 %v872
    %v1091 = vunpack.c.h.b16 %v872
    %v1092 = vunpack.c.l.b16 %v873
    %v1093 = vunpack.c.h.b16 %v873
    %v1094 = vunpack.c.l.b16 %v874
    %v1095 = vunpack.c.h.b16 %v874
    %v1096 = vunpack.c.l.b16 %v875
    %v1097 = vunpack.c.h.b16 %v875
    %v1098 = vunpack.c.l.b16 %v876
    %v1099 = vunpack.c.h.b16 %v876
    %v1100 = vunpack.c.l.b16 %v877
    %v1101 = vunpack.c.h.b16 %v877
    %v1102 = vunpack.c.l.b16 %v878
    %v1103 = vunpack.c.h.b16 %v878
    %v1104 = vunpack.c.l.b16 %v879
    %v1105 = vunpack.c.h.b16 %v879
    %v1106 = vunpack.c.l.b16 %v880
    %v1107 = vunpack.c.h.b16 %v880
    %v1108 = vunpack.c.l.b16 %v881
    %v1109 = vunpack.c.h.b16 %v881
    %v1110 = vunpack.c.l.b16 %v882
    %v1111 = vunpack.c.h.b16 %v882
    %v1112 = vunpack.c.l.b16 %v883
    %v1113 = vunpack.c.h.b16 %v883
    %v1114 = vunpack.c.l.b16 %v884
    %v1115 = vunpack.c.h.b16 %v884
    %v1116 = vunpack.c.l.b16 %v885
    %v1117 = vunpack.c.h.b16 %v885
    %v1118 = vunpack.c.l.b16 %v886
    %v1119 = vunpack.c.h.b16 %v886
    %v1120 = vunpack.c.l.b16 %v887
    %v1121 = vunpack.c.h.b16 %v887
    %v1122 = vunpack.c.l.b16 %v888
    %v1123 = vunpack.c.h.b16 %v888
    %v1124 = vunpack.c.l.b16 %v889
    %v1125 = vunpack.c.h.b16 %v889
    %v1126 = vunpack.c.l.b16 %v890
    %v1127 = vunpack.c.h.b16 %v890
    %v1128 = vunpack.c.l.b16 %v891
    %v1129 = vunpack.c.h.b16 %v891
    %v1130 = vunpack.c.l.b16 %v892
    %v1131 = vunpack.c.h.b16 %v892
    %v1132 = vunpack.c.l.b16 %v893
    %v1133 = vunpack.c.h.b16 %v893
    %v1134 = vunpack.c.l.b16 %v894
    %v1135 = vunpack.c.h.b16 %v894
    %v1136 = vunpack.c.l.b16 %v895
    %v1137 = vunpack.c.h.b16 %v895
    %v1138 = vunpack.c.l.b16 %v896
    %v1139 = vunpack.c.h.b16 %v896
    %v1140 = vunpack.c.l.b16 %v897
    %v1141 = vunpack.c.h.b16 %v897
    %v1142 = vunpack.c.l.b16 %v898
    %v1143 = vunpack.c.h.b16 %v898
    %v1144 = vunpack.c.l.b16 %v899
    %v1145 = vunpack.c.h.b16 %v899
    %v1146 = vunpack.c.l.b16 %v900
    %v1147 = vunpack.c.h.b16 %v900
    %v1148 = vunpack.c.l.b16 %v901
    %v1149 = vunpack.c.h.b16 %v901
    %v1150 = vunpack.c.l.b16 %v902
    %v1151 = vunpack.c.h.b16 %v902
    %v1152 = vunpack.c.l.b16 %v903
    %v1153 = vunpack.c.h.b16 %v903
    %v1154 = vunpack.c.l.b16 %v904
    %v1155 = vunpack.c.h.b16 %v904
    %v1156 = vunpack.c.l.b16 %v905
    %v1157 = vunpack.c.h.b16 %v905
    %v1158 = vunpack.c.l.b16 %v906
    %v1159 = vunpack.c.h.b16 %v906
    %v1160 = vunpack.c.l.b16 %v907
    %v1161 = vunpack.c.h.b16 %v907
    %v1162 = vunpack.c.l.b16 %v908
    %v1163 = vunpack.c.h.b16 %v908
    %v1164 = vunpack.c.l.b16 %v909
    %v1165 = vunpack.c.h.b16 %v909
    %v1166 = vunpack.c.l.b16 %v910
    %v1167 = vunpack.c.h.b16 %v910
    %v1168 = vunpack.c.l.b16 %v911
    %v1169 = vunpack.c.h.b16 %v911
    %v1170 = vunpack.c.l.b16 %v912
    %v1171 = vunpack.c.h.b16 %v912
    %v1172 = vpack.c.b16 %v1048, %v1044
    %v1173 = vpack.c.b16 %v1049, %v1045
    %v1174 = vpack.c.b16 %v1050, %v1046
    %v1175 = vpack.c.b16 %v1051, %v1047
    %v1176 = vpack.c.b16 %v1056, %v1052
    %v1177 = vpack.c.b16 %v1057, %v1053
    %v1178 = vpack.c.b16 %v1058, %v1054
    %v1179 = vpack.c.b16 %v1059, %v1055
    %v1180 = vpack.c.b16 %v1064, %v1060
    %v1181 = vpack.c.b16 %v1065, %v1061
    %v1182 = vpack.c.b16 %v1066, %v1062
    %v1183 = vpack.c.b16 %v1067, %v1063
    %v1184 = vpack.c.b16 %v1072, %v1068
    %v1185 = vpack.c.b16 %v1073, %v1069
    %v1186 = vpack.c.b16 %v1074, %v1070
    %v1187 = vpack.c.b16 %v1075, %v1071
    %v1188 = vpack.c.b16 %v1080, %v1076
    %v1189 = vpack.c.b16 %v1081, %v1077
    %v1190 = vpack.c.b16 %v1082, %v1078
    %v1191 = vpack.c.b16 %v1083, %v1079
    %v1192 = vpack.c.b16 %v1088, %v1084
    %v1193 = vpack.c.b16 %v1089, %v1085
    %v1194 = vpack.c.b16 %v1090, %v1086
    %v1195 = vpack.c.b16 %v1091, %v1087
    %v1196 = vpack.c.b16 %v1096, %v1092
    %v1197 = vpack.c.b16 %v1097, %v1093
    %v1198 = vpack.c.b16 %v1098, %v1094
    %v1199 = vpack.c.b16 %v1099, %v1095
    %v1200 = vpack.c.b16 %v1104, %v1100
    %v1201 = vpack.c.b16 %v1105, %v1101
    %v1202 = vpack.c.b16 %v1106, %v1102
    %v1203 = vpack.c.b16 %v1107, %v1103
    %v1204 = vpack.c.b16 %v1112, %v1108
    %v1205 = vpack.c.b16 %v1113, %v1109
    %v1206 = vpack.c.b16 %v1114, %v1110
    %v1207 = vpack.c.b16 %v1115, %v1111
    %v1208 = vpack.c.b16 %v1120, %v1116
    %v1209 = vpack.c.b16 %v1121, %v1117
    %v1210 = vpack.c.b16 %v1122, %v1118
    %v1211 = vpack.c.b16 %v1123, %v1119
    %v1212 = vpack.c.b16 %v1128, %v1124
    %v1213 = vpack.c.b16 %v1129, %v1125
    %v1214 = vpack.c.b16 %v1130, %v1126
    %v1215 = vpack.c.b16 %v1131, %v1127
    %v1216 = vpack.c.b16 %v1136, %v1132
    %v1217 = vpack.c.b16 %v1137, %v1133
    %v1218 = vpack.c.b16 %v1138, %v1134
    %v1219 = vpack.c.b16 %v1139, %v1135
    %v1220 = vpack.c.b16 %v1144, %v1140
    %v1221 = vpack.c.b16 %v1145, %v1141
    %v1222 = vpack.c.b16 %v1146, %v1142
    %v1223 = vpack.c.b16 %v1147, %v1143
    %v1224 = vpack.c.b16 %v1152, %v1148
    %v1225 = vpack.c.b16 %v1153, %v1149
    %v1226 = vpack.c.b16 %v1154, %v1150
    %v1227 = vpack.c.b16 %v1155, %v1151
    %v1228 = vpack.c.b16 %v1160, %v1156
    %v1229 = vpack.c.b16 %v1161, %v1157
    %v1230 = vpack.c.b16 %v1162, %v1158
    %v1231 = vpack.c.b16 %v1163, %v1159
    %v1232 = vpack.c.b16 %v1168, %v1164
    %v1233 = vpack.c.b16 %v1169, %v1165
    %v1234 = vpack.c.b16 %v1170, %v1166
    %v1235 = vpack.c.b16 %v1171, %v1167
    %1300 = vmatprep.subr.bf16.mxu0 %v1173
    %1301 = vmatpush1.bf16.msra.mxu0 %v1172
    %1302 = vmatprep.subr.bf16.mxu0 %v1177
    %1303 = vmatpush1.bf16.msra.mxu0 %v1176
    %1304 = vmatprep.subr.bf16.mxu0 %v1181
    %1305 = vmatpush1.bf16.msra.mxu0 %v1180
    %1306 = vmatprep.subr.bf16.mxu0 %v1185
    %1307 = vmatpush1.bf16.msra.mxu0 %v1184
    %1308 = vmatprep.subr.bf16.mxu0 %v1189
    %1309 = vmatpush1.bf16.msra.mxu0 %v1188
    %1310 = vmatprep.subr.bf16.mxu0 %v1193
    %1311 = vmatpush1.bf16.msra.mxu0 %v1192
    %1312 = vmatprep.subr.bf16.mxu0 %v1197
    %1313 = vmatpush1.bf16.msra.mxu0 %v1196
    %1314 = vmatprep.subr.bf16.mxu0 %v1201
    %1315 = vmatpush1.bf16.msra.mxu0 %v1200
    %1316 = vmatprep.subr.bf16.mxu0 %v1205
    %1317 = vmatpush1.bf16.msra.mxu0 %v1204
    %1318 = vmatprep.subr.bf16.mxu0 %v1209
    %1319 = vmatpush1.bf16.msra.mxu0 %v1208
    %1320 = vmatprep.subr.bf16.mxu0 %v1213
    %1321 = vmatpush1.bf16.msra.mxu0 %v1212
    %1322 = vmatprep.subr.bf16.mxu0 %v1217
    %1323 = vmatpush1.bf16.msra.mxu0 %v1216
    %1324 = vmatprep.subr.bf16.mxu0 %v1221
    %1325 = vmatpush1.bf16.msra.mxu0 %v1220
    %1326 = vmatprep.subr.bf16.mxu0 %v1225
    %1327 = vmatpush1.bf16.msra.mxu0 %v1224
    %1328 = vmatprep.subr.bf16.mxu0 %v1229
    %1329 = vmatpush1.bf16.msra.mxu0 %v1228
    %1330 = vmatprep.subr.bf16.mxu0 %v1233
    %1331 = vmatpush1.bf16.msra.mxu0 %v1232
    %1332 = vmatprep.mubr.bf16.mxu0 %v979
    %1333 = vmatmul.mubr.bf16.gmra.mrb[0].mxu0 %v978
    %v1334 = vpop.f32.mrb[0].mxu0
    %v1335 = vadd.f32 0.0, %v1334
    %v1336 = vpop.f32.mrb[0].mxu0
    %v1337 = vadd.f32 0.0, %v1336
    %v1338 = vpop.f32.mrb[0].mxu0
    %v1339 = vadd.f32 0.0, %v1338
    %v1340 = vpop.f32.mrb[0].mxu0
    %v1341 = vadd.f32 0.0, %v1340
    %1342 = vdwg.mxu0
    %1343 = vmatprep.subr.bf16.mxu0 %v1175
    %1344 = vmatpush1.bf16.msra.mxu0 %v1174
    %1345 = vmatprep.subr.bf16.mxu0 %v1179
    %1346 = vmatpush1.bf16.msra.mxu0 %v1178
    %1347 = vmatprep.subr.bf16.mxu0 %v1183
    %1348 = vmatpush1.bf16.msra.mxu0 %v1182
    %1349 = vmatprep.subr.bf16.mxu0 %v1187
    %1350 = vmatpush1.bf16.msra.mxu0 %v1186
    %1351 = vmatprep.subr.bf16.mxu0 %v1191
    %1352 = vmatpush1.bf16.msra.mxu0 %v1190
    %1353 = vmatprep.subr.bf16.mxu0 %v1195
    %1354 = vmatpush1.bf16.msra.mxu0 %v1194
    %1355 = vmatprep.subr.bf16.mxu0 %v1199
    %1356 = vmatpush1.bf16.msra.mxu0 %v1198
    %1357 = vmatprep.subr.bf16.mxu0 %v1203
    %1358 = vmatpush1.bf16.msra.mxu0 %v1202
    %1359 = vmatprep.subr.bf16.mxu0 %v1207
    %1360 = vmatpush1.bf16.msra.mxu0 %v1206
    %1361 = vmatprep.subr.bf16.mxu0 %v1211
    %1362 = vmatpush1.bf16.msra.mxu0 %v1210
    %1363 = vmatprep.subr.bf16.mxu0 %v1215
    %1364 = vmatpush1.bf16.msra.mxu0 %v1214
    %1365 = vmatprep.subr.bf16.mxu0 %v1219
    %1366 = vmatpush1.bf16.msra.mxu0 %v1218
    %1367 = vmatprep.subr.bf16.mxu0 %v1223
    %1368 = vmatpush1.bf16.msra.mxu0 %v1222
    %1369 = vmatprep.subr.bf16.mxu0 %v1227
    %1370 = vmatpush1.bf16.msra.mxu0 %v1226
    %1371 = vmatprep.subr.bf16.mxu0 %v1231
    %1372 = vmatpush1.bf16.msra.mxu0 %v1230
    %1373 = vmatprep.subr.bf16.mxu0 %v1235
    %1374 = vmatpush1.bf16.msra.mxu0 %v1234
    %1375 = vmatprep.mubr.bf16.mxu0 %v979
    %1376 = vmatmul.mubr.bf16.gmra.mrb[0].mxu0 %v978
    %v1377 = vpop.f32.mrb[0].mxu0
    %v1378 = vadd.f32 0.0, %v1377
    %v1379 = vpop.f32.mrb[0].mxu0
    %v1380 = vadd.f32 0.0, %v1379
    %v1381 = vpop.f32.mrb[0].mxu0
    %v1382 = vadd.f32 0.0, %v1381
    %v1383 = vpop.f32.mrb[0].mxu0
    %v1384 = vadd.f32 0.0, %v1383
    %1385 = vdwg.mxu0
    %v1386 = vpack.c.bf16 %v1339, %v1335
    %v1387 = vpack.c.bf16 %v1341, %v1337
    %v1388 = vpack.c.bf16 %v1382, %v1378
    %v1389 = vpack.c.bf16 %v1384, %v1380
    %v1454 = vunpack.c.l.b16 %v913
    %v1455 = vunpack.c.l.b16 %v914
    %v1456 = vunpack.c.l.b16 %v915
    %v1457 = vunpack.c.l.b16 %v916
    %v1458 = vunpack.c.l.b16 %v917
    %v1459 = vunpack.c.l.b16 %v918
    %v1460 = vunpack.c.l.b16 %v919
    %v1461 = vunpack.c.l.b16 %v920
    %v1462 = vunpack.c.l.b16 %v921
    %v1463 = vunpack.c.l.b16 %v922
    %v1464 = vunpack.c.l.b16 %v923
    %v1465 = vunpack.c.l.b16 %v924
    %v1466 = vunpack.c.l.b16 %v925
    %v1467 = vunpack.c.l.b16 %v926
    %v1468 = vunpack.c.l.b16 %v927
    %v1469 = vunpack.c.l.b16 %v928
    %v1470 = vunpack.c.l.b16 %v929
    %v1471 = vunpack.c.l.b16 %v930
    %v1472 = vunpack.c.l.b16 %v931
    %v1473 = vunpack.c.l.b16 %v932
    %v1474 = vunpack.c.l.b16 %v933
    %v1475 = vunpack.c.l.b16 %v934
    %v1476 = vunpack.c.l.b16 %v935
    %v1477 = vunpack.c.l.b16 %v936
    %v1478 = vunpack.c.l.b16 %v937
    %v1479 = vunpack.c.l.b16 %v938
    %v1480 = vunpack.c.l.b16 %v939
    %v1481 = vunpack.c.l.b16 %v940
    %v1482 = vunpack.c.l.b16 %v941
    %v1483 = vunpack.c.l.b16 %v942
    %v1484 = vunpack.c.l.b16 %v943
    %v1485 = vunpack.c.l.b16 %v944
    %v1486 = vunpack.c.l.b16 %v945
    %v1487 = vunpack.c.l.b16 %v946
    %v1488 = vunpack.c.l.b16 %v947
    %v1489 = vunpack.c.l.b16 %v948
    %v1490 = vunpack.c.l.b16 %v949
    %v1491 = vunpack.c.l.b16 %v950
    %v1492 = vunpack.c.l.b16 %v951
    %v1493 = vunpack.c.l.b16 %v952
    %v1494 = vunpack.c.l.b16 %v953
    %v1495 = vunpack.c.l.b16 %v954
    %v1496 = vunpack.c.l.b16 %v955
    %v1497 = vunpack.c.l.b16 %v956
    %v1498 = vunpack.c.l.b16 %v957
    %v1499 = vunpack.c.l.b16 %v958
    %v1500 = vunpack.c.l.b16 %v959
    %v1501 = vunpack.c.l.b16 %v960
    %v1502 = vunpack.c.l.b16 %v961
    %v1503 = vunpack.c.l.b16 %v962
    %v1504 = vunpack.c.l.b16 %v963
    %v1505 = vunpack.c.l.b16 %v964
    %v1506 = vunpack.c.l.b16 %v965
    %v1507 = vunpack.c.l.b16 %v966
    %v1508 = vunpack.c.l.b16 %v967
    %v1509 = vunpack.c.l.b16 %v968
    %v1510 = vunpack.c.l.b16 %v969
    %v1511 = vunpack.c.l.b16 %v970
    %v1512 = vunpack.c.l.b16 %v971
    %v1513 = vunpack.c.l.b16 %v972
    %v1514 = vunpack.c.l.b16 %v973
    %v1515 = vunpack.c.l.b16 %v974
    %v1516 = vunpack.c.l.b16 %v975
    %v1517 = vunpack.c.l.b16 %v976
    %v1518 = vpack.c.b16 %v1455, %v1454
    %v1519 = vpack.c.b16 %v1457, %v1456
    %v1520 = vpack.c.b16 %v1459, %v1458
    %v1521 = vpack.c.b16 %v1461, %v1460
    %v1522 = vpack.c.b16 %v1463, %v1462
    %v1523 = vpack.c.b16 %v1465, %v1464
    %v1524 = vpack.c.b16 %v1467, %v1466
    %v1525 = vpack.c.b16 %v1469, %v1468
    %v1526 = vpack.c.b16 %v1471, %v1470
    %v1527 = vpack.c.b16 %v1473, %v1472
    %v1528 = vpack.c.b16 %v1475, %v1474
    %v1529 = vpack.c.b16 %v1477, %v1476
    %v1530 = vpack.c.b16 %v1479, %v1478
    %v1531 = vpack.c.b16 %v1481, %v1480
    %v1532 = vpack.c.b16 %v1483, %v1482
    %v1533 = vpack.c.b16 %v1485, %v1484
    %v1534 = vpack.c.b16 %v1487, %v1486
    %v1535 = vpack.c.b16 %v1489, %v1488
    %v1536 = vpack.c.b16 %v1491, %v1490
    %v1537 = vpack.c.b16 %v1493, %v1492
    %v1538 = vpack.c.b16 %v1495, %v1494
    %v1539 = vpack.c.b16 %v1497, %v1496
    %v1540 = vpack.c.b16 %v1499, %v1498
    %v1541 = vpack.c.b16 %v1501, %v1500
    %v1542 = vpack.c.b16 %v1503, %v1502
    %v1543 = vpack.c.b16 %v1505, %v1504
    %v1544 = vpack.c.b16 %v1507, %v1506
    %v1545 = vpack.c.b16 %v1509, %v1508
    %v1546 = vpack.c.b16 %v1511, %v1510
    %v1547 = vpack.c.b16 %v1513, %v1512
    %v1548 = vpack.c.b16 %v1515, %v1514
    %v1549 = vpack.c.b16 %v1517, %v1516
    %1582 = vmatprep.subr.bf16.mxu0 0
    %1583 = vmatpush1.bf16.msra.mxu0 %v1518
    %1584 = vmatprep.subr.bf16.mxu0 0
    %1585 = vmatpush1.bf16.msra.mxu0 %v1519
    %1586 = vmatprep.subr.bf16.mxu0 0
    %1587 = vmatpush1.bf16.msra.mxu0 %v1520
    %1588 = vmatprep.subr.bf16.mxu0 0
    %1589 = vmatpush1.bf16.msra.mxu0 %v1521
    %1590 = vmatprep.subr.bf16.mxu0 0
    %1591 = vmatpush1.bf16.msra.mxu0 %v1522
    %1592 = vmatprep.subr.bf16.mxu0 0
    %1593 = vmatpush1.bf16.msra.mxu0 %v1523
    %1594 = vmatprep.subr.bf16.mxu0 0
    %1595 = vmatpush1.bf16.msra.mxu0 %v1524
    %1596 = vmatprep.subr.bf16.mxu0 0
    %1597 = vmatpush1.bf16.msra.mxu0 %v1525
    %1598 = vmatprep.subr.bf16.mxu0 0
    %1599 = vmatpush1.bf16.msra.mxu0 %v1526
    %1600 = vmatprep.subr.bf16.mxu0 0
    %1601 = vmatpush1.bf16.msra.mxu0 %v1527
    %1602 = vmatprep.subr.bf16.mxu0 0
    %1603 = vmatpush1.bf16.msra.mxu0 %v1528
    %1604 = vmatprep.subr.bf16.mxu0 0
    %1605 = vmatpush1.bf16.msra.mxu0 %v1529
    %1606 = vmatprep.subr.bf16.mxu0 0
    %1607 = vmatpush1.bf16.msra.mxu0 %v1530
    %1608 = vmatprep.subr.bf16.mxu0 0
    %1609 = vmatpush1.bf16.msra.mxu0 %v1531
    %1610 = vmatprep.subr.bf16.mxu0 0
    %1611 = vmatpush1.bf16.msra.mxu0 %v1532
    %1612 = vmatprep.subr.bf16.mxu0 0
    %1613 = vmatpush1.bf16.msra.mxu0 %v1533
    %1614 = vmatprep.mubr.bf16.mxu0 %v1387
    %1615 = vmatmul.mubr.bf16.gmra.mrb[0].mxu0 %v1386
    %v1616 = vpop.f32.mrb[0].mxu0
    %v1617 = vadd.f32 0.0, %v1616
    %v1618 = vpop.f32.mrb[0].mxu0
    %v1619 = vpop.f32.mrb[0].mxu0
    %v1620 = vadd.f32 0.0, %v1619
    %v1621 = vpop.f32.mrb[0].mxu0
    %1622 = vdwg.mxu0
    %1623 = vmatprep.subr.bf16.mxu0 0
    %1624 = vmatpush1.bf16.msra.mxu0 %v1534
    %1625 = vmatprep.subr.bf16.mxu0 0
    %1626 = vmatpush1.bf16.msra.mxu0 %v1535
    %1627 = vmatprep.subr.bf16.mxu0 0
    %1628 = vmatpush1.bf16.msra.mxu0 %v1536
    %1629 = vmatprep.subr.bf16.mxu0 0
    %1630 = vmatpush1.bf16.msra.mxu0 %v1537
    %1631 = vmatprep.subr.bf16.mxu0 0
    %1632 = vmatpush1.bf16.msra.mxu0 %v1538
    %1633 = vmatprep.subr.bf16.mxu0 0
    %1634 = vmatpush1.bf16.msra.mxu0 %v1539
    %1635 = vmatprep.subr.bf16.mxu0 0
    %1636 = vmatpush1.bf16.msra.mxu0 %v1540
    %1637 = vmatprep.subr.bf16.mxu0 0
    %1638 = vmatpush1.bf16.msra.mxu0 %v1541
    %1639 = vmatprep.subr.bf16.mxu0 0
    %1640 = vmatpush1.bf16.msra.mxu0 %v1542
    %1641 = vmatprep.subr.bf16.mxu0 0
    %1642 = vmatpush1.bf16.msra.mxu0 %v1543
    %1643 = vmatprep.subr.bf16.mxu0 0
    %1644 = vmatpush1.bf16.msra.mxu0 %v1544
    %1645 = vmatprep.subr.bf16.mxu0 0
    %1646 = vmatpush1.bf16.msra.mxu0 %v1545
    %1647 = vmatprep.subr.bf16.mxu0 0
    %1648 = vmatpush1.bf16.msra.mxu0 %v1546
    %1649 = vmatprep.subr.bf16.mxu0 0
    %1650 = vmatpush1.bf16.msra.mxu0 %v1547
    %1651 = vmatprep.subr.bf16.mxu0 0
    %1652 = vmatpush1.bf16.msra.mxu0 %v1548
    %1653 = vmatprep.subr.bf16.mxu0 0
    %1654 = vmatpush1.bf16.msra.mxu0 %v1549
    %1655 = vmatprep.mubr.bf16.mxu0 %v1389
    %1656 = vmatmul.mubr.bf16.gmra.mrb[0].mxu0 %v1388
    %v1657 = vpop.f32.mrb[0].mxu0
    %v1658 = vadd.f32 %v1617, %v1657
    %v1659 = vpop.f32.mrb[0].mxu0
    %v1660 = vpop.f32.mrb[0].mxu0
    %v1661 = vadd.f32 %v1620, %v1660
    %v1662 = vpop.f32.mrb[0].mxu0
    %1663 = vdwg.mxu0
    %1664 = vxpose.xlu0.b32.start [1/16] %v1658, 128
    %1665 = vxpose.xlu0.b32.cont [2/16] %v1661, 128
    %1666 = vxpose.xlu0.b32.cont [3/16] 0.0, 128
    %1667 = vxpose.xlu0.b32.cont [4/16] 0.0, 128
    %1668 = vxpose.xlu0.b32.cont [5/16] 0.0, 128
    %1669 = vxpose.xlu0.b32.cont [6/16] 0.0, 128
    %1670 = vxpose.xlu0.b32.cont [7/16] 0.0, 128
    %1671 = vxpose.xlu0.b32.cont [8/16] 0.0, 128
    %1672 = vxpose.xlu0.b32.cont [9/16] 0.0, 128
    %1673 = vxpose.xlu0.b32.cont [10/16] 0.0, 128
    %1674 = vxpose.xlu0.b32.cont [11/16] 0.0, 128
    %1675 = vxpose.xlu0.b32.cont [12/16] 0.0, 128
    %1676 = vxpose.xlu0.b32.cont [13/16] 0.0, 128
    %1677 = vxpose.xlu0.b32.cont [14/16] 0.0, 128
    %1678 = vxpose.xlu0.b32.cont [15/16] 0.0, 128
    %1679 = vxpose.xlu0.b32.end [16/16] 0.0, 128
    %v1680 = vpop.trf.xlu0
    %v1681 = vpop.trf.xlu0
    %v1682 = vpop.trf.xlu0
    %v1683 = vpop.trf.xlu0
    %v1684 = vpop.trf.xlu0
    %v1685 = vpop.trf.xlu0
    %v1686 = vpop.trf.xlu0
    %v1687 = vpop.trf.xlu0
    %v1688 = vpop.trf.xlu0
    %v1689 = vpop.trf.xlu0
    %v1690 = vpop.trf.xlu0
    %v1691 = vpop.trf.xlu0
    %v1692 = vpop.trf.xlu0
    %v1693 = vpop.trf.xlu0
    %v1694 = vpop.trf.xlu0
    %v1695 = vpop.trf.xlu0
    %1697 = vset.pattern.permute.xlu0 1
    %1698 = vperm.xlu0 %1697, %v1658
    %v1699 = vpop.permute.xlu0 %1698
    %1702 = vset.pattern.permute.xlu0 1
    %1703 = vperm.xlu0 %1702, %v1661
    %v1704 = vpop.permute.xlu0 %1703
    %v1706 = vlaneseq
    %v1707 = vshrl.u32 %v1706, 7
    %v1708 = vsub.s32 0, %v1707
    %v1709 = vrot.slane %v1680, %v1708
    %v1710 = vadd.f32 %v1699, %v1709
    %v1711 = vadd.f32 %v1704, %v1709
    %vm1712 = vcmp.ge.f32.partialorder %v1710, 0.0
    %vm1713 = vcmp.ge.f32.partialorder %v1711, 0.0
    %v1714 = vmul.f32 %v1710, 0.2
    %v1715 = vmul.f32 %v1711, 0.2
    %v1716 = vsel %vm1712, %v1710, %v1714
    %v1717 = vsel %vm1713, %v1711, %v1715
    %v1718 = vsel %vm224, %v1716, -1e+30
    %v1719 = vsel %vm225, %v1717, -1e+30
    %v1720 = vsel %vm601, %v1718, -inf
    %1721 = vmax.xlane.f32.xlu0 %v1720
    %v1722 = vpop.xlane.xlu0 %1721
    %v1723 = vsel %vm601, %v1719, -inf
    %1724 = vmax.xlane.f32.xlu0 %v1723
    %v1725 = vpop.xlane.xlu0 %1724
    %v1726 = vsub.f32 %v1718, %v1722
    %v1727 = vsub.f32 %v1719, %v1725
    %v1728 = vmul.f32 %v1726, 1.442695
    %v1729 = vpow.pop %v1728
    %v1730 = vmul.f32 %v1727, 1.442695
    %v1731 = vpow.pop %v1730
    %v1732 = vsel %vm601, %v1729, 0.0
    %1733 = vadd.xlane.f32.xlu0 %v1732
    %v1734 = vpop.xlane.xlu0 %1733
    %v1735 = vsel %vm601, %v1731, 0.0
    %1736 = vadd.xlane.f32.xlu0 %v1735
    %v1737 = vpop.xlane.xlu0 %1736
    %v1738 = vrcp.pop %v1734
    %v1739 = vmul.f32 %v1729, %v1738
    %v1740 = vrcp.pop %v1737
    %v1741 = vmul.f32 %v1731, %v1740
    %v1743 = vsel %vm601, %v1739, 0
    %v1746 = vsel %vm601, %v1741, 0
    %1748 = vmatprep.subr.mxu0 %v1337
    %1749 = vmatpush1.msra.mxu0 %v1335
    %1750 = vmatprep.subr.mxu0 %v1341
    %1751 = vmatpush1.msra.mxu0 %v1339
    %1752 = vmatprep.subr.mxu0 0.0
    %1753 = vmatpush1.msra.mxu0 0.0
    %1754 = vmatprep.subr.mxu0 0.0
    %1755 = vmatpush1.msra.mxu0 0.0
    %1756 = vmatprep.subr.mxu0 0.0
    %1757 = vmatpush1.msra.mxu0 0.0
    %1758 = vmatprep.subr.mxu0 0.0
    %1759 = vmatpush1.msra.mxu0 0.0
    %1760 = vmatprep.subr.mxu0 0.0
    %1761 = vmatpush1.msra.mxu0 0.0
    %1762 = vmatprep.subr.mxu0 0.0
    %1763 = vmatpush1.msra.mxu0 0.0
    %1764 = vmatprep.subr.mxu0 0.0
    %1765 = vmatpush1.msra.mxu0 0.0
    %1766 = vmatprep.subr.mxu0 0.0
    %1767 = vmatpush1.msra.mxu0 0.0
    %1768 = vmatprep.subr.mxu0 0.0
    %1769 = vmatpush1.msra.mxu0 0.0
    %1770 = vmatprep.subr.mxu0 0.0
    %1771 = vmatpush1.msra.mxu0 0.0
    %1772 = vmatprep.subr.mxu0 0.0
    %1773 = vmatpush1.msra.mxu0 0.0
    %1774 = vmatprep.subr.mxu0 0.0
    %1775 = vmatpush1.msra.mxu0 0.0
    %1776 = vmatprep.subr.mxu0 0.0
    %1777 = vmatpush1.msra.mxu0 0.0
    %1778 = vmatprep.subr.mxu0 0.0
    %1779 = vmatpush1.msra.mxu0 0.0
    %1780 = vmatprep.subr.mxu0 0.0
    %1781 = vmatpush1.msra.mxu0 0.0
    %1782 = vmatprep.subr.mxu0 0.0
    %1783 = vmatpush1.msra.mxu0 0.0
    %1784 = vmatprep.subr.mxu0 0.0
    %1785 = vmatpush1.msra.mxu0 0.0
    %1786 = vmatprep.subr.mxu0 0.0
    %1787 = vmatpush1.msra.mxu0 0.0
    %1788 = vmatprep.subr.mxu0 0.0
    %1789 = vmatpush1.msra.mxu0 0.0
    %1790 = vmatprep.subr.mxu0 0.0
    %1791 = vmatpush1.msra.mxu0 0.0
    %1792 = vmatprep.subr.mxu0 0.0
    %1793 = vmatpush1.msra.mxu0 0.0
    %1794 = vmatprep.subr.mxu0 0.0
    %1795 = vmatpush1.msra.mxu0 0.0
    %1796 = vmatprep.subr.mxu0 0.0
    %1797 = vmatpush1.msra.mxu0 0.0
    %1798 = vmatprep.subr.mxu0 0.0
    %1799 = vmatpush1.msra.mxu0 0.0
    %1800 = vmatprep.subr.mxu0 0.0
    %1801 = vmatpush1.msra.mxu0 0.0
    %1802 = vmatprep.subr.mxu0 0.0
    %1803 = vmatpush1.msra.mxu0 0.0
    %1804 = vmatprep.subr.mxu0 0.0
    %1805 = vmatpush1.msra.mxu0 0.0
    %1806 = vmatprep.subr.mxu0 0.0
    %1807 = vmatpush1.msra.mxu0 0.0
    %1808 = vmatprep.subr.mxu0 0.0
    %1809 = vmatpush1.msra.mxu0 0.0
    %1810 = vmatprep.subr.mxu0 0.0
    %1811 = vmatpush1.msra.mxu0 0.0
    %1812 = vmatprep.mubr.f32.mxu0 0.0
    %1813 = vmatmul.mubr.f32.gmra.mrb[0].mxu0 %v1743
    %v1814 = vpop.f32.mrb[0].mxu0
    %v1815 = vadd.f32 0.0, %v1814
    %v1816 = vpop.f32.mrb[0].mxu0
    %v1817 = vadd.f32 0.0, %v1816
    %1818 = vmatprep.mubr.f32.mxu0 0.0
    %1819 = vmatmul.mubr.f32.gmra.mrb[0].mxu0 %v1746
    %v1820 = vpop.f32.mrb[0].mxu0
    %v1821 = vadd.f32 0.0, %v1820
    %v1822 = vpop.f32.mrb[0].mxu0
    %v1823 = vadd.f32 0.0, %v1822
    %1824 = vdwg.mxu0
    %1825 = vset.pattern.permute.xlu0 3
    %1826 = vperm.xlu0 %1825, %v1658
    %v1827 = vpop.permute.xlu0 %1826
    %1829 = vset.pattern.permute.xlu0 3
    %1830 = vperm.xlu0 %1829, %v1661
    %v1831 = vpop.permute.xlu0 %1830
    %v1833 = vlaneseq
    %v1834 = vshrl.u32 %v1833, 7
    %v1835 = vsub.s32 2, %v1834
    %v1836 = vrot.slane %v1680, %v1835
    %v1837 = vadd.f32 %v1827, %v1836
    %v1838 = vadd.f32 %v1831, %v1836
    %vm1839 = vcmp.ge.f32.partialorder %v1837, 0.0
    %vm1840 = vcmp.ge.f32.partialorder %v1838, 0.0
    %v1841 = vmul.f32 %v1837, 0.2
    %v1842 = vmul.f32 %v1838, 0.2
    %v1843 = vsel %vm1839, %v1837, %v1841
    %v1844 = vsel %vm1840, %v1838, %v1842
    %v1845 = vsel %vm224, %v1843, -1e+30
    %v1846 = vsel %vm225, %v1844, -1e+30
    %v1847 = vsel %vm601, %v1845, -inf
    %1848 = vmax.xlane.f32.xlu0 %v1847
    %v1849 = vpop.xlane.xlu0 %1848
    %v1850 = vsel %vm601, %v1846, -inf
    %1851 = vmax.xlane.f32.xlu0 %v1850
    %v1852 = vpop.xlane.xlu0 %1851
    %v1853 = vsub.f32 %v1845, %v1849
    %v1854 = vsub.f32 %v1846, %v1852
    %v1855 = vmul.f32 %v1853, 1.442695
    %v1856 = vpow.pop %v1855
    %v1857 = vmul.f32 %v1854, 1.442695
    %v1858 = vpow.pop %v1857
    %v1859 = vsel %vm601, %v1856, 0.0
    %1860 = vadd.xlane.f32.xlu0 %v1859
    %v1861 = vpop.xlane.xlu0 %1860
    %v1862 = vsel %vm601, %v1858, 0.0
    %1863 = vadd.xlane.f32.xlu0 %v1862
    %v1864 = vpop.xlane.xlu0 %1863
    %v1865 = vrcp.pop %v1861
    %v1866 = vmul.f32 %v1856, %v1865
    %v1867 = vrcp.pop %v1864
    %v1868 = vmul.f32 %v1858, %v1867
    %v1870 = vsel %vm601, %v1866, 0
    %v1873 = vsel %vm601, %v1868, 0
    %1875 = vmatprep.subr.mxu0 %v1380
    %1876 = vmatpush1.msra.mxu0 %v1378
    %1877 = vmatprep.subr.mxu0 %v1384
    %1878 = vmatpush1.msra.mxu0 %v1382
    %1879 = vmatprep.subr.mxu0 0.0
    %1880 = vmatpush1.msra.mxu0 0.0
    %1881 = vmatprep.subr.mxu0 0.0
    %1882 = vmatpush1.msra.mxu0 0.0
    %1883 = vmatprep.subr.mxu0 0.0
    %1884 = vmatpush1.msra.mxu0 0.0
    %1885 = vmatprep.subr.mxu0 0.0
    %1886 = vmatpush1.msra.mxu0 0.0
    %1887 = vmatprep.subr.mxu0 0.0
    %1888 = vmatpush1.msra.mxu0 0.0
    %1889 = vmatprep.subr.mxu0 0.0
    %1890 = vmatpush1.msra.mxu0 0.0
    %1891 = vmatprep.subr.mxu0 0.0
    %1892 = vmatpush1.msra.mxu0 0.0
    %1893 = vmatprep.subr.mxu0 0.0
    %1894 = vmatpush1.msra.mxu0 0.0
    %1895 = vmatprep.subr.mxu0 0.0
    %1896 = vmatpush1.msra.mxu0 0.0
    %1897 = vmatprep.subr.mxu0 0.0
    %1898 = vmatpush1.msra.mxu0 0.0
    %1899 = vmatprep.subr.mxu0 0.0
    %1900 = vmatpush1.msra.mxu0 0.0
    %1901 = vmatprep.subr.mxu0 0.0
    %1902 = vmatpush1.msra.mxu0 0.0
    %1903 = vmatprep.subr.mxu0 0.0
    %1904 = vmatpush1.msra.mxu0 0.0
    %1905 = vmatprep.subr.mxu0 0.0
    %1906 = vmatpush1.msra.mxu0 0.0
    %1907 = vmatprep.subr.mxu0 0.0
    %1908 = vmatpush1.msra.mxu0 0.0
    %1909 = vmatprep.subr.mxu0 0.0
    %1910 = vmatpush1.msra.mxu0 0.0
    %1911 = vmatprep.subr.mxu0 0.0
    %1912 = vmatpush1.msra.mxu0 0.0
    %1913 = vmatprep.subr.mxu0 0.0
    %1914 = vmatpush1.msra.mxu0 0.0
    %1915 = vmatprep.subr.mxu0 0.0
    %1916 = vmatpush1.msra.mxu0 0.0
    %1917 = vmatprep.subr.mxu0 0.0
    %1918 = vmatpush1.msra.mxu0 0.0
    %1919 = vmatprep.subr.mxu0 0.0
    %1920 = vmatpush1.msra.mxu0 0.0
    %1921 = vmatprep.subr.mxu0 0.0
    %1922 = vmatpush1.msra.mxu0 0.0
    %1923 = vmatprep.subr.mxu0 0.0
    %1924 = vmatpush1.msra.mxu0 0.0
    %1925 = vmatprep.subr.mxu0 0.0
    %1926 = vmatpush1.msra.mxu0 0.0
    %1927 = vmatprep.subr.mxu0 0.0
    %1928 = vmatpush1.msra.mxu0 0.0
    %1929 = vmatprep.subr.mxu0 0.0
    %1930 = vmatpush1.msra.mxu0 0.0
    %1931 = vmatprep.subr.mxu0 0.0
    %1932 = vmatpush1.msra.mxu0 0.0
    %1933 = vmatprep.subr.mxu0 0.0
    %1934 = vmatpush1.msra.mxu0 0.0
    %1935 = vmatprep.subr.mxu0 0.0
    %1936 = vmatpush1.msra.mxu0 0.0
    %1937 = vmatprep.subr.mxu0 0.0
    %1938 = vmatpush1.msra.mxu0 0.0
    %1939 = vmatprep.mubr.f32.mxu0 0.0
    %1940 = vmatmul.mubr.f32.gmra.mrb[0].mxu0 %v1870
    %v1941 = vpop.f32.mrb[0].mxu0
    %v1942 = vadd.f32 0.0, %v1941
    %v1943 = vpop.f32.mrb[0].mxu0
    %v1944 = vadd.f32 0.0, %v1943
    %1945 = vmatprep.mubr.f32.mxu0 0.0
    %1946 = vmatmul.mubr.f32.gmra.mrb[0].mxu0 %v1873
    %v1947 = vpop.f32.mrb[0].mxu0
    %v1948 = vadd.f32 0.0, %v1947
    %v1949 = vpop.f32.mrb[0].mxu0
    %v1950 = vadd.f32 0.0, %v1949
    %1951 = vdwg.mxu0
    %v1953 = vlaneseq
    %v1954 = vshrl.u32 %v1953, 7
    %v1955 = vsub.s32 0, %v1954
    %v1956 = vrot.slane %v977, %v1955
    %v1957 = vlaneseq
    %v1958 = vshrl.u32 %v1957, 7
    %v1959 = vsub.s32 1, %v1958
    %v1960 = vrot.slane %v977, %v1959
    %v1961 = vlaneseq
    %v1962 = vshrl.u32 %v1961, 7
    %v1963 = vsub.s32 2, %v1962
    %v1964 = vrot.slane %v977, %v1963
    %v1965 = vlaneseq
    %v1966 = vshrl.u32 %v1965, 7
    %v1967 = vsub.s32 3, %v1966
    %v1968 = vrot.slane %v977, %v1967
    %v1973 = vadd.f32 %v1815, %v1956
    %v1974 = vadd.f32 %v1817, %v1960
    %v1975 = vadd.f32 %v1942, %v1964
    %v1976 = vadd.f32 %v1944, %v1968
    %v1977 = vadd.f32 %v1821, %v1956
    %v1978 = vadd.f32 %v1823, %v1960
    %v1979 = vadd.f32 %v1948, %v1964
    %v1980 = vadd.f32 %v1950, %v1968
    %v1981 = vmax.f32 %v1973, 0.0
    %v1982 = vmax.f32 %v1974, 0.0
    %v1983 = vmax.f32 %v1975, 0.0
    %v1984 = vmax.f32 %v1976, 0.0
    %v1985 = vmax.f32 %v1977, 0.0
    %v1986 = vmax.f32 %v1978, 0.0
    %v1987 = vmax.f32 %v1979, 0.0
    %v1988 = vmax.f32 %v1980, 0.0
    %v1989 = vld [vmem:[#allocation15 + $0x140] sm:$0xff]
    %v1990 = vld [vmem:[#allocation15 + $0x148] sm:$0xf]
    %v1991 = vld [vmem:[#allocation15 + $0x154] sm:$0xff]
    %v1992 = vld [vmem:[#allocation15 + $0x15c] sm:$0xf]
    %v1993 = vld [vmem:[#allocation15 + $0x168] sm:$0xff]
    %v1994 = vld [vmem:[#allocation15 + $0x170] sm:$0xf]
    %v1995 = vld [vmem:[#allocation15 + $0x17c] sm:$0xff]
    %v1996 = vld [vmem:[#allocation15 + $0x184] sm:$0xf]
    %v1997 = vld [vmem:[#allocation15 + $0x190] sm:$0xff]
    %v1998 = vld [vmem:[#allocation15 + $0x198] sm:$0xf]
    %v1999 = vld [vmem:[#allocation15 + $0x1a4] sm:$0xff]
    %v2000 = vld [vmem:[#allocation15 + $0x1ac] sm:$0xf]
    %v2001 = vld [vmem:[#allocation15 + $0x1b8] sm:$0xff]
    %v2002 = vld [vmem:[#allocation15 + $0x1c0] sm:$0xf]
    %v2003 = vld [vmem:[#allocation15 + $0x1cc] sm:$0xff]
    %v2004 = vld [vmem:[#allocation15 + $0x1d4] sm:$0xf]
    %v2005 = vld [vmem:[#allocation15 + $0x1e0] sm:$0xff]
    %v2006 = vld [vmem:[#allocation15 + $0x1e8] sm:$0xf]
    %v2007 = vld [vmem:[#allocation15 + $0x1f4] sm:$0xff]
    %v2008 = vld [vmem:[#allocation15 + $0x1fc] sm:$0xf]
    %v2009 = vld [vmem:[#allocation15 + $0x208] sm:$0xff]
    %v2010 = vld [vmem:[#allocation15 + $0x210] sm:$0xf]
    %v2011 = vld [vmem:[#allocation15 + $0x21c] sm:$0xff]
    %v2012 = vld [vmem:[#allocation15 + $0x224] sm:$0xf]
    %v2013 = vld [vmem:[#allocation15 + $0x230] sm:$0xff]
    %v2014 = vld [vmem:[#allocation15 + $0x238] sm:$0xf]
    %v2015 = vld [vmem:[#allocation15 + $0x244] sm:$0xff]
    %v2016 = vld [vmem:[#allocation15 + $0x24c] sm:$0xf]
    %v2017 = vld [vmem:[#allocation15 + $0x258] sm:$0xff]
    %v2018 = vld [vmem:[#allocation15 + $0x260] sm:$0xf]
    %v2019 = vld [vmem:[#allocation15 + $0x26c] sm:$0xff]
    %v2020 = vld [vmem:[#allocation15 + $0x274] sm:$0xf]
    %v2021 = vld [vmem:[#allocation15 + $0x280] sm:$0xff]
    %v2022 = vld [vmem:[#allocation15 + $0x288] sm:$0xf]
    %v2023 = vld [vmem:[#allocation15 + $0x294] sm:$0xff]
    %v2024 = vld [vmem:[#allocation15 + $0x29c] sm:$0xf]
    %v2025 = vld [vmem:[#allocation15 + $0x2a8] sm:$0xff]
    %v2026 = vld [vmem:[#allocation15 + $0x2b0] sm:$0xf]
    %v2027 = vld [vmem:[#allocation15 + $0x2bc] sm:$0xff]
    %v2028 = vld [vmem:[#allocation15 + $0x2c4] sm:$0xf]
    %v2029 = vld [vmem:[#allocation15 + $0x2d0] sm:$0xff]
    %v2030 = vld [vmem:[#allocation15 + $0x2d8] sm:$0xf]
    %v2031 = vld [vmem:[#allocation15 + $0x2e4] sm:$0xff]
    %v2032 = vld [vmem:[#allocation15 + $0x2ec] sm:$0xf]
    %v2033 = vld [vmem:[#allocation15 + $0x2f8] sm:$0xff]
    %v2034 = vld [vmem:[#allocation15 + $0x300] sm:$0xf]
    %v2035 = vld [vmem:[#allocation15 + $0x30c] sm:$0xff]
    %v2036 = vld [vmem:[#allocation15 + $0x314] sm:$0xf]
    %v2037 = vld [vmem:[#allocation15 + $0x320] sm:$0xff]
    %v2038 = vld [vmem:[#allocation15 + $0x328] sm:$0xf]
    %v2039 = vld [vmem:[#allocation15 + $0x334] sm:$0xff]
    %v2040 = vld [vmem:[#allocation15 + $0x33c] sm:$0xf]
    %v2041 = vld [vmem:[#allocation15 + $0x348] sm:$0xff]
    %v2042 = vld [vmem:[#allocation15 + $0x350] sm:$0xf]
    %v2043 = vld [vmem:[#allocation15 + $0x35c] sm:$0xff]
    %v2044 = vld [vmem:[#allocation15 + $0x364] sm:$0xf]
    %v2045 = vld [vmem:[#allocation15 + $0x370] sm:$0xff]
    %v2046 = vld [vmem:[#allocation15 + $0x378] sm:$0xf]
    %v2047 = vld [vmem:[#allocation15 + $0x384] sm:$0xff]
    %v2048 = vld [vmem:[#allocation15 + $0x38c] sm:$0xf]
    %v2049 = vld [vmem:[#allocation15 + $0x398] sm:$0xff]
    %v2050 = vld [vmem:[#allocation15 + $0x3a0] sm:$0xf]
    %v2051 = vld [vmem:[#allocation15 + $0x3ac] sm:$0xff]
    %v2052 = vld [vmem:[#allocation15 + $0x3b4] sm:$0xf]
    %v2053 = vld [vmem:[#allocation15 + $0x3c0] sm:$0xff]
    %v2054 = vld [vmem:[#allocation15 + $0x3c8] sm:$0xf]
    %v2055 = vld [vmem:[#allocation15 + $0x3d4] sm:$0xff]
    %v2056 = vld [vmem:[#allocation15 + $0x3dc] sm:$0xf]
    %v2057 = vld [vmem:[#allocation15 + $0x3e8] sm:$0xff]
    %v2058 = vld [vmem:[#allocation15 + $0x3f0] sm:$0xf]
    %v2059 = vld [vmem:[#allocation15 + $0x3fc] sm:$0xff]
    %v2060 = vld [vmem:[#allocation15 + $0x404] sm:$0xf]
    %v2061 = vld [vmem:[#allocation15 + $0x410] sm:$0xff]
    %v2062 = vld [vmem:[#allocation15 + $0x418] sm:$0xf]
    %v2063 = vld [vmem:[#allocation15 + $0x424] sm:$0xff]
    %v2064 = vld [vmem:[#allocation15 + $0x42c] sm:$0xf]
    %v2065 = vld [vmem:[#allocation15 + $0x438] sm:$0xff]
    %v2066 = vld [vmem:[#allocation15 + $0x440] sm:$0xf]
    %v2067 = vld [vmem:[#allocation15 + $0x44c] sm:$0xff]
    %v2068 = vld [vmem:[#allocation15 + $0x454] sm:$0xf]
    %v2069 = vld [vmem:[#allocation15 + $0x460] sm:$0xff]
    %v2070 = vld [vmem:[#allocation15 + $0x468] sm:$0xf]
    %v2071 = vld [vmem:[#allocation15 + $0x474] sm:$0xff]
    %v2072 = vld [vmem:[#allocation15 + $0x47c] sm:$0xf]
    %v2073 = vld [vmem:[#allocation15 + $0x488] sm:$0xff]
    %v2074 = vld [vmem:[#allocation15 + $0x490] sm:$0xf]
    %v2075 = vld [vmem:[#allocation15 + $0x49c] sm:$0xff]
    %v2076 = vld [vmem:[#allocation15 + $0x4a4] sm:$0xf]
    %v2077 = vld [vmem:[#allocation15 + $0x4b0] sm:$0xff]
    %v2078 = vld [vmem:[#allocation15 + $0x4b8] sm:$0xf]
    %v2079 = vld [vmem:[#allocation15 + $0x4c4] sm:$0xff]
    %v2080 = vld [vmem:[#allocation15 + $0x4cc] sm:$0xf]
    %v2081 = vld [vmem:[#allocation15 + $0x4d8] sm:$0xff]
    %v2082 = vld [vmem:[#allocation15 + $0x4e0] sm:$0xf]
    %v2083 = vld [vmem:[#allocation15 + $0x4ec] sm:$0xff]
    %v2084 = vld [vmem:[#allocation15 + $0x4f4] sm:$0xf]
    %v2085 = vld [vmem:[#allocation15 + $0x500] sm:$0xff]
    %v2086 = vld [vmem:[#allocation15 + $0x508] sm:$0xf]
    %v2087 = vld [vmem:[#allocation15 + $0x514] sm:$0xff]
    %v2088 = vld [vmem:[#allocation15 + $0x51c] sm:$0xf]
    %v2089 = vld [vmem:[#allocation15 + $0x528] sm:$0xff]
    %v2090 = vld [vmem:[#allocation15 + $0x530] sm:$0xf]
    %v2091 = vld [vmem:[#allocation15 + $0x53c] sm:$0xff]
    %v2092 = vld [vmem:[#allocation15 + $0x544] sm:$0xf]
    %v2093 = vld [vmem:[#allocation15 + $0x550] sm:$0xff]
    %v2094 = vld [vmem:[#allocation15 + $0x558] sm:$0xf]
    %v2095 = vld [vmem:[#allocation15 + $0x564] sm:$0xff]
    %v2096 = vld [vmem:[#allocation15 + $0x56c] sm:$0xf]
    %v2097 = vld [vmem:[#allocation15 + $0x578] sm:$0xff]
    %v2098 = vld [vmem:[#allocation15 + $0x580] sm:$0xf]
    %v2099 = vld [vmem:[#allocation15 + $0x58c] sm:$0xff]
    %v2100 = vld [vmem:[#allocation15 + $0x594] sm:$0xf]
    %v2101 = vld [vmem:[#allocation15 + $0x5a0] sm:$0xff]
    %v2102 = vld [vmem:[#allocation15 + $0x5a8] sm:$0xf]
    %v2103 = vld [vmem:[#allocation15 + $0x5b4] sm:$0xff]
    %v2104 = vld [vmem:[#allocation15 + $0x5bc] sm:$0xf]
    %v2105 = vld [vmem:[#allocation15 + $0x5c8] sm:$0xff]
    %v2106 = vld [vmem:[#allocation15 + $0x5d0] sm:$0xf]
    %v2107 = vld [vmem:[#allocation15 + $0x5dc] sm:$0xff]
    %v2108 = vld [vmem:[#allocation15 + $0x5e4] sm:$0xf]
    %v2109 = vld [vmem:[#allocation15 + $0x5f0] sm:$0xff]
    %v2110 = vld [vmem:[#allocation15 + $0x5f8] sm:$0xf]
    %v2111 = vld [vmem:[#allocation15 + $0x604] sm:$0xff]
    %v2112 = vld [vmem:[#allocation15 + $0x60c] sm:$0xf]
    %v2113 = vld [vmem:[#allocation15 + $0x618] sm:$0xff]
    %v2114 = vld [vmem:[#allocation15 + $0x620] sm:$0xf]
    %v2115 = vld [vmem:[#allocation15 + $0x62c] sm:$0xff]
    %v2116 = vld [vmem:[#allocation15 + $0x634] sm:$0xf]
    %v2117 = vld [vmem:[#allocation15 + $0x8c0] sm:$0xf]
    %v2118 = vld [vmem:[#allocation15 + $0x8d4] sm:$0xf]
    %v2119 = vld [vmem:[#allocation15 + $0x8e8] sm:$0xf]
    %v2120 = vld [vmem:[#allocation15 + $0x8fc] sm:$0xf]
    %v2121 = vld [vmem:[#allocation15 + $0x910] sm:$0xf]
    %v2122 = vld [vmem:[#allocation15 + $0x924] sm:$0xf]
    %v2123 = vld [vmem:[#allocation15 + $0x938] sm:$0xf]
    %v2124 = vld [vmem:[#allocation15 + $0x94c] sm:$0xf]
    %v2125 = vld [vmem:[#allocation15 + $0x960] sm:$0xf]
    %v2126 = vld [vmem:[#allocation15 + $0x974] sm:$0xf]
    %v2127 = vld [vmem:[#allocation15 + $0x988] sm:$0xf]
    %v2128 = vld [vmem:[#allocation15 + $0x99c] sm:$0xf]
    %v2129 = vld [vmem:[#allocation15 + $0x9b0] sm:$0xf]
    %v2130 = vld [vmem:[#allocation15 + $0x9c4] sm:$0xf]
    %v2131 = vld [vmem:[#allocation15 + $0x9d8] sm:$0xf]
    %v2132 = vld [vmem:[#allocation15 + $0x9ec] sm:$0xf]
    %v2133 = vld [vmem:[#allocation15 + $0xa00] sm:$0xf]
    %v2134 = vld [vmem:[#allocation15 + $0xa14] sm:$0xf]
    %v2135 = vld [vmem:[#allocation15 + $0xa28] sm:$0xf]
    %v2136 = vld [vmem:[#allocation15 + $0xa3c] sm:$0xf]
    %v2137 = vld [vmem:[#allocation15 + $0xa50] sm:$0xf]
    %v2138 = vld [vmem:[#allocation15 + $0xa64] sm:$0xf]
    %v2139 = vld [vmem:[#allocation15 + $0xa78] sm:$0xf]
    %v2140 = vld [vmem:[#allocation15 + $0xa8c] sm:$0xf]
    %v2141 = vld [vmem:[#allocation15 + $0xaa0] sm:$0xf]
    %v2142 = vld [vmem:[#allocation15 + $0xab4] sm:$0xf]
    %v2143 = vld [vmem:[#allocation15 + $0xac8] sm:$0xf]
    %v2144 = vld [vmem:[#allocation15 + $0xadc] sm:$0xf]
    %v2145 = vld [vmem:[#allocation15 + $0xaf0] sm:$0xf]
    %v2146 = vld [vmem:[#allocation15 + $0xb04] sm:$0xf]
    %v2147 = vld [vmem:[#allocation15 + $0xb18] sm:$0xf]
    %v2148 = vld [vmem:[#allocation15 + $0xb2c] sm:$0xf]
    %v2149 = vld [vmem:[#allocation15 + $0xb40] sm:$0xf]
    %v2150 = vld [vmem:[#allocation15 + $0xb54] sm:$0xf]
    %v2151 = vld [vmem:[#allocation15 + $0xb68] sm:$0xf]
    %v2152 = vld [vmem:[#allocation15 + $0xb7c] sm:$0xf]
    %v2153 = vld [vmem:[#allocation15 + $0xb90] sm:$0xf]
    %v2154 = vld [vmem:[#allocation15 + $0xba4] sm:$0xf]
    %v2155 = vld [vmem:[#allocation15 + $0xbb8] sm:$0xf]
    %v2156 = vld [vmem:[#allocation15 + $0xbcc] sm:$0xf]
    %v2157 = vld [vmem:[#allocation15 + $0xbe0] sm:$0xf]
    %v2158 = vld [vmem:[#allocation15 + $0xbf4] sm:$0xf]
    %v2159 = vld [vmem:[#allocation15 + $0xc08] sm:$0xf]
    %v2160 = vld [vmem:[#allocation15 + $0xc1c] sm:$0xf]
    %v2161 = vld [vmem:[#allocation15 + $0xc30] sm:$0xf]
    %v2162 = vld [vmem:[#allocation15 + $0xc44] sm:$0xf]
    %v2163 = vld [vmem:[#allocation15 + $0xc58] sm:$0xf]
    %v2164 = vld [vmem:[#allocation15 + $0xc6c] sm:$0xf]
    %v2165 = vld [vmem:[#allocation17 + $0x6] sm:$0x7]
    %v2166 = vpack.c.bf16 %v1985, %v1981
    %v2167 = vpack.c.bf16 %v1986, %v1982
    %v2168 = vpack.c.bf16 %v1987, %v1983
    %v2169 = vpack.c.bf16 %v1988, %v1984
    %v2298 = vunpack.c.l.b16 %v1989
    %v2299 = vunpack.c.h.b16 %v1989
    %v2300 = vunpack.c.l.b16 %v1990
    %v2301 = vunpack.c.l.b16 %v1991
    %v2302 = vunpack.c.h.b16 %v1991
    %v2303 = vunpack.c.l.b16 %v1992
    %v2304 = vunpack.c.l.b16 %v1993
    %v2305 = vunpack.c.h.b16 %v1993
    %v2306 = vunpack.c.l.b16 %v1994
    %v2307 = vunpack.c.l.b16 %v1995
    %v2308 = vunpack.c.h.b16 %v1995
    %v2309 = vunpack.c.l.b16 %v1996
    %v2310 = vunpack.c.l.b16 %v1997
    %v2311 = vunpack.c.h.b16 %v1997
    %v2312 = vunpack.c.l.b16 %v1998
    %v2313 = vunpack.c.l.b16 %v1999
    %v2314 = vunpack.c.h.b16 %v1999
    %v2315 = vunpack.c.l.b16 %v2000
    %v2316 = vunpack.c.l.b16 %v2001
    %v2317 = vunpack.c.h.b16 %v2001
    %v2318 = vunpack.c.l.b16 %v2002
    %v2319 = vunpack.c.l.b16 %v2003
    %v2320 = vunpack.c.h.b16 %v2003
    %v2321 = vunpack.c.l.b16 %v2004
    %v2322 = vunpack.c.l.b16 %v2005
    %v2323 = vunpack.c.h.b16 %v2005
    %v2324 = vunpack.c.l.b16 %v2006
    %v2325 = vunpack.c.l.b16 %v2007
    %v2326 = vunpack.c.h.b16 %v2007
    %v2327 = vunpack.c.l.b16 %v2008
    %v2328 = vunpack.c.l.b16 %v2009
    %v2329 = vunpack.c.h.b16 %v2009
    %v2330 = vunpack.c.l.b16 %v2010
    %v2331 = vunpack.c.l.b16 %v2011
    %v2332 = vunpack.c.h.b16 %v2011
    %v2333 = vunpack.c.l.b16 %v2012
    %v2334 = vunpack.c.l.b16 %v2013
    %v2335 = vunpack.c.h.b16 %v2013
    %v2336 = vunpack.c.l.b16 %v2014
    %v2337 = vunpack.c.l.b16 %v2015
    %v2338 = vunpack.c.h.b16 %v2015
    %v2339 = vunpack.c.l.b16 %v2016
    %v2340 = vunpack.c.l.b16 %v2017
    %v2341 = vunpack.c.h.b16 %v2017
    %v2342 = vunpack.c.l.b16 %v2018
    %v2343 = vunpack.c.l.b16 %v2019
    %v2344 = vunpack.c.h.b16 %v2019
    %v2345 = vunpack.c.l.b16 %v2020
    %v2346 = vunpack.c.l.b16 %v2021
    %v2347 = vunpack.c.h.b16 %v2021
    %v2348 = vunpack.c.l.b16 %v2022
    %v2349 = vunpack.c.l.b16 %v2023
    %v2350 = vunpack.c.h.b16 %v2023
    %v2351 = vunpack.c.l.b16 %v2024
    %v2352 = vunpack.c.l.b16 %v2025
    %v2353 = vunpack.c.h.b16 %v2025
    %v2354 = vunpack.c.l.b16 %v2026
    %v2355 = vunpack.c.l.b16 %v2027
    %v2356 = vunpack.c.h.b16 %v2027
    %v2357 = vunpack.c.l.b16 %v2028
    %v2358 = vunpack.c.l.b16 %v2029
    %v2359 = vunpack.c.h.b16 %v2029
    %v2360 = vunpack.c.l.b16 %v2030
    %v2361 = vunpack.c.l.b16 %v2031
    %v2362 = vunpack.c.h.b16 %v2031
    %v2363 = vunpack.c.l.b16 %v2032
    %v2364 = vunpack.c.l.b16 %v2033
    %v2365 = vunpack.c.h.b16 %v2033
    %v2366 = vunpack.c.l.b16 %v2034
    %v2367 = vunpack.c.l.b16 %v2035
    %v2368 = vunpack.c.h.b16 %v2035
    %v2369 = vunpack.c.l.b16 %v2036
    %v2370 = vunpack.c.l.b16 %v2037
    %v2371 = vunpack.c.h.b16 %v2037
    %v2372 = vunpack.c.l.b16 %v2038
    %v2373 = vunpack.c.l.b16 %v2039
    %v2374 = vunpack.c.h.b16 %v2039
    %v2375 = vunpack.c.l.b16 %v2040
    %v2376 = vunpack.c.l.b16 %v2041
    %v2377 = vunpack.c.h.b16 %v2041
    %v2378 = vunpack.c.l.b16 %v2042
    %v2379 = vunpack.c.l.b16 %v2043
    %v2380 = vunpack.c.h.b16 %v2043
    %v2381 = vunpack.c.l.b16 %v2044
    %v2382 = vunpack.c.l.b16 %v2045
    %v2383 = vunpack.c.h.b16 %v2045
    %v2384 = vunpack.c.l.b16 %v2046
    %v2385 = vunpack.c.l.b16 %v2047
    %v2386 = vunpack.c.h.b16 %v2047
    %v2387 = vunpack.c.l.b16 %v2048
    %v2388 = vunpack.c.l.b16 %v2049
    %v2389 = vunpack.c.h.b16 %v2049
    %v2390 = vunpack.c.l.b16 %v2050
    %v2391 = vunpack.c.l.b16 %v2051
    %v2392 = vunpack.c.h.b16 %v2051
    %v2393 = vunpack.c.l.b16 %v2052
    %v2394 = vunpack.c.l.b16 %v2053
    %v2395 = vunpack.c.h.b16 %v2053
    %v2396 = vunpack.c.l.b16 %v2054
    %v2397 = vunpack.c.l.b16 %v2055
    %v2398 = vunpack.c.h.b16 %v2055
    %v2399 = vunpack.c.l.b16 %v2056
    %v2400 = vunpack.c.l.b16 %v2057
    %v2401 = vunpack.c.h.b16 %v2057
    %v2402 = vunpack.c.l.b16 %v2058
    %v2403 = vunpack.c.l.b16 %v2059
    %v2404 = vunpack.c.h.b16 %v2059
    %v2405 = vunpack.c.l.b16 %v2060
    %v2406 = vunpack.c.l.b16 %v2061
    %v2407 = vunpack.c.h.b16 %v2061
    %v2408 = vunpack.c.l.b16 %v2062
    %v2409 = vunpack.c.l.b16 %v2063
    %v2410 = vunpack.c.h.b16 %v2063
    %v2411 = vunpack.c.l.b16 %v2064
    %v2412 = vunpack.c.l.b16 %v2065
    %v2413 = vunpack.c.h.b16 %v2065
    %v2414 = vunpack.c.l.b16 %v2066
    %v2415 = vunpack.c.l.b16 %v2067
    %v2416 = vunpack.c.h.b16 %v2067
    %v2417 = vunpack.c.l.b16 %v2068
    %v2418 = vunpack.c.l.b16 %v2069
    %v2419 = vunpack.c.h.b16 %v2069
    %v2420 = vunpack.c.l.b16 %v2070
    %v2421 = vunpack.c.l.b16 %v2071
    %v2422 = vunpack.c.h.b16 %v2071
    %v2423 = vunpack.c.l.b16 %v2072
    %v2424 = vunpack.c.l.b16 %v2073
    %v2425 = vunpack.c.h.b16 %v2073
    %v2426 = vunpack.c.l.b16 %v2074
    %v2427 = vunpack.c.l.b16 %v2075
    %v2428 = vunpack.c.h.b16 %v2075
    %v2429 = vunpack.c.l.b16 %v2076
    %v2430 = vunpack.c.l.b16 %v2077
    %v2431 = vunpack.c.h.b16 %v2077
    %v2432 = vunpack.c.l.b16 %v2078
    %v2433 = vunpack.c.l.b16 %v2079
    %v2434 = vunpack.c.h.b16 %v2079
    %v2435 = vunpack.c.l.b16 %v2080
    %v2436 = vunpack.c.l.b16 %v2081
    %v2437 = vunpack.c.h.b16 %v2081
    %v2438 = vunpack.c.l.b16 %v2082
    %v2439 = vunpack.c.l.b16 %v2083
    %v2440 = vunpack.c.h.b16 %v2083
    %v2441 = vunpack.c.l.b16 %v2084
    %v2442 = vunpack.c.l.b16 %v2085
    %v2443 = vunpack.c.h.b16 %v2085
    %v2444 = vunpack.c.l.b16 %v2086
    %v2445 = vunpack.c.l.b16 %v2087
    %v2446 = vunpack.c.h.b16 %v2087
    %v2447 = vunpack.c.l.b16 %v2088
    %v2448 = vunpack.c.l.b16 %v2089
    %v2449 = vunpack.c.h.b16 %v2089
    %v2450 = vunpack.c.l.b16 %v2090
    %v2451 = vunpack.c.l.b16 %v2091
    %v2452 = vunpack.c.h.b16 %v2091
    %v2453 = vunpack.c.l.b16 %v2092
    %v2454 = vunpack.c.l.b16 %v2093
    %v2455 = vunpack.c.h.b16 %v2093
    %v2456 = vunpack.c.l.b16 %v2094
    %v2457 = vunpack.c.l.b16 %v2095
    %v2458 = vunpack.c.h.b16 %v2095
    %v2459 = vunpack.c.l.b16 %v2096
    %v2460 = vunpack.c.l.b16 %v2097
    %v2461 = vunpack.c.h.b16 %v2097
    %v2462 = vunpack.c.l.b16 %v2098
    %v2463 = vunpack.c.l.b16 %v2099
    %v2464 = vunpack.c.h.b16 %v2099
    %v2465 = vunpack.c.l.b16 %v2100
    %v2466 = vunpack.c.l.b16 %v2101
    %v2467 = vunpack.c.h.b16 %v2101
    %v2468 = vunpack.c.l.b16 %v2102
    %v2469 = vunpack.c.l.b16 %v2103
    %v2470 = vunpack.c.h.b16 %v2103
    %v2471 = vunpack.c.l.b16 %v2104
    %v2472 = vunpack.c.l.b16 %v2105
    %v2473 = vunpack.c.h.b16 %v2105
    %v2474 = vunpack.c.l.b16 %v2106
    %v2475 = vunpack.c.l.b16 %v2107
    %v2476 = vunpack.c.h.b16 %v2107
    %v2477 = vunpack.c.l.b16 %v2108
    %v2478 = vunpack.c.l.b16 %v2109
    %v2479 = vunpack.c.h.b16 %v2109
    %v2480 = vunpack.c.l.b16 %v2110
    %v2481 = vunpack.c.l.b16 %v2111
    %v2482 = vunpack.c.h.b16 %v2111
    %v2483 = vunpack.c.l.b16 %v2112
    %v2484 = vunpack.c.l.b16 %v2113
    %v2485 = vunpack.c.h.b16 %v2113
    %v2486 = vunpack.c.l.b16 %v2114
    %v2487 = vunpack.c.l.b16 %v2115
    %v2488 = vunpack.c.h.b16 %v2115
    %v2489 = vunpack.c.l.b16 %v2116
    %v2490 = vpack.c.b16 %v2301, %v2298
    %v2491 = vpack.c.b16 %v2302, %v2299
    %v2492 = vpack.c.b16 %v2303, %v2300
    %v2493 = vpack.c.b16 %v2307, %v2304
    %v2494 = vpack.c.b16 %v2308, %v2305
    %v2495 = vpack.c.b16 %v2309, %v2306
    %v2496 = vpack.c.b16 %v2313, %v2310
    %v2497 = vpack.c.b16 %v2314, %v2311
    %v2498 = vpack.c.b16 %v2315, %v2312
    %v2499 = vpack.c.b16 %v2319, %v2316
    %v2500 = vpack.c.b16 %v2320, %v2317
    %v2501 = vpack.c.b16 %v2321, %v2318
    %v2502 = vpack.c.b16 %v2325, %v2322
    %v2503 = vpack.c.b16 %v2326, %v2323
    %v2504 = vpack.c.b16 %v2327, %v2324
    %v2505 = vpack.c.b16 %v2331, %v2328
    %v2506 = vpack.c.b16 %v2332, %v2329
    %v2507 = vpack.c.b16 %v2333, %v2330
    %v2508 = vpack.c.b16 %v2337, %v2334
    %v2509 = vpack.c.b16 %v2338, %v2335
    %v2510 = vpack.c.b16 %v2339, %v2336
    %v2511 = vpack.c.b16 %v2343, %v2340
    %v2512 = vpack.c.b16 %v2344, %v2341
    %v2513 = vpack.c.b16 %v2345, %v2342
    %v2514 = vpack.c.b16 %v2349, %v2346
    %v2515 = vpack.c.b16 %v2350, %v2347
    %v2516 = vpack.c.b16 %v2351, %v2348
    %v2517 = vpack.c.b16 %v2355, %v2352
    %v2518 = vpack.c.b16 %v2356, %v2353
    %v2519 = vpack.c.b16 %v2357, %v2354
    %v2520 = vpack.c.b16 %v2361, %v2358
    %v2521 = vpack.c.b16 %v2362, %v2359
    %v2522 = vpack.c.b16 %v2363, %v2360
    %v2523 = vpack.c.b16 %v2367, %v2364
    %v2524 = vpack.c.b16 %v2368, %v2365
    %v2525 = vpack.c.b16 %v2369, %v2366
    %v2526 = vpack.c.b16 %v2373, %v2370
    %v2527 = vpack.c.b16 %v2374, %v2371
    %v2528 = vpack.c.b16 %v2375, %v2372
    %v2529 = vpack.c.b16 %v2379, %v2376
    %v2530 = vpack.c.b16 %v2380, %v2377
    %v2531 = vpack.c.b16 %v2381, %v2378
    %v2532 = vpack.c.b16 %v2385, %v2382
    %v2533 = vpack.c.b16 %v2386, %v2383
    %v2534 = vpack.c.b16 %v2387, %v2384
    %v2535 = vpack.c.b16 %v2391, %v2388
    %v2536 = vpack.c.b16 %v2392, %v2389
    %v2537 = vpack.c.b16 %v2393, %v2390
    %v2538 = vpack.c.b16 %v2397, %v2394
    %v2539 = vpack.c.b16 %v2398, %v2395
    %v2540 = vpack.c.b16 %v2399, %v2396
    %v2541 = vpack.c.b16 %v2403, %v2400
    %v2542 = vpack.c.b16 %v2404, %v2401
    %v2543 = vpack.c.b16 %v2405, %v2402
    %v2544 = vpack.c.b16 %v2409, %v2406
    %v2545 = vpack.c.b16 %v2410, %v2407
    %v2546 = vpack.c.b16 %v2411, %v2408
    %v2547 = vpack.c.b16 %v2415, %v2412
    %v2548 = vpack.c.b16 %v2416, %v2413
    %v2549 = vpack.c.b16 %v2417, %v2414
    %v2550 = vpack.c.b16 %v2421, %v2418
    %v2551 = vpack.c.b16 %v2422, %v2419
    %v2552 = vpack.c.b16 %v2423, %v2420
    %v2553 = vpack.c.b16 %v2427, %v2424
    %v2554 = vpack.c.b16 %v2428, %v2425
    %v2555 = vpack.c.b16 %v2429, %v2426
    %v2556 = vpack.c.b16 %v2433, %v2430
    %v2557 = vpack.c.b16 %v2434, %v2431
    %v2558 = vpack.c.b16 %v2435, %v2432
    %v2559 = vpack.c.b16 %v2439, %v2436
    %v2560 = vpack.c.b16 %v2440, %v2437
    %v2561 = vpack.c.b16 %v2441, %v2438
    %v2562 = vpack.c.b16 %v2445, %v2442
    %v2563 = vpack.c.b16 %v2446, %v2443
    %v2564 = vpack.c.b16 %v2447, %v2444
    %v2565 = vpack.c.b16 %v2451, %v2448
    %v2566 = vpack.c.b16 %v2452, %v2449
    %v2567 = vpack.c.b16 %v2453, %v2450
    %v2568 = vpack.c.b16 %v2457, %v2454
    %v2569 = vpack.c.b16 %v2458, %v2455
    %v2570 = vpack.c.b16 %v2459, %v2456
    %v2571 = vpack.c.b16 %v2463, %v2460
    %v2572 = vpack.c.b16 %v2464, %v2461
    %v2573 = vpack.c.b16 %v2465, %v2462
    %v2574 = vpack.c.b16 %v2469, %v2466
    %v2575 = vpack.c.b16 %v2470, %v2467
    %v2576 = vpack.c.b16 %v2471, %v2468
    %v2577 = vpack.c.b16 %v2475, %v2472
    %v2578 = vpack.c.b16 %v2476, %v2473
    %v2579 = vpack.c.b16 %v2477, %v2474
    %v2580 = vpack.c.b16 %v2481, %v2478
    %v2581 = vpack.c.b16 %v2482, %v2479
    %v2582 = vpack.c.b16 %v2483, %v2480
    %v2583 = vpack.c.b16 %v2487, %v2484
    %v2584 = vpack.c.b16 %v2488, %v2485
    %v2585 = vpack.c.b16 %v2489, %v2486
    %2682 = vmatprep.subr.bf16.mxu0 %v2491
    %2683 = vmatpush1.bf16.msra.mxu0 %v2490
    %2684 = vmatprep.subr.bf16.mxu0 %v2494
    %2685 = vmatpush1.bf16.msra.mxu0 %v2493
    %2686 = vmatprep.subr.bf16.mxu0 %v2497
    %2687 = vmatpush1.bf16.msra.mxu0 %v2496
    %2688 = vmatprep.subr.bf16.mxu0 %v2500
    %2689 = vmatpush1.bf16.msra.mxu0 %v2499
    %2690 = vmatprep.subr.bf16.mxu0 %v2503
    %2691 = vmatpush1.bf16.msra.mxu0 %v2502
    %2692 = vmatprep.subr.bf16.mxu0 %v2506
    %2693 = vmatpush1.bf16.msra.mxu0 %v2505
    %2694 = vmatprep.subr.bf16.mxu0 %v2509
    %2695 = vmatpush1.bf16.msra.mxu0 %v2508
    %2696 = vmatprep.subr.bf16.mxu0 %v2512
    %2697 = vmatpush1.bf16.msra.mxu0 %v2511
    %2698 = vmatprep.subr.bf16.mxu0 %v2515
    %2699 = vmatpush1.bf16.msra.mxu0 %v2514
    %2700 = vmatprep.subr.bf16.mxu0 %v2518
    %2701 = vmatpush1.bf16.msra.mxu0 %v2517
    %2702 = vmatprep.subr.bf16.mxu0 %v2521
    %2703 = vmatpush1.bf16.msra.mxu0 %v2520
    %2704 = vmatprep.subr.bf16.mxu0 %v2524
    %2705 = vmatpush1.bf16.msra.mxu0 %v2523
    %2706 = vmatprep.subr.bf16.mxu0 %v2527
    %2707 = vmatpush1.bf16.msra.mxu0 %v2526
    %2708 = vmatprep.subr.bf16.mxu0 %v2530
    %2709 = vmatpush1.bf16.msra.mxu0 %v2529
    %2710 = vmatprep.subr.bf16.mxu0 %v2533
    %2711 = vmatpush1.bf16.msra.mxu0 %v2532
    %2712 = vmatprep.subr.bf16.mxu0 %v2536
    %2713 = vmatpush1.bf16.msra.mxu0 %v2535
    %2714 = vmatprep.mubr.bf16.mxu0 %v2167
    %2715 = vmatmul.mubr.bf16.gmra.mrb[0].mxu0 %v2166
    %v2716 = vpop.f32.mrb[0].mxu0
    %v2717 = vadd.f32 0.0, %v2716
    %v2718 = vpop.f32.mrb[0].mxu0
    %v2719 = vadd.f32 0.0, %v2718
    %v2720 = vpop.f32.mrb[0].mxu0
    %v2721 = vadd.f32 0.0, %v2720
    %v2722 = vpop.f32.mrb[0].mxu0
    %v2723 = vadd.f32 0.0, %v2722
    %2724 = vdwg.mxu0
    %2725 = vmatprep.subr.bf16.mxu0 %v2539
    %2726 = vmatpush1.bf16.msra.mxu0 %v2538
    %2727 = vmatprep.subr.bf16.mxu0 %v2542
    %2728 = vmatpush1.bf16.msra.mxu0 %v2541
    %2729 = vmatprep.subr.bf16.mxu0 %v2545
    %2730 = vmatpush1.bf16.msra.mxu0 %v2544
    %2731 = vmatprep.subr.bf16.mxu0 %v2548
    %2732 = vmatpush1.bf16.msra.mxu0 %v2547
    %2733 = vmatprep.subr.bf16.mxu0 %v2551
    %2734 = vmatpush1.bf16.msra.mxu0 %v2550
    %2735 = vmatprep.subr.bf16.mxu0 %v2554
    %2736 = vmatpush1.bf16.msra.mxu0 %v2553
    %2737 = vmatprep.subr.bf16.mxu0 %v2557
    %2738 = vmatpush1.bf16.msra.mxu0 %v2556
    %2739 = vmatprep.subr.bf16.mxu0 %v2560
    %2740 = vmatpush1.bf16.msra.mxu0 %v2559
    %2741 = vmatprep.subr.bf16.mxu0 %v2563
    %2742 = vmatpush1.bf16.msra.mxu0 %v2562
    %2743 = vmatprep.subr.bf16.mxu0 %v2566
    %2744 = vmatpush1.bf16.msra.mxu0 %v2565
    %2745 = vmatprep.subr.bf16.mxu0 %v2569
    %2746 = vmatpush1.bf16.msra.mxu0 %v2568
    %2747 = vmatprep.subr.bf16.mxu0 %v2572
    %2748 = vmatpush1.bf16.msra.mxu0 %v2571
    %2749 = vmatprep.subr.bf16.mxu0 %v2575
    %2750 = vmatpush1.bf16.msra.mxu0 %v2574
    %2751 = vmatprep.subr.bf16.mxu0 %v2578
    %2752 = vmatpush1.bf16.msra.mxu0 %v2577
    %2753 = vmatprep.subr.bf16.mxu0 %v2581
    %2754 = vmatpush1.bf16.msra.mxu0 %v2580
    %2755 = vmatprep.subr.bf16.mxu0 %v2584
    %2756 = vmatpush1.bf16.msra.mxu0 %v2583
    %2757 = vmatprep.mubr.bf16.mxu0 %v2169
    %2758 = vmatmul.mubr.bf16.gmra.mrb[0].mxu0 %v2168
    %v2759 = vpop.f32.mrb[0].mxu0
    %v2760 = vadd.f32 %v2717, %v2759
    %v2761 = vpop.f32.mrb[0].mxu0
    %v2762 = vadd.f32 %v2719, %v2761
    %v2763 = vpop.f32.mrb[0].mxu0
    %v2764 = vadd.f32 %v2721, %v2763
    %v2765 = vpop.f32.mrb[0].mxu0
    %v2766 = vadd.f32 %v2723, %v2765
    %2767 = vdwg.mxu0
    %2768 = vmatprep.subr.bf16.mxu0 0
    %2769 = vmatpush1.bf16.msra.mxu0 %v2492
    %2770 = vmatprep.subr.bf16.mxu0 0
    %2771 = vmatpush1.bf16.msra.mxu0 %v2495
    %2772 = vmatprep.subr.bf16.mxu0 0
    %2773 = vmatpush1.bf16.msra.mxu0 %v2498
    %2774 = vmatprep.subr.bf16.mxu0 0
    %2775 = vmatpush1.bf16.msra.mxu0 %v2501
    %2776 = vmatprep.subr.bf16.mxu0 0
    %2777 = vmatpush1.bf16.msra.mxu0 %v2504
    %2778 = vmatprep.subr.bf16.mxu0 0
    %2779 = vmatpush1.bf16.msra.mxu0 %v2507
    %2780 = vmatprep.subr.bf16.mxu0 0
    %2781 = vmatpush1.bf16.msra.mxu0 %v2510
    %2782 = vmatprep.subr.bf16.mxu0 0
    %2783 = vmatpush1.bf16.msra.mxu0 %v2513
    %2784 = vmatprep.subr.bf16.mxu0 0
    %2785 = vmatpush1.bf16.msra.mxu0 %v2516
    %2786 = vmatprep.subr.bf16.mxu0 0
    %2787 = vmatpush1.bf16.msra.mxu0 %v2519
    %2788 = vmatprep.subr.bf16.mxu0 0
    %2789 = vmatpush1.bf16.msra.mxu0 %v2522
    %2790 = vmatprep.subr.bf16.mxu0 0
    %2791 = vmatpush1.bf16.msra.mxu0 %v2525
    %2792 = vmatprep.subr.bf16.mxu0 0
    %2793 = vmatpush1.bf16.msra.mxu0 %v2528
    %2794 = vmatprep.subr.bf16.mxu0 0
    %2795 = vmatpush1.bf16.msra.mxu0 %v2531
    %2796 = vmatprep.subr.bf16.mxu0 0
    %2797 = vmatpush1.bf16.msra.mxu0 %v2534
    %2798 = vmatprep.subr.bf16.mxu0 0
    %2799 = vmatpush1.bf16.msra.mxu0 %v2537
    %2800 = vmatprep.mubr.bf16.mxu0 %v2167
    %2801 = vmatmul.mubr.bf16.gmra.mrb[0].mxu0 %v2166
    %v2802 = vpop.f32.mrb[0].mxu0
    %v2803 = vadd.f32 0.0, %v2802
    %v2804 = vpop.f32.mrb[0].mxu0
    %v2805 = vpop.f32.mrb[0].mxu0
    %v2806 = vadd.f32 0.0, %v2805
    %v2807 = vpop.f32.mrb[0].mxu0
    %2808 = vdwg.mxu0
    %2809 = vmatprep.subr.bf16.mxu0 0
    %2810 = vmatpush1.bf16.msra.mxu0 %v2540
    %2811 = vmatprep.subr.bf16.mxu0 0
    %2812 = vmatpush1.bf16.msra.mxu0 %v2543
    %2813 = vmatprep.subr.bf16.mxu0 0
    %2814 = vmatpush1.bf16.msra.mxu0 %v2546
    %2815 = vmatprep.subr.bf16.mxu0 0
    %2816 = vmatpush1.bf16.msra.mxu0 %v2549
    %2817 = vmatprep.subr.bf16.mxu0 0
    %2818 = vmatpush1.bf16.msra.mxu0 %v2552
    %2819 = vmatprep.subr.bf16.mxu0 0
    %2820 = vmatpush1.bf16.msra.mxu0 %v2555
    %2821 = vmatprep.subr.bf16.mxu0 0
    %2822 = vmatpush1.bf16.msra.mxu0 %v2558
    %2823 = vmatprep.subr.bf16.mxu0 0
    %2824 = vmatpush1.bf16.msra.mxu0 %v2561
    %2825 = vmatprep.subr.bf16.mxu0 0
    %2826 = vmatpush1.bf16.msra.mxu0 %v2564
    %2827 = vmatprep.subr.bf16.mxu0 0
    %2828 = vmatpush1.bf16.msra.mxu0 %v2567
    %2829 = vmatprep.subr.bf16.mxu0 0
    %2830 = vmatpush1.bf16.msra.mxu0 %v2570
    %2831 = vmatprep.subr.bf16.mxu0 0
    %2832 = vmatpush1.bf16.msra.mxu0 %v2573
    %2833 = vmatprep.subr.bf16.mxu0 0
    %2834 = vmatpush1.bf16.msra.mxu0 %v2576
    %2835 = vmatprep.subr.bf16.mxu0 0
    %2836 = vmatpush1.bf16.msra.mxu0 %v2579
    %2837 = vmatprep.subr.bf16.mxu0 0
    %2838 = vmatpush1.bf16.msra.mxu0 %v2582
    %2839 = vmatprep.subr.bf16.mxu0 0
    %2840 = vmatpush1.bf16.msra.mxu0 %v2585
    %2841 = vmatprep.mubr.bf16.mxu0 %v2169
    %2842 = vmatmul.mubr.bf16.gmra.mrb[0].mxu0 %v2168
    %v2843 = vpop.f32.mrb[0].mxu0
    %v2844 = vadd.f32 %v2803, %v2843
    %v2845 = vpop.f32.mrb[0].mxu0
    %v2846 = vpop.f32.mrb[0].mxu0
    %v2847 = vadd.f32 %v2806, %v2846
    %v2848 = vpop.f32.mrb[0].mxu0
    %2849 = vdwg.mxu0
    %v2850 = vpack.c.bf16 %v2764, %v2760
    %v2851 = vpack.c.bf16 %v2766, %v2762
    %v2852 = vpack.c.bf16 %v2847, %v2844
    %v2901 = vunpack.c.l.b16 %v2117
    %v2902 = vunpack.c.l.b16 %v2118
    %v2903 = vunpack.c.l.b16 %v2119
    %v2904 = vunpack.c.l.b16 %v2120
    %v2905 = vunpack.c.l.b16 %v2121
    %v2906 = vunpack.c.l.b16 %v2122
    %v2907 = vunpack.c.l.b16 %v2123
    %v2908 = vunpack.c.l.b16 %v2124
    %v2909 = vunpack.c.l.b16 %v2125
    %v2910 = vunpack.c.l.b16 %v2126
    %v2911 = vunpack.c.l.b16 %v2127
    %v2912 = vunpack.c.l.b16 %v2128
    %v2913 = vunpack.c.l.b16 %v2129
    %v2914 = vunpack.c.l.b16 %v2130
    %v2915 = vunpack.c.l.b16 %v2131
    %v2916 = vunpack.c.l.b16 %v2132
    %v2917 = vunpack.c.l.b16 %v2133
    %v2918 = vunpack.c.l.b16 %v2134
    %v2919 = vunpack.c.l.b16 %v2135
    %v2920 = vunpack.c.l.b16 %v2136
    %v2921 = vunpack.c.l.b16 %v2137
    %v2922 = vunpack.c.l.b16 %v2138
    %v2923 = vunpack.c.l.b16 %v2139
    %v2924 = vunpack.c.l.b16 %v2140
    %v2925 = vunpack.c.l.b16 %v2141
    %v2926 = vunpack.c.l.b16 %v2142
    %v2927 = vunpack.c.l.b16 %v2143
    %v2928 = vunpack.c.l.b16 %v2144
    %v2929 = vunpack.c.l.b16 %v2145
    %v2930 = vunpack.c.l.b16 %v2146
    %v2931 = vunpack.c.l.b16 %v2147
    %v2932 = vunpack.c.l.b16 %v2148
    %v2933 = vunpack.c.l.b16 %v2149
    %v2934 = vunpack.c.l.b16 %v2150
    %v2935 = vunpack.c.l.b16 %v2151
    %v2936 = vunpack.c.l.b16 %v2152
    %v2937 = vunpack.c.l.b16 %v2153
    %v2938 = vunpack.c.l.b16 %v2154
    %v2939 = vunpack.c.l.b16 %v2155
    %v2940 = vunpack.c.l.b16 %v2156
    %v2941 = vunpack.c.l.b16 %v2157
    %v2942 = vunpack.c.l.b16 %v2158
    %v2943 = vunpack.c.l.b16 %v2159
    %v2944 = vunpack.c.l.b16 %v2160
    %v2945 = vunpack.c.l.b16 %v2161
    %v2946 = vunpack.c.l.b16 %v2162
    %v2947 = vunpack.c.l.b16 %v2163
    %v2948 = vunpack.c.l.b16 %v2164
    %v2949 = vpack.c.b16 %v2902, %v2901
    %v2950 = vpack.c.b16 %v2904, %v2903
    %v2951 = vpack.c.b16 %v2906, %v2905
    %v2952 = vpack.c.b16 %v2908, %v2907
    %v2953 = vpack.c.b16 %v2910, %v2909
    %v2954 = vpack.c.b16 %v2912, %v2911
    %v2955 = vpack.c.b16 %v2914, %v2913
    %v2956 = vpack.c.b16 %v2916, %v2915
    %v2957 = vpack.c.b16 %v2918, %v2917
    %v2958 = vpack.c.b16 %v2920, %v2919
    %v2959 = vpack.c.b16 %v2922, %v2921
    %v2960 = vpack.c.b16 %v2924, %v2923
    %v2961 = vpack.c.b16 %v2926, %v2925
    %v2962 = vpack.c.b16 %v2928, %v2927
    %v2963 = vpack.c.b16 %v2930, %v2929
    %v2964 = vpack.c.b16 %v2932, %v2931
    %v2965 = vpack.c.b16 %v2934, %v2933
    %v2966 = vpack.c.b16 %v2936, %v2935
    %v2967 = vpack.c.b16 %v2938, %v2937
    %v2968 = vpack.c.b16 %v2940, %v2939
    %v2969 = vpack.c.b16 %v2942, %v2941
    %v2970 = vpack.c.b16 %v2944, %v2943
    %v2971 = vpack.c.b16 %v2946, %v2945
    %v2972 = vpack.c.b16 %v2948, %v2947
    %2997 = vmatprep.subr.bf16.mxu0 0
    %2998 = vmatpush1.bf16.msra.mxu0 %v2949
    %2999 = vmatprep.subr.bf16.mxu0 0
    %3000 = vmatpush1.bf16.msra.mxu0 %v2950
    %3001 = vmatprep.subr.bf16.mxu0 0
    %3002 = vmatpush1.bf16.msra.mxu0 %v2951
    %3003 = vmatprep.subr.bf16.mxu0 0
    %3004 = vmatpush1.bf16.msra.mxu0 %v2952
    %3005 = vmatprep.subr.bf16.mxu0 0
    %3006 = vmatpush1.bf16.msra.mxu0 %v2953
    %3007 = vmatprep.subr.bf16.mxu0 0
    %3008 = vmatpush1.bf16.msra.mxu0 %v2954
    %3009 = vmatprep.subr.bf16.mxu0 0
    %3010 = vmatpush1.bf16.msra.mxu0 %v2955
    %3011 = vmatprep.subr.bf16.mxu0 0
    %3012 = vmatpush1.bf16.msra.mxu0 %v2956
    %3013 = vmatprep.subr.bf16.mxu0 0
    %3014 = vmatpush1.bf16.msra.mxu0 %v2957
    %3015 = vmatprep.subr.bf16.mxu0 0
    %3016 = vmatpush1.bf16.msra.mxu0 %v2958
    %3017 = vmatprep.subr.bf16.mxu0 0
    %3018 = vmatpush1.bf16.msra.mxu0 %v2959
    %3019 = vmatprep.subr.bf16.mxu0 0
    %3020 = vmatpush1.bf16.msra.mxu0 %v2960
    %3021 = vmatprep.subr.bf16.mxu0 0
    %3022 = vmatpush1.bf16.msra.mxu0 %v2961
    %3023 = vmatprep.subr.bf16.mxu0 0
    %3024 = vmatpush1.bf16.msra.mxu0 %v2962
    %3025 = vmatprep.subr.bf16.mxu0 0
    %3026 = vmatpush1.bf16.msra.mxu0 %v2963
    %3027 = vmatprep.subr.bf16.mxu0 0
    %3028 = vmatpush1.bf16.msra.mxu0 %v2964
    %3029 = vmatprep.mubr.bf16.mxu0 %v2851
    %3030 = vmatmul.mubr.bf16.gmra.mrb[0].mxu0 %v2850
    %v3031 = vpop.f32.mrb[0].mxu0
    %v3032 = vadd.f32 0.0, %v3031
    %v3033 = vpop.f32.mrb[0].mxu0
    %v3034 = vpop.f32.mrb[0].mxu0
    %v3035 = vadd.f32 0.0, %v3034
    %v3036 = vpop.f32.mrb[0].mxu0
    %3037 = vdwg.mxu0
    %3038 = vmatprep.subr.bf16.mxu0 0
    %3039 = vmatpush1.bf16.msra.mxu0 %v2965
    %3040 = vmatprep.subr.bf16.mxu0 0
    %3041 = vmatpush1.bf16.msra.mxu0 %v2966
    %3042 = vmatprep.subr.bf16.mxu0 0
    %3043 = vmatpush1.bf16.msra.mxu0 %v2967
    %3044 = vmatprep.subr.bf16.mxu0 0
    %3045 = vmatpush1.bf16.msra.mxu0 %v2968
    %3046 = vmatprep.subr.bf16.mxu0 0
    %3047 = vmatpush1.bf16.msra.mxu0 %v2969
    %3048 = vmatprep.subr.bf16.mxu0 0
    %3049 = vmatpush1.bf16.msra.mxu0 %v2970
    %3050 = vmatprep.subr.bf16.mxu0 0
    %3051 = vmatpush1.bf16.msra.mxu0 %v2971
    %3052 = vmatprep.subr.bf16.mxu0 0
    %3053 = vmatpush1.bf16.msra.mxu0 %v2972
    %3054 = vmatprep.subr.bf16.mxu0 0
    %3055 = vmatpush1.bf16.msra.mxu0 0
    %3056 = vmatprep.subr.bf16.mxu0 0
    %3057 = vmatpush1.bf16.msra.mxu0 0
    %3058 = vmatprep.subr.bf16.mxu0 0
    %3059 = vmatpush1.bf16.msra.mxu0 0
    %3060 = vmatprep.subr.bf16.mxu0 0
    %3061 = vmatpush1.bf16.msra.mxu0 0
    %3062 = vmatprep.subr.bf16.mxu0 0
    %3063 = vmatpush1.bf16.msra.mxu0 0
    %3064 = vmatprep.subr.bf16.mxu0 0
    %3065 = vmatpush1.bf16.msra.mxu0 0
    %3066 = vmatprep.subr.bf16.mxu0 0
    %3067 = vmatpush1.bf16.msra.mxu0 0
    %3068 = vmatprep.subr.bf16.mxu0 0
    %3069 = vmatpush1.bf16.msra.mxu0 0
    %3070 = vmatprep.mubr.bf16.mxu0 0
    %3071 = vmatmul.mubr.bf16.gmra.mrb[0].mxu0 %v2852
    %v3072 = vpop.f32.mrb[0].mxu0
    %v3073 = vadd.f32 %v3032, %v3072
    %v3074 = vpop.f32.mrb[0].mxu0
    %v3075 = vpop.f32.mrb[0].mxu0
    %v3076 = vadd.f32 %v3035, %v3075
    %v3077 = vpop.f32.mrb[0].mxu0
    %3078 = vdwg.mxu0
    %3079 = vxpose.xlu0.b32.start [1/16] %v3073, 128
    %3080 = vxpose.xlu0.b32.cont [2/16] %v3076, 128
    %3081 = vxpose.xlu0.b32.cont [3/16] 0.0, 128
    %3082 = vxpose.xlu0.b32.cont [4/16] 0.0, 128
    %3083 = vxpose.xlu0.b32.cont [5/16] 0.0, 128
    %3084 = vxpose.xlu0.b32.cont [6/16] 0.0, 128
    %3085 = vxpose.xlu0.b32.cont [7/16] 0.0, 128
    %3086 = vxpose.xlu0.b32.cont [8/16] 0.0, 128
    %3087 = vxpose.xlu0.b32.cont [9/16] 0.0, 128
    %3088 = vxpose.xlu0.b32.cont [10/16] 0.0, 128
    %3089 = vxpose.xlu0.b32.cont [11/16] 0.0, 128
    %3090 = vxpose.xlu0.b32.cont [12/16] 0.0, 128
    %3091 = vxpose.xlu0.b32.cont [13/16] 0.0, 128
    %3092 = vxpose.xlu0.b32.cont [14/16] 0.0, 128
    %3093 = vxpose.xlu0.b32.cont [15/16] 0.0, 128
    %3094 = vxpose.xlu0.b32.end [16/16] 0.0, 128
    %v3095 = vpop.trf.xlu0
    %v3096 = vpop.trf.xlu0
    %v3097 = vpop.trf.xlu0
    %v3098 = vpop.trf.xlu0
    %v3099 = vpop.trf.xlu0
    %v3100 = vpop.trf.xlu0
    %v3101 = vpop.trf.xlu0
    %v3102 = vpop.trf.xlu0
    %v3103 = vpop.trf.xlu0
    %v3104 = vpop.trf.xlu0
    %v3105 = vpop.trf.xlu0
    %v3106 = vpop.trf.xlu0
    %v3107 = vpop.trf.xlu0
    %v3108 = vpop.trf.xlu0
    %v3109 = vpop.trf.xlu0
    %v3110 = vpop.trf.xlu0
    %3112 = vset.pattern.permute.xlu0 1
    %3113 = vperm.xlu0 %3112, %v3073
    %v3114 = vpop.permute.xlu0 %3113
    %3117 = vset.pattern.permute.xlu0 1
    %3118 = vperm.xlu0 %3117, %v3076
    %v3119 = vpop.permute.xlu0 %3118
    %v3121 = vlaneseq
    %v3122 = vshrl.u32 %v3121, 7
    %v3123 = vsub.s32 0, %v3122
    %v3124 = vrot.slane %v3095, %v3123
    %v3125 = vadd.f32 %v3114, %v3124
    %v3126 = vadd.f32 %v3119, %v3124
    %vm3127 = vcmp.ge.f32.partialorder %v3125, 0.0
    %vm3128 = vcmp.ge.f32.partialorder %v3126, 0.0
    %v3129 = vmul.f32 %v3125, 0.2
    %v3130 = vmul.f32 %v3126, 0.2
    %v3131 = vsel %vm3127, %v3125, %v3129
    %v3132 = vsel %vm3128, %v3126, %v3130
    %v3133 = vsel %vm224, %v3131, -1e+30
    %v3134 = vsel %vm225, %v3132, -1e+30
    %v3135 = vsel %vm601, %v3133, -inf
    %3136 = vmax.xlane.f32.xlu0 %v3135
    %v3137 = vpop.xlane.xlu0 %3136
    %v3138 = vsel %vm601, %v3134, -inf
    %3139 = vmax.xlane.f32.xlu0 %v3138
    %v3140 = vpop.xlane.xlu0 %3139
    %v3141 = vsub.f32 %v3133, %v3137
    %v3142 = vsub.f32 %v3134, %v3140
    %v3143 = vmul.f32 %v3141, 1.442695
    %v3144 = vpow.pop %v3143
    %v3145 = vmul.f32 %v3142, 1.442695
    %v3146 = vpow.pop %v3145
    %v3147 = vsel %vm601, %v3144, 0.0
    %3148 = vadd.xlane.f32.xlu0 %v3147
    %v3149 = vpop.xlane.xlu0 %3148
    %v3150 = vsel %vm601, %v3146, 0.0
    %3151 = vadd.xlane.f32.xlu0 %v3150
    %v3152 = vpop.xlane.xlu0 %3151
    %v3153 = vrcp.pop %v3149
    %v3154 = vmul.f32 %v3144, %v3153
    %v3155 = vrcp.pop %v3152
    %v3156 = vmul.f32 %v3146, %v3155
    %v3158 = vlaneseq
    %v3159 = vshrl.u32 %v3158, 7
    %v3160 = vsub.s32 0, %v3159
    %v3161 = vrot.slane %v2165, %v3160
    %v3162 = vlaneseq
    %v3163 = vshrl.u32 %v3162, 7
    %v3164 = vsub.s32 1, %v3163
    %v3165 = vrot.slane %v2165, %v3164
    %v3166 = vlaneseq
    %v3167 = vshrl.u32 %v3166, 7
    %v3168 = vsub.s32 2, %v3167
    %v3169 = vrot.slane %v2165, %v3168
    %v3174 = vsel %vm601, %v3154, 0
    %v3177 = vsel %vm601, %v3156, 0
    %3179 = vmatprep.subr.mxu0 %v2762
    %3180 = vmatpush1.msra.mxu0 %v2760
    %3181 = vmatprep.subr.mxu0 %v2766
    %3182 = vmatpush1.msra.mxu0 %v2764
    %3183 = vmatprep.subr.mxu0 0.0
    %3184 = vmatpush1.msra.mxu0 0.0
    %3185 = vmatprep.subr.mxu0 0.0
    %3186 = vmatpush1.msra.mxu0 0.0
    %3187 = vmatprep.subr.mxu0 0.0
    %3188 = vmatpush1.msra.mxu0 0.0
    %3189 = vmatprep.subr.mxu0 0.0
    %3190 = vmatpush1.msra.mxu0 0.0
    %3191 = vmatprep.subr.mxu0 0.0
    %3192 = vmatpush1.msra.mxu0 0.0
    %3193 = vmatprep.subr.mxu0 0.0
    %3194 = vmatpush1.msra.mxu0 0.0
    %3195 = vmatprep.subr.mxu0 0.0
    %3196 = vmatpush1.msra.mxu0 0.0
    %3197 = vmatprep.subr.mxu0 0.0
    %3198 = vmatpush1.msra.mxu0 0.0
    %3199 = vmatprep.subr.mxu0 0.0
    %3200 = vmatpush1.msra.mxu0 0.0
    %3201 = vmatprep.subr.mxu0 0.0
    %3202 = vmatpush1.msra.mxu0 0.0
    %3203 = vmatprep.subr.mxu0 0.0
    %3204 = vmatpush1.msra.mxu0 0.0
    %3205 = vmatprep.subr.mxu0 0.0
    %3206 = vmatpush1.msra.mxu0 0.0
    %3207 = vmatprep.subr.mxu0 0.0
    %3208 = vmatpush1.msra.mxu0 0.0
    %3209 = vmatprep.subr.mxu0 0.0
    %3210 = vmatpush1.msra.mxu0 0.0
    %3211 = vmatprep.subr.mxu0 0.0
    %3212 = vmatpush1.msra.mxu0 0.0
    %3213 = vmatprep.subr.mxu0 0.0
    %3214 = vmatpush1.msra.mxu0 0.0
    %3215 = vmatprep.subr.mxu0 0.0
    %3216 = vmatpush1.msra.mxu0 0.0
    %3217 = vmatprep.subr.mxu0 0.0
    %3218 = vmatpush1.msra.mxu0 0.0
    %3219 = vmatprep.subr.mxu0 0.0
    %3220 = vmatpush1.msra.mxu0 0.0
    %3221 = vmatprep.subr.mxu0 0.0
    %3222 = vmatpush1.msra.mxu0 0.0
    %3223 = vmatprep.subr.mxu0 0.0
    %3224 = vmatpush1.msra.mxu0 0.0
    %3225 = vmatprep.subr.mxu0 0.0
    %3226 = vmatpush1.msra.mxu0 0.0
    %3227 = vmatprep.subr.mxu0 0.0
    %3228 = vmatpush1.msra.mxu0 0.0
    %3229 = vmatprep.subr.mxu0 0.0
    %3230 = vmatpush1.msra.mxu0 0.0
    %3231 = vmatprep.subr.mxu0 0.0
    %3232 = vmatpush1.msra.mxu0 0.0
    %3233 = vmatprep.subr.mxu0 0.0
    %3234 = vmatpush1.msra.mxu0 0.0
    %3235 = vmatprep.subr.mxu0 0.0
    %3236 = vmatpush1.msra.mxu0 0.0
    %3237 = vmatprep.subr.mxu0 0.0
    %3238 = vmatpush1.msra.mxu0 0.0
    %3239 = vmatprep.subr.mxu0 0.0
    %3240 = vmatpush1.msra.mxu0 0.0
    %3241 = vmatprep.subr.mxu0 0.0
    %3242 = vmatpush1.msra.mxu0 0.0
    %3243 = vmatprep.mubr.f32.mxu0 0.0
    %3244 = vmatmul.mubr.f32.gmra.mrb[0].mxu0 %v3174
    %v3245 = vpop.f32.mrb[0].mxu0
    %v3246 = vadd.f32 %v3161, %v3245
    %v3247 = vpop.f32.mrb[0].mxu0
    %v3248 = vadd.f32 %v3165, %v3247
    %3249 = vmatprep.mubr.f32.mxu0 0.0
    %3250 = vmatmul.mubr.f32.gmra.mrb[0].mxu0 %v3177
    %v3251 = vpop.f32.mrb[0].mxu0
    %v3252 = vadd.f32 %v3161, %v3251
    %v3253 = vpop.f32.mrb[0].mxu0
    %v3254 = vadd.f32 %v3165, %v3253
    %3255 = vdwg.mxu0
    %3256 = vmatprep.subr.mxu0 0.0
    %3257 = vmatpush1.msra.mxu0 %v2844
    %3258 = vmatprep.subr.mxu0 0.0
    %3259 = vmatpush1.msra.mxu0 %v2847
    %3260 = vmatprep.subr.mxu0 0.0
    %3261 = vmatpush1.msra.mxu0 0.0
    %3262 = vmatprep.subr.mxu0 0.0
    %3263 = vmatpush1.msra.mxu0 0.0
    %3264 = vmatprep.subr.mxu0 0.0
    %3265 = vmatpush1.msra.mxu0 0.0
    %3266 = vmatprep.subr.mxu0 0.0
    %3267 = vmatpush1.msra.mxu0 0.0
    %3268 = vmatprep.subr.mxu0 0.0
    %3269 = vmatpush1.msra.mxu0 0.0
    %3270 = vmatprep.subr.mxu0 0.0
    %3271 = vmatpush1.msra.mxu0 0.0
    %3272 = vmatprep.subr.mxu0 0.0
    %3273 = vmatpush1.msra.mxu0 0.0
    %3274 = vmatprep.subr.mxu0 0.0
    %3275 = vmatpush1.msra.mxu0 0.0
    %3276 = vmatprep.subr.mxu0 0.0
    %3277 = vmatpush1.msra.mxu0 0.0
    %3278 = vmatprep.subr.mxu0 0.0
    %3279 = vmatpush1.msra.mxu0 0.0
    %3280 = vmatprep.subr.mxu0 0.0
    %3281 = vmatpush1.msra.mxu0 0.0
    %3282 = vmatprep.subr.mxu0 0.0
    %3283 = vmatpush1.msra.mxu0 0.0
    %3284 = vmatprep.subr.mxu0 0.0
    %3285 = vmatpush1.msra.mxu0 0.0
    %3286 = vmatprep.subr.mxu0 0.0
    %3287 = vmatpush1.msra.mxu0 0.0
    %3288 = vmatprep.subr.mxu0 0.0
    %3289 = vmatpush1.msra.mxu0 0.0
    %3290 = vmatprep.subr.mxu0 0.0
    %3291 = vmatpush1.msra.mxu0 0.0
    %3292 = vmatprep.subr.mxu0 0.0
    %3293 = vmatpush1.msra.mxu0 0.0
    %3294 = vmatprep.subr.mxu0 0.0
    %3295 = vmatpush1.msra.mxu0 0.0
    %3296 = vmatprep.subr.mxu0 0.0
    %3297 = vmatpush1.msra.mxu0 0.0
    %3298 = vmatprep.subr.mxu0 0.0
    %3299 = vmatpush1.msra.mxu0 0.0
    %3300 = vmatprep.subr.mxu0 0.0
    %3301 = vmatpush1.msra.mxu0 0.0
    %3302 = vmatprep.subr.mxu0 0.0
    %3303 = vmatpush1.msra.mxu0 0.0
    %3304 = vmatprep.subr.mxu0 0.0
    %3305 = vmatpush1.msra.mxu0 0.0
    %3306 = vmatprep.subr.mxu0 0.0
    %3307 = vmatpush1.msra.mxu0 0.0
    %3308 = vmatprep.subr.mxu0 0.0
    %3309 = vmatpush1.msra.mxu0 0.0
    %3310 = vmatprep.subr.mxu0 0.0
    %3311 = vmatpush1.msra.mxu0 0.0
    %3312 = vmatprep.subr.mxu0 0.0
    %3313 = vmatpush1.msra.mxu0 0.0
    %3314 = vmatprep.subr.mxu0 0.0
    %3315 = vmatpush1.msra.mxu0 0.0
    %3316 = vmatprep.subr.mxu0 0.0
    %3317 = vmatpush1.msra.mxu0 0.0
    %3318 = vmatprep.subr.mxu0 0.0
    %3319 = vmatpush1.msra.mxu0 0.0
    %3320 = vmatprep.mubr.f32.mxu0 0.0
    %3321 = vmatmul.mubr.f32.gmra.mrb[0].mxu0 %v3174
    %v3322 = vpop.f32.mrb[0].mxu0
    %v3323 = vadd.f32 %v3169, %v3322
    %v3324 = vpop.f32.mrb[0].mxu0
    %3325 = vmatprep.mubr.f32.mxu0 0.0
    %3326 = vmatmul.mubr.f32.gmra.mrb[0].mxu0 %v3177
    %v3327 = vpop.f32.mrb[0].mxu0
    %v3328 = vadd.f32 %v3169, %v3327
    %v3329 = vpop.f32.mrb[0].mxu0
    %3330 = vdwg.mxu0
    %v3331 = vld [vmem:[#allocation11] sm:$0xff]
    %v3332 = vld [vmem:[#allocation11 + $0x8] sm:$0xff]
    %v3333 = vld [vmem:[#allocation11 + $0x10] sm:$0xff]
    %vm3334 = vcmp.gt.f32.partialorder %v3331, 0.0
    %vm3335 = vcmp.gt.f32.partialorder %v3332, 0.0
    %vm3336 = vcmp.gt.f32.partialorder %v3333, 0.0
    %v3337 = vld [vmem:[#allocation9] sm:$0xf]
    %v3338 = vld [vmem:[#allocation9 + $0x4] sm:$0xf]
    %v3339 = vld [vmem:[#allocation9 + $0x8] sm:$0xf]
    %v3340 = vld [vmem:[#allocation15 + $0x8] sm:$0xf]
    %v3341 = vld [vmem:[#allocation15 + $0x1c] sm:$0xf]
    %v3342 = vld [vmem:[#allocation15 + $0x30] sm:$0xf]
    %v3343 = vld [vmem:[#allocation15 + $0x44] sm:$0xf]
    %v3344 = vld [vmem:[#allocation15 + $0x58] sm:$0xf]
    %v3345 = vld [vmem:[#allocation15 + $0x6c] sm:$0xf]
    %v3346 = vld [vmem:[#allocation15 + $0x80] sm:$0xf]
    %v3347 = vld [vmem:[#allocation15 + $0x94] sm:$0xf]
    %v3348 = vld [vmem:[#allocation15 + $0xa8] sm:$0xf]
    %v3349 = vld [vmem:[#allocation15 + $0xbc] sm:$0xf]
    %v3350 = vld [vmem:[#allocation15 + $0xd0] sm:$0xf]
    %v3351 = vld [vmem:[#allocation15 + $0xe4] sm:$0xf]
    %v3352 = vld [vmem:[#allocation15 + $0xf8] sm:$0xf]
    %v3353 = vld [vmem:[#allocation15 + $0x10c] sm:$0xf]
    %v3354 = vld [vmem:[#allocation15 + $0x120] sm:$0xf]
    %v3355 = vld [vmem:[#allocation15 + $0x134] sm:$0xf]
    %v3356 = vld [vmem:[#allocation17 + $0x9] sm:$0x1]
    %v3357 = vld [vmem:[#allocation12] sm:$0xff]
    %v3358 = vld [vmem:[#allocation12 + $0x8] sm:$0xff]
    %v3359 = vld [vmem:[#allocation12 + $0x10] sm:$0xff]
    %v3363 = vunpack.c.l.b16 %v3337
    %v3364 = vunpack.c.l.b16 %v3338
    %v3365 = vunpack.c.l.b16 %v3339
    %v3366 = vpack.c.b16 %v3364, %v3363
    %v3367 = vpack.c.b16 %v3365, %v3365
    %v3386 = vunpack.c.l.b16 %v3340
    %v3387 = vunpack.c.l.b16 %v3341
    %v3388 = vunpack.c.l.b16 %v3342
    %v3389 = vunpack.c.l.b16 %v3343
    %v3390 = vunpack.c.l.b16 %v3344
    %v3391 = vunpack.c.l.b16 %v3345
    %v3392 = vunpack.c.l.b16 %v3346
    %v3393 = vunpack.c.l.b16 %v3347
    %v3394 = vunpack.c.l.b16 %v3348
    %v3395 = vunpack.c.l.b16 %v3349
    %v3396 = vunpack.c.l.b16 %v3350
    %v3397 = vunpack.c.l.b16 %v3351
    %v3398 = vunpack.c.l.b16 %v3352
    %v3399 = vunpack.c.l.b16 %v3353
    %v3400 = vunpack.c.l.b16 %v3354
    %v3401 = vunpack.c.l.b16 %v3355
    %v3402 = vpack.c.b16 %v3387, %v3386
    %v3403 = vpack.c.b16 %v3389, %v3388
    %v3404 = vpack.c.b16 %v3391, %v3390
    %v3405 = vpack.c.b16 %v3393, %v3392
    %v3406 = vpack.c.b16 %v3395, %v3394
    %v3407 = vpack.c.b16 %v3397, %v3396
    %v3408 = vpack.c.b16 %v3399, %v3398
    %v3409 = vpack.c.b16 %v3401, %v3400
    %3418 = vmatprep.subr.bf16.mxu0 0
    %3419 = vmatpush1.bf16.msra.mxu0 %v3402
    %3420 = vmatprep.subr.bf16.mxu0 0
    %3421 = vmatpush1.bf16.msra.mxu0 %v3403
    %3422 = vmatprep.subr.bf16.mxu0 0
    %3423 = vmatpush1.bf16.msra.mxu0 %v3404
    %3424 = vmatprep.subr.bf16.mxu0 0
    %3425 = vmatpush1.bf16.msra.mxu0 %v3405
    %3426 = vmatprep.subr.bf16.mxu0 0
    %3427 = vmatpush1.bf16.msra.mxu0 %v3406
    %3428 = vmatprep.subr.bf16.mxu0 0
    %3429 = vmatpush1.bf16.msra.mxu0 %v3407
    %3430 = vmatprep.subr.bf16.mxu0 0
    %3431 = vmatpush1.bf16.msra.mxu0 %v3408
    %3432 = vmatprep.subr.bf16.mxu0 0
    %3433 = vmatpush1.bf16.msra.mxu0 %v3409
    %3434 = vmatprep.subr.bf16.mxu0 0
    %3435 = vmatpush1.bf16.msra.mxu0 0
    %3436 = vmatprep.subr.bf16.mxu0 0
    %3437 = vmatpush1.bf16.msra.mxu0 0
    %3438 = vmatprep.subr.bf16.mxu0 0
    %3439 = vmatpush1.bf16.msra.mxu0 0
    %3440 = vmatprep.subr.bf16.mxu0 0
    %3441 = vmatpush1.bf16.msra.mxu0 0
    %3442 = vmatprep.subr.bf16.mxu0 0
    %3443 = vmatpush1.bf16.msra.mxu0 0
    %3444 = vmatprep.subr.bf16.mxu0 0
    %3445 = vmatpush1.bf16.msra.mxu0 0
    %3446 = vmatprep.subr.bf16.mxu0 0
    %3447 = vmatpush1.bf16.msra.mxu0 0
    %3448 = vmatprep.subr.bf16.mxu0 0
    %3449 = vmatpush1.bf16.msra.mxu0 0
    %3450 = vmatprep.mubr.bf16.mxu0 0
    %3451 = vmatmul.mubr.bf16.gmra.mrb[0].mxu0 %v3366
    %v3452 = vpop.f32.mrb[0].mxu0
    %v3453 = vadd.f32 0.0, %v3452
    %v3454 = vpop.f32.mrb[0].mxu0
    %v3455 = vpop.f32.mrb[0].mxu0
    %v3456 = vadd.f32 0.0, %v3455
    %v3457 = vpop.f32.mrb[0].mxu0
    %3458 = vmatprep.mubr.bf16.mxu0 0
    %3459 = vmatmul.mubr.bf16.gmra.mrb[0].mxu0 %v3367
    %v3460 = vpop.f32.mrb[0].mxu0
    %v3461 = vadd.f32 0.0, %v3460
    %v3462 = vpop.f32.mrb[0].mxu0
    %v3463 = vpop.f32.mrb[0].mxu0
    %v3464 = vpop.f32.mrb[0].mxu0
    %3465 = vdwg.mxu0
    %vm3466 = vcmask 195584
    %v3467 = vsel %vm3466, %v3357, 0.0
    %3468 = vadd.xlane.f32.xlu0 %v3467
    %v3469 = vpop.xlane.xlu0 %3468
    %v3470 = vsel %vm3466, %v3358, 0.0
    %3471 = vadd.xlane.f32.xlu0 %v3470
    %v3472 = vpop.xlane.xlu0 %3471
    %v3473 = vsel %vm3466, %v3359, 0.0
    %3474 = vadd.xlane.f32.xlu0 %v3473
    %v3475 = vpop.xlane.xlu0 %3474
    %vm3476 = vcmp.gt.f32.partialorder %v3469, 0.0
    %vm3477 = vcmp.gt.f32.partialorder %v3472, 0.0
    %vm3478 = vcmp.gt.f32.partialorder %v3475, 0.0
    %v3479 = vrsqrt.pop %v3469
    %v3480 = vrsqrt.pop %v3472
    %v3481 = vrsqrt.pop %v3475
    %v3482 = vsel %vm3476, %v3479, 0.0
    %v3483 = vsel %vm3477, %v3480, 0.0
    %v3484 = vsel %vm3478, %v3481, 0.0
    %v3485 = vmul.f32 %v3482, %v3453
    %v3486 = vmul.f32 %v3483, %v3456
    %v3487 = vmul.f32 %v3484, %v3461
    %v3489 = vsel %vm3466, %v3357, 0
    %v3492 = vsel %vm3466, %v3358, 0
    %v3495 = vsel %vm3466, %v3359, 0
    %3497 = vmatprep.subr.mxu0 0.0
    %3498 = vmatpush1.msra.mxu0 %v3485
    %3499 = vmatprep.subr.mxu0 0.0
    %3500 = vmatpush1.msra.mxu0 %v3486
    %3501 = vmatprep.subr.mxu0 0.0
    %3502 = vmatpush1.msra.mxu0 %v3487
    %3503 = vmatprep.subr.mxu0 0.0
    %3504 = vmatpush1.msra.mxu0 0.0
    %3505 = vmatprep.subr.mxu0 0.0
    %3506 = vmatpush1.msra.mxu0 0.0
    %3507 = vmatprep.subr.mxu0 0.0
    %3508 = vmatpush1.msra.mxu0 0.0
    %3509 = vmatprep.subr.mxu0 0.0
    %3510 = vmatpush1.msra.mxu0 0.0
    %3511 = vmatprep.subr.mxu0 0.0
    %3512 = vmatpush1.msra.mxu0 0.0
    %3513 = vmatprep.subr.mxu0 0.0
    %3514 = vmatpush1.msra.mxu0 0.0
    %3515 = vmatprep.subr.mxu0 0.0
    %3516 = vmatpush1.msra.mxu0 0.0
    %3517 = vmatprep.subr.mxu0 0.0
    %3518 = vmatpush1.msra.mxu0 0.0
    %3519 = vmatprep.subr.mxu0 0.0
    %3520 = vmatpush1.msra.mxu0 0.0
    %3521 = vmatprep.subr.mxu0 0.0
    %3522 = vmatpush1.msra.mxu0 0.0
    %3523 = vmatprep.subr.mxu0 0.0
    %3524 = vmatpush1.msra.mxu0 0.0
    %3525 = vmatprep.subr.mxu0 0.0
    %3526 = vmatpush1.msra.mxu0 0.0
    %3527 = vmatprep.subr.mxu0 0.0
    %3528 = vmatpush1.msra.mxu0 0.0
    %3529 = vmatprep.subr.mxu0 0.0
    %3530 = vmatpush1.msra.mxu0 0.0
    %3531 = vmatprep.subr.mxu0 0.0
    %3532 = vmatpush1.msra.mxu0 0.0
    %3533 = vmatprep.subr.mxu0 0.0
    %3534 = vmatpush1.msra.mxu0 0.0
    %3535 = vmatprep.subr.mxu0 0.0
    %3536 = vmatpush1.msra.mxu0 0.0
    %3537 = vmatprep.subr.mxu0 0.0
    %3538 = vmatpush1.msra.mxu0 0.0
    %3539 = vmatprep.subr.mxu0 0.0
    %3540 = vmatpush1.msra.mxu0 0.0
    %3541 = vmatprep.subr.mxu0 0.0
    %3542 = vmatpush1.msra.mxu0 0.0
    %3543 = vmatprep.subr.mxu0 0.0
    %3544 = vmatpush1.msra.mxu0 0.0
    %3545 = vmatprep.subr.mxu0 0.0
    %3546 = vmatpush1.msra.mxu0 0.0
    %3547 = vmatprep.subr.mxu0 0.0
    %3548 = vmatpush1.msra.mxu0 0.0
    %3549 = vmatprep.subr.mxu0 0.0
    %3550 = vmatpush1.msra.mxu0 0.0
    %3551 = vmatprep.subr.mxu0 0.0
    %3552 = vmatpush1.msra.mxu0 0.0
    %3553 = vmatprep.subr.mxu0 0.0
    %3554 = vmatpush1.msra.mxu0 0.0
    %3555 = vmatprep.subr.mxu0 0.0
    %3556 = vmatpush1.msra.mxu0 0.0
    %3557 = vmatprep.subr.mxu0 0.0
    %3558 = vmatpush1.msra.mxu0 0.0
    %3559 = vmatprep.subr.mxu0 0.0
    %3560 = vmatpush1.msra.mxu0 0.0
    %3561 = vmatprep.mubr.f32.mxu0 0.0
    %3562 = vmatmul.mubr.f32.gmra.mrb[0].mxu0 %v3489
    %v3563 = vpop.f32.mrb[0].mxu0
    %v3564 = vadd.f32 0.0, %v3563
    %v3565 = vpop.f32.mrb[0].mxu0
    %3566 = vmatprep.mubr.f32.mxu0 0.0
    %3567 = vmatmul.mubr.f32.gmra.mrb[0].mxu0 %v3492
    %v3568 = vpop.f32.mrb[0].mxu0
    %v3569 = vadd.f32 0.0, %v3568
    %v3570 = vpop.f32.mrb[0].mxu0
    %3571 = vmatprep.mubr.f32.mxu0 0.0
    %3572 = vmatmul.mubr.f32.gmra.mrb[0].mxu0 %v3495
    %v3573 = vpop.f32.mrb[0].mxu0
    %v3574 = vadd.f32 0.0, %v3573
    %v3575 = vpop.f32.mrb[0].mxu0
    %3576 = vdwg.mxu0
    %v3577 = vmul.f32 %v3482, %v3564
    %v3578 = vmul.f32 %v3483, %v3569
    %v3579 = vmul.f32 %v3484, %v3574
    %v3581 = vlaneseq
    %v3582 = vshrl.u32 %v3581, 7
    %v3583 = vsub.s32 0, %v3582
    %v3584 = vrot.slane %v3356, %v3583
    %v3586 = vadd.f32 %v3577, %v3584
    %v3587 = vadd.f32 %v3578, %v3584
    %v3588 = vadd.f32 %v3579, %v3584
    %v3589 = vmax.f32 %v3586, 0.0
    %v3590 = vmax.f32 %v3587, 0.0
    %v3591 = vmax.f32 %v3588, 0.0
    %v3592 = vld [vmem:[#allocation15 + $0xc] sm:$0xff]
    %v3593 = vld [vmem:[#allocation15 + $0x20] sm:$0xff]
    %v3594 = vld [vmem:[#allocation15 + $0x34] sm:$0xff]
    %v3595 = vld [vmem:[#allocation15 + $0x48] sm:$0xff]
    %v3596 = vld [vmem:[#allocation15 + $0x5c] sm:$0xff]
    %v3597 = vld [vmem:[#allocation15 + $0x70] sm:$0xff]
    %v3598 = vld [vmem:[#allocation15 + $0x84] sm:$0xff]
    %v3599 = vld [vmem:[#allocation15 + $0x98] sm:$0xff]
    %v3600 = vld [vmem:[#allocation15 + $0xac] sm:$0xff]
    %v3601 = vld [vmem:[#allocation15 + $0xc0] sm:$0xff]
    %v3602 = vld [vmem:[#allocation15 + $0xd4] sm:$0xff]
    %v3603 = vld [vmem:[#allocation15 + $0xe8] sm:$0xff]
    %v3604 = vld [vmem:[#allocation15 + $0xfc] sm:$0xff]
    %v3605 = vld [vmem:[#allocation15 + $0x110] sm:$0xff]
    %v3606 = vld [vmem:[#allocation15 + $0x124] sm:$0xff]
    %v3607 = vld [vmem:[#allocation15 + $0x138] sm:$0xff]
    %v3608 = vld [vmem:[#allocation15 + $0x3d0] sm:$0xf]
    %v3609 = vld [vmem:[#allocation15 + $0x3e4] sm:$0xf]
    %v3610 = vld [vmem:[#allocation15 + $0x3f8] sm:$0xf]
    %v3611 = vld [vmem:[#allocation15 + $0x40c] sm:$0xf]
    %v3612 = vld [vmem:[#allocation15 + $0x420] sm:$0xf]
    %v3613 = vld [vmem:[#allocation15 + $0x434] sm:$0xf]
    %v3614 = vld [vmem:[#allocation15 + $0x448] sm:$0xf]
    %v3615 = vld [vmem:[#allocation15 + $0x45c] sm:$0xf]
    %v3616 = vld [vmem:[#allocation15 + $0x470] sm:$0xf]
    %v3617 = vld [vmem:[#allocation15 + $0x484] sm:$0xf]
    %v3618 = vld [vmem:[#allocation15 + $0x498] sm:$0xf]
    %v3619 = vld [vmem:[#allocation15 + $0x4ac] sm:$0xf]
    %v3620 = vld [vmem:[#allocation15 + $0x4c0] sm:$0xf]
    %v3621 = vld [vmem:[#allocation15 + $0x4d4] sm:$0xf]
    %v3622 = vld [vmem:[#allocation15 + $0x4e8] sm:$0xf]
    %v3623 = vld [vmem:[#allocation15 + $0x4fc] sm:$0xf]
    %v3624 = vld [vmem:[#allocation15 + $0x510] sm:$0xf]
    %v3625 = vld [vmem:[#allocation15 + $0x524] sm:$0xf]
    %v3626 = vld [vmem:[#allocation15 + $0x538] sm:$0xf]
    %v3627 = vld [vmem:[#allocation15 + $0x54c] sm:$0xf]
    %v3628 = vld [vmem:[#allocation15 + $0x560] sm:$0xf]
    %v3629 = vld [vmem:[#allocation15 + $0x574] sm:$0xf]
    %v3630 = vld [vmem:[#allocation15 + $0x588] sm:$0xf]
    %v3631 = vld [vmem:[#allocation15 + $0x59c] sm:$0xf]
    %v3632 = vld [vmem:[#allocation15 + $0x5b0] sm:$0xf]
    %v3633 = vld [vmem:[#allocation15 + $0x5c4] sm:$0xf]
    %v3634 = vld [vmem:[#allocation15 + $0x5d8] sm:$0xf]
    %v3635 = vld [vmem:[#allocation15 + $0x5ec] sm:$0xf]
    %v3636 = vld [vmem:[#allocation15 + $0x600] sm:$0xf]
    %v3637 = vld [vmem:[#allocation15 + $0x614] sm:$0xf]
    %v3638 = vld [vmem:[#allocation15 + $0x628] sm:$0xf]
    %v3639 = vld [vmem:[#allocation15 + $0x63c] sm:$0xf]
    %v3640 = vld [vmem:[#allocation17 + $0xa] sm:$0x3]
    %v3641 = vpack.c.bf16 %v3590, %v3589
    %v3642 = vpack.c.bf16 %v3591, %v3591
    %v3659 = vunpack.c.l.b16 %v3592
    %v3660 = vunpack.c.h.b16 %v3592
    %v3661 = vunpack.c.l.b16 %v3593
    %v3662 = vunpack.c.h.b16 %v3593
    %v3663 = vunpack.c.l.b16 %v3594
    %v3664 = vunpack.c.h.b16 %v3594
    %v3665 = vunpack.c.l.b16 %v3595
    %v3666 = vunpack.c.h.b16 %v3595
    %v3667 = vunpack.c.l.b16 %v3596
    %v3668 = vunpack.c.h.b16 %v3596
    %v3669 = vunpack.c.l.b16 %v3597
    %v3670 = vunpack.c.h.b16 %v3597
    %v3671 = vunpack.c.l.b16 %v3598
    %v3672 = vunpack.c.h.b16 %v3598
    %v3673 = vunpack.c.l.b16 %v3599
    %v3674 = vunpack.c.h.b16 %v3599
    %v3675 = vunpack.c.l.b16 %v3600
    %v3676 = vunpack.c.h.b16 %v3600
    %v3677 = vunpack.c.l.b16 %v3601
    %v3678 = vunpack.c.h.b16 %v3601
    %v3679 = vunpack.c.l.b16 %v3602
    %v3680 = vunpack.c.h.b16 %v3602
    %v3681 = vunpack.c.l.b16 %v3603
    %v3682 = vunpack.c.h.b16 %v3603
    %v3683 = vunpack.c.l.b16 %v3604
    %v3684 = vunpack.c.h.b16 %v3604
    %v3685 = vunpack.c.l.b16 %v3605
    %v3686 = vunpack.c.h.b16 %v3605
    %v3687 = vunpack.c.l.b16 %v3606
    %v3688 = vunpack.c.h.b16 %v3606
    %v3689 = vunpack.c.l.b16 %v3607
    %v3690 = vunpack.c.h.b16 %v3607
    %v3691 = vpack.c.b16 %v3661, %v3659
    %v3692 = vpack.c.b16 %v3662, %v3660
    %v3693 = vpack.c.b16 %v3665, %v3663
    %v3694 = vpack.c.b16 %v3666, %v3664
    %v3695 = vpack.c.b16 %v3669, %v3667
    %v3696 = vpack.c.b16 %v3670, %v3668
    %v3697 = vpack.c.b16 %v3673, %v3671
    %v3698 = vpack.c.b16 %v3674, %v3672
    %v3699 = vpack.c.b16 %v3677, %v3675
    %v3700 = vpack.c.b16 %v3678, %v3676
    %v3701 = vpack.c.b16 %v3681, %v3679
    %v3702 = vpack.c.b16 %v3682, %v3680
    %v3703 = vpack.c.b16 %v3685, %v3683
    %v3704 = vpack.c.b16 %v3686, %v3684
    %v3705 = vpack.c.b16 %v3689, %v3687
    %v3706 = vpack.c.b16 %v3690, %v3688
    %3723 = vmatprep.subr.bf16.mxu0 %v3692
    %3724 = vmatpush1.bf16.msra.mxu0 %v3691
    %3725 = vmatprep.subr.bf16.mxu0 %v3694
    %3726 = vmatpush1.bf16.msra.mxu0 %v3693
    %3727 = vmatprep.subr.bf16.mxu0 %v3696
    %3728 = vmatpush1.bf16.msra.mxu0 %v3695
    %3729 = vmatprep.subr.bf16.mxu0 %v3698
    %3730 = vmatpush1.bf16.msra.mxu0 %v3697
    %3731 = vmatprep.subr.bf16.mxu0 %v3700
    %3732 = vmatpush1.bf16.msra.mxu0 %v3699
    %3733 = vmatprep.subr.bf16.mxu0 %v3702
    %3734 = vmatpush1.bf16.msra.mxu0 %v3701
    %3735 = vmatprep.subr.bf16.mxu0 %v3704
    %3736 = vmatpush1.bf16.msra.mxu0 %v3703
    %3737 = vmatprep.subr.bf16.mxu0 %v3706
    %3738 = vmatpush1.bf16.msra.mxu0 %v3705
    %3739 = vmatprep.subr.bf16.mxu0 0
    %3740 = vmatpush1.bf16.msra.mxu0 0
    %3741 = vmatprep.subr.bf16.mxu0 0
    %3742 = vmatpush1.bf16.msra.mxu0 0
    %3743 = vmatprep.subr.bf16.mxu0 0
    %3744 = vmatpush1.bf16.msra.mxu0 0
    %3745 = vmatprep.subr.bf16.mxu0 0
    %3746 = vmatpush1.bf16.msra.mxu0 0
    %3747 = vmatprep.subr.bf16.mxu0 0
    %3748 = vmatpush1.bf16.msra.mxu0 0
    %3749 = vmatprep.subr.bf16.mxu0 0
    %3750 = vmatpush1.bf16.msra.mxu0 0
    %3751 = vmatprep.subr.bf16.mxu0 0
    %3752 = vmatpush1.bf16.msra.mxu0 0
    %3753 = vmatprep.subr.bf16.mxu0 0
    %3754 = vmatpush1.bf16.msra.mxu0 0
    %3755 = vmatprep.mubr.bf16.mxu0 0
    %3756 = vmatmul.mubr.bf16.gmra.mrb[0].mxu0 %v3641
    %v3757 = vpop.f32.mrb[0].mxu0
    %v3758 = vadd.f32 0.0, %v3757
    %v3759 = vpop.f32.mrb[0].mxu0
    %v3760 = vadd.f32 0.0, %v3759
    %v3761 = vpop.f32.mrb[0].mxu0
    %v3762 = vadd.f32 0.0, %v3761
    %v3763 = vpop.f32.mrb[0].mxu0
    %v3764 = vadd.f32 0.0, %v3763
    %3765 = vmatprep.mubr.bf16.mxu0 0
    %3766 = vmatmul.mubr.bf16.gmra.mrb[0].mxu0 %v3642
    %v3767 = vpop.f32.mrb[0].mxu0
    %v3768 = vadd.f32 0.0, %v3767
    %v3769 = vpop.f32.mrb[0].mxu0
    %v3770 = vadd.f32 0.0, %v3769
    %v3771 = vpop.f32.mrb[0].mxu0
    %v3772 = vpop.f32.mrb[0].mxu0
    %3773 = vdwg.mxu0
    %v3774 = vpack.c.bf16 %v3762, %v3758
    %v3775 = vpack.c.bf16 %v3764, %v3760
    %v3776 = vpack.c.bf16 %v3768, %v3768
    %v3777 = vpack.c.bf16 %v3770, %v3770
    %v3810 = vunpack.c.l.b16 %v3608
    %v3811 = vunpack.c.l.b16 %v3609
    %v3812 = vunpack.c.l.b16 %v3610
    %v3813 = vunpack.c.l.b16 %v3611
    %v3814 = vunpack.c.l.b16 %v3612
    %v3815 = vunpack.c.l.b16 %v3613
    %v3816 = vunpack.c.l.b16 %v3614
    %v3817 = vunpack.c.l.b16 %v3615
    %v3818 = vunpack.c.l.b16 %v3616
    %v3819 = vunpack.c.l.b16 %v3617
    %v3820 = vunpack.c.l.b16 %v3618
    %v3821 = vunpack.c.l.b16 %v3619
    %v3822 = vunpack.c.l.b16 %v3620
    %v3823 = vunpack.c.l.b16 %v3621
    %v3824 = vunpack.c.l.b16 %v3622
    %v3825 = vunpack.c.l.b16 %v3623
    %v3826 = vunpack.c.l.b16 %v3624
    %v3827 = vunpack.c.l.b16 %v3625
    %v3828 = vunpack.c.l.b16 %v3626
    %v3829 = vunpack.c.l.b16 %v3627
    %v3830 = vunpack.c.l.b16 %v3628
    %v3831 = vunpack.c.l.b16 %v3629
    %v3832 = vunpack.c.l.b16 %v3630
    %v3833 = vunpack.c.l.b16 %v3631
    %v3834 = vunpack.c.l.b16 %v3632
    %v3835 = vunpack.c.l.b16 %v3633
    %v3836 = vunpack.c.l.b16 %v3634
    %v3837 = vunpack.c.l.b16 %v3635
    %v3838 = vunpack.c.l.b16 %v3636
    %v3839 = vunpack.c.l.b16 %v3637
    %v3840 = vunpack.c.l.b16 %v3638
    %v3841 = vunpack.c.l.b16 %v3639
    %v3842 = vpack.c.b16 %v3811, %v3810
    %v3843 = vpack.c.b16 %v3813, %v3812
    %v3844 = vpack.c.b16 %v3815, %v3814
    %v3845 = vpack.c.b16 %v3817, %v3816
    %v3846 = vpack.c.b16 %v3819, %v3818
    %v3847 = vpack.c.b16 %v3821, %v3820
    %v3848 = vpack.c.b16 %v3823, %v3822
    %v3849 = vpack.c.b16 %v3825, %v3824
    %v3850 = vpack.c.b16 %v3827, %v3826
    %v3851 = vpack.c.b16 %v3829, %v3828
    %v3852 = vpack.c.b16 %v3831, %v3830
    %v3853 = vpack.c.b16 %v3833, %v3832
    %v3854 = vpack.c.b16 %v3835, %v3834
    %v3855 = vpack.c.b16 %v3837, %v3836
    %v3856 = vpack.c.b16 %v3839, %v3838
    %v3857 = vpack.c.b16 %v3841, %v3840
    %3874 = vmatprep.subr.bf16.mxu0 0
    %3875 = vmatpush1.bf16.msra.mxu0 %v3842
    %3876 = vmatprep.subr.bf16.mxu0 0
    %3877 = vmatpush1.bf16.msra.mxu0 %v3843
    %3878 = vmatprep.subr.bf16.mxu0 0
    %3879 = vmatpush1.bf16.msra.mxu0 %v3844
    %3880 = vmatprep.subr.bf16.mxu0 0
    %3881 = vmatpush1.bf16.msra.mxu0 %v3845
    %3882 = vmatprep.subr.bf16.mxu0 0
    %3883 = vmatpush1.bf16.msra.mxu0 %v3846
    %3884 = vmatprep.subr.bf16.mxu0 0
    %3885 = vmatpush1.bf16.msra.mxu0 %v3847
    %3886 = vmatprep.subr.bf16.mxu0 0
    %3887 = vmatpush1.bf16.msra.mxu0 %v3848
    %3888 = vmatprep.subr.bf16.mxu0 0
    %3889 = vmatpush1.bf16.msra.mxu0 %v3849
    %3890 = vmatprep.subr.bf16.mxu0 0
    %3891 = vmatpush1.bf16.msra.mxu0 %v3850
    %3892 = vmatprep.subr.bf16.mxu0 0
    %3893 = vmatpush1.bf16.msra.mxu0 %v3851
    %3894 = vmatprep.subr.bf16.mxu0 0
    %3895 = vmatpush1.bf16.msra.mxu0 %v3852
    %3896 = vmatprep.subr.bf16.mxu0 0
    %3897 = vmatpush1.bf16.msra.mxu0 %v3853
    %3898 = vmatprep.subr.bf16.mxu0 0
    %3899 = vmatpush1.bf16.msra.mxu0 %v3854
    %3900 = vmatprep.subr.bf16.mxu0 0
    %3901 = vmatpush1.bf16.msra.mxu0 %v3855
    %3902 = vmatprep.subr.bf16.mxu0 0
    %3903 = vmatpush1.bf16.msra.mxu0 %v3856
    %3904 = vmatprep.subr.bf16.mxu0 0
    %3905 = vmatpush1.bf16.msra.mxu0 %v3857
    %3906 = vmatprep.mubr.bf16.mxu0 %v3775
    %3907 = vmatmul.mubr.bf16.gmra.mrb[0].mxu0 %v3774
    %v3908 = vpop.f32.mrb[0].mxu0
    %v3909 = vadd.f32 0.0, %v3908
    %v3910 = vpop.f32.mrb[0].mxu0
    %v3911 = vpop.f32.mrb[0].mxu0
    %v3912 = vadd.f32 0.0, %v3911
    %v3913 = vpop.f32.mrb[0].mxu0
    %3914 = vmatprep.mubr.bf16.mxu0 %v3777
    %3915 = vmatmul.mubr.bf16.gmra.mrb[0].mxu0 %v3776
    %v3916 = vpop.f32.mrb[0].mxu0
    %v3917 = vadd.f32 0.0, %v3916
    %v3918 = vpop.f32.mrb[0].mxu0
    %v3919 = vpop.f32.mrb[0].mxu0
    %v3920 = vpop.f32.mrb[0].mxu0
    %3921 = vdwg.mxu0
    %3922 = vxpose.xlu0.b32.start [1/16] %v3909, 128
    %3923 = vxpose.xlu0.b32.cont [2/16] %v3912, 128
    %3924 = vxpose.xlu0.b32.cont [3/16] %v3917, 128
    %3925 = vxpose.xlu0.b32.cont [4/16] 0.0, 128
    %3926 = vxpose.xlu0.b32.cont [5/16] 0.0, 128
    %3927 = vxpose.xlu0.b32.cont [6/16] 0.0, 128
    %3928 = vxpose.xlu0.b32.cont [7/16] 0.0, 128
    %3929 = vxpose.xlu0.b32.cont [8/16] 0.0, 128
    %3930 = vxpose.xlu0.b32.cont [9/16] 0.0, 128
    %3931 = vxpose.xlu0.b32.cont [10/16] 0.0, 128
    %3932 = vxpose.xlu0.b32.cont [11/16] 0.0, 128
    %3933 = vxpose.xlu0.b32.cont [12/16] 0.0, 128
    %3934 = vxpose.xlu0.b32.cont [13/16] 0.0, 128
    %3935 = vxpose.xlu0.b32.cont [14/16] 0.0, 128
    %3936 = vxpose.xlu0.b32.cont [15/16] 0.0, 128
    %3937 = vxpose.xlu0.b32.end [16/16] 0.0, 128
    %v3938 = vpop.trf.xlu0
    %v3939 = vpop.trf.xlu0
    %v3940 = vpop.trf.xlu0
    %v3941 = vpop.trf.xlu0
    %v3942 = vpop.trf.xlu0
    %v3943 = vpop.trf.xlu0
    %v3944 = vpop.trf.xlu0
    %v3945 = vpop.trf.xlu0
    %v3946 = vpop.trf.xlu0
    %v3947 = vpop.trf.xlu0
    %v3948 = vpop.trf.xlu0
    %v3949 = vpop.trf.xlu0
    %v3950 = vpop.trf.xlu0
    %v3951 = vpop.trf.xlu0
    %v3952 = vpop.trf.xlu0
    %v3953 = vpop.trf.xlu0
    %3955 = vset.pattern.permute.xlu0 1
    %3956 = vperm.xlu0 %3955, %v3909
    %v3957 = vpop.permute.xlu0 %3956
    %3960 = vset.pattern.permute.xlu0 1
    %3961 = vperm.xlu0 %3960, %v3912
    %v3962 = vpop.permute.xlu0 %3961
    %3965 = vset.pattern.permute.xlu0 1
    %3966 = vperm.xlu0 %3965, %v3917
    %v3967 = vpop.permute.xlu0 %3966
    %v3969 = vlaneseq
    %v3970 = vshrl.u32 %v3969, 7
    %v3971 = vsub.s32 0, %v3970
    %v3972 = vrot.slane %v3938, %v3971
    %v3973 = vadd.f32 %v3957, %v3972
    %v3974 = vadd.f32 %v3962, %v3972
    %v3975 = vadd.f32 %v3967, %v3972
    %vm3976 = vcmp.ge.f32.partialorder %v3973, 0.0
    %vm3977 = vcmp.ge.f32.partialorder %v3974, 0.0
    %vm3978 = vcmp.ge.f32.partialorder %v3975, 0.0
    %v3979 = vmul.f32 %v3973, 0.2
    %v3980 = vmul.f32 %v3974, 0.2
    %v3981 = vmul.f32 %v3975, 0.2
    %v3982 = vsel %vm3976, %v3973, %v3979
    %v3983 = vsel %vm3977, %v3974, %v3980
    %v3984 = vsel %vm3978, %v3975, %v3981
    %v3985 = vsel %vm3334, %v3982, -1e+30
    %v3986 = vsel %vm3335, %v3983, -1e+30
    %v3987 = vsel %vm3336, %v3984, -1e+30
    %v3988 = vsel %vm3466, %v3985, -inf
    %3989 = vmax.xlane.f32.xlu0 %v3988
    %v3990 = vpop.xlane.xlu0 %3989
    %v3991 = vsel %vm3466, %v3986, -inf
    %3992 = vmax.xlane.f32.xlu0 %v3991
    %v3993 = vpop.xlane.xlu0 %3992
    %v3994 = vsel %vm3466, %v3987, -inf
    %3995 = vmax.xlane.f32.xlu0 %v3994
    %v3996 = vpop.xlane.xlu0 %3995
    %v3997 = vsub.f32 %v3985, %v3990
    %v3998 = vsub.f32 %v3986, %v3993
    %v3999 = vsub.f32 %v3987, %v3996
    %v4000 = vmul.f32 %v3997, 1.442695
    %v4001 = vpow.pop %v4000
    %v4002 = vmul.f32 %v3998, 1.442695
    %v4003 = vpow.pop %v4002
    %v4004 = vmul.f32 %v3999, 1.442695
    %v4005 = vpow.pop %v4004
    %v4006 = vsel %vm3466, %v4001, 0.0
    %4007 = vadd.xlane.f32.xlu0 %v4006
    %v4008 = vpop.xlane.xlu0 %4007
    %v4009 = vsel %vm3466, %v4003, 0.0
    %4010 = vadd.xlane.f32.xlu0 %v4009
    %v4011 = vpop.xlane.xlu0 %4010
    %v4012 = vsel %vm3466, %v4005, 0.0
    %4013 = vadd.xlane.f32.xlu0 %v4012
    %v4014 = vpop.xlane.xlu0 %4013
    %v4015 = vrcp.pop %v4008
    %v4016 = vmul.f32 %v4001, %v4015
    %v4017 = vrcp.pop %v4011
    %v4018 = vmul.f32 %v4003, %v4017
    %v4019 = vrcp.pop %v4014
    %v4020 = vmul.f32 %v4005, %v4019
    %v4022 = vsel %vm3466, %v4016, 0
    %v4025 = vsel %vm3466, %v4018, 0
    %v4028 = vsel %vm3466, %v4020, 0
    %4030 = vmatprep.subr.mxu0 0.0
    %4031 = vmatpush1.msra.mxu0 %v3758
    %4032 = vmatprep.subr.mxu0 0.0
    %4033 = vmatpush1.msra.mxu0 %v3762
    %4034 = vmatprep.subr.mxu0 0.0
    %4035 = vmatpush1.msra.mxu0 %v3768
    %4036 = vmatprep.subr.mxu0 0.0
    %4037 = vmatpush1.msra.mxu0 0.0
    %4038 = vmatprep.subr.mxu0 0.0
    %4039 = vmatpush1.msra.mxu0 0.0
    %4040 = vmatprep.subr.mxu0 0.0
    %4041 = vmatpush1.msra.mxu0 0.0
    %4042 = vmatprep.subr.mxu0 0.0
    %4043 = vmatpush1.msra.mxu0 0.0
    %4044 = vmatprep.subr.mxu0 0.0
    %4045 = vmatpush1.msra.mxu0 0.0
    %4046 = vmatprep.subr.mxu0 0.0
    %4047 = vmatpush1.msra.mxu0 0.0
    %4048 = vmatprep.subr.mxu0 0.0
    %4049 = vmatpush1.msra.mxu0 0.0
    %4050 = vmatprep.subr.mxu0 0.0
    %4051 = vmatpush1.msra.mxu0 0.0
    %4052 = vmatprep.subr.mxu0 0.0
    %4053 = vmatpush1.msra.mxu0 0.0
    %4054 = vmatprep.subr.mxu0 0.0
    %4055 = vmatpush1.msra.mxu0 0.0
    %4056 = vmatprep.subr.mxu0 0.0
    %4057 = vmatpush1.msra.mxu0 0.0
    %4058 = vmatprep.subr.mxu0 0.0
    %4059 = vmatpush1.msra.mxu0 0.0
    %4060 = vmatprep.subr.mxu0 0.0
    %4061 = vmatpush1.msra.mxu0 0.0
    %4062 = vmatprep.subr.mxu0 0.0
    %4063 = vmatpush1.msra.mxu0 0.0
    %4064 = vmatprep.subr.mxu0 0.0
    %4065 = vmatpush1.msra.mxu0 0.0
    %4066 = vmatprep.subr.mxu0 0.0
    %4067 = vmatpush1.msra.mxu0 0.0
    %4068 = vmatprep.subr.mxu0 0.0
    %4069 = vmatpush1.msra.mxu0 0.0
    %4070 = vmatprep.subr.mxu0 0.0
    %4071 = vmatpush1.msra.mxu0 0.0
    %4072 = vmatprep.subr.mxu0 0.0
    %4073 = vmatpush1.msra.mxu0 0.0
    %4074 = vmatprep.subr.mxu0 0.0
    %4075 = vmatpush1.msra.mxu0 0.0
    %4076 = vmatprep.subr.mxu0 0.0
    %4077 = vmatpush1.msra.mxu0 0.0
    %4078 = vmatprep.subr.mxu0 0.0
    %4079 = vmatpush1.msra.mxu0 0.0
    %4080 = vmatprep.subr.mxu0 0.0
    %4081 = vmatpush1.msra.mxu0 0.0
    %4082 = vmatprep.subr.mxu0 0.0
    %4083 = vmatpush1.msra.mxu0 0.0
    %4084 = vmatprep.subr.mxu0 0.0
    %4085 = vmatpush1.msra.mxu0 0.0
    %4086 = vmatprep.subr.mxu0 0.0
    %4087 = vmatpush1.msra.mxu0 0.0
    %4088 = vmatprep.subr.mxu0 0.0
    %4089 = vmatpush1.msra.mxu0 0.0
    %4090 = vmatprep.subr.mxu0 0.0
    %4091 = vmatpush1.msra.mxu0 0.0
    %4092 = vmatprep.subr.mxu0 0.0
    %4093 = vmatpush1.msra.mxu0 0.0
    %4094 = vmatprep.mubr.f32.mxu0 0.0
    %4095 = vmatmul.mubr.f32.gmra.mrb[0].mxu0 %v4022
    %v4096 = vpop.f32.mrb[0].mxu0
    %v4097 = vadd.f32 0.0, %v4096
    %v4098 = vpop.f32.mrb[0].mxu0
    %4099 = vmatprep.mubr.f32.mxu0 0.0
    %4100 = vmatmul.mubr.f32.gmra.mrb[0].mxu0 %v4025
    %v4101 = vpop.f32.mrb[0].mxu0
    %v4102 = vadd.f32 0.0, %v4101
    %v4103 = vpop.f32.mrb[0].mxu0
    %4104 = vmatprep.mubr.f32.mxu0 0.0
    %4105 = vmatmul.mubr.f32.gmra.mrb[0].mxu0 %v4028
    %v4106 = vpop.f32.mrb[0].mxu0
    %v4107 = vadd.f32 0.0, %v4106
    %v4108 = vpop.f32.mrb[0].mxu0
    %4109 = vdwg.mxu0
    %4110 = vset.pattern.permute.xlu0 3
    %4111 = vperm.xlu0 %4110, %v3909
    %v4112 = vpop.permute.xlu0 %4111
    %4114 = vset.pattern.permute.xlu0 3
    %4115 = vperm.xlu0 %4114, %v3912
    %v4116 = vpop.permute.xlu0 %4115
    %4118 = vset.pattern.permute.xlu0 3
    %4119 = vperm.xlu0 %4118, %v3917
    %v4120 = vpop.permute.xlu0 %4119
    %v4122 = vlaneseq
    %v4123 = vshrl.u32 %v4122, 7
    %v4124 = vsub.s32 2, %v4123
    %v4125 = vrot.slane %v3938, %v4124
    %v4126 = vadd.f32 %v4112, %v4125
    %v4127 = vadd.f32 %v4116, %v4125
    %v4128 = vadd.f32 %v4120, %v4125
    %vm4129 = vcmp.ge.f32.partialorder %v4126, 0.0
    %vm4130 = vcmp.ge.f32.partialorder %v4127, 0.0
    %vm4131 = vcmp.ge.f32.partialorder %v4128, 0.0
    %v4132 = vmul.f32 %v4126, 0.2
    %v4133 = vmul.f32 %v4127, 0.2
    %v4134 = vmul.f32 %v4128, 0.2
    %v4135 = vsel %vm4129, %v4126, %v4132
    %v4136 = vsel %vm4130, %v4127, %v4133
    %v4137 = vsel %vm4131, %v4128, %v4134
    %v4138 = vsel %vm3334, %v4135, -1e+30
    %v4139 = vsel %vm3335, %v4136, -1e+30
    %v4140 = vsel %vm3336, %v4137, -1e+30
    %v4141 = vsel %vm3466, %v4138, -inf
    %4142 = vmax.xlane.f32.xlu0 %v4141
    %v4143 = vpop.xlane.xlu0 %4142
    %v4144 = vsel %vm3466, %v4139, -inf
    %4145 = vmax.xlane.f32.xlu0 %v4144
    %v4146 = vpop.xlane.xlu0 %4145
    %v4147 = vsel %vm3466, %v4140, -inf
    %4148 = vmax.xlane.f32.xlu0 %v4147
    %v4149 = vpop.xlane.xlu0 %4148
    %v4150 = vsub.f32 %v4138, %v4143
    %v4151 = vsub.f32 %v4139, %v4146
    %v4152 = vsub.f32 %v4140, %v4149
    %v4153 = vmul.f32 %v4150, 1.442695
    %v4154 = vpow.pop %v4153
    %v4155 = vmul.f32 %v4151, 1.442695
    %v4156 = vpow.pop %v4155
    %v4157 = vmul.f32 %v4152, 1.442695
    %v4158 = vpow.pop %v4157
    %v4159 = vsel %vm3466, %v4154, 0.0
    %4160 = vadd.xlane.f32.xlu0 %v4159
    %v4161 = vpop.xlane.xlu0 %4160
    %v4162 = vsel %vm3466, %v4156, 0.0
    %4163 = vadd.xlane.f32.xlu0 %v4162
    %v4164 = vpop.xlane.xlu0 %4163
    %v4165 = vsel %vm3466, %v4158, 0.0
    %4166 = vadd.xlane.f32.xlu0 %v4165
    %v4167 = vpop.xlane.xlu0 %4166
    %v4168 = vrcp.pop %v4161
    %v4169 = vmul.f32 %v4154, %v4168
    %v4170 = vrcp.pop %v4164
    %v4171 = vmul.f32 %v4156, %v4170
    %v4172 = vrcp.pop %v4167
    %v4173 = vmul.f32 %v4158, %v4172
    %v4175 = vsel %vm3466, %v4169, 0
    %v4178 = vsel %vm3466, %v4171, 0
    %v4181 = vsel %vm3466, %v4173, 0
    %4183 = vmatprep.subr.mxu0 0.0
    %4184 = vmatpush1.msra.mxu0 %v3760
    %4185 = vmatprep.subr.mxu0 0.0
    %4186 = vmatpush1.msra.mxu0 %v3764
    %4187 = vmatprep.subr.mxu0 0.0
    %4188 = vmatpush1.msra.mxu0 %v3770
    %4189 = vmatprep.subr.mxu0 0.0
    %4190 = vmatpush1.msra.mxu0 0.0
    %4191 = vmatprep.subr.mxu0 0.0
    %4192 = vmatpush1.msra.mxu0 0.0
    %4193 = vmatprep.subr.mxu0 0.0
    %4194 = vmatpush1.msra.mxu0 0.0
    %4195 = vmatprep.subr.mxu0 0.0
    %4196 = vmatpush1.msra.mxu0 0.0
    %4197 = vmatprep.subr.mxu0 0.0
    %4198 = vmatpush1.msra.mxu0 0.0
    %4199 = vmatprep.subr.mxu0 0.0
    %4200 = vmatpush1.msra.mxu0 0.0
    %4201 = vmatprep.subr.mxu0 0.0
    %4202 = vmatpush1.msra.mxu0 0.0
    %4203 = vmatprep.subr.mxu0 0.0
    %4204 = vmatpush1.msra.mxu0 0.0
    %4205 = vmatprep.subr.mxu0 0.0
    %4206 = vmatpush1.msra.mxu0 0.0
    %4207 = vmatprep.subr.mxu0 0.0
    %4208 = vmatpush1.msra.mxu0 0.0
    %4209 = vmatprep.subr.mxu0 0.0
    %4210 = vmatpush1.msra.mxu0 0.0
    %4211 = vmatprep.subr.mxu0 0.0
    %4212 = vmatpush1.msra.mxu0 0.0
    %4213 = vmatprep.subr.mxu0 0.0
    %4214 = vmatpush1.msra.mxu0 0.0
    %4215 = vmatprep.subr.mxu0 0.0
    %4216 = vmatpush1.msra.mxu0 0.0
    %4217 = vmatprep.subr.mxu0 0.0
    %4218 = vmatpush1.msra.mxu0 0.0
    %4219 = vmatprep.subr.mxu0 0.0
    %4220 = vmatpush1.msra.mxu0 0.0
    %4221 = vmatprep.subr.mxu0 0.0
    %4222 = vmatpush1.msra.mxu0 0.0
    %4223 = vmatprep.subr.mxu0 0.0
    %4224 = vmatpush1.msra.mxu0 0.0
    %4225 = vmatprep.subr.mxu0 0.0
    %4226 = vmatpush1.msra.mxu0 0.0
    %4227 = vmatprep.subr.mxu0 0.0
    %4228 = vmatpush1.msra.mxu0 0.0
    %4229 = vmatprep.subr.mxu0 0.0
    %4230 = vmatpush1.msra.mxu0 0.0
    %4231 = vmatprep.subr.mxu0 0.0
    %4232 = vmatpush1.msra.mxu0 0.0
    %4233 = vmatprep.subr.mxu0 0.0
    %4234 = vmatpush1.msra.mxu0 0.0
    %4235 = vmatprep.subr.mxu0 0.0
    %4236 = vmatpush1.msra.mxu0 0.0
    %4237 = vmatprep.subr.mxu0 0.0
    %4238 = vmatpush1.msra.mxu0 0.0
    %4239 = vmatprep.subr.mxu0 0.0
    %4240 = vmatpush1.msra.mxu0 0.0
    %4241 = vmatprep.subr.mxu0 0.0
    %4242 = vmatpush1.msra.mxu0 0.0
    %4243 = vmatprep.subr.mxu0 0.0
    %4244 = vmatpush1.msra.mxu0 0.0
    %4245 = vmatprep.subr.mxu0 0.0
    %4246 = vmatpush1.msra.mxu0 0.0
    %4247 = vmatprep.mubr.f32.mxu0 0.0
    %4248 = vmatmul.mubr.f32.gmra.mrb[0].mxu0 %v4175
    %v4249 = vpop.f32.mrb[0].mxu0
    %v4250 = vadd.f32 0.0, %v4249
    %v4251 = vpop.f32.mrb[0].mxu0
    %4252 = vmatprep.mubr.f32.mxu0 0.0
    %4253 = vmatmul.mubr.f32.gmra.mrb[0].mxu0 %v4178
    %v4254 = vpop.f32.mrb[0].mxu0
    %v4255 = vadd.f32 0.0, %v4254
    %v4256 = vpop.f32.mrb[0].mxu0
    %4257 = vmatprep.mubr.f32.mxu0 0.0
    %4258 = vmatmul.mubr.f32.gmra.mrb[0].mxu0 %v4181
    %v4259 = vpop.f32.mrb[0].mxu0
    %v4260 = vadd.f32 0.0, %v4259
    %v4261 = vpop.f32.mrb[0].mxu0
    %4262 = vdwg.mxu0
    %v4264 = vlaneseq
    %v4265 = vshrl.u32 %v4264, 7
    %v4266 = vsub.s32 0, %v4265
    %v4267 = vrot.slane %v3640, %v4266
    %v4268 = vlaneseq
    %v4269 = vshrl.u32 %v4268, 7
    %v4270 = vsub.s32 1, %v4269
    %v4271 = vrot.slane %v3640, %v4270
    %v4274 = vadd.f32 %v4097, %v4267
    %v4275 = vadd.f32 %v4250, %v4271
    %v4276 = vadd.f32 %v4102, %v4267
    %v4277 = vadd.f32 %v4255, %v4271
    %v4278 = vadd.f32 %v4107, %v4267
    %v4279 = vadd.f32 %v4260, %v4271
    %v4280 = vmax.f32 %v4274, 0.0
    %v4281 = vmax.f32 %v4275, 0.0
    %v4282 = vmax.f32 %v4276, 0.0
    %v4283 = vmax.f32 %v4277, 0.0
    %v4284 = vmax.f32 %v4278, 0.0
    %v4285 = vmax.f32 %v4279, 0.0
    %v4286 = vld [vmem:[#allocation15 + $0x8c4] sm:$0xff]
    %v4287 = vld [vmem:[#allocation15 + $0x8d8] sm:$0xff]
    %v4288 = vld [vmem:[#allocation15 + $0x8ec] sm:$0xff]
    %v4289 = vld [vmem:[#allocation15 + $0x900] sm:$0xff]
    %v4290 = vld [vmem:[#allocation15 + $0x914] sm:$0xff]
    %v4291 = vld [vmem:[#allocation15 + $0x928] sm:$0xff]
    %v4292 = vld [vmem:[#allocation15 + $0x93c] sm:$0xff]
    %v4293 = vld [vmem:[#allocation15 + $0x950] sm:$0xff]
    %v4294 = vld [vmem:[#allocation15 + $0x964] sm:$0xff]
    %v4295 = vld [vmem:[#allocation15 + $0x978] sm:$0xff]
    %v4296 = vld [vmem:[#allocation15 + $0x98c] sm:$0xff]
    %v4297 = vld [vmem:[#allocation15 + $0x9a0] sm:$0xff]
    %v4298 = vld [vmem:[#allocation15 + $0x9b4] sm:$0xff]
    %v4299 = vld [vmem:[#allocation15 + $0x9c8] sm:$0xff]
    %v4300 = vld [vmem:[#allocation15 + $0x9dc] sm:$0xff]
    %v4301 = vld [vmem:[#allocation15 + $0x9f0] sm:$0xff]
    %v4302 = vld [vmem:[#allocation15 + $0xa04] sm:$0xff]
    %v4303 = vld [vmem:[#allocation15 + $0xa18] sm:$0xff]
    %v4304 = vld [vmem:[#allocation15 + $0xa2c] sm:$0xff]
    %v4305 = vld [vmem:[#allocation15 + $0xa40] sm:$0xff]
    %v4306 = vld [vmem:[#allocation15 + $0xa54] sm:$0xff]
    %v4307 = vld [vmem:[#allocation15 + $0xa68] sm:$0xff]
    %v4308 = vld [vmem:[#allocation15 + $0xa7c] sm:$0xff]
    %v4309 = vld [vmem:[#allocation15 + $0xa90] sm:$0xff]
    %v4310 = vld [vmem:[#allocation15 + $0xaa4] sm:$0xff]
    %v4311 = vld [vmem:[#allocation15 + $0xab8] sm:$0xff]
    %v4312 = vld [vmem:[#allocation15 + $0xacc] sm:$0xff]
    %v4313 = vld [vmem:[#allocation15 + $0xae0] sm:$0xff]
    %v4314 = vld [vmem:[#allocation15 + $0xaf4] sm:$0xff]
    %v4315 = vld [vmem:[#allocation15 + $0xb08] sm:$0xff]
    %v4316 = vld [vmem:[#allocation15 + $0xb1c] sm:$0xff]
    %v4317 = vld [vmem:[#allocation15 + $0xb30] sm:$0xff]
    %v4318 = vld [vmem:[#allocation15 + $0x650] sm:$0xf]
    %v4319 = vld [vmem:[#allocation15 + $0x664] sm:$0xf]
    %v4320 = vld [vmem:[#allocation15 + $0x678] sm:$0xf]
    %v4321 = vld [vmem:[#allocation15 + $0x68c] sm:$0xf]
    %v4322 = vld [vmem:[#allocation15 + $0x6a0] sm:$0xf]
    %v4323 = vld [vmem:[#allocation15 + $0x6b4] sm:$0xf]
    %v4324 = vld [vmem:[#allocation15 + $0x6c8] sm:$0xf]
    %v4325 = vld [vmem:[#allocation15 + $0x6dc] sm:$0xf]
    %v4326 = vld [vmem:[#allocation15 + $0x6f0] sm:$0xf]
    %v4327 = vld [vmem:[#allocation15 + $0x704] sm:$0xf]
    %v4328 = vld [vmem:[#allocation15 + $0x718] sm:$0xf]
    %v4329 = vld [vmem:[#allocation15 + $0x72c] sm:$0xf]
    %v4330 = vld [vmem:[#allocation15 + $0x740] sm:$0xf]
    %v4331 = vld [vmem:[#allocation15 + $0x754] sm:$0xf]
    %v4332 = vld [vmem:[#allocation15 + $0x768] sm:$0xf]
    %v4333 = vld [vmem:[#allocation15 + $0x77c] sm:$0xf]
    %v4334 = vld [vmem:[#allocation15 + $0x790] sm:$0xf]
    %v4335 = vld [vmem:[#allocation15 + $0x7a4] sm:$0xf]
    %v4336 = vld [vmem:[#allocation15 + $0x7b8] sm:$0xf]
    %v4337 = vld [vmem:[#allocation15 + $0x7cc] sm:$0xf]
    %v4338 = vld [vmem:[#allocation15 + $0x7e0] sm:$0xf]
    %v4339 = vld [vmem:[#allocation15 + $0x7f4] sm:$0xf]
    %v4340 = vld [vmem:[#allocation15 + $0x808] sm:$0xf]
    %v4341 = vld [vmem:[#allocation15 + $0x81c] sm:$0xf]
    %v4342 = vld [vmem:[#allocation15 + $0x830] sm:$0xf]
    %v4343 = vld [vmem:[#allocation15 + $0x844] sm:$0xf]
    %v4344 = vld [vmem:[#allocation15 + $0x858] sm:$0xf]
    %v4345 = vld [vmem:[#allocation15 + $0x86c] sm:$0xf]
    %v4346 = vld [vmem:[#allocation15 + $0x880] sm:$0xf]
    %v4347 = vld [vmem:[#allocation15 + $0x894] sm:$0xf]
    %v4348 = vld [vmem:[#allocation15 + $0x8a8] sm:$0xf]
    %v4349 = vld [vmem:[#allocation15 + $0x8bc] sm:$0xf]
    %v4350 = vld [vmem:[#allocation17 + $0xc] sm:$0x3]
    %v4351 = vpack.c.bf16 %v4282, %v4280
    %v4352 = vpack.c.bf16 %v4283, %v4281
    %v4353 = vpack.c.bf16 %v4284, %v4284
    %v4354 = vpack.c.bf16 %v4285, %v4285
    %v4387 = vunpack.c.l.b16 %v4286
    %v4388 = vunpack.c.h.b16 %v4286
    %v4389 = vunpack.c.l.b16 %v4287
    %v4390 = vunpack.c.h.b16 %v4287
    %v4391 = vunpack.c.l.b16 %v4288
    %v4392 = vunpack.c.h.b16 %v4288
    %v4393 = vunpack.c.l.b16 %v4289
    %v4394 = vunpack.c.h.b16 %v4289
    %v4395 = vunpack.c.l.b16 %v4290
    %v4396 = vunpack.c.h.b16 %v4290
    %v4397 = vunpack.c.l.b16 %v4291
    %v4398 = vunpack.c.h.b16 %v4291
    %v4399 = vunpack.c.l.b16 %v4292
    %v4400 = vunpack.c.h.b16 %v4292
    %v4401 = vunpack.c.l.b16 %v4293
    %v4402 = vunpack.c.h.b16 %v4293
    %v4403 = vunpack.c.l.b16 %v4294
    %v4404 = vunpack.c.h.b16 %v4294
    %v4405 = vunpack.c.l.b16 %v4295
    %v4406 = vunpack.c.h.b16 %v4295
    %v4407 = vunpack.c.l.b16 %v4296
    %v4408 = vunpack.c.h.b16 %v4296
    %v4409 = vunpack.c.l.b16 %v4297
    %v4410 = vunpack.c.h.b16 %v4297
    %v4411 = vunpack.c.l.b16 %v4298
    %v4412 = vunpack.c.h.b16 %v4298
    %v4413 = vunpack.c.l.b16 %v4299
    %v4414 = vunpack.c.h.b16 %v4299
    %v4415 = vunpack.c.l.b16 %v4300
    %v4416 = vunpack.c.h.b16 %v4300
    %v4417 = vunpack.c.l.b16 %v4301
    %v4418 = vunpack.c.h.b16 %v4301
    %v4419 = vunpack.c.l.b16 %v4302
    %v4420 = vunpack.c.h.b16 %v4302
    %v4421 = vunpack.c.l.b16 %v4303
    %v4422 = vunpack.c.h.b16 %v4303
    %v4423 = vunpack.c.l.b16 %v4304
    %v4424 = vunpack.c.h.b16 %v4304
    %v4425 = vunpack.c.l.b16 %v4305
    %v4426 = vunpack.c.h.b16 %v4305
    %v4427 = vunpack.c.l.b16 %v4306
    %v4428 = vunpack.c.h.b16 %v4306
    %v4429 = vunpack.c.l.b16 %v4307
    %v4430 = vunpack.c.h.b16 %v4307
    %v4431 = vunpack.c.l.b16 %v4308
    %v4432 = vunpack.c.h.b16 %v4308
    %v4433 = vunpack.c.l.b16 %v4309
    %v4434 = vunpack.c.h.b16 %v4309
    %v4435 = vunpack.c.l.b16 %v4310
    %v4436 = vunpack.c.h.b16 %v4310
    %v4437 = vunpack.c.l.b16 %v4311
    %v4438 = vunpack.c.h.b16 %v4311
    %v4439 = vunpack.c.l.b16 %v4312
    %v4440 = vunpack.c.h.b16 %v4312
    %v4441 = vunpack.c.l.b16 %v4313
    %v4442 = vunpack.c.h.b16 %v4313
    %v4443 = vunpack.c.l.b16 %v4314
    %v4444 = vunpack.c.h.b16 %v4314
    %v4445 = vunpack.c.l.b16 %v4315
    %v4446 = vunpack.c.h.b16 %v4315
    %v4447 = vunpack.c.l.b16 %v4316
    %v4448 = vunpack.c.h.b16 %v4316
    %v4449 = vunpack.c.l.b16 %v4317
    %v4450 = vunpack.c.h.b16 %v4317
    %v4451 = vpack.c.b16 %v4389, %v4387
    %v4452 = vpack.c.b16 %v4390, %v4388
    %v4453 = vpack.c.b16 %v4393, %v4391
    %v4454 = vpack.c.b16 %v4394, %v4392
    %v4455 = vpack.c.b16 %v4397, %v4395
    %v4456 = vpack.c.b16 %v4398, %v4396
    %v4457 = vpack.c.b16 %v4401, %v4399
    %v4458 = vpack.c.b16 %v4402, %v4400
    %v4459 = vpack.c.b16 %v4405, %v4403
    %v4460 = vpack.c.b16 %v4406, %v4404
    %v4461 = vpack.c.b16 %v4409, %v4407
    %v4462 = vpack.c.b16 %v4410, %v4408
    %v4463 = vpack.c.b16 %v4413, %v4411
    %v4464 = vpack.c.b16 %v4414, %v4412
    %v4465 = vpack.c.b16 %v4417, %v4415
    %v4466 = vpack.c.b16 %v4418, %v4416
    %v4467 = vpack.c.b16 %v4421, %v4419
    %v4468 = vpack.c.b16 %v4422, %v4420
    %v4469 = vpack.c.b16 %v4425, %v4423
    %v4470 = vpack.c.b16 %v4426, %v4424
    %v4471 = vpack.c.b16 %v4429, %v4427
    %v4472 = vpack.c.b16 %v4430, %v4428
    %v4473 = vpack.c.b16 %v4433, %v4431
    %v4474 = vpack.c.b16 %v4434, %v4432
    %v4475 = vpack.c.b16 %v4437, %v4435
    %v4476 = vpack.c.b16 %v4438, %v4436
    %v4477 = vpack.c.b16 %v4441, %v4439
    %v4478 = vpack.c.b16 %v4442, %v4440
    %v4479 = vpack.c.b16 %v4445, %v4443
    %v4480 = vpack.c.b16 %v4446, %v4444
    %v4481 = vpack.c.b16 %v4449, %v4447
    %v4482 = vpack.c.b16 %v4450, %v4448
    %4515 = vmatprep.subr.bf16.mxu0 %v4452
    %4516 = vmatpush1.bf16.msra.mxu0 %v4451
    %4517 = vmatprep.subr.bf16.mxu0 %v4454
    %4518 = vmatpush1.bf16.msra.mxu0 %v4453
    %4519 = vmatprep.subr.bf16.mxu0 %v4456
    %4520 = vmatpush1.bf16.msra.mxu0 %v4455
    %4521 = vmatprep.subr.bf16.mxu0 %v4458
    %4522 = vmatpush1.bf16.msra.mxu0 %v4457
    %4523 = vmatprep.subr.bf16.mxu0 %v4460
    %4524 = vmatpush1.bf16.msra.mxu0 %v4459
    %4525 = vmatprep.subr.bf16.mxu0 %v4462
    %4526 = vmatpush1.bf16.msra.mxu0 %v4461
    %4527 = vmatprep.subr.bf16.mxu0 %v4464
    %4528 = vmatpush1.bf16.msra.mxu0 %v4463
    %4529 = vmatprep.subr.bf16.mxu0 %v4466
    %4530 = vmatpush1.bf16.msra.mxu0 %v4465
    %4531 = vmatprep.subr.bf16.mxu0 %v4468
    %4532 = vmatpush1.bf16.msra.mxu0 %v4467
    %4533 = vmatprep.subr.bf16.mxu0 %v4470
    %4534 = vmatpush1.bf16.msra.mxu0 %v4469
    %4535 = vmatprep.subr.bf16.mxu0 %v4472
    %4536 = vmatpush1.bf16.msra.mxu0 %v4471
    %4537 = vmatprep.subr.bf16.mxu0 %v4474
    %4538 = vmatpush1.bf16.msra.mxu0 %v4473
    %4539 = vmatprep.subr.bf16.mxu0 %v4476
    %4540 = vmatpush1.bf16.msra.mxu0 %v4475
    %4541 = vmatprep.subr.bf16.mxu0 %v4478
    %4542 = vmatpush1.bf16.msra.mxu0 %v4477
    %4543 = vmatprep.subr.bf16.mxu0 %v4480
    %4544 = vmatpush1.bf16.msra.mxu0 %v4479
    %4545 = vmatprep.subr.bf16.mxu0 %v4482
    %4546 = vmatpush1.bf16.msra.mxu0 %v4481
    %4547 = vmatprep.mubr.bf16.mxu0 %v4352
    %4548 = vmatmul.mubr.bf16.gmra.mrb[0].mxu0 %v4351
    %v4549 = vpop.f32.mrb[0].mxu0
    %v4550 = vadd.f32 0.0, %v4549
    %v4551 = vpop.f32.mrb[0].mxu0
    %v4552 = vadd.f32 0.0, %v4551
    %v4553 = vpop.f32.mrb[0].mxu0
    %v4554 = vadd.f32 0.0, %v4553
    %v4555 = vpop.f32.mrb[0].mxu0
    %v4556 = vadd.f32 0.0, %v4555
    %4557 = vmatprep.mubr.bf16.mxu0 %v4354
    %4558 = vmatmul.mubr.bf16.gmra.mrb[0].mxu0 %v4353
    %v4559 = vpop.f32.mrb[0].mxu0
    %v4560 = vadd.f32 0.0, %v4559
    %v4561 = vpop.f32.mrb[0].mxu0
    %v4562 = vadd.f32 0.0, %v4561
    %v4563 = vpop.f32.mrb[0].mxu0
    %v4564 = vpop.f32.mrb[0].mxu0
    %4565 = vdwg.mxu0
    %v4566 = vpack.c.bf16 %v4554, %v4550
    %v4567 = vpack.c.bf16 %v4556, %v4552
    %v4568 = vpack.c.bf16 %v4560, %v4560
    %v4569 = vpack.c.bf16 %v4562, %v4562
    %v4602 = vunpack.c.l.b16 %v4318
    %v4603 = vunpack.c.l.b16 %v4319
    %v4604 = vunpack.c.l.b16 %v4320
    %v4605 = vunpack.c.l.b16 %v4321
    %v4606 = vunpack.c.l.b16 %v4322
    %v4607 = vunpack.c.l.b16 %v4323
    %v4608 = vunpack.c.l.b16 %v4324
    %v4609 = vunpack.c.l.b16 %v4325
    %v4610 = vunpack.c.l.b16 %v4326
    %v4611 = vunpack.c.l.b16 %v4327
    %v4612 = vunpack.c.l.b16 %v4328
    %v4613 = vunpack.c.l.b16 %v4329
    %v4614 = vunpack.c.l.b16 %v4330
    %v4615 = vunpack.c.l.b16 %v4331
    %v4616 = vunpack.c.l.b16 %v4332
    %v4617 = vunpack.c.l.b16 %v4333
    %v4618 = vunpack.c.l.b16 %v4334
    %v4619 = vunpack.c.l.b16 %v4335
    %v4620 = vunpack.c.l.b16 %v4336
    %v4621 = vunpack.c.l.b16 %v4337
    %v4622 = vunpack.c.l.b16 %v4338
    %v4623 = vunpack.c.l.b16 %v4339
    %v4624 = vunpack.c.l.b16 %v4340
    %v4625 = vunpack.c.l.b16 %v4341
    %v4626 = vunpack.c.l.b16 %v4342
    %v4627 = vunpack.c.l.b16 %v4343
    %v4628 = vunpack.c.l.b16 %v4344
    %v4629 = vunpack.c.l.b16 %v4345
    %v4630 = vunpack.c.l.b16 %v4346
    %v4631 = vunpack.c.l.b16 %v4347
    %v4632 = vunpack.c.l.b16 %v4348
    %v4633 = vunpack.c.l.b16 %v4349
    %v4634 = vpack.c.b16 %v4603, %v4602
    %v4635 = vpack.c.b16 %v4605, %v4604
    %v4636 = vpack.c.b16 %v4607, %v4606
    %v4637 = vpack.c.b16 %v4609, %v4608
    %v4638 = vpack.c.b16 %v4611, %v4610
    %v4639 = vpack.c.b16 %v4613, %v4612
    %v4640 = vpack.c.b16 %v4615, %v4614
    %v4641 = vpack.c.b16 %v4617, %v4616
    %v4642 = vpack.c.b16 %v4619, %v4618
    %v4643 = vpack.c.b16 %v4621, %v4620
    %v4644 = vpack.c.b16 %v4623, %v4622
    %v4645 = vpack.c.b16 %v4625, %v4624
    %v4646 = vpack.c.b16 %v4627, %v4626
    %v4647 = vpack.c.b16 %v4629, %v4628
    %v4648 = vpack.c.b16 %v4631, %v4630
    %v4649 = vpack.c.b16 %v4633, %v4632
    %4666 = vmatprep.subr.bf16.mxu0 0
    %4667 = vmatpush1.bf16.msra.mxu0 %v4634
    %4668 = vmatprep.subr.bf16.mxu0 0
    %4669 = vmatpush1.bf16.msra.mxu0 %v4635
    %4670 = vmatprep.subr.bf16.mxu0 0
    %4671 = vmatpush1.bf16.msra.mxu0 %v4636
    %4672 = vmatprep.subr.bf16.mxu0 0
    %4673 = vmatpush1.bf16.msra.mxu0 %v4637
    %4674 = vmatprep.subr.bf16.mxu0 0
    %4675 = vmatpush1.bf16.msra.mxu0 %v4638
    %4676 = vmatprep.subr.bf16.mxu0 0
    %4677 = vmatpush1.bf16.msra.mxu0 %v4639
    %4678 = vmatprep.subr.bf16.mxu0 0
    %4679 = vmatpush1.bf16.msra.mxu0 %v4640
    %4680 = vmatprep.subr.bf16.mxu0 0
    %4681 = vmatpush1.bf16.msra.mxu0 %v4641
    %4682 = vmatprep.subr.bf16.mxu0 0
    %4683 = vmatpush1.bf16.msra.mxu0 %v4642
    %4684 = vmatprep.subr.bf16.mxu0 0
    %4685 = vmatpush1.bf16.msra.mxu0 %v4643
    %4686 = vmatprep.subr.bf16.mxu0 0
    %4687 = vmatpush1.bf16.msra.mxu0 %v4644
    %4688 = vmatprep.subr.bf16.mxu0 0
    %4689 = vmatpush1.bf16.msra.mxu0 %v4645
    %4690 = vmatprep.subr.bf16.mxu0 0
    %4691 = vmatpush1.bf16.msra.mxu0 %v4646
    %4692 = vmatprep.subr.bf16.mxu0 0
    %4693 = vmatpush1.bf16.msra.mxu0 %v4647
    %4694 = vmatprep.subr.bf16.mxu0 0
    %4695 = vmatpush1.bf16.msra.mxu0 %v4648
    %4696 = vmatprep.subr.bf16.mxu0 0
    %4697 = vmatpush1.bf16.msra.mxu0 %v4649
    %4698 = vmatprep.mubr.bf16.mxu0 %v4567
    %4699 = vmatmul.mubr.bf16.gmra.mrb[0].mxu0 %v4566
    %v4700 = vpop.f32.mrb[0].mxu0
    %v4701 = vadd.f32 0.0, %v4700
    %v4702 = vpop.f32.mrb[0].mxu0
    %v4703 = vpop.f32.mrb[0].mxu0
    %v4704 = vadd.f32 0.0, %v4703
    %v4705 = vpop.f32.mrb[0].mxu0
    %4706 = vmatprep.mubr.bf16.mxu0 %v4569
    %4707 = vmatmul.mubr.bf16.gmra.mrb[0].mxu0 %v4568
    %v4708 = vpop.f32.mrb[0].mxu0
    %v4709 = vadd.f32 0.0, %v4708
    %v4710 = vpop.f32.mrb[0].mxu0
    %v4711 = vpop.f32.mrb[0].mxu0
    %v4712 = vpop.f32.mrb[0].mxu0
    %4713 = vdwg.mxu0
    %4714 = vxpose.xlu0.b32.start [1/16] %v4701, 128
    %4715 = vxpose.xlu0.b32.cont [2/16] %v4704, 128
    %4716 = vxpose.xlu0.b32.cont [3/16] %v4709, 128
    %4717 = vxpose.xlu0.b32.cont [4/16] 0.0, 128
    %4718 = vxpose.xlu0.b32.cont [5/16] 0.0, 128
    %4719 = vxpose.xlu0.b32.cont [6/16] 0.0, 128
    %4720 = vxpose.xlu0.b32.cont [7/16] 0.0, 128
    %4721 = vxpose.xlu0.b32.cont [8/16] 0.0, 128
    %4722 = vxpose.xlu0.b32.cont [9/16] 0.0, 128
    %4723 = vxpose.xlu0.b32.cont [10/16] 0.0, 128
    %4724 = vxpose.xlu0.b32.cont [11/16] 0.0, 128
    %4725 = vxpose.xlu0.b32.cont [12/16] 0.0, 128
    %4726 = vxpose.xlu0.b32.cont [13/16] 0.0, 128
    %4727 = vxpose.xlu0.b32.cont [14/16] 0.0, 128
    %4728 = vxpose.xlu0.b32.cont [15/16] 0.0, 128
    %4729 = vxpose.xlu0.b32.end [16/16] 0.0, 128
    %v4730 = vpop.trf.xlu0
    %v4731 = vpop.trf.xlu0
    %v4732 = vpop.trf.xlu0
    %v4733 = vpop.trf.xlu0
    %v4734 = vpop.trf.xlu0
    %v4735 = vpop.trf.xlu0
    %v4736 = vpop.trf.xlu0
    %v4737 = vpop.trf.xlu0
    %v4738 = vpop.trf.xlu0
    %v4739 = vpop.trf.xlu0
    %v4740 = vpop.trf.xlu0
    %v4741 = vpop.trf.xlu0
    %v4742 = vpop.trf.xlu0
    %v4743 = vpop.trf.xlu0
    %v4744 = vpop.trf.xlu0
    %v4745 = vpop.trf.xlu0
    %4747 = vset.pattern.permute.xlu0 1
    %4748 = vperm.xlu0 %4747, %v4701
    %v4749 = vpop.permute.xlu0 %4748
    %4752 = vset.pattern.permute.xlu0 1
    %4753 = vperm.xlu0 %4752, %v4704
    %v4754 = vpop.permute.xlu0 %4753
    %4757 = vset.pattern.permute.xlu0 1
    %4758 = vperm.xlu0 %4757, %v4709
    %v4759 = vpop.permute.xlu0 %4758
    %v4761 = vlaneseq
    %v4762 = vshrl.u32 %v4761, 7
    %v4763 = vsub.s32 0, %v4762
    %v4764 = vrot.slane %v4730, %v4763
    %v4765 = vadd.f32 %v4749, %v4764
    %v4766 = vadd.f32 %v4754, %v4764
    %v4767 = vadd.f32 %v4759, %v4764
    %vm4768 = vcmp.ge.f32.partialorder %v4765, 0.0
    %vm4769 = vcmp.ge.f32.partialorder %v4766, 0.0
    %vm4770 = vcmp.ge.f32.partialorder %v4767, 0.0
    %v4771 = vmul.f32 %v4765, 0.2
    %v4772 = vmul.f32 %v4766, 0.2
    %v4773 = vmul.f32 %v4767, 0.2
    %v4774 = vsel %vm4768, %v4765, %v4771
    %v4775 = vsel %vm4769, %v4766, %v4772
    %v4776 = vsel %vm4770, %v4767, %v4773
    %v4777 = vsel %vm3334, %v4774, -1e+30
    %v4778 = vsel %vm3335, %v4775, -1e+30
    %v4779 = vsel %vm3336, %v4776, -1e+30
    %v4780 = vsel %vm3466, %v4777, -inf
    %4781 = vmax.xlane.f32.xlu0 %v4780
    %v4782 = vpop.xlane.xlu0 %4781
    %v4783 = vsel %vm3466, %v4778, -inf
    %4784 = vmax.xlane.f32.xlu0 %v4783
    %v4785 = vpop.xlane.xlu0 %4784
    %v4786 = vsel %vm3466, %v4779, -inf
    %4787 = vmax.xlane.f32.xlu0 %v4786
    %v4788 = vpop.xlane.xlu0 %4787
    %v4789 = vsub.f32 %v4777, %v4782
    %v4790 = vsub.f32 %v4778, %v4785
    %v4791 = vsub.f32 %v4779, %v4788
    %v4792 = vmul.f32 %v4789, 1.442695
    %v4793 = vpow.pop %v4792
    %v4794 = vmul.f32 %v4790, 1.442695
    %v4795 = vpow.pop %v4794
    %v4796 = vmul.f32 %v4791, 1.442695
    %v4797 = vpow.pop %v4796
    %v4798 = vsel %vm3466, %v4793, 0.0
    %4799 = vadd.xlane.f32.xlu0 %v4798
    %v4800 = vpop.xlane.xlu0 %4799
    %v4801 = vsel %vm3466, %v4795, 0.0
    %4802 = vadd.xlane.f32.xlu0 %v4801
    %v4803 = vpop.xlane.xlu0 %4802
    %v4804 = vsel %vm3466, %v4797, 0.0
    %4805 = vadd.xlane.f32.xlu0 %v4804
    %v4806 = vpop.xlane.xlu0 %4805
    %v4807 = vrcp.pop %v4800
    %v4808 = vmul.f32 %v4793, %v4807
    %v4809 = vrcp.pop %v4803
    %v4810 = vmul.f32 %v4795, %v4809
    %v4811 = vrcp.pop %v4806
    %v4812 = vmul.f32 %v4797, %v4811
    %v4814 = vlaneseq
    %v4815 = vshrl.u32 %v4814, 7
    %v4816 = vsub.s32 0, %v4815
    %v4817 = vrot.slane %v4350, %v4816
    %v4818 = vlaneseq
    %v4819 = vshrl.u32 %v4818, 7
    %v4820 = vsub.s32 1, %v4819
    %v4821 = vrot.slane %v4350, %v4820
    %v4825 = vsel %vm3466, %v4808, 0
    %v4828 = vsel %vm3466, %v4810, 0
    %v4831 = vsel %vm3466, %v4812, 0
    %4833 = vmatprep.subr.mxu0 %v4552
    %4834 = vmatpush1.msra.mxu0 %v4550
    %4835 = vmatprep.subr.mxu0 %v4556
    %4836 = vmatpush1.msra.mxu0 %v4554
    %4837 = vmatprep.subr.mxu0 %v4562
    %4838 = vmatpush1.msra.mxu0 %v4560
    %4839 = vmatprep.subr.mxu0 0.0
    %4840 = vmatpush1.msra.mxu0 0.0
    %4841 = vmatprep.subr.mxu0 0.0
    %4842 = vmatpush1.msra.mxu0 0.0
    %4843 = vmatprep.subr.mxu0 0.0
    %4844 = vmatpush1.msra.mxu0 0.0
    %4845 = vmatprep.subr.mxu0 0.0
    %4846 = vmatpush1.msra.mxu0 0.0
    %4847 = vmatprep.subr.mxu0 0.0
    %4848 = vmatpush1.msra.mxu0 0.0
    %4849 = vmatprep.subr.mxu0 0.0
    %4850 = vmatpush1.msra.mxu0 0.0
    %4851 = vmatprep.subr.mxu0 0.0
    %4852 = vmatpush1.msra.mxu0 0.0
    %4853 = vmatprep.subr.mxu0 0.0
    %4854 = vmatpush1.msra.mxu0 0.0
    %4855 = vmatprep.subr.mxu0 0.0
    %4856 = vmatpush1.msra.mxu0 0.0
    %4857 = vmatprep.subr.mxu0 0.0
    %4858 = vmatpush1.msra.mxu0 0.0
    %4859 = vmatprep.subr.mxu0 0.0
    %4860 = vmatpush1.msra.mxu0 0.0
    %4861 = vmatprep.subr.mxu0 0.0
    %4862 = vmatpush1.msra.mxu0 0.0
    %4863 = vmatprep.subr.mxu0 0.0
    %4864 = vmatpush1.msra.mxu0 0.0
    %4865 = vmatprep.subr.mxu0 0.0
    %4866 = vmatpush1.msra.mxu0 0.0
    %4867 = vmatprep.subr.mxu0 0.0
    %4868 = vmatpush1.msra.mxu0 0.0
    %4869 = vmatprep.subr.mxu0 0.0
    %4870 = vmatpush1.msra.mxu0 0.0
    %4871 = vmatprep.subr.mxu0 0.0
    %4872 = vmatpush1.msra.mxu0 0.0
    %4873 = vmatprep.subr.mxu0 0.0
    %4874 = vmatpush1.msra.mxu0 0.0
    %4875 = vmatprep.subr.mxu0 0.0
    %4876 = vmatpush1.msra.mxu0 0.0
    %4877 = vmatprep.subr.mxu0 0.0
    %4878 = vmatpush1.msra.mxu0 0.0
    %4879 = vmatprep.subr.mxu0 0.0
    %4880 = vmatpush1.msra.mxu0 0.0
    %4881 = vmatprep.subr.mxu0 0.0
    %4882 = vmatpush1.msra.mxu0 0.0
    %4883 = vmatprep.subr.mxu0 0.0
    %4884 = vmatpush1.msra.mxu0 0.0
    %4885 = vmatprep.subr.mxu0 0.0
    %4886 = vmatpush1.msra.mxu0 0.0
    %4887 = vmatprep.subr.mxu0 0.0
    %4888 = vmatpush1.msra.mxu0 0.0
    %4889 = vmatprep.subr.mxu0 0.0
    %4890 = vmatpush1.msra.mxu0 0.0
    %4891 = vmatprep.subr.mxu0 0.0
    %4892 = vmatpush1.msra.mxu0 0.0
    %4893 = vmatprep.subr.mxu0 0.0
    %4894 = vmatpush1.msra.mxu0 0.0
    %4895 = vmatprep.subr.mxu0 0.0
    %4896 = vmatpush1.msra.mxu0 0.0
    %4897 = vmatprep.mubr.f32.mxu0 0.0
    %4898 = vmatmul.mubr.f32.gmra.mrb[0].mxu0 %v4825
    %v4899 = vpop.f32.mrb[0].mxu0
    %v4900 = vadd.f32 %v4817, %v4899
    %v4901 = vpop.f32.mrb[0].mxu0
    %v4902 = vadd.f32 %v4821, %v4901
    %4903 = vmatprep.mubr.f32.mxu0 0.0
    %4904 = vmatmul.mubr.f32.gmra.mrb[0].mxu0 %v4828
    %v4905 = vpop.f32.mrb[0].mxu0
    %v4906 = vadd.f32 %v4817, %v4905
    %v4907 = vpop.f32.mrb[0].mxu0
    %v4908 = vadd.f32 %v4821, %v4907
    %4909 = vmatprep.mubr.f32.mxu0 0.0
    %4910 = vmatmul.mubr.f32.gmra.mrb[0].mxu0 %v4831
    %v4911 = vpop.f32.mrb[0].mxu0
    %v4912 = vadd.f32 %v4817, %v4911
    %v4913 = vpop.f32.mrb[0].mxu0
    %v4914 = vadd.f32 %v4821, %v4913
    %4915 = vdwg.mxu0
    %v4916 = vmax.f32 %v4900, 0.0
    %v4917 = vmax.f32 %v4902, 0.0
    %v4918 = vmax.f32 %v4906, 0.0
    %v4919 = vmax.f32 %v4908, 0.0
    %v4920 = vmax.f32 %v4912, 0.0
    %v4921 = vmax.f32 %v4914, 0.0
    %v4922 = vld [vmem:[#allocation8] sm:$0xff]
    %v4924 = vsel %vm601, %v4922, 0
    %4926 = vmatprep.subr.mxu0 %v3248
    %4927 = vmatpush1.msra.mxu0 %v3246
    %4928 = vmatprep.subr.mxu0 %v3254
    %4929 = vmatpush1.msra.mxu0 %v3252
    %4930 = vmatprep.subr.mxu0 0.0
    %4931 = vmatpush1.msra.mxu0 0.0
    %4932 = vmatprep.subr.mxu0 0.0
    %4933 = vmatpush1.msra.mxu0 0.0
    %4934 = vmatprep.subr.mxu0 0.0
    %4935 = vmatpush1.msra.mxu0 0.0
    %4936 = vmatprep.subr.mxu0 0.0
    %4937 = vmatpush1.msra.mxu0 0.0
    %4938 = vmatprep.subr.mxu0 0.0
    %4939 = vmatpush1.msra.mxu0 0.0
    %4940 = vmatprep.subr.mxu0 0.0
    %4941 = vmatpush1.msra.mxu0 0.0
    %4942 = vmatprep.subr.mxu0 0.0
    %4943 = vmatpush1.msra.mxu0 0.0
    %4944 = vmatprep.subr.mxu0 0.0
    %4945 = vmatpush1.msra.mxu0 0.0
    %4946 = vmatprep.subr.mxu0 0.0
    %4947 = vmatpush1.msra.mxu0 0.0
    %4948 = vmatprep.subr.mxu0 0.0
    %4949 = vmatpush1.msra.mxu0 0.0
    %4950 = vmatprep.subr.mxu0 0.0
    %4951 = vmatpush1.msra.mxu0 0.0
    %4952 = vmatprep.subr.mxu0 0.0
    %4953 = vmatpush1.msra.mxu0 0.0
    %4954 = vmatprep.subr.mxu0 0.0
    %4955 = vmatpush1.msra.mxu0 0.0
    %4956 = vmatprep.subr.mxu0 0.0
    %4957 = vmatpush1.msra.mxu0 0.0
    %4958 = vmatprep.subr.mxu0 0.0
    %4959 = vmatpush1.msra.mxu0 0.0
    %4960 = vmatprep.subr.mxu0 0.0
    %4961 = vmatpush1.msra.mxu0 0.0
    %4962 = vmatprep.subr.mxu0 0.0
    %4963 = vmatpush1.msra.mxu0 0.0
    %4964 = vmatprep.subr.mxu0 0.0
    %4965 = vmatpush1.msra.mxu0 0.0
    %4966 = vmatprep.subr.mxu0 0.0
    %4967 = vmatpush1.msra.mxu0 0.0
    %4968 = vmatprep.subr.mxu0 0.0
    %4969 = vmatpush1.msra.mxu0 0.0
    %4970 = vmatprep.subr.mxu0 0.0
    %4971 = vmatpush1.msra.mxu0 0.0
    %4972 = vmatprep.subr.mxu0 0.0
    %4973 = vmatpush1.msra.mxu0 0.0
    %4974 = vmatprep.subr.mxu0 0.0
    %4975 = vmatpush1.msra.mxu0 0.0
    %4976 = vmatprep.subr.mxu0 0.0
    %4977 = vmatpush1.msra.mxu0 0.0
    %4978 = vmatprep.subr.mxu0 0.0
    %4979 = vmatpush1.msra.mxu0 0.0
    %4980 = vmatprep.subr.mxu0 0.0
    %4981 = vmatpush1.msra.mxu0 0.0
    %4982 = vmatprep.subr.mxu0 0.0
    %4983 = vmatpush1.msra.mxu0 0.0
    %4984 = vmatprep.subr.mxu0 0.0
    %4985 = vmatpush1.msra.mxu0 0.0
    %4986 = vmatprep.subr.mxu0 0.0
    %4987 = vmatpush1.msra.mxu0 0.0
    %4988 = vmatprep.subr.mxu0 0.0
    %4989 = vmatpush1.msra.mxu0 0.0
    %4990 = vmatprep.mubr.f32.mxu0 0.0
    %4991 = vmatmul.mubr.f32.gmra.mrb[0].mxu0 %v4924
    %v4992 = vpop.f32.mrb[0].mxu0
    %v4993 = vadd.f32 0.0, %v4992
    %v4994 = vpop.f32.mrb[0].mxu0
    %v4995 = vadd.f32 0.0, %v4994
    %4996 = vdwg.mxu0
    %4997 = vmatprep.subr.mxu0 0.0
    %4998 = vmatpush1.msra.mxu0 %v3323
    %4999 = vmatprep.subr.mxu0 0.0
    %5000 = vmatpush1.msra.mxu0 %v3328
    %5001 = vmatprep.subr.mxu0 0.0
    %5002 = vmatpush1.msra.mxu0 0.0
    %5003 = vmatprep.subr.mxu0 0.0
    %5004 = vmatpush1.msra.mxu0 0.0
    %5005 = vmatprep.subr.mxu0 0.0
    %5006 = vmatpush1.msra.mxu0 0.0
    %5007 = vmatprep.subr.mxu0 0.0
    %5008 = vmatpush1.msra.mxu0 0.0
    %5009 = vmatprep.subr.mxu0 0.0
    %5010 = vmatpush1.msra.mxu0 0.0
    %5011 = vmatprep.subr.mxu0 0.0
    %5012 = vmatpush1.msra.mxu0 0.0
    %5013 = vmatprep.subr.mxu0 0.0
    %5014 = vmatpush1.msra.mxu0 0.0
    %5015 = vmatprep.subr.mxu0 0.0
    %5016 = vmatpush1.msra.mxu0 0.0
    %5017 = vmatprep.subr.mxu0 0.0
    %5018 = vmatpush1.msra.mxu0 0.0
    %5019 = vmatprep.subr.mxu0 0.0
    %5020 = vmatpush1.msra.mxu0 0.0
    %5021 = vmatprep.subr.mxu0 0.0
    %5022 = vmatpush1.msra.mxu0 0.0
    %5023 = vmatprep.subr.mxu0 0.0
    %5024 = vmatpush1.msra.mxu0 0.0
    %5025 = vmatprep.subr.mxu0 0.0
    %5026 = vmatpush1.msra.mxu0 0.0
    %5027 = vmatprep.subr.mxu0 0.0
    %5028 = vmatpush1.msra.mxu0 0.0
    %5029 = vmatprep.subr.mxu0 0.0
    %5030 = vmatpush1.msra.mxu0 0.0
    %5031 = vmatprep.subr.mxu0 0.0
    %5032 = vmatpush1.msra.mxu0 0.0
    %5033 = vmatprep.subr.mxu0 0.0
    %5034 = vmatpush1.msra.mxu0 0.0
    %5035 = vmatprep.subr.mxu0 0.0
    %5036 = vmatpush1.msra.mxu0 0.0
    %5037 = vmatprep.subr.mxu0 0.0
    %5038 = vmatpush1.msra.mxu0 0.0
    %5039 = vmatprep.subr.mxu0 0.0
    %5040 = vmatpush1.msra.mxu0 0.0
    %5041 = vmatprep.subr.mxu0 0.0
    %5042 = vmatpush1.msra.mxu0 0.0
    %5043 = vmatprep.subr.mxu0 0.0
    %5044 = vmatpush1.msra.mxu0 0.0
    %5045 = vmatprep.subr.mxu0 0.0
    %5046 = vmatpush1.msra.mxu0 0.0
    %5047 = vmatprep.subr.mxu0 0.0
    %5048 = vmatpush1.msra.mxu0 0.0
    %5049 = vmatprep.subr.mxu0 0.0
    %5050 = vmatpush1.msra.mxu0 0.0
    %5051 = vmatprep.subr.mxu0 0.0
    %5052 = vmatpush1.msra.mxu0 0.0
    %5053 = vmatprep.subr.mxu0 0.0
    %5054 = vmatpush1.msra.mxu0 0.0
    %5055 = vmatprep.subr.mxu0 0.0
    %5056 = vmatpush1.msra.mxu0 0.0
    %5057 = vmatprep.subr.mxu0 0.0
    %5058 = vmatpush1.msra.mxu0 0.0
    %5059 = vmatprep.subr.mxu0 0.0
    %5060 = vmatpush1.msra.mxu0 0.0
    %5061 = vmatprep.mubr.f32.mxu0 0.0
    %5062 = vmatmul.mubr.f32.gmra.mrb[0].mxu0 %v4924
    %v5063 = vpop.f32.mrb[0].mxu0
    %v5064 = vadd.f32 0.0, %v5063
    %v5065 = vpop.f32.mrb[0].mxu0
    %5066 = vdwg.mxu0
    %v5067 = vld [vmem:[#allocation14] sm:$0xff]
    %v5069 = vsel %vm3466, %v5067, 0
    %5071 = vmatprep.subr.mxu0 %v4917
    %5072 = vmatpush1.msra.mxu0 %v4916
    %5073 = vmatprep.subr.mxu0 %v4919
    %5074 = vmatpush1.msra.mxu0 %v4918
    %5075 = vmatprep.subr.mxu0 %v4921
    %5076 = vmatpush1.msra.mxu0 %v4920
    %5077 = vmatprep.subr.mxu0 0.0
    %5078 = vmatpush1.msra.mxu0 0.0
    %5079 = vmatprep.subr.mxu0 0.0
    %5080 = vmatpush1.msra.mxu0 0.0
    %5081 = vmatprep.subr.mxu0 0.0
    %5082 = vmatpush1.msra.mxu0 0.0
    %5083 = vmatprep.subr.mxu0 0.0
    %5084 = vmatpush1.msra.mxu0 0.0
    %5085 = vmatprep.subr.mxu0 0.0
    %5086 = vmatpush1.msra.mxu0 0.0
    %5087 = vmatprep.subr.mxu0 0.0
    %5088 = vmatpush1.msra.mxu0 0.0
    %5089 = vmatprep.subr.mxu0 0.0
    %5090 = vmatpush1.msra.mxu0 0.0
    %5091 = vmatprep.subr.mxu0 0.0
    %5092 = vmatpush1.msra.mxu0 0.0
    %5093 = vmatprep.subr.mxu0 0.0
    %5094 = vmatpush1.msra.mxu0 0.0
    %5095 = vmatprep.subr.mxu0 0.0
    %5096 = vmatpush1.msra.mxu0 0.0
    %5097 = vmatprep.subr.mxu0 0.0
    %5098 = vmatpush1.msra.mxu0 0.0
    %5099 = vmatprep.subr.mxu0 0.0
    %5100 = vmatpush1.msra.mxu0 0.0
    %5101 = vmatprep.subr.mxu0 0.0
    %5102 = vmatpush1.msra.mxu0 0.0
    %5103 = vmatprep.subr.mxu0 0.0
    %5104 = vmatpush1.msra.mxu0 0.0
    %5105 = vmatprep.subr.mxu0 0.0
    %5106 = vmatpush1.msra.mxu0 0.0
    %5107 = vmatprep.subr.mxu0 0.0
    %5108 = vmatpush1.msra.mxu0 0.0
    %5109 = vmatprep.subr.mxu0 0.0
    %5110 = vmatpush1.msra.mxu0 0.0
    %5111 = vmatprep.subr.mxu0 0.0
    %5112 = vmatpush1.msra.mxu0 0.0
    %5113 = vmatprep.subr.mxu0 0.0
    %5114 = vmatpush1.msra.mxu0 0.0
    %5115 = vmatprep.subr.mxu0 0.0
    %5116 = vmatpush1.msra.mxu0 0.0
    %5117 = vmatprep.subr.mxu0 0.0
    %5118 = vmatpush1.msra.mxu0 0.0
    %5119 = vmatprep.subr.mxu0 0.0
    %5120 = vmatpush1.msra.mxu0 0.0
    %5121 = vmatprep.subr.mxu0 0.0
    %5122 = vmatpush1.msra.mxu0 0.0
    %5123 = vmatprep.subr.mxu0 0.0
    %5124 = vmatpush1.msra.mxu0 0.0
    %5125 = vmatprep.subr.mxu0 0.0
    %5126 = vmatpush1.msra.mxu0 0.0
    %5127 = vmatprep.subr.mxu0 0.0
    %5128 = vmatpush1.msra.mxu0 0.0
    %5129 = vmatprep.subr.mxu0 0.0
    %5130 = vmatpush1.msra.mxu0 0.0
    %5131 = vmatprep.subr.mxu0 0.0
    %5132 = vmatpush1.msra.mxu0 0.0
    %5133 = vmatprep.subr.mxu0 0.0
    %5134 = vmatpush1.msra.mxu0 0.0
    %5135 = vmatprep.mubr.f32.mxu0 0.0
    %5136 = vmatmul.mubr.f32.gmra.mrb[0].mxu0 %v5069
    %v5137 = vpop.f32.mrb[0].mxu0
    %v5138 = vadd.f32 0.0, %v5137
    %v5139 = vpop.f32.mrb[0].mxu0
    %v5140 = vadd.f32 0.0, %v5139
    %5141 = vdwg.mxu0
    %s5142 = smul.u32 4, 128
    %s5143 = smul.u32 %s5142, 8
    %s5144 = sshll.u32 %s5143, 4
    %5145 = dma.done [#allocation3], %s5144
    %v5146 = vld [vmem:[#allocation2] sm:$0xff]
    %v5147 = vld [vmem:[#allocation2 + $0x8] sm:$0xff]
    %v5148 = vld [vmem:[#allocation2 + $0x10] sm:$0xff]
    %v5149 = vld [vmem:[#allocation2 + $0x18] sm:$0xff]
    %v5150 = vld [vmem:[#allocation2 + $0x20] sm:$0xff]
    %v5151 = vld [vmem:[#allocation2 + $0x28] sm:$0xff]
    %v5152 = vld [vmem:[#allocation2 + $0x30] sm:$0xff]
    %v5153 = vld [vmem:[#allocation2 + $0x38] sm:$0xff]
    %v5154 = vld [vmem:[#allocation2 + $0x40] sm:$0xff]
    %v5155 = vld [vmem:[#allocation2 + $0x48] sm:$0xff]
    %v5156 = vld [vmem:[#allocation2 + $0x50] sm:$0xff]
    %v5157 = vld [vmem:[#allocation2 + $0x58] sm:$0xff]
    %v5158 = vld [vmem:[#allocation2 + $0x60] sm:$0xff]
    %v5159 = vld [vmem:[#allocation2 + $0x68] sm:$0xff]
    %v5160 = vld [vmem:[#allocation2 + $0x70] sm:$0xff]
    %v5161 = vld [vmem:[#allocation2 + $0x78] sm:$0xff]
    %v5162 = vld [vmem:[#allocation2 + $0x80] sm:$0xff]
    %v5163 = vld [vmem:[#allocation2 + $0x88] sm:$0xff]
    %v5164 = vld [vmem:[#allocation2 + $0x90] sm:$0xff]
    %v5165 = vld [vmem:[#allocation2 + $0x98] sm:$0xff]
    %v5166 = vld [vmem:[#allocation2 + $0xa0] sm:$0xff]
    %v5167 = vld [vmem:[#allocation2 + $0xa8] sm:$0xff]
    %v5168 = vld [vmem:[#allocation2 + $0xb0] sm:$0xff]
    %v5169 = vld [vmem:[#allocation2 + $0xb8] sm:$0xff]
    %v5170 = vld [vmem:[#allocation2 + $0xc0] sm:$0xff]
    %v5171 = vld [vmem:[#allocation2 + $0xc8] sm:$0xff]
    %v5172 = vld [vmem:[#allocation2 + $0xd0] sm:$0xff]
    %v5173 = vld [vmem:[#allocation2 + $0xd8] sm:$0xff]
    %v5174 = vld [vmem:[#allocation2 + $0xe0] sm:$0xff]
    %v5175 = vld [vmem:[#allocation2 + $0xe8] sm:$0xff]
    %v5176 = vld [vmem:[#allocation2 + $0xf0] sm:$0xff]
    %v5177 = vld [vmem:[#allocation2 + $0xf8] sm:$0xff]
    %v5178 = vld [vmem:[#allocation2 + $0x100] sm:$0xff]
    %v5179 = vld [vmem:[#allocation2 + $0x108] sm:$0xff]
    %v5180 = vld [vmem:[#allocation2 + $0x110] sm:$0xff]
    %v5181 = vld [vmem:[#allocation2 + $0x118] sm:$0xff]
    %v5182 = vld [vmem:[#allocation2 + $0x120] sm:$0xff]
    %v5183 = vld [vmem:[#allocation2 + $0x128] sm:$0xff]
    %v5184 = vld [vmem:[#allocation2 + $0x130] sm:$0xff]
    %v5185 = vld [vmem:[#allocation2 + $0x138] sm:$0xff]
    %v5186 = vld [vmem:[#allocation2 + $0x140] sm:$0xff]
    %v5187 = vld [vmem:[#allocation2 + $0x148] sm:$0xff]
    %v5188 = vld [vmem:[#allocation2 + $0x150] sm:$0xff]
    %v5189 = vld [vmem:[#allocation2 + $0x158] sm:$0xff]
    %v5190 = vld [vmem:[#allocation2 + $0x160] sm:$0xff]
    %v5191 = vld [vmem:[#allocation2 + $0x168] sm:$0xff]
    %v5192 = vld [vmem:[#allocation2 + $0x170] sm:$0xff]
    %v5193 = vld [vmem:[#allocation2 + $0x178] sm:$0xff]
    %v5194 = vld [vmem:[#allocation2 + $0x180] sm:$0xff]
    %v5195 = vld [vmem:[#allocation2 + $0x188] sm:$0xff]
    %v5196 = vld [vmem:[#allocation2 + $0x190] sm:$0xff]
    %v5197 = vld [vmem:[#allocation2 + $0x198] sm:$0xff]
    %v5198 = vld [vmem:[#allocation2 + $0x1a0] sm:$0xff]
    %v5199 = vld [vmem:[#allocation2 + $0x1a8] sm:$0xff]
    %v5200 = vld [vmem:[#allocation2 + $0x1b0] sm:$0xff]
    %v5201 = vld [vmem:[#allocation2 + $0x1b8] sm:$0xff]
    %v5202 = vld [vmem:[#allocation2 + $0x1c0] sm:$0xff]
    %v5203 = vld [vmem:[#allocation2 + $0x1c8] sm:$0xff]
    %v5204 = vld [vmem:[#allocation2 + $0x1d0] sm:$0xff]
    %v5205 = vld [vmem:[#allocation2 + $0x1d8] sm:$0xff]
    %v5206 = vld [vmem:[#allocation2 + $0x1e0] sm:$0xff]
    %v5207 = vld [vmem:[#allocation2 + $0x1e8] sm:$0xff]
    %v5208 = vld [vmem:[#allocation2 + $0x1f0] sm:$0xff]
    %v5209 = vld [vmem:[#allocation2 + $0x1f8] sm:$0xff]
    %v5210 = vld [vmem:[#allocation2 + $0x200] sm:$0xff]
    %v5211 = vld [vmem:[#allocation2 + $0x208] sm:$0xff]
    %v5212 = vld [vmem:[#allocation2 + $0x210] sm:$0xff]
    %v5213 = vld [vmem:[#allocation2 + $0x218] sm:$0xff]
    %v5214 = vld [vmem:[#allocation2 + $0x220] sm:$0xff]
    %v5215 = vld [vmem:[#allocation2 + $0x228] sm:$0xff]
    %v5216 = vld [vmem:[#allocation2 + $0x230] sm:$0xff]
    %v5217 = vld [vmem:[#allocation2 + $0x238] sm:$0xff]
    %v5218 = vld [vmem:[#allocation2 + $0x240] sm:$0xff]
    %v5219 = vld [vmem:[#allocation2 + $0x248] sm:$0xff]
    %v5220 = vld [vmem:[#allocation2 + $0x250] sm:$0xff]
    %v5221 = vld [vmem:[#allocation2 + $0x258] sm:$0xff]
    %v5222 = vld [vmem:[#allocation2 + $0x260] sm:$0xff]
    %v5223 = vld [vmem:[#allocation2 + $0x268] sm:$0xff]
    %v5224 = vld [vmem:[#allocation2 + $0x270] sm:$0xff]
    %v5225 = vld [vmem:[#allocation2 + $0x278] sm:$0xff]
    %v5226 = vld [vmem:[#allocation2 + $0x280] sm:$0xff]
    %v5227 = vld [vmem:[#allocation2 + $0x288] sm:$0xff]
    %v5228 = vld [vmem:[#allocation2 + $0x290] sm:$0xff]
    %v5229 = vld [vmem:[#allocation2 + $0x298] sm:$0xff]
    %v5230 = vld [vmem:[#allocation2 + $0x2a0] sm:$0xff]
    %v5231 = vld [vmem:[#allocation2 + $0x2a8] sm:$0xff]
    %v5232 = vld [vmem:[#allocation2 + $0x2b0] sm:$0xff]
    %v5233 = vld [vmem:[#allocation2 + $0x2b8] sm:$0xff]
    %v5234 = vld [vmem:[#allocation2 + $0x2c0] sm:$0xff]
    %v5235 = vld [vmem:[#allocation2 + $0x2c8] sm:$0xff]
    %v5236 = vld [vmem:[#allocation2 + $0x2d0] sm:$0xff]
    %v5237 = vld [vmem:[#allocation2 + $0x2d8] sm:$0xff]
    %v5238 = vld [vmem:[#allocation2 + $0x2e0] sm:$0xff]
    %v5239 = vld [vmem:[#allocation2 + $0x2e8] sm:$0xff]
    %v5240 = vld [vmem:[#allocation2 + $0x2f0] sm:$0xff]
    %v5241 = vld [vmem:[#allocation2 + $0x2f8] sm:$0xff]
    %v5242 = vld [vmem:[#allocation2 + $0x300] sm:$0xff]
    %v5243 = vld [vmem:[#allocation2 + $0x308] sm:$0xff]
    %v5244 = vld [vmem:[#allocation2 + $0x310] sm:$0xff]
    %v5245 = vld [vmem:[#allocation2 + $0x318] sm:$0xff]
    %v5246 = vld [vmem:[#allocation2 + $0x320] sm:$0xff]
    %v5247 = vld [vmem:[#allocation2 + $0x328] sm:$0xff]
    %v5248 = vld [vmem:[#allocation2 + $0x330] sm:$0xff]
    %v5249 = vld [vmem:[#allocation2 + $0x338] sm:$0xff]
    %v5250 = vld [vmem:[#allocation2 + $0x340] sm:$0xff]
    %v5251 = vld [vmem:[#allocation2 + $0x348] sm:$0xff]
    %v5252 = vld [vmem:[#allocation2 + $0x350] sm:$0xff]
    %v5253 = vld [vmem:[#allocation2 + $0x358] sm:$0xff]
    %v5254 = vld [vmem:[#allocation2 + $0x360] sm:$0xff]
    %v5255 = vld [vmem:[#allocation2 + $0x368] sm:$0xff]
    %v5256 = vld [vmem:[#allocation2 + $0x370] sm:$0xff]
    %v5257 = vld [vmem:[#allocation2 + $0x378] sm:$0xff]
    %v5258 = vld [vmem:[#allocation2 + $0x380] sm:$0xff]
    %v5259 = vld [vmem:[#allocation2 + $0x388] sm:$0xff]
    %v5260 = vld [vmem:[#allocation2 + $0x390] sm:$0xff]
    %v5261 = vld [vmem:[#allocation2 + $0x398] sm:$0xff]
    %v5262 = vld [vmem:[#allocation2 + $0x3a0] sm:$0xff]
    %v5263 = vld [vmem:[#allocation2 + $0x3a8] sm:$0xff]
    %v5264 = vld [vmem:[#allocation2 + $0x3b0] sm:$0xff]
    %v5265 = vld [vmem:[#allocation2 + $0x3b8] sm:$0xff]
    %v5266 = vld [vmem:[#allocation2 + $0x3c0] sm:$0xff]
    %v5267 = vld [vmem:[#allocation2 + $0x3c8] sm:$0xff]
    %v5268 = vld [vmem:[#allocation2 + $0x3d0] sm:$0xff]
    %v5269 = vld [vmem:[#allocation2 + $0x3d8] sm:$0xff]
    %v5270 = vld [vmem:[#allocation2 + $0x3e0] sm:$0xff]
    %v5271 = vld [vmem:[#allocation2 + $0x3e8] sm:$0xff]
    %v5272 = vld [vmem:[#allocation2 + $0x3f0] sm:$0xff]
    %v5273 = vld [vmem:[#allocation2 + $0x3f8] sm:$0xff]
    %v5274 = vld [vmem:[#allocation2 + $0x400] sm:$0xff]
    %v5275 = vld [vmem:[#allocation2 + $0x408] sm:$0xff]
    %v5276 = vld [vmem:[#allocation2 + $0x410] sm:$0xff]
    %v5277 = vld [vmem:[#allocation2 + $0x418] sm:$0xff]
    %v5278 = vld [vmem:[#allocation2 + $0x420] sm:$0xff]
    %v5279 = vld [vmem:[#allocation2 + $0x428] sm:$0xff]
    %v5280 = vld [vmem:[#allocation2 + $0x430] sm:$0xff]
    %v5281 = vld [vmem:[#allocation2 + $0x438] sm:$0xff]
    %v5282 = vld [vmem:[#allocation2 + $0x440] sm:$0xff]
    %v5283 = vld [vmem:[#allocation2 + $0x448] sm:$0xff]
    %v5284 = vld [vmem:[#allocation2 + $0x450] sm:$0xff]
    %v5285 = vld [vmem:[#allocation2 + $0x458] sm:$0xff]
    %v5286 = vld [vmem:[#allocation2 + $0x460] sm:$0xff]
    %v5287 = vld [vmem:[#allocation2 + $0x468] sm:$0xff]
    %v5288 = vld [vmem:[#allocation2 + $0x470] sm:$0xff]
    %v5289 = vld [vmem:[#allocation2 + $0x478] sm:$0xff]
    %v5290 = vld [vmem:[#allocation2 + $0x480] sm:$0xff]
    %v5291 = vld [vmem:[#allocation2 + $0x488] sm:$0xff]
    %v5292 = vld [vmem:[#allocation2 + $0x490] sm:$0xff]
    %v5293 = vld [vmem:[#allocation2 + $0x498] sm:$0xff]
    %v5294 = vld [vmem:[#allocation2 + $0x4a0] sm:$0xff]
    %v5295 = vld [vmem:[#allocation2 + $0x4a8] sm:$0xff]
    %v5296 = vld [vmem:[#allocation2 + $0x4b0] sm:$0xff]
    %v5297 = vld [vmem:[#allocation2 + $0x4b8] sm:$0xff]
    %v5298 = vld [vmem:[#allocation2 + $0x4c0] sm:$0xff]
    %v5299 = vld [vmem:[#allocation2 + $0x4c8] sm:$0xff]
    %v5300 = vld [vmem:[#allocation2 + $0x4d0] sm:$0xff]
    %v5301 = vld [vmem:[#allocation2 + $0x4d8] sm:$0xff]
    %v5302 = vld [vmem:[#allocation2 + $0x4e0] sm:$0xff]
    %v5303 = vld [vmem:[#allocation2 + $0x4e8] sm:$0xff]
    %v5304 = vld [vmem:[#allocation2 + $0x4f0] sm:$0xff]
    %v5305 = vld [vmem:[#allocation2 + $0x4f8] sm:$0xff]
    %v5306 = vld [vmem:[#allocation2 + $0x500] sm:$0xff]
    %v5307 = vld [vmem:[#allocation2 + $0x508] sm:$0xff]
    %v5308 = vld [vmem:[#allocation2 + $0x510] sm:$0xff]
    %v5309 = vld [vmem:[#allocation2 + $0x518] sm:$0xff]
    %v5310 = vld [vmem:[#allocation2 + $0x520] sm:$0xff]
    %v5311 = vld [vmem:[#allocation2 + $0x528] sm:$0xff]
    %v5312 = vld [vmem:[#allocation2 + $0x530] sm:$0xff]
    %v5313 = vld [vmem:[#allocation2 + $0x538] sm:$0xff]
    %v5314 = vld [vmem:[#allocation2 + $0x540] sm:$0xff]
    %v5315 = vld [vmem:[#allocation2 + $0x548] sm:$0xff]
    %v5316 = vld [vmem:[#allocation2 + $0x550] sm:$0xff]
    %v5317 = vld [vmem:[#allocation2 + $0x558] sm:$0xff]
    %v5318 = vld [vmem:[#allocation2 + $0x560] sm:$0xff]
    %v5319 = vld [vmem:[#allocation2 + $0x568] sm:$0xff]
    %v5320 = vld [vmem:[#allocation2 + $0x570] sm:$0xff]
    %v5321 = vld [vmem:[#allocation2 + $0x578] sm:$0xff]
    %v5322 = vld [vmem:[#allocation2 + $0x580] sm:$0xff]
    %v5323 = vld [vmem:[#allocation2 + $0x588] sm:$0xff]
    %v5324 = vld [vmem:[#allocation2 + $0x590] sm:$0xff]
    %v5325 = vld [vmem:[#allocation2 + $0x598] sm:$0xff]
    %v5326 = vld [vmem:[#allocation2 + $0x5a0] sm:$0xff]
    %v5327 = vld [vmem:[#allocation2 + $0x5a8] sm:$0xff]
    %v5328 = vld [vmem:[#allocation2 + $0x5b0] sm:$0xff]
    %v5329 = vld [vmem:[#allocation2 + $0x5b8] sm:$0xff]
    %v5330 = vld [vmem:[#allocation2 + $0x5c0] sm:$0xff]
    %v5331 = vld [vmem:[#allocation2 + $0x5c8] sm:$0xff]
    %v5332 = vld [vmem:[#allocation2 + $0x5d0] sm:$0xff]
    %v5333 = vld [vmem:[#allocation2 + $0x5d8] sm:$0xff]
    %v5334 = vld [vmem:[#allocation2 + $0x5e0] sm:$0xff]
    %v5335 = vld [vmem:[#allocation2 + $0x5e8] sm:$0xff]
    %v5336 = vld [vmem:[#allocation2 + $0x5f0] sm:$0xff]
    %v5337 = vld [vmem:[#allocation2 + $0x5f8] sm:$0xff]
    %v5338 = vld [vmem:[#allocation17 + $0xe] sm:$0xff]
    %v5339 = vpack.c.bf16 %v4993, %v4993
    %v5340 = vpack.c.bf16 %v4995, %v4995
    %v5341 = vpack.c.bf16 %v5064, %v5064
    %v5343 = vlaneseq
    %v5344 = vshrl.u32 %v5343, 7
    %v5345 = vsub.s32 0, %v5344
    %v5346 = vrot.slane %v5338, %v5345
    %v5347 = vlaneseq
    %v5348 = vshrl.u32 %v5347, 7
    %v5349 = vsub.s32 1, %v5348
    %v5350 = vrot.slane %v5338, %v5349
    %v5351 = vlaneseq
    %v5352 = vshrl.u32 %v5351, 7
    %v5353 = vsub.s32 2, %v5352
    %v5354 = vrot.slane %v5338, %v5353
    %v5355 = vlaneseq
    %v5356 = vshrl.u32 %v5355, 7
    %v5357 = vsub.s32 3, %v5356
    %v5358 = vrot.slane %v5338, %v5357
    %v5359 = vlaneseq
    %v5360 = vshrl.u32 %v5359, 7
    %v5361 = vsub.s32 4, %v5360
    %v5362 = vrot.slane %v5338, %v5361
    %v5363 = vlaneseq
    %v5364 = vshrl.u32 %v5363, 7
    %v5365 = vsub.s32 5, %v5364
    %v5366 = vrot.slane %v5338, %v5365
    %v5367 = vlaneseq
    %v5368 = vshrl.u32 %v5367, 7
    %v5369 = vsub.s32 6, %v5368
    %v5370 = vrot.slane %v5338, %v5369
    %v5371 = vlaneseq
    %v5372 = vshrl.u32 %v5371, 7
    %v5373 = vsub.s32 7, %v5372
    %v5374 = vrot.slane %v5338, %v5373
    %5383 = vmatprep.subr.bf16.mxu0 %v5147
    %5384 = vmatpush1.bf16.msra.mxu0 %v5146
    %5385 = vmatprep.subr.bf16.mxu0 %v5155
    %5386 = vmatpush1.bf16.msra.mxu0 %v5154
    %5387 = vmatprep.subr.bf16.mxu0 %v5163
    %5388 = vmatpush1.bf16.msra.mxu0 %v5162
    %5389 = vmatprep.subr.bf16.mxu0 %v5171
    %5390 = vmatpush1.bf16.msra.mxu0 %v5170
    %5391 = vmatprep.subr.bf16.mxu0 %v5179
    %5392 = vmatpush1.bf16.msra.mxu0 %v5178
    %5393 = vmatprep.subr.bf16.mxu0 %v5187
    %5394 = vmatpush1.bf16.msra.mxu0 %v5186
    %5395 = vmatprep.subr.bf16.mxu0 %v5195
    %5396 = vmatpush1.bf16.msra.mxu0 %v5194
    %5397 = vmatprep.subr.bf16.mxu0 %v5203
    %5398 = vmatpush1.bf16.msra.mxu0 %v5202
    %5399 = vmatprep.subr.bf16.mxu0 %v5211
    %5400 = vmatpush1.bf16.msra.mxu0 %v5210
    %5401 = vmatprep.subr.bf16.mxu0 %v5219
    %5402 = vmatpush1.bf16.msra.mxu0 %v5218
    %5403 = vmatprep.subr.bf16.mxu0 %v5227
    %5404 = vmatpush1.bf16.msra.mxu0 %v5226
    %5405 = vmatprep.subr.bf16.mxu0 %v5235
    %5406 = vmatpush1.bf16.msra.mxu0 %v5234
    %5407 = vmatprep.subr.bf16.mxu0 %v5243
    %5408 = vmatpush1.bf16.msra.mxu0 %v5242
    %5409 = vmatprep.subr.bf16.mxu0 %v5251
    %5410 = vmatpush1.bf16.msra.mxu0 %v5250
    %5411 = vmatprep.subr.bf16.mxu0 %v5259
    %5412 = vmatpush1.bf16.msra.mxu0 %v5258
    %5413 = vmatprep.subr.bf16.mxu0 %v5267
    %5414 = vmatpush1.bf16.msra.mxu0 %v5266
    %5415 = vmatprep.mubr.bf16.mxu0 %v5340
    %5416 = vmatmul.mubr.bf16.gmra.mrb[0].mxu0 %v5339
    %v5417 = vpop.f32.mrb[0].mxu0
    %v5418 = vadd.f32 %v5346, %v5417
    %v5419 = vpop.f32.mrb[0].mxu0
    %v5420 = vadd.f32 %v5350, %v5419
    %v5421 = vpop.f32.mrb[0].mxu0
    %v5422 = vpop.f32.mrb[0].mxu0
    %5423 = vdwg.mxu0
    %5424 = vmatprep.subr.bf16.mxu0 %v5275
    %5425 = vmatpush1.bf16.msra.mxu0 %v5274
    %5426 = vmatprep.subr.bf16.mxu0 %v5283
    %5427 = vmatpush1.bf16.msra.mxu0 %v5282
    %5428 = vmatprep.subr.bf16.mxu0 %v5291
    %5429 = vmatpush1.bf16.msra.mxu0 %v5290
    %5430 = vmatprep.subr.bf16.mxu0 %v5299
    %5431 = vmatpush1.bf16.msra.mxu0 %v5298
    %5432 = vmatprep.subr.bf16.mxu0 %v5307
    %5433 = vmatpush1.bf16.msra.mxu0 %v5306
    %5434 = vmatprep.subr.bf16.mxu0 %v5315
    %5435 = vmatpush1.bf16.msra.mxu0 %v5314
    %5436 = vmatprep.subr.bf16.mxu0 %v5323
    %5437 = vmatpush1.bf16.msra.mxu0 %v5322
    %5438 = vmatprep.subr.bf16.mxu0 %v5331
    %5439 = vmatpush1.bf16.msra.mxu0 %v5330
    %5440 = vmatprep.subr.bf16.mxu0 0
    %5441 = vmatpush1.bf16.msra.mxu0 0
    %5442 = vmatprep.subr.bf16.mxu0 0
    %5443 = vmatpush1.bf16.msra.mxu0 0
    %5444 = vmatprep.subr.bf16.mxu0 0
    %5445 = vmatpush1.bf16.msra.mxu0 0
    %5446 = vmatprep.subr.bf16.mxu0 0
    %5447 = vmatpush1.bf16.msra.mxu0 0
    %5448 = vmatprep.subr.bf16.mxu0 0
    %5449 = vmatpush1.bf16.msra.mxu0 0
    %5450 = vmatprep.subr.bf16.mxu0 0
    %5451 = vmatpush1.bf16.msra.mxu0 0
    %5452 = vmatprep.subr.bf16.mxu0 0
    %5453 = vmatpush1.bf16.msra.mxu0 0
    %5454 = vmatprep.subr.bf16.mxu0 0
    %5455 = vmatpush1.bf16.msra.mxu0 0
    %5456 = vmatprep.mubr.bf16.mxu0 0
    %5457 = vmatmul.mubr.bf16.gmra.mrb[0].mxu0 %v5341
    %v5458 = vpop.f32.mrb[0].mxu0
    %v5459 = vadd.f32 %v5418, %v5458
    %v5460 = vpop.f32.mrb[0].mxu0
    %v5461 = vadd.f32 %v5420, %v5460
    %v5462 = vpop.f32.mrb[0].mxu0
    %v5463 = vpop.f32.mrb[0].mxu0
    %5464 = vdwg.mxu0
    %5465 = vmatprep.subr.bf16.mxu0 %v5149
    %5466 = vmatpush1.bf16.msra.mxu0 %v5148
    %5467 = vmatprep.subr.bf16.mxu0 %v5157
    %5468 = vmatpush1.bf16.msra.mxu0 %v5156
    %5469 = vmatprep.subr.bf16.mxu0 %v5165
    %5470 = vmatpush1.bf16.msra.mxu0 %v5164
    %5471 = vmatprep.subr.bf16.mxu0 %v5173
    %5472 = vmatpush1.bf16.msra.mxu0 %v5172
    %5473 = vmatprep.subr.bf16.mxu0 %v5181
    %5474 = vmatpush1.bf16.msra.mxu0 %v5180
    %5475 = vmatprep.subr.bf16.mxu0 %v5189
    %5476 = vmatpush1.bf16.msra.mxu0 %v5188
    %5477 = vmatprep.subr.bf16.mxu0 %v5197
    %5478 = vmatpush1.bf16.msra.mxu0 %v5196
    %5479 = vmatprep.subr.bf16.mxu0 %v5205
    %5480 = vmatpush1.bf16.msra.mxu0 %v5204
    %5481 = vmatprep.subr.bf16.mxu0 %v5213
    %5482 = vmatpush1.bf16.msra.mxu0 %v5212
    %5483 = vmatprep.subr.bf16.mxu0 %v5221
    %5484 = vmatpush1.bf16.msra.mxu0 %v5220
    %5485 = vmatprep.subr.bf16.mxu0 %v5229
    %5486 = vmatpush1.bf16.msra.mxu0 %v5228
    %5487 = vmatprep.subr.bf16.mxu0 %v5237
    %5488 = vmatpush1.bf16.msra.mxu0 %v5236
    %5489 = vmatprep.subr.bf16.mxu0 %v5245
    %5490 = vmatpush1.bf16.msra.mxu0 %v5244
    %5491 = vmatprep.subr.bf16.mxu0 %v5253
    %5492 = vmatpush1.bf16.msra.mxu0 %v5252
    %5493 = vmatprep.subr.bf16.mxu0 %v5261
    %5494 = vmatpush1.bf16.msra.mxu0 %v5260
    %5495 = vmatprep.subr.bf16.mxu0 %v5269
    %5496 = vmatpush1.bf16.msra.mxu0 %v5268
    %5497 = vmatprep.mubr.bf16.mxu0 %v5340
    %5498 = vmatmul.mubr.bf16.gmra.mrb[0].mxu0 %v5339
    %v5499 = vpop.f32.mrb[0].mxu0
    %v5500 = vadd.f32 %v5354, %v5499
    %v5501 = vpop.f32.mrb[0].mxu0
    %v5502 = vadd.f32 %v5358, %v5501
    %v5503 = vpop.f32.mrb[0].mxu0
    %v5504 = vpop.f32.mrb[0].mxu0
    %5505 = vdwg.mxu0
    %5506 = vmatprep.subr.bf16.mxu0 %v5277
    %5507 = vmatpush1.bf16.msra.mxu0 %v5276
    %5508 = vmatprep.subr.bf16.mxu0 %v5285
    %5509 = vmatpush1.bf16.msra.mxu0 %v5284
    %5510 = vmatprep.subr.bf16.mxu0 %v5293
    %5511 = vmatpush1.bf16.msra.mxu0 %v5292
    %5512 = vmatprep.subr.bf16.mxu0 %v5301
    %5513 = vmatpush1.bf16.msra.mxu0 %v5300
    %5514 = vmatprep.subr.bf16.mxu0 %v5309
    %5515 = vmatpush1.bf16.msra.mxu0 %v5308
    %5516 = vmatprep.subr.bf16.mxu0 %v5317
    %5517 = vmatpush1.bf16.msra.mxu0 %v5316
    %5518 = vmatprep.subr.bf16.mxu0 %v5325
    %5519 = vmatpush1.bf16.msra.mxu0 %v5324
    %5520 = vmatprep.subr.bf16.mxu0 %v5333
    %5521 = vmatpush1.bf16.msra.mxu0 %v5332
    %5522 = vmatprep.subr.bf16.mxu0 0
    %5523 = vmatpush1.bf16.msra.mxu0 0
    %5524 = vmatprep.subr.bf16.mxu0 0
    %5525 = vmatpush1.bf16.msra.mxu0 0
    %5526 = vmatprep.subr.bf16.mxu0 0
    %5527 = vmatpush1.bf16.msra.mxu0 0
    %5528 = vmatprep.subr.bf16.mxu0 0
    %5529 = vmatpush1.bf16.msra.mxu0 0
    %5530 = vmatprep.subr.bf16.mxu0 0
    %5531 = vmatpush1.bf16.msra.mxu0 0
    %5532 = vmatprep.subr.bf16.mxu0 0
    %5533 = vmatpush1.bf16.msra.mxu0 0
    %5534 = vmatprep.subr.bf16.mxu0 0
    %5535 = vmatpush1.bf16.msra.mxu0 0
    %5536 = vmatprep.subr.bf16.mxu0 0
    %5537 = vmatpush1.bf16.msra.mxu0 0
    %5538 = vmatprep.mubr.bf16.mxu0 0
    %5539 = vmatmul.mubr.bf16.gmra.mrb[0].mxu0 %v5341
    %v5540 = vpop.f32.mrb[0].mxu0
    %v5541 = vadd.f32 %v5500, %v5540
    %v5542 = vpop.f32.mrb[0].mxu0
    %v5543 = vadd.f32 %v5502, %v5542
    %v5544 = vpop.f32.mrb[0].mxu0
    %v5545 = vpop.f32.mrb[0].mxu0
    %5546 = vdwg.mxu0
    %5547 = vmatprep.subr.bf16.mxu0 %v5151
    %5548 = vmatpush1.bf16.msra.mxu0 %v5150
    %5549 = vmatprep.subr.bf16.mxu0 %v5159
    %5550 = vmatpush1.bf16.msra.mxu0 %v5158
    %5551 = vmatprep.subr.bf16.mxu0 %v5167
    %5552 = vmatpush1.bf16.msra.mxu0 %v5166
    %5553 = vmatprep.subr.bf16.mxu0 %v5175
    %5554 = vmatpush1.bf16.msra.mxu0 %v5174
    %5555 = vmatprep.subr.bf16.mxu0 %v5183
    %5556 = vmatpush1.bf16.msra.mxu0 %v5182
    %5557 = vmatprep.subr.bf16.mxu0 %v5191
    %5558 = vmatpush1.bf16.msra.mxu0 %v5190
    %5559 = vmatprep.subr.bf16.mxu0 %v5199
    %5560 = vmatpush1.bf16.msra.mxu0 %v5198
    %5561 = vmatprep.subr.bf16.mxu0 %v5207
    %5562 = vmatpush1.bf16.msra.mxu0 %v5206
    %5563 = vmatprep.subr.bf16.mxu0 %v5215
    %5564 = vmatpush1.bf16.msra.mxu0 %v5214
    %5565 = vmatprep.subr.bf16.mxu0 %v5223
    %5566 = vmatpush1.bf16.msra.mxu0 %v5222
    %5567 = vmatprep.subr.bf16.mxu0 %v5231
    %5568 = vmatpush1.bf16.msra.mxu0 %v5230
    %5569 = vmatprep.subr.bf16.mxu0 %v5239
    %5570 = vmatpush1.bf16.msra.mxu0 %v5238
    %5571 = vmatprep.subr.bf16.mxu0 %v5247
    %5572 = vmatpush1.bf16.msra.mxu0 %v5246
    %5573 = vmatprep.subr.bf16.mxu0 %v5255
    %5574 = vmatpush1.bf16.msra.mxu0 %v5254
    %5575 = vmatprep.subr.bf16.mxu0 %v5263
    %5576 = vmatpush1.bf16.msra.mxu0 %v5262
    %5577 = vmatprep.subr.bf16.mxu0 %v5271
    %5578 = vmatpush1.bf16.msra.mxu0 %v5270
    %5579 = vmatprep.mubr.bf16.mxu0 %v5340
    %5580 = vmatmul.mubr.bf16.gmra.mrb[0].mxu0 %v5339
    %v5581 = vpop.f32.mrb[0].mxu0
    %v5582 = vadd.f32 %v5362, %v5581
    %v5583 = vpop.f32.mrb[0].mxu0
    %v5584 = vadd.f32 %v5366, %v5583
    %v5585 = vpop.f32.mrb[0].mxu0
    %v5586 = vpop.f32.mrb[0].mxu0
    %5587 = vdwg.mxu0
    %5588 = vmatprep.subr.bf16.mxu0 %v5279
    %5589 = vmatpush1.bf16.msra.mxu0 %v5278
    %5590 = vmatprep.subr.bf16.mxu0 %v5287
    %5591 = vmatpush1.bf16.msra.mxu0 %v5286
    %5592 = vmatprep.subr.bf16.mxu0 %v5295
    %5593 = vmatpush1.bf16.msra.mxu0 %v5294
    %5594 = vmatprep.subr.bf16.mxu0 %v5303
    %5595 = vmatpush1.bf16.msra.mxu0 %v5302
    %5596 = vmatprep.subr.bf16.mxu0 %v5311
    %5597 = vmatpush1.bf16.msra.mxu0 %v5310
    %5598 = vmatprep.subr.bf16.mxu0 %v5319
    %5599 = vmatpush1.bf16.msra.mxu0 %v5318
    %5600 = vmatprep.subr.bf16.mxu0 %v5327
    %5601 = vmatpush1.bf16.msra.mxu0 %v5326
    %5602 = vmatprep.subr.bf16.mxu0 %v5335
    %5603 = vmatpush1.bf16.msra.mxu0 %v5334
    %5604 = vmatprep.subr.bf16.mxu0 0
    %5605 = vmatpush1.bf16.msra.mxu0 0
    %5606 = vmatprep.subr.bf16.mxu0 0
    %5607 = vmatpush1.bf16.msra.mxu0 0
    %5608 = vmatprep.subr.bf16.mxu0 0
    %5609 = vmatpush1.bf16.msra.mxu0 0
    %5610 = vmatprep.subr.bf16.mxu0 0
    %5611 = vmatpush1.bf16.msra.mxu0 0
    %5612 = vmatprep.subr.bf16.mxu0 0
    %5613 = vmatpush1.bf16.msra.mxu0 0
    %5614 = vmatprep.subr.bf16.mxu0 0
    %5615 = vmatpush1.bf16.msra.mxu0 0
    %5616 = vmatprep.subr.bf16.mxu0 0
    %5617 = vmatpush1.bf16.msra.mxu0 0
    %5618 = vmatprep.subr.bf16.mxu0 0
    %5619 = vmatpush1.bf16.msra.mxu0 0
    %5620 = vmatprep.mubr.bf16.mxu0 0
    %5621 = vmatmul.mubr.bf16.gmra.mrb[0].mxu0 %v5341
    %v5622 = vpop.f32.mrb[0].mxu0
    %v5623 = vadd.f32 %v5582, %v5622
    %v5624 = vpop.f32.mrb[0].mxu0
    %v5625 = vadd.f32 %v5584, %v5624
    %v5626 = vpop.f32.mrb[0].mxu0
    %v5627 = vpop.f32.mrb[0].mxu0
    %5628 = vdwg.mxu0
    %5629 = vmatprep.subr.bf16.mxu0 %v5153
    %5630 = vmatpush1.bf16.msra.mxu0 %v5152
    %5631 = vmatprep.subr.bf16.mxu0 %v5161
    %5632 = vmatpush1.bf16.msra.mxu0 %v5160
    %5633 = vmatprep.subr.bf16.mxu0 %v5169
    %5634 = vmatpush1.bf16.msra.mxu0 %v5168
    %5635 = vmatprep.subr.bf16.mxu0 %v5177
    %5636 = vmatpush1.bf16.msra.mxu0 %v5176
    %5637 = vmatprep.subr.bf16.mxu0 %v5185
    %5638 = vmatpush1.bf16.msra.mxu0 %v5184
    %5639 = vmatprep.subr.bf16.mxu0 %v5193
    %5640 = vmatpush1.bf16.msra.mxu0 %v5192
    %5641 = vmatprep.subr.bf16.mxu0 %v5201
    %5642 = vmatpush1.bf16.msra.mxu0 %v5200
    %5643 = vmatprep.subr.bf16.mxu0 %v5209
    %5644 = vmatpush1.bf16.msra.mxu0 %v5208
    %5645 = vmatprep.subr.bf16.mxu0 %v5217
    %5646 = vmatpush1.bf16.msra.mxu0 %v5216
    %5647 = vmatprep.subr.bf16.mxu0 %v5225
    %5648 = vmatpush1.bf16.msra.mxu0 %v5224
    %5649 = vmatprep.subr.bf16.mxu0 %v5233
    %5650 = vmatpush1.bf16.msra.mxu0 %v5232
    %5651 = vmatprep.subr.bf16.mxu0 %v5241
    %5652 = vmatpush1.bf16.msra.mxu0 %v5240
    %5653 = vmatprep.subr.bf16.mxu0 %v5249
    %5654 = vmatpush1.bf16.msra.mxu0 %v5248
    %5655 = vmatprep.subr.bf16.mxu0 %v5257
    %5656 = vmatpush1.bf16.msra.mxu0 %v5256
    %5657 = vmatprep.subr.bf16.mxu0 %v5265
    %5658 = vmatpush1.bf16.msra.mxu0 %v5264
    %5659 = vmatprep.subr.bf16.mxu0 %v5273
    %5660 = vmatpush1.bf16.msra.mxu0 %v5272
    %5661 = vmatprep.mubr.bf16.mxu0 %v5340
    %5662 = vmatmul.mubr.bf16.gmra.mrb[0].mxu0 %v5339
    %v5663 = vpop.f32.mrb[0].mxu0
    %v5664 = vadd.f32 %v5370, %v5663
    %v5665 = vpop.f32.mrb[0].mxu0
    %v5666 = vadd.f32 %v5374, %v5665
    %v5667 = vpop.f32.mrb[0].mxu0
    %v5668 = vpop.f32.mrb[0].mxu0
    %5669 = vdwg.mxu0
    %5670 = vmatprep.subr.bf16.mxu0 %v5281
    %5671 = vmatpush1.bf16.msra.mxu0 %v5280
    %5672 = vmatprep.subr.bf16.mxu0 %v5289
    %5673 = vmatpush1.bf16.msra.mxu0 %v5288
    %5674 = vmatprep.subr.bf16.mxu0 %v5297
    %5675 = vmatpush1.bf16.msra.mxu0 %v5296
    %5676 = vmatprep.subr.bf16.mxu0 %v5305
    %5677 = vmatpush1.bf16.msra.mxu0 %v5304
    %5678 = vmatprep.subr.bf16.mxu0 %v5313
    %5679 = vmatpush1.bf16.msra.mxu0 %v5312
    %5680 = vmatprep.subr.bf16.mxu0 %v5321
    %5681 = vmatpush1.bf16.msra.mxu0 %v5320
    %5682 = vmatprep.subr.bf16.mxu0 %v5329
    %5683 = vmatpush1.bf16.msra.mxu0 %v5328
    %5684 = vmatprep.subr.bf16.mxu0 %v5337
    %5685 = vmatpush1.bf16.msra.mxu0 %v5336
    %5686 = vmatprep.subr.bf16.mxu0 0
    %5687 = vmatpush1.bf16.msra.mxu0 0
    %5688 = vmatprep.subr.bf16.mxu0 0
    %5689 = vmatpush1.bf16.msra.mxu0 0
    %5690 = vmatprep.subr.bf16.mxu0 0
    %5691 = vmatpush1.bf16.msra.mxu0 0
    %5692 = vmatprep.subr.bf16.mxu0 0
    %5693 = vmatpush1.bf16.msra.mxu0 0
    %5694 = vmatprep.subr.bf16.mxu0 0
    %5695 = vmatpush1.bf16.msra.mxu0 0
    %5696 = vmatprep.subr.bf16.mxu0 0
    %5697 = vmatpush1.bf16.msra.mxu0 0
    %5698 = vmatprep.subr.bf16.mxu0 0
    %5699 = vmatpush1.bf16.msra.mxu0 0
    %5700 = vmatprep.subr.bf16.mxu0 0
    %5701 = vmatpush1.bf16.msra.mxu0 0
    %5702 = vmatprep.mubr.bf16.mxu0 0
    %5703 = vmatmul.mubr.bf16.gmra.mrb[0].mxu0 %v5341
    %v5704 = vpop.f32.mrb[0].mxu0
    %v5705 = vadd.f32 %v5664, %v5704
    %v5706 = vpop.f32.mrb[0].mxu0
    %v5707 = vadd.f32 %v5666, %v5706
    %v5708 = vpop.f32.mrb[0].mxu0
    %v5709 = vpop.f32.mrb[0].mxu0
    %5710 = vdwg.mxu0
    %v5711 = vmax.f32 %v5459, 0.0
    %v5712 = vmax.f32 %v5461, 0.0
    %v5713 = vmax.f32 %v5541, 0.0
    %v5714 = vmax.f32 %v5543, 0.0
    %v5715 = vmax.f32 %v5623, 0.0
    %v5716 = vmax.f32 %v5625, 0.0
    %v5717 = vmax.f32 %v5705, 0.0
    %v5718 = vmax.f32 %v5707, 0.0
    %v5719 = vld [vmem:[#allocation2 + $0x600] sm:$0xff]
    %v5720 = vld [vmem:[#allocation2 + $0x608] sm:$0xff]
    %v5721 = vld [vmem:[#allocation2 + $0x610] sm:$0xff]
    %v5722 = vld [vmem:[#allocation2 + $0x618] sm:$0xff]
    %v5723 = vld [vmem:[#allocation2 + $0x620] sm:$0xff]
    %v5724 = vld [vmem:[#allocation2 + $0x628] sm:$0xff]
    %v5725 = vld [vmem:[#allocation2 + $0x630] sm:$0xff]
    %v5726 = vld [vmem:[#allocation2 + $0x638] sm:$0xff]
    %v5727 = vld [vmem:[#allocation2 + $0x640] sm:$0xff]
    %v5728 = vld [vmem:[#allocation2 + $0x648] sm:$0xff]
    %v5729 = vld [vmem:[#allocation2 + $0x650] sm:$0xff]
    %v5730 = vld [vmem:[#allocation2 + $0x658] sm:$0xff]
    %v5731 = vld [vmem:[#allocation2 + $0x660] sm:$0xff]
    %v5732 = vld [vmem:[#allocation2 + $0x668] sm:$0xff]
    %v5733 = vld [vmem:[#allocation2 + $0x670] sm:$0xff]
    %v5734 = vld [vmem:[#allocation2 + $0x678] sm:$0xff]
    %v5735 = vld [vmem:[#allocation2 + $0x680] sm:$0xff]
    %v5736 = vld [vmem:[#allocation2 + $0x688] sm:$0xff]
    %v5737 = vld [vmem:[#allocation2 + $0x690] sm:$0xff]
    %v5738 = vld [vmem:[#allocation2 + $0x698] sm:$0xff]
    %v5739 = vld [vmem:[#allocation2 + $0x6a0] sm:$0xff]
    %v5740 = vld [vmem:[#allocation2 + $0x6a8] sm:$0xff]
    %v5741 = vld [vmem:[#allocation2 + $0x6b0] sm:$0xff]
    %v5742 = vld [vmem:[#allocation2 + $0x6b8] sm:$0xff]
    %v5743 = vld [vmem:[#allocation2 + $0x6c0] sm:$0xff]
    %v5744 = vld [vmem:[#allocation2 + $0x6c8] sm:$0xff]
    %v5745 = vld [vmem:[#allocation2 + $0x6d0] sm:$0xff]
    %v5746 = vld [vmem:[#allocation2 + $0x6d8] sm:$0xff]
    %v5747 = vld [vmem:[#allocation2 + $0x6e0] sm:$0xff]
    %v5748 = vld [vmem:[#allocation2 + $0x6e8] sm:$0xff]
    %v5749 = vld [vmem:[#allocation2 + $0x6f0] sm:$0xff]
    %v5750 = vld [vmem:[#allocation2 + $0x6f8] sm:$0xff]
    %v5751 = vld [vmem:[#allocation2 + $0x700] sm:$0xff]
    %v5752 = vld [vmem:[#allocation2 + $0x708] sm:$0xff]
    %v5753 = vld [vmem:[#allocation2 + $0x710] sm:$0xff]
    %v5754 = vld [vmem:[#allocation2 + $0x718] sm:$0xff]
    %v5755 = vld [vmem:[#allocation2 + $0x720] sm:$0xff]
    %v5756 = vld [vmem:[#allocation2 + $0x728] sm:$0xff]
    %v5757 = vld [vmem:[#allocation2 + $0x730] sm:$0xff]
    %v5758 = vld [vmem:[#allocation2 + $0x738] sm:$0xff]
    %v5759 = vld [vmem:[#allocation2 + $0x740] sm:$0xff]
    %v5760 = vld [vmem:[#allocation2 + $0x748] sm:$0xff]
    %v5761 = vld [vmem:[#allocation2 + $0x750] sm:$0xff]
    %v5762 = vld [vmem:[#allocation2 + $0x758] sm:$0xff]
    %v5763 = vld [vmem:[#allocation2 + $0x760] sm:$0xff]
    %v5764 = vld [vmem:[#allocation2 + $0x768] sm:$0xff]
    %v5765 = vld [vmem:[#allocation2 + $0x770] sm:$0xff]
    %v5766 = vld [vmem:[#allocation2 + $0x778] sm:$0xff]
    %v5767 = vld [vmem:[#allocation2 + $0x780] sm:$0xff]
    %v5768 = vld [vmem:[#allocation2 + $0x788] sm:$0xff]
    %v5769 = vld [vmem:[#allocation2 + $0x790] sm:$0xff]
    %v5770 = vld [vmem:[#allocation2 + $0x798] sm:$0xff]
    %v5771 = vld [vmem:[#allocation2 + $0x7a0] sm:$0xff]
    %v5772 = vld [vmem:[#allocation2 + $0x7a8] sm:$0xff]
    %v5773 = vld [vmem:[#allocation2 + $0x7b0] sm:$0xff]
    %v5774 = vld [vmem:[#allocation2 + $0x7b8] sm:$0xff]
    %v5775 = vld [vmem:[#allocation2 + $0x7c0] sm:$0xff]
    %v5776 = vld [vmem:[#allocation2 + $0x7c8] sm:$0xff]
    %v5777 = vld [vmem:[#allocation2 + $0x7d0] sm:$0xff]
    %v5778 = vld [vmem:[#allocation2 + $0x7d8] sm:$0xff]
    %v5779 = vld [vmem:[#allocation2 + $0x7e0] sm:$0xff]
    %v5780 = vld [vmem:[#allocation2 + $0x7e8] sm:$0xff]
    %v5781 = vld [vmem:[#allocation2 + $0x7f0] sm:$0xff]
    %v5782 = vld [vmem:[#allocation2 + $0x7f8] sm:$0xff]
    %v5783 = vld [vmem:[#allocation2 + $0x800] sm:$0xff]
    %v5784 = vld [vmem:[#allocation2 + $0x808] sm:$0xff]
    %v5785 = vld [vmem:[#allocation2 + $0x810] sm:$0xff]
    %v5786 = vld [vmem:[#allocation2 + $0x818] sm:$0xff]
    %v5787 = vld [vmem:[#allocation2 + $0x820] sm:$0xff]
    %v5788 = vld [vmem:[#allocation2 + $0x828] sm:$0xff]
    %v5789 = vld [vmem:[#allocation2 + $0x830] sm:$0xff]
    %v5790 = vld [vmem:[#allocation2 + $0x838] sm:$0xff]
    %v5791 = vld [vmem:[#allocation2 + $0x840] sm:$0xff]
    %v5792 = vld [vmem:[#allocation2 + $0x848] sm:$0xff]
    %v5793 = vld [vmem:[#allocation2 + $0x850] sm:$0xff]
    %v5794 = vld [vmem:[#allocation2 + $0x858] sm:$0xff]
    %v5795 = vld [vmem:[#allocation2 + $0x860] sm:$0xff]
    %v5796 = vld [vmem:[#allocation2 + $0x868] sm:$0xff]
    %v5797 = vld [vmem:[#allocation2 + $0x870] sm:$0xff]
    %v5798 = vld [vmem:[#allocation2 + $0x878] sm:$0xff]
    %v5799 = vld [vmem:[#allocation2 + $0x880] sm:$0xff]
    %v5800 = vld [vmem:[#allocation2 + $0x888] sm:$0xff]
    %v5801 = vld [vmem:[#allocation2 + $0x890] sm:$0xff]
    %v5802 = vld [vmem:[#allocation2 + $0x898] sm:$0xff]
    %v5803 = vld [vmem:[#allocation2 + $0x8a0] sm:$0xff]
    %v5804 = vld [vmem:[#allocation2 + $0x8a8] sm:$0xff]
    %v5805 = vld [vmem:[#allocation2 + $0x8b0] sm:$0xff]
    %v5806 = vld [vmem:[#allocation2 + $0x8b8] sm:$0xff]
    %v5807 = vld [vmem:[#allocation2 + $0x8c0] sm:$0xff]
    %v5808 = vld [vmem:[#allocation2 + $0x8c8] sm:$0xff]
    %v5809 = vld [vmem:[#allocation2 + $0x8d0] sm:$0xff]
    %v5810 = vld [vmem:[#allocation2 + $0x8d8] sm:$0xff]
    %v5811 = vld [vmem:[#allocation2 + $0x8e0] sm:$0xff]
    %v5812 = vld [vmem:[#allocation2 + $0x8e8] sm:$0xff]
    %v5813 = vld [vmem:[#allocation2 + $0x8f0] sm:$0xff]
    %v5814 = vld [vmem:[#allocation2 + $0x8f8] sm:$0xff]
    %v5815 = vld [vmem:[#allocation2 + $0x900] sm:$0xff]
    %v5816 = vld [vmem:[#allocation2 + $0x908] sm:$0xff]
    %v5817 = vld [vmem:[#allocation2 + $0x910] sm:$0xff]
    %v5818 = vld [vmem:[#allocation2 + $0x918] sm:$0xff]
    %v5819 = vld [vmem:[#allocation2 + $0x920] sm:$0xff]
    %v5820 = vld [vmem:[#allocation2 + $0x928] sm:$0xff]
    %v5821 = vld [vmem:[#allocation2 + $0x930] sm:$0xff]
    %v5822 = vld [vmem:[#allocation2 + $0x938] sm:$0xff]
    %v5823 = vld [vmem:[#allocation2 + $0x940] sm:$0xff]
    %v5824 = vld [vmem:[#allocation2 + $0x948] sm:$0xff]
    %v5825 = vld [vmem:[#allocation2 + $0x950] sm:$0xff]
    %v5826 = vld [vmem:[#allocation2 + $0x958] sm:$0xff]
    %v5827 = vld [vmem:[#allocation2 + $0x960] sm:$0xff]
    %v5828 = vld [vmem:[#allocation2 + $0x968] sm:$0xff]
    %v5829 = vld [vmem:[#allocation2 + $0x970] sm:$0xff]
    %v5830 = vld [vmem:[#allocation2 + $0x978] sm:$0xff]
    %v5831 = vld [vmem:[#allocation2 + $0x980] sm:$0xff]
    %v5832 = vld [vmem:[#allocation2 + $0x988] sm:$0xff]
    %v5833 = vld [vmem:[#allocation2 + $0x990] sm:$0xff]
    %v5834 = vld [vmem:[#allocation2 + $0x998] sm:$0xff]
    %v5835 = vld [vmem:[#allocation2 + $0x9a0] sm:$0xff]
    %v5836 = vld [vmem:[#allocation2 + $0x9a8] sm:$0xff]
    %v5837 = vld [vmem:[#allocation2 + $0x9b0] sm:$0xff]
    %v5838 = vld [vmem:[#allocation2 + $0x9b8] sm:$0xff]
    %v5839 = vld [vmem:[#allocation2 + $0x9c0] sm:$0xff]
    %v5840 = vld [vmem:[#allocation2 + $0x9c8] sm:$0xff]
    %v5841 = vld [vmem:[#allocation2 + $0x9d0] sm:$0xff]
    %v5842 = vld [vmem:[#allocation2 + $0x9d8] sm:$0xff]
    %v5843 = vld [vmem:[#allocation2 + $0x9e0] sm:$0xff]
    %v5844 = vld [vmem:[#allocation2 + $0x9e8] sm:$0xff]
    %v5845 = vld [vmem:[#allocation2 + $0x9f0] sm:$0xff]
    %v5846 = vld [vmem:[#allocation2 + $0x9f8] sm:$0xff]
    %v5847 = vld [vmem:[#allocation17 + $0x17] sm:$0xff]
    %v5848 = vpack.c.bf16 %v5138, %v5138
    %v5849 = vpack.c.bf16 %v5140, %v5140
    %v5851 = vlaneseq
    %v5852 = vshrl.u32 %v5851, 7
    %v5853 = vsub.s32 0, %v5852
    %v5854 = vrot.slane %v5847, %v5853
    %v5855 = vlaneseq
    %v5856 = vshrl.u32 %v5855, 7
    %v5857 = vsub.s32 1, %v5856
    %v5858 = vrot.slane %v5847, %v5857
    %v5859 = vlaneseq
    %v5860 = vshrl.u32 %v5859, 7
    %v5861 = vsub.s32 2, %v5860
    %v5862 = vrot.slane %v5847, %v5861
    %v5863 = vlaneseq
    %v5864 = vshrl.u32 %v5863, 7
    %v5865 = vsub.s32 3, %v5864
    %v5866 = vrot.slane %v5847, %v5865
    %v5867 = vlaneseq
    %v5868 = vshrl.u32 %v5867, 7
    %v5869 = vsub.s32 4, %v5868
    %v5870 = vrot.slane %v5847, %v5869
    %v5871 = vlaneseq
    %v5872 = vshrl.u32 %v5871, 7
    %v5873 = vsub.s32 5, %v5872
    %v5874 = vrot.slane %v5847, %v5873
    %v5875 = vlaneseq
    %v5876 = vshrl.u32 %v5875, 7
    %v5877 = vsub.s32 6, %v5876
    %v5878 = vrot.slane %v5847, %v5877
    %v5879 = vlaneseq
    %v5880 = vshrl.u32 %v5879, 7
    %v5881 = vsub.s32 7, %v5880
    %v5882 = vrot.slane %v5847, %v5881
    %5891 = vmatprep.subr.bf16.mxu0 %v5720
    %5892 = vmatpush1.bf16.msra.mxu0 %v5719
    %5893 = vmatprep.subr.bf16.mxu0 %v5728
    %5894 = vmatpush1.bf16.msra.mxu0 %v5727
    %5895 = vmatprep.subr.bf16.mxu0 %v5736
    %5896 = vmatpush1.bf16.msra.mxu0 %v5735
    %5897 = vmatprep.subr.bf16.mxu0 %v5744
    %5898 = vmatpush1.bf16.msra.mxu0 %v5743
    %5899 = vmatprep.subr.bf16.mxu0 %v5752
    %5900 = vmatpush1.bf16.msra.mxu0 %v5751
    %5901 = vmatprep.subr.bf16.mxu0 %v5760
    %5902 = vmatpush1.bf16.msra.mxu0 %v5759
    %5903 = vmatprep.subr.bf16.mxu0 %v5768
    %5904 = vmatpush1.bf16.msra.mxu0 %v5767
    %5905 = vmatprep.subr.bf16.mxu0 %v5776
    %5906 = vmatpush1.bf16.msra.mxu0 %v5775
    %5907 = vmatprep.subr.bf16.mxu0 %v5784
    %5908 = vmatpush1.bf16.msra.mxu0 %v5783
    %5909 = vmatprep.subr.bf16.mxu0 %v5792
    %5910 = vmatpush1.bf16.msra.mxu0 %v5791
    %5911 = vmatprep.subr.bf16.mxu0 %v5800
    %5912 = vmatpush1.bf16.msra.mxu0 %v5799
    %5913 = vmatprep.subr.bf16.mxu0 %v5808
    %5914 = vmatpush1.bf16.msra.mxu0 %v5807
    %5915 = vmatprep.subr.bf16.mxu0 %v5816
    %5916 = vmatpush1.bf16.msra.mxu0 %v5815
    %5917 = vmatprep.subr.bf16.mxu0 %v5824
    %5918 = vmatpush1.bf16.msra.mxu0 %v5823
    %5919 = vmatprep.subr.bf16.mxu0 %v5832
    %5920 = vmatpush1.bf16.msra.mxu0 %v5831
    %5921 = vmatprep.subr.bf16.mxu0 %v5840
    %5922 = vmatpush1.bf16.msra.mxu0 %v5839
    %5923 = vmatprep.mubr.bf16.mxu0 %v5849
    %5924 = vmatmul.mubr.bf16.gmra.mrb[0].mxu0 %v5848
    %v5925 = vpop.f32.mrb[0].mxu0
    %v5926 = vadd.f32 %v5854, %v5925
    %v5927 = vpop.f32.mrb[0].mxu0
    %v5928 = vadd.f32 %v5858, %v5927
    %v5929 = vpop.f32.mrb[0].mxu0
    %v5930 = vpop.f32.mrb[0].mxu0
    %5931 = vdwg.mxu0
    %5932 = vmatprep.subr.bf16.mxu0 %v5722
    %5933 = vmatpush1.bf16.msra.mxu0 %v5721
    %5934 = vmatprep.subr.bf16.mxu0 %v5730
    %5935 = vmatpush1.bf16.msra.mxu0 %v5729
    %5936 = vmatprep.subr.bf16.mxu0 %v5738
    %5937 = vmatpush1.bf16.msra.mxu0 %v5737
    %5938 = vmatprep.subr.bf16.mxu0 %v5746
    %5939 = vmatpush1.bf16.msra.mxu0 %v5745
    %5940 = vmatprep.subr.bf16.mxu0 %v5754
    %5941 = vmatpush1.bf16.msra.mxu0 %v5753
    %5942 = vmatprep.subr.bf16.mxu0 %v5762
    %5943 = vmatpush1.bf16.msra.mxu0 %v5761
    %5944 = vmatprep.subr.bf16.mxu0 %v5770
    %5945 = vmatpush1.bf16.msra.mxu0 %v5769
    %5946 = vmatprep.subr.bf16.mxu0 %v5778
    %5947 = vmatpush1.bf16.msra.mxu0 %v5777
    %5948 = vmatprep.subr.bf16.mxu0 %v5786
    %5949 = vmatpush1.bf16.msra.mxu0 %v5785
    %5950 = vmatprep.subr.bf16.mxu0 %v5794
    %5951 = vmatpush1.bf16.msra.mxu0 %v5793
    %5952 = vmatprep.subr.bf16.mxu0 %v5802
    %5953 = vmatpush1.bf16.msra.mxu0 %v5801
    %5954 = vmatprep.subr.bf16.mxu0 %v5810
    %5955 = vmatpush1.bf16.msra.mxu0 %v5809
    %5956 = vmatprep.subr.bf16.mxu0 %v5818
    %5957 = vmatpush1.bf16.msra.mxu0 %v5817
    %5958 = vmatprep.subr.bf16.mxu0 %v5826
    %5959 = vmatpush1.bf16.msra.mxu0 %v5825
    %5960 = vmatprep.subr.bf16.mxu0 %v5834
    %5961 = vmatpush1.bf16.msra.mxu0 %v5833
    %5962 = vmatprep.subr.bf16.mxu0 %v5842
    %5963 = vmatpush1.bf16.msra.mxu0 %v5841
    %5964 = vmatprep.mubr.bf16.mxu0 %v5849
    %5965 = vmatmul.mubr.bf16.gmra.mrb[0].mxu0 %v5848
    %v5966 = vpop.f32.mrb[0].mxu0
    %v5967 = vadd.f32 %v5862, %v5966
    %v5968 = vpop.f32.mrb[0].mxu0
    %v5969 = vadd.f32 %v5866, %v5968
    %v5970 = vpop.f32.mrb[0].mxu0
    %v5971 = vpop.f32.mrb[0].mxu0
    %5972 = vdwg.mxu0
    %5973 = vmatprep.subr.bf16.mxu0 %v5724
    %5974 = vmatpush1.bf16.msra.mxu0 %v5723
    %5975 = vmatprep.subr.bf16.mxu0 %v5732
    %5976 = vmatpush1.bf16.msra.mxu0 %v5731
    %5977 = vmatprep.subr.bf16.mxu0 %v5740
    %5978 = vmatpush1.bf16.msra.mxu0 %v5739
    %5979 = vmatprep.subr.bf16.mxu0 %v5748
    %5980 = vmatpush1.bf16.msra.mxu0 %v5747
    %5981 = vmatprep.subr.bf16.mxu0 %v5756
    %5982 = vmatpush1.bf16.msra.mxu0 %v5755
    %5983 = vmatprep.subr.bf16.mxu0 %v5764
    %5984 = vmatpush1.bf16.msra.mxu0 %v5763
    %5985 = vmatprep.subr.bf16.mxu0 %v5772
    %5986 = vmatpush1.bf16.msra.mxu0 %v5771
    %5987 = vmatprep.subr.bf16.mxu0 %v5780
    %5988 = vmatpush1.bf16.msra.mxu0 %v5779
    %5989 = vmatprep.subr.bf16.mxu0 %v5788
    %5990 = vmatpush1.bf16.msra.mxu0 %v5787
    %5991 = vmatprep.subr.bf16.mxu0 %v5796
    %5992 = vmatpush1.bf16.msra.mxu0 %v5795
    %5993 = vmatprep.subr.bf16.mxu0 %v5804
    %5994 = vmatpush1.bf16.msra.mxu0 %v5803
    %5995 = vmatprep.subr.bf16.mxu0 %v5812
    %5996 = vmatpush1.bf16.msra.mxu0 %v5811
    %5997 = vmatprep.subr.bf16.mxu0 %v5820
    %5998 = vmatpush1.bf16.msra.mxu0 %v5819
    %5999 = vmatprep.subr.bf16.mxu0 %v5828
    %6000 = vmatpush1.bf16.msra.mxu0 %v5827
    %6001 = vmatprep.subr.bf16.mxu0 %v5836
    %6002 = vmatpush1.bf16.msra.mxu0 %v5835
    %6003 = vmatprep.subr.bf16.mxu0 %v5844
    %6004 = vmatpush1.bf16.msra.mxu0 %v5843
    %6005 = vmatprep.mubr.bf16.mxu0 %v5849
    %6006 = vmatmul.mubr.bf16.gmra.mrb[0].mxu0 %v5848
    %v6007 = vpop.f32.mrb[0].mxu0
    %v6008 = vadd.f32 %v5870, %v6007
    %v6009 = vpop.f32.mrb[0].mxu0
    %v6010 = vadd.f32 %v5874, %v6009
    %v6011 = vpop.f32.mrb[0].mxu0
    %v6012 = vpop.f32.mrb[0].mxu0
    %6013 = vdwg.mxu0
    %6014 = vmatprep.subr.bf16.mxu0 %v5726
    %6015 = vmatpush1.bf16.msra.mxu0 %v5725
    %6016 = vmatprep.subr.bf16.mxu0 %v5734
    %6017 = vmatpush1.bf16.msra.mxu0 %v5733
    %6018 = vmatprep.subr.bf16.mxu0 %v5742
    %6019 = vmatpush1.bf16.msra.mxu0 %v5741
    %6020 = vmatprep.subr.bf16.mxu0 %v5750
    %6021 = vmatpush1.bf16.msra.mxu0 %v5749
    %6022 = vmatprep.subr.bf16.mxu0 %v5758
    %6023 = vmatpush1.bf16.msra.mxu0 %v5757
    %6024 = vmatprep.subr.bf16.mxu0 %v5766
    %6025 = vmatpush1.bf16.msra.mxu0 %v5765
    %6026 = vmatprep.subr.bf16.mxu0 %v5774
    %6027 = vmatpush1.bf16.msra.mxu0 %v5773
    %6028 = vmatprep.subr.bf16.mxu0 %v5782
    %6029 = vmatpush1.bf16.msra.mxu0 %v5781
    %6030 = vmatprep.subr.bf16.mxu0 %v5790
    %6031 = vmatpush1.bf16.msra.mxu0 %v5789
    %6032 = vmatprep.subr.bf16.mxu0 %v5798
    %6033 = vmatpush1.bf16.msra.mxu0 %v5797
    %6034 = vmatprep.subr.bf16.mxu0 %v5806
    %6035 = vmatpush1.bf16.msra.mxu0 %v5805
    %6036 = vmatprep.subr.bf16.mxu0 %v5814
    %6037 = vmatpush1.bf16.msra.mxu0 %v5813
    %6038 = vmatprep.subr.bf16.mxu0 %v5822
    %6039 = vmatpush1.bf16.msra.mxu0 %v5821
    %6040 = vmatprep.subr.bf16.mxu0 %v5830
    %6041 = vmatpush1.bf16.msra.mxu0 %v5829
    %6042 = vmatprep.subr.bf16.mxu0 %v5838
    %6043 = vmatpush1.bf16.msra.mxu0 %v5837
    %6044 = vmatprep.subr.bf16.mxu0 %v5846
    %6045 = vmatpush1.bf16.msra.mxu0 %v5845
    %6046 = vmatprep.mubr.bf16.mxu0 %v5849
    %6047 = vmatmul.mubr.bf16.gmra.mrb[0].mxu0 %v5848
    %v6048 = vpop.f32.mrb[0].mxu0
    %v6049 = vadd.f32 %v5878, %v6048
    %v6050 = vpop.f32.mrb[0].mxu0
    %v6051 = vadd.f32 %v5882, %v6050
    %v6052 = vpop.f32.mrb[0].mxu0
    %v6053 = vpop.f32.mrb[0].mxu0
    %6054 = vdwg.mxu0
    %v6055 = vmax.f32 %v5926, 0.0
    %v6056 = vmax.f32 %v5928, 0.0
    %v6057 = vmax.f32 %v5967, 0.0
    %v6058 = vmax.f32 %v5969, 0.0
    %v6059 = vmax.f32 %v6008, 0.0
    %v6060 = vmax.f32 %v6010, 0.0
    %v6061 = vmax.f32 %v6049, 0.0
    %v6062 = vmax.f32 %v6051, 0.0
    %s6063 = sshll.u32 %s5143, 4
    %6064 = dma.done %s187, %s6063
    %v6065 = vld [vmem:[%s186 + $0x20] sm:$0xff]
    %v6066 = vld [vmem:[%s186 + $0x60] sm:$0xff]
    %v6067 = vld [vmem:[%s186 + $0xa0] sm:$0xff]
    %v6068 = vld [vmem:[%s186 + $0xe0] sm:$0xff]
    %v6069 = vld [vmem:[%s186 + $0x120] sm:$0xff]
    %v6070 = vld [vmem:[%s186 + $0x160] sm:$0xff]
    %v6071 = vld [vmem:[%s186 + $0x1a0] sm:$0xff]
    %v6072 = vld [vmem:[%s186 + $0x1e0] sm:$0xff]
    %v6073 = vld [vmem:[%s186 + $0x220] sm:$0xff]
    %v6074 = vld [vmem:[%s186 + $0x260] sm:$0xff]
    %v6075 = vld [vmem:[%s186 + $0x2a0] sm:$0xff]
    %v6076 = vld [vmem:[%s186 + $0x2e0] sm:$0xff]
    %v6077 = vld [vmem:[%s186 + $0x320] sm:$0xff]
    %v6078 = vld [vmem:[%s186 + $0x360] sm:$0xff]
    %v6079 = vld [vmem:[%s186 + $0x3a0] sm:$0xff]
    %v6080 = vld [vmem:[%s186 + $0x3e0] sm:$0xff]
    %v6081 = vld [vmem:[%s186 + $0x420] sm:$0xff]
    %v6082 = vld [vmem:[%s186 + $0x460] sm:$0xff]
    %v6083 = vld [vmem:[%s186 + $0x4a0] sm:$0xff]
    %v6084 = vld [vmem:[%s186 + $0x4e0] sm:$0xff]
    %v6085 = vld [vmem:[%s186 + $0x520] sm:$0xff]
    %v6086 = vld [vmem:[%s186 + $0x560] sm:$0xff]
    %v6087 = vld [vmem:[%s186 + $0x5a0] sm:$0xff]
    %v6088 = vld [vmem:[%s186 + $0x5e0] sm:$0xff]
    %v6089 = vld [vmem:[%s186 + $0x620] sm:$0xff]
    %v6090 = vld [vmem:[%s186 + $0x660] sm:$0xff]
    %v6091 = vld [vmem:[%s186 + $0x6a0] sm:$0xff]
    %v6092 = vld [vmem:[%s186 + $0x6e0] sm:$0xff]
    %v6093 = vld [vmem:[%s186 + $0x720] sm:$0xff]
    %v6094 = vld [vmem:[%s186 + $0x760] sm:$0xff]
    %v6095 = vld [vmem:[%s186 + $0x7a0] sm:$0xff]
    %v6096 = vld [vmem:[%s186 + $0x7e0] sm:$0xff]
    %v6097 = vld [vmem:[%s186 + $0x820] sm:$0xff]
    %v6098 = vld [vmem:[%s186 + $0x860] sm:$0xff]
    %v6099 = vld [vmem:[%s186 + $0x8a0] sm:$0xff]
    %v6100 = vld [vmem:[%s186 + $0x8e0] sm:$0xff]
    %v6101 = vld [vmem:[%s186 + $0x920] sm:$0xff]
    %v6102 = vld [vmem:[%s186 + $0x960] sm:$0xff]
    %v6103 = vld [vmem:[%s186 + $0x9a0] sm:$0xff]
    %v6104 = vld [vmem:[%s186 + $0x9e0] sm:$0xff]
    %v6105 = vld [vmem:[%s186 + $0xa20] sm:$0xff]
    %v6106 = vld [vmem:[%s186 + $0xa60] sm:$0xff]
    %v6107 = vld [vmem:[%s186 + $0xaa0] sm:$0xff]
    %v6108 = vld [vmem:[%s186 + $0xae0] sm:$0xff]
    %v6109 = vld [vmem:[%s186 + $0xb20] sm:$0xff]
    %v6110 = vld [vmem:[%s186 + $0xb60] sm:$0xff]
    %v6111 = vld [vmem:[%s186 + $0xba0] sm:$0xff]
    %v6112 = vld [vmem:[%s186 + $0xbe0] sm:$0xff]
    %v6113 = vld [vmem:[%s186 + $0xc20] sm:$0xff]
    %v6114 = vld [vmem:[%s186 + $0xc60] sm:$0xff]
    %v6115 = vld [vmem:[%s186 + $0xca0] sm:$0xff]
    %v6116 = vld [vmem:[%s186 + $0xce0] sm:$0xff]
    %v6117 = vld [vmem:[%s186 + $0xd20] sm:$0xff]
    %v6118 = vld [vmem:[%s186 + $0xd60] sm:$0xff]
    %v6119 = vld [vmem:[%s186 + $0xda0] sm:$0xff]
    %v6120 = vld [vmem:[%s186 + $0xde0] sm:$0xff]
    %v6121 = vld [vmem:[%s186 + $0xe20] sm:$0xff]
    %v6122 = vld [vmem:[%s186 + $0xe60] sm:$0xff]
    %v6123 = vld [vmem:[%s186 + $0xea0] sm:$0xff]
    %v6124 = vld [vmem:[%s186 + $0xee0] sm:$0xff]
    %v6125 = vld [vmem:[%s186 + $0xf20] sm:$0xff]
    %v6126 = vld [vmem:[%s186 + $0xf60] sm:$0xff]
    %v6127 = vld [vmem:[%s186 + $0xfa0] sm:$0xff]
    %v6128 = vld [vmem:[%s186 + $0xfe0] sm:$0xff]
    %v6129 = vld [vmem:[#allocation17 + $0x16] sm:$0x1]
    %v6130 = vpack.c.bf16 %v5711, %v5711
    %v6131 = vpack.c.bf16 %v5712, %v5712
    %v6132 = vpack.c.bf16 %v5713, %v5713
    %v6133 = vpack.c.bf16 %v5714, %v5714
    %v6134 = vpack.c.bf16 %v5715, %v5715
    %v6135 = vpack.c.bf16 %v5716, %v5716
    %v6136 = vpack.c.bf16 %v5717, %v5717
    %v6137 = vpack.c.bf16 %v5718, %v5718
    %v6139 = vlaneseq
    %v6140 = vshrl.u32 %v6139, 7
    %v6141 = vsub.s32 0, %v6140
    %v6142 = vrot.slane %v6129, %v6141
    %6144 = vmatprep.subr.bf16.mxu0 0
    %6145 = vmatpush1.bf16.msra.mxu0 %v6065
    %6146 = vmatprep.subr.bf16.mxu0 0
    %6147 = vmatpush1.bf16.msra.mxu0 %v6066
    %6148 = vmatprep.subr.bf16.mxu0 0
    %6149 = vmatpush1.bf16.msra.mxu0 %v6067
    %6150 = vmatprep.subr.bf16.mxu0 0
    %6151 = vmatpush1.bf16.msra.mxu0 %v6068
    %6152 = vmatprep.subr.bf16.mxu0 0
    %6153 = vmatpush1.bf16.msra.mxu0 %v6069
    %6154 = vmatprep.subr.bf16.mxu0 0
    %6155 = vmatpush1.bf16.msra.mxu0 %v6070
    %6156 = vmatprep.subr.bf16.mxu0 0
    %6157 = vmatpush1.bf16.msra.mxu0 %v6071
    %6158 = vmatprep.subr.bf16.mxu0 0
    %6159 = vmatpush1.bf16.msra.mxu0 %v6072
    %6160 = vmatprep.subr.bf16.mxu0 0
    %6161 = vmatpush1.bf16.msra.mxu0 %v6073
    %6162 = vmatprep.subr.bf16.mxu0 0
    %6163 = vmatpush1.bf16.msra.mxu0 %v6074
    %6164 = vmatprep.subr.bf16.mxu0 0
    %6165 = vmatpush1.bf16.msra.mxu0 %v6075
    %6166 = vmatprep.subr.bf16.mxu0 0
    %6167 = vmatpush1.bf16.msra.mxu0 %v6076
    %6168 = vmatprep.subr.bf16.mxu0 0
    %6169 = vmatpush1.bf16.msra.mxu0 %v6077
    %6170 = vmatprep.subr.bf16.mxu0 0
    %6171 = vmatpush1.bf16.msra.mxu0 %v6078
    %6172 = vmatprep.subr.bf16.mxu0 0
    %6173 = vmatpush1.bf16.msra.mxu0 %v6079
    %6174 = vmatprep.subr.bf16.mxu0 0
    %6175 = vmatpush1.bf16.msra.mxu0 %v6080
    %6176 = vmatprep.mubr.bf16.mxu0 %v6131
    %6177 = vmatmul.mubr.bf16.gmra.mrb[0].mxu0 %v6130
    %v6178 = vpop.f32.mrb[0].mxu0
    %v6179 = vadd.f32 %v6142, %v6178
    %v6180 = vpop.f32.mrb[0].mxu0
    %v6181 = vpop.f32.mrb[0].mxu0
    %v6182 = vpop.f32.mrb[0].mxu0
    %6183 = vdwg.mxu0
    %6184 = vmatprep.subr.bf16.mxu0 0
    %6185 = vmatpush1.bf16.msra.mxu0 %v6081
    %6186 = vmatprep.subr.bf16.mxu0 0
    %6187 = vmatpush1.bf16.msra.mxu0 %v6082
    %6188 = vmatprep.subr.bf16.mxu0 0
    %6189 = vmatpush1.bf16.msra.mxu0 %v6083
    %6190 = vmatprep.subr.bf16.mxu0 0
    %6191 = vmatpush1.bf16.msra.mxu0 %v6084
    %6192 = vmatprep.subr.bf16.mxu0 0
    %6193 = vmatpush1.bf16.msra.mxu0 %v6085
    %6194 = vmatprep.subr.bf16.mxu0 0
    %6195 = vmatpush1.bf16.msra.mxu0 %v6086
    %6196 = vmatprep.subr.bf16.mxu0 0
    %6197 = vmatpush1.bf16.msra.mxu0 %v6087
    %6198 = vmatprep.subr.bf16.mxu0 0
    %6199 = vmatpush1.bf16.msra.mxu0 %v6088
    %6200 = vmatprep.subr.bf16.mxu0 0
    %6201 = vmatpush1.bf16.msra.mxu0 %v6089
    %6202 = vmatprep.subr.bf16.mxu0 0
    %6203 = vmatpush1.bf16.msra.mxu0 %v6090
    %6204 = vmatprep.subr.bf16.mxu0 0
    %6205 = vmatpush1.bf16.msra.mxu0 %v6091
    %6206 = vmatprep.subr.bf16.mxu0 0
    %6207 = vmatpush1.bf16.msra.mxu0 %v6092
    %6208 = vmatprep.subr.bf16.mxu0 0
    %6209 = vmatpush1.bf16.msra.mxu0 %v6093
    %6210 = vmatprep.subr.bf16.mxu0 0
    %6211 = vmatpush1.bf16.msra.mxu0 %v6094
    %6212 = vmatprep.subr.bf16.mxu0 0
    %6213 = vmatpush1.bf16.msra.mxu0 %v6095
    %6214 = vmatprep.subr.bf16.mxu0 0
    %6215 = vmatpush1.bf16.msra.mxu0 %v6096
    %6216 = vmatprep.mubr.bf16.mxu0 %v6133
    %6217 = vmatmul.mubr.bf16.gmra.mrb[0].mxu0 %v6132
    %v6218 = vpop.f32.mrb[0].mxu0
    %v6219 = vadd.f32 %v6179, %v6218
    %v6220 = vpop.f32.mrb[0].mxu0
    %v6221 = vpop.f32.mrb[0].mxu0
    %v6222 = vpop.f32.mrb[0].mxu0
    %6223 = vdwg.mxu0
    %6224 = vmatprep.subr.bf16.mxu0 0
    %6225 = vmatpush1.bf16.msra.mxu0 %v6097
    %6226 = vmatprep.subr.bf16.mxu0 0
    %6227 = vmatpush1.bf16.msra.mxu0 %v6098
    %6228 = vmatprep.subr.bf16.mxu0 0
    %6229 = vmatpush1.bf16.msra.mxu0 %v6099
    %6230 = vmatprep.subr.bf16.mxu0 0
    %6231 = vmatpush1.bf16.msra.mxu0 %v6100
    %6232 = vmatprep.subr.bf16.mxu0 0
    %6233 = vmatpush1.bf16.msra.mxu0 %v6101
    %6234 = vmatprep.subr.bf16.mxu0 0
    %6235 = vmatpush1.bf16.msra.mxu0 %v6102
    %6236 = vmatprep.subr.bf16.mxu0 0
    %6237 = vmatpush1.bf16.msra.mxu0 %v6103
    %6238 = vmatprep.subr.bf16.mxu0 0
    %6239 = vmatpush1.bf16.msra.mxu0 %v6104
    %6240 = vmatprep.subr.bf16.mxu0 0
    %6241 = vmatpush1.bf16.msra.mxu0 %v6105
    %6242 = vmatprep.subr.bf16.mxu0 0
    %6243 = vmatpush1.bf16.msra.mxu0 %v6106
    %6244 = vmatprep.subr.bf16.mxu0 0
    %6245 = vmatpush1.bf16.msra.mxu0 %v6107
    %6246 = vmatprep.subr.bf16.mxu0 0
    %6247 = vmatpush1.bf16.msra.mxu0 %v6108
    %6248 = vmatprep.subr.bf16.mxu0 0
    %6249 = vmatpush1.bf16.msra.mxu0 %v6109
    %6250 = vmatprep.subr.bf16.mxu0 0
    %6251 = vmatpush1.bf16.msra.mxu0 %v6110
    %6252 = vmatprep.subr.bf16.mxu0 0
    %6253 = vmatpush1.bf16.msra.mxu0 %v6111
    %6254 = vmatprep.subr.bf16.mxu0 0
    %6255 = vmatpush1.bf16.msra.mxu0 %v6112
    %6256 = vmatprep.mubr.bf16.mxu0 %v6135
    %6257 = vmatmul.mubr.bf16.gmra.mrb[0].mxu0 %v6134
    %v6258 = vpop.f32.mrb[0].mxu0
    %v6259 = vadd.f32 %v6219, %v6258
    %v6260 = vpop.f32.mrb[0].mxu0
    %v6261 = vpop.f32.mrb[0].mxu0
    %v6262 = vpop.f32.mrb[0].mxu0
    %6263 = vdwg.mxu0
    %6264 = vmatprep.subr.bf16.mxu0 0
    %6265 = vmatpush1.bf16.msra.mxu0 %v6113
    %6266 = vmatprep.subr.bf16.mxu0 0
    %6267 = vmatpush1.bf16.msra.mxu0 %v6114
    %6268 = vmatprep.subr.bf16.mxu0 0
    %6269 = vmatpush1.bf16.msra.mxu0 %v6115
    %6270 = vmatprep.subr.bf16.mxu0 0
    %6271 = vmatpush1.bf16.msra.mxu0 %v6116
    %6272 = vmatprep.subr.bf16.mxu0 0
    %6273 = vmatpush1.bf16.msra.mxu0 %v6117
    %6274 = vmatprep.subr.bf16.mxu0 0
    %6275 = vmatpush1.bf16.msra.mxu0 %v6118
    %6276 = vmatprep.subr.bf16.mxu0 0
    %6277 = vmatpush1.bf16.msra.mxu0 %v6119
    %6278 = vmatprep.subr.bf16.mxu0 0
    %6279 = vmatpush1.bf16.msra.mxu0 %v6120
    %6280 = vmatprep.subr.bf16.mxu0 0
    %6281 = vmatpush1.bf16.msra.mxu0 %v6121
    %6282 = vmatprep.subr.bf16.mxu0 0
    %6283 = vmatpush1.bf16.msra.mxu0 %v6122
    %6284 = vmatprep.subr.bf16.mxu0 0
    %6285 = vmatpush1.bf16.msra.mxu0 %v6123
    %6286 = vmatprep.subr.bf16.mxu0 0
    %6287 = vmatpush1.bf16.msra.mxu0 %v6124
    %6288 = vmatprep.subr.bf16.mxu0 0
    %6289 = vmatpush1.bf16.msra.mxu0 %v6125
    %6290 = vmatprep.subr.bf16.mxu0 0
    %6291 = vmatpush1.bf16.msra.mxu0 %v6126
    %6292 = vmatprep.subr.bf16.mxu0 0
    %6293 = vmatpush1.bf16.msra.mxu0 %v6127
    %6294 = vmatprep.subr.bf16.mxu0 0
    %6295 = vmatpush1.bf16.msra.mxu0 %v6128
    %6296 = vmatprep.mubr.bf16.mxu0 %v6137
    %6297 = vmatmul.mubr.bf16.gmra.mrb[0].mxu0 %v6136
    %v6298 = vpop.f32.mrb[0].mxu0
    %v6299 = vadd.f32 %v6259, %v6298
    %v6300 = vpop.f32.mrb[0].mxu0
    %v6301 = vpop.f32.mrb[0].mxu0
    %v6302 = vpop.f32.mrb[0].mxu0
    %6303 = vdwg.mxu0
    %v6304 = vld [vmem:[%s186 + $0x28] sm:$0xff]
    %v6305 = vld [vmem:[%s186 + $0x68] sm:$0xff]
    %v6306 = vld [vmem:[%s186 + $0xa8] sm:$0xff]
    %v6307 = vld [vmem:[%s186 + $0xe8] sm:$0xff]
    %v6308 = vld [vmem:[%s186 + $0x128] sm:$0xff]
    %v6309 = vld [vmem:[%s186 + $0x168] sm:$0xff]
    %v6310 = vld [vmem:[%s186 + $0x1a8] sm:$0xff]
    %v6311 = vld [vmem:[%s186 + $0x1e8] sm:$0xff]
    %v6312 = vld [vmem:[%s186 + $0x228] sm:$0xff]
    %v6313 = vld [vmem:[%s186 + $0x268] sm:$0xff]
    %v6314 = vld [vmem:[%s186 + $0x2a8] sm:$0xff]
    %v6315 = vld [vmem:[%s186 + $0x2e8] sm:$0xff]
    %v6316 = vld [vmem:[%s186 + $0x328] sm:$0xff]
    %v6317 = vld [vmem:[%s186 + $0x368] sm:$0xff]
    %v6318 = vld [vmem:[%s186 + $0x3a8] sm:$0xff]
    %v6319 = vld [vmem:[%s186 + $0x3e8] sm:$0xff]
    %v6320 = vld [vmem:[%s186 + $0x428] sm:$0xff]
    %v6321 = vld [vmem:[%s186 + $0x468] sm:$0xff]
    %v6322 = vld [vmem:[%s186 + $0x4a8] sm:$0xff]
    %v6323 = vld [vmem:[%s186 + $0x4e8] sm:$0xff]
    %v6324 = vld [vmem:[%s186 + $0x528] sm:$0xff]
    %v6325 = vld [vmem:[%s186 + $0x568] sm:$0xff]
    %v6326 = vld [vmem:[%s186 + $0x5a8] sm:$0xff]
    %v6327 = vld [vmem:[%s186 + $0x5e8] sm:$0xff]
    %v6328 = vld [vmem:[%s186 + $0x628] sm:$0xff]
    %v6329 = vld [vmem:[%s186 + $0x668] sm:$0xff]
    %v6330 = vld [vmem:[%s186 + $0x6a8] sm:$0xff]
    %v6331 = vld [vmem:[%s186 + $0x6e8] sm:$0xff]
    %v6332 = vld [vmem:[%s186 + $0x728] sm:$0xff]
    %v6333 = vld [vmem:[%s186 + $0x768] sm:$0xff]
    %v6334 = vld [vmem:[%s186 + $0x7a8] sm:$0xff]
    %v6335 = vld [vmem:[%s186 + $0x7e8] sm:$0xff]
    %v6336 = vld [vmem:[%s186 + $0x828] sm:$0xff]
    %v6337 = vld [vmem:[%s186 + $0x868] sm:$0xff]
    %v6338 = vld [vmem:[%s186 + $0x8a8] sm:$0xff]
    %v6339 = vld [vmem:[%s186 + $0x8e8] sm:$0xff]
    %v6340 = vld [vmem:[%s186 + $0x928] sm:$0xff]
    %v6341 = vld [vmem:[%s186 + $0x968] sm:$0xff]
    %v6342 = vld [vmem:[%s186 + $0x9a8] sm:$0xff]
    %v6343 = vld [vmem:[%s186 + $0x9e8] sm:$0xff]
    %v6344 = vld [vmem:[%s186 + $0xa28] sm:$0xff]
    %v6345 = vld [vmem:[%s186 + $0xa68] sm:$0xff]
    %v6346 = vld [vmem:[%s186 + $0xaa8] sm:$0xff]
    %v6347 = vld [vmem:[%s186 + $0xae8] sm:$0xff]
    %v6348 = vld [vmem:[%s186 + $0xb28] sm:$0xff]
    %v6349 = vld [vmem:[%s186 + $0xb68] sm:$0xff]
    %v6350 = vld [vmem:[%s186 + $0xba8] sm:$0xff]
    %v6351 = vld [vmem:[%s186 + $0xbe8] sm:$0xff]
    %v6352 = vld [vmem:[%s186 + $0xc28] sm:$0xff]
    %v6353 = vld [vmem:[%s186 + $0xc68] sm:$0xff]
    %v6354 = vld [vmem:[%s186 + $0xca8] sm:$0xff]
    %v6355 = vld [vmem:[%s186 + $0xce8] sm:$0xff]
    %v6356 = vld [vmem:[%s186 + $0xd28] sm:$0xff]
    %v6357 = vld [vmem:[%s186 + $0xd68] sm:$0xff]
    %v6358 = vld [vmem:[%s186 + $0xda8] sm:$0xff]
    %v6359 = vld [vmem:[%s186 + $0xde8] sm:$0xff]
    %v6360 = vld [vmem:[%s186 + $0xe28] sm:$0xff]
    %v6361 = vld [vmem:[%s186 + $0xe68] sm:$0xff]
    %v6362 = vld [vmem:[%s186 + $0xea8] sm:$0xff]
    %v6363 = vld [vmem:[%s186 + $0xee8] sm:$0xff]
    %v6364 = vld [vmem:[%s186 + $0xf28] sm:$0xff]
    %v6365 = vld [vmem:[%s186 + $0xf68] sm:$0xff]
    %v6366 = vld [vmem:[%s186 + $0xfa8] sm:$0xff]
    %v6367 = vld [vmem:[%s186 + $0xfe8] sm:$0xff]
    %v6368 = vld [vmem:[#allocation17 + $0x1f] sm:$0x1]
    %v6369 = vpack.c.bf16 %v6055, %v6055
    %v6370 = vpack.c.bf16 %v6056, %v6056
    %v6371 = vpack.c.bf16 %v6057, %v6057
    %v6372 = vpack.c.bf16 %v6058, %v6058
    %v6373 = vpack.c.bf16 %v6059, %v6059
    %v6374 = vpack.c.bf16 %v6060, %v6060
    %v6375 = vpack.c.bf16 %v6061, %v6061
    %v6376 = vpack.c.bf16 %v6062, %v6062
    %v6378 = vlaneseq
    %v6379 = vshrl.u32 %v6378, 7
    %v6380 = vsub.s32 0, %v6379
    %v6381 = vrot.slane %v6368, %v6380
    %6383 = vmatprep.subr.bf16.mxu0 0
    %6384 = vmatpush1.bf16.msra.mxu0 %v6304
    %6385 = vmatprep.subr.bf16.mxu0 0
    %6386 = vmatpush1.bf16.msra.mxu0 %v6305
    %6387 = vmatprep.subr.bf16.mxu0 0
    %6388 = vmatpush1.bf16.msra.mxu0 %v6306
    %6389 = vmatprep.subr.bf16.mxu0 0
    %6390 = vmatpush1.bf16.msra.mxu0 %v6307
    %6391 = vmatprep.subr.bf16.mxu0 0
    %6392 = vmatpush1.bf16.msra.mxu0 %v6308
    %6393 = vmatprep.subr.bf16.mxu0 0
    %6394 = vmatpush1.bf16.msra.mxu0 %v6309
    %6395 = vmatprep.subr.bf16.mxu0 0
    %6396 = vmatpush1.bf16.msra.mxu0 %v6310
    %6397 = vmatprep.subr.bf16.mxu0 0
    %6398 = vmatpush1.bf16.msra.mxu0 %v6311
    %6399 = vmatprep.subr.bf16.mxu0 0
    %6400 = vmatpush1.bf16.msra.mxu0 %v6312
    %6401 = vmatprep.subr.bf16.mxu0 0
    %6402 = vmatpush1.bf16.msra.mxu0 %v6313
    %6403 = vmatprep.subr.bf16.mxu0 0
    %6404 = vmatpush1.bf16.msra.mxu0 %v6314
    %6405 = vmatprep.subr.bf16.mxu0 0
    %6406 = vmatpush1.bf16.msra.mxu0 %v6315
    %6407 = vmatprep.subr.bf16.mxu0 0
    %6408 = vmatpush1.bf16.msra.mxu0 %v6316
    %6409 = vmatprep.subr.bf16.mxu0 0
    %6410 = vmatpush1.bf16.msra.mxu0 %v6317
    %6411 = vmatprep.subr.bf16.mxu0 0
    %6412 = vmatpush1.bf16.msra.mxu0 %v6318
    %6413 = vmatprep.subr.bf16.mxu0 0
    %6414 = vmatpush1.bf16.msra.mxu0 %v6319
    %6415 = vmatprep.mubr.bf16.mxu0 %v6370
    %6416 = vmatmul.mubr.bf16.gmra.mrb[0].mxu0 %v6369
    %v6417 = vpop.f32.mrb[0].mxu0
    %v6418 = vadd.f32 %v6381, %v6417
    %v6419 = vpop.f32.mrb[0].mxu0
    %v6420 = vpop.f32.mrb[0].mxu0
    %v6421 = vpop.f32.mrb[0].mxu0
    %6422 = vdwg.mxu0
    %6423 = vmatprep.subr.bf16.mxu0 0
    %6424 = vmatpush1.bf16.msra.mxu0 %v6320
    %6425 = vmatprep.subr.bf16.mxu0 0
    %6426 = vmatpush1.bf16.msra.mxu0 %v6321
    %6427 = vmatprep.subr.bf16.mxu0 0
    %6428 = vmatpush1.bf16.msra.mxu0 %v6322
    %6429 = vmatprep.subr.bf16.mxu0 0
    %6430 = vmatpush1.bf16.msra.mxu0 %v6323
    %6431 = vmatprep.subr.bf16.mxu0 0
    %6432 = vmatpush1.bf16.msra.mxu0 %v6324
    %6433 = vmatprep.subr.bf16.mxu0 0
    %6434 = vmatpush1.bf16.msra.mxu0 %v6325
    %6435 = vmatprep.subr.bf16.mxu0 0
    %6436 = vmatpush1.bf16.msra.mxu0 %v6326
    %6437 = vmatprep.subr.bf16.mxu0 0
    %6438 = vmatpush1.bf16.msra.mxu0 %v6327
    %6439 = vmatprep.subr.bf16.mxu0 0
    %6440 = vmatpush1.bf16.msra.mxu0 %v6328
    %6441 = vmatprep.subr.bf16.mxu0 0
    %6442 = vmatpush1.bf16.msra.mxu0 %v6329
    %6443 = vmatprep.subr.bf16.mxu0 0
    %6444 = vmatpush1.bf16.msra.mxu0 %v6330
    %6445 = vmatprep.subr.bf16.mxu0 0
    %6446 = vmatpush1.bf16.msra.mxu0 %v6331
    %6447 = vmatprep.subr.bf16.mxu0 0
    %6448 = vmatpush1.bf16.msra.mxu0 %v6332
    %6449 = vmatprep.subr.bf16.mxu0 0
    %6450 = vmatpush1.bf16.msra.mxu0 %v6333
    %6451 = vmatprep.subr.bf16.mxu0 0
    %6452 = vmatpush1.bf16.msra.mxu0 %v6334
    %6453 = vmatprep.subr.bf16.mxu0 0
    %6454 = vmatpush1.bf16.msra.mxu0 %v6335
    %6455 = vmatprep.mubr.bf16.mxu0 %v6372
    %6456 = vmatmul.mubr.bf16.gmra.mrb[0].mxu0 %v6371
    %v6457 = vpop.f32.mrb[0].mxu0
    %v6458 = vadd.f32 %v6418, %v6457
    %v6459 = vpop.f32.mrb[0].mxu0
    %v6460 = vpop.f32.mrb[0].mxu0
    %v6461 = vpop.f32.mrb[0].mxu0
    %6462 = vdwg.mxu0
    %6463 = vmatprep.subr.bf16.mxu0 0
    %6464 = vmatpush1.bf16.msra.mxu0 %v6336
    %6465 = vmatprep.subr.bf16.mxu0 0
    %6466 = vmatpush1.bf16.msra.mxu0 %v6337
    %6467 = vmatprep.subr.bf16.mxu0 0
    %6468 = vmatpush1.bf16.msra.mxu0 %v6338
    %6469 = vmatprep.subr.bf16.mxu0 0
    %6470 = vmatpush1.bf16.msra.mxu0 %v6339
    %6471 = vmatprep.subr.bf16.mxu0 0
    %6472 = vmatpush1.bf16.msra.mxu0 %v6340
    %6473 = vmatprep.subr.bf16.mxu0 0
    %6474 = vmatpush1.bf16.msra.mxu0 %v6341
    %6475 = vmatprep.subr.bf16.mxu0 0
    %6476 = vmatpush1.bf16.msra.mxu0 %v6342
    %6477 = vmatprep.subr.bf16.mxu0 0
    %6478 = vmatpush1.bf16.msra.mxu0 %v6343
    %6479 = vmatprep.subr.bf16.mxu0 0
    %6480 = vmatpush1.bf16.msra.mxu0 %v6344
    %6481 = vmatprep.subr.bf16.mxu0 0
    %6482 = vmatpush1.bf16.msra.mxu0 %v6345
    %6483 = vmatprep.subr.bf16.mxu0 0
    %6484 = vmatpush1.bf16.msra.mxu0 %v6346
    %6485 = vmatprep.subr.bf16.mxu0 0
    %6486 = vmatpush1.bf16.msra.mxu0 %v6347
    %6487 = vmatprep.subr.bf16.mxu0 0
    %6488 = vmatpush1.bf16.msra.mxu0 %v6348
    %6489 = vmatprep.subr.bf16.mxu0 0
    %6490 = vmatpush1.bf16.msra.mxu0 %v6349
    %6491 = vmatprep.subr.bf16.mxu0 0
    %6492 = vmatpush1.bf16.msra.mxu0 %v6350
    %6493 = vmatprep.subr.bf16.mxu0 0
    %6494 = vmatpush1.bf16.msra.mxu0 %v6351
    %6495 = vmatprep.mubr.bf16.mxu0 %v6374
    %6496 = vmatmul.mubr.bf16.gmra.mrb[0].mxu0 %v6373
    %v6497 = vpop.f32.mrb[0].mxu0
    %v6498 = vadd.f32 %v6458, %v6497
    %v6499 = vpop.f32.mrb[0].mxu0
    %v6500 = vpop.f32.mrb[0].mxu0
    %v6501 = vpop.f32.mrb[0].mxu0
    %6502 = vdwg.mxu0
    %6503 = vmatprep.subr.bf16.mxu0 0
    %6504 = vmatpush1.bf16.msra.mxu0 %v6352
    %6505 = vmatprep.subr.bf16.mxu0 0
    %6506 = vmatpush1.bf16.msra.mxu0 %v6353
    %6507 = vmatprep.subr.bf16.mxu0 0
    %6508 = vmatpush1.bf16.msra.mxu0 %v6354
    %6509 = vmatprep.subr.bf16.mxu0 0
    %6510 = vmatpush1.bf16.msra.mxu0 %v6355
    %6511 = vmatprep.subr.bf16.mxu0 0
    %6512 = vmatpush1.bf16.msra.mxu0 %v6356
    %6513 = vmatprep.subr.bf16.mxu0 0
    %6514 = vmatpush1.bf16.msra.mxu0 %v6357
    %6515 = vmatprep.subr.bf16.mxu0 0
    %6516 = vmatpush1.bf16.msra.mxu0 %v6358
    %6517 = vmatprep.subr.bf16.mxu0 0
    %6518 = vmatpush1.bf16.msra.mxu0 %v6359
    %6519 = vmatprep.subr.bf16.mxu0 0
    %6520 = vmatpush1.bf16.msra.mxu0 %v6360
    %6521 = vmatprep.subr.bf16.mxu0 0
    %6522 = vmatpush1.bf16.msra.mxu0 %v6361
    %6523 = vmatprep.subr.bf16.mxu0 0
    %6524 = vmatpush1.bf16.msra.mxu0 %v6362
    %6525 = vmatprep.subr.bf16.mxu0 0
    %6526 = vmatpush1.bf16.msra.mxu0 %v6363
    %6527 = vmatprep.subr.bf16.mxu0 0
    %6528 = vmatpush1.bf16.msra.mxu0 %v6364
    %6529 = vmatprep.subr.bf16.mxu0 0
    %6530 = vmatpush1.bf16.msra.mxu0 %v6365
    %6531 = vmatprep.subr.bf16.mxu0 0
    %6532 = vmatpush1.bf16.msra.mxu0 %v6366
    %6533 = vmatprep.subr.bf16.mxu0 0
    %6534 = vmatpush1.bf16.msra.mxu0 %v6367
    %6535 = vmatprep.mubr.bf16.mxu0 %v6376
    %6536 = vmatmul.mubr.bf16.gmra.mrb[0].mxu0 %v6375
    %v6537 = vpop.f32.mrb[0].mxu0
    %v6538 = vadd.f32 %v6498, %v6537
    %v6539 = vpop.f32.mrb[0].mxu0
    %v6540 = vpop.f32.mrb[0].mxu0
    %v6541 = vpop.f32.mrb[0].mxu0
    %6542 = vdwg.mxu0
    %v6543 = vld [vmem:[#allocation2 + $0xa00] sm:$0xff]
    %v6544 = vld [vmem:[#allocation2 + $0xa08] sm:$0xff]
    %v6545 = vld [vmem:[#allocation2 + $0xa10] sm:$0xff]
    %v6546 = vld [vmem:[#allocation2 + $0xa18] sm:$0xff]
    %v6547 = vld [vmem:[#allocation2 + $0xa20] sm:$0xff]
    %v6548 = vld [vmem:[#allocation2 + $0xa28] sm:$0xff]
    %v6549 = vld [vmem:[#allocation2 + $0xa30] sm:$0xff]
    %v6550 = vld [vmem:[#allocation2 + $0xa38] sm:$0xff]
    %v6551 = vld [vmem:[#allocation2 + $0xa40] sm:$0xff]
    %v6552 = vld [vmem:[#allocation2 + $0xa48] sm:$0xff]
    %v6553 = vld [vmem:[#allocation2 + $0xa50] sm:$0xff]
    %v6554 = vld [vmem:[#allocation2 + $0xa58] sm:$0xff]
    %v6555 = vld [vmem:[#allocation2 + $0xa60] sm:$0xff]
    %v6556 = vld [vmem:[#allocation2 + $0xa68] sm:$0xff]
    %v6557 = vld [vmem:[#allocation2 + $0xa70] sm:$0xff]
    %v6558 = vld [vmem:[#allocation2 + $0xa78] sm:$0xff]
    %v6559 = vld [vmem:[#allocation2 + $0xa80] sm:$0xff]
    %v6560 = vld [vmem:[#allocation2 + $0xa88] sm:$0xff]
    %v6561 = vld [vmem:[#allocation2 + $0xa90] sm:$0xff]
    %v6562 = vld [vmem:[#allocation2 + $0xa98] sm:$0xff]
    %v6563 = vld [vmem:[#allocation2 + $0xaa0] sm:$0xff]
    %v6564 = vld [vmem:[#allocation2 + $0xaa8] sm:$0xff]
    %v6565 = vld [vmem:[#allocation2 + $0xab0] sm:$0xff]
    %v6566 = vld [vmem:[#allocation2 + $0xab8] sm:$0xff]
    %v6567 = vld [vmem:[#allocation2 + $0xac0] sm:$0xff]
    %v6568 = vld [vmem:[#allocation2 + $0xac8] sm:$0xff]
    %v6569 = vld [vmem:[#allocation2 + $0xad0] sm:$0xff]
    %v6570 = vld [vmem:[#allocation2 + $0xad8] sm:$0xff]
    %v6571 = vld [vmem:[#allocation2 + $0xae0] sm:$0xff]
    %v6572 = vld [vmem:[#allocation2 + $0xae8] sm:$0xff]
    %v6573 = vld [vmem:[#allocation2 + $0xaf0] sm:$0xff]
    %v6574 = vld [vmem:[#allocation2 + $0xaf8] sm:$0xff]
    %v6575 = vld [vmem:[#allocation2 + $0xb00] sm:$0xff]
    %v6576 = vld [vmem:[#allocation2 + $0xb08] sm:$0xff]
    %v6577 = vld [vmem:[#allocation2 + $0xb10] sm:$0xff]
    %v6578 = vld [vmem:[#allocation2 + $0xb18] sm:$0xff]
    %v6579 = vld [vmem:[#allocation2 + $0xb20] sm:$0xff]
    %v6580 = vld [vmem:[#allocation2 + $0xb28] sm:$0xff]
    %v6581 = vld [vmem:[#allocation2 + $0xb30] sm:$0xff]
    %v6582 = vld [vmem:[#allocation2 + $0xb38] sm:$0xff]
    %v6583 = vld [vmem:[#allocation2 + $0xb40] sm:$0xff]
    %v6584 = vld [vmem:[#allocation2 + $0xb48] sm:$0xff]
    %v6585 = vld [vmem:[#allocation2 + $0xb50] sm:$0xff]
    %v6586 = vld [vmem:[#allocation2 + $0xb58] sm:$0xff]
    %v6587 = vld [vmem:[#allocation2 + $0xb60] sm:$0xff]
    %v6588 = vld [vmem:[#allocation2 + $0xb68] sm:$0xff]
    %v6589 = vld [vmem:[#allocation2 + $0xb70] sm:$0xff]
    %v6590 = vld [vmem:[#allocation2 + $0xb78] sm:$0xff]
    %v6591 = vld [vmem:[#allocation2 + $0xb80] sm:$0xff]
    %v6592 = vld [vmem:[#allocation2 + $0xb88] sm:$0xff]
    %v6593 = vld [vmem:[#allocation2 + $0xb90] sm:$0xff]
    %v6594 = vld [vmem:[#allocation2 + $0xb98] sm:$0xff]
    %v6595 = vld [vmem:[#allocation2 + $0xba0] sm:$0xff]
    %v6596 = vld [vmem:[#allocation2 + $0xba8] sm:$0xff]
    %v6597 = vld [vmem:[#allocation2 + $0xbb0] sm:$0xff]
    %v6598 = vld [vmem:[#allocation2 + $0xbb8] sm:$0xff]
    %v6599 = vld [vmem:[#allocation2 + $0xbc0] sm:$0xff]
    %v6600 = vld [vmem:[#allocation2 + $0xbc8] sm:$0xff]
    %v6601 = vld [vmem:[#allocation2 + $0xbd0] sm:$0xff]
    %v6602 = vld [vmem:[#allocation2 + $0xbd8] sm:$0xff]
    %v6603 = vld [vmem:[#allocation2 + $0xbe0] sm:$0xff]
    %v6604 = vld [vmem:[#allocation2 + $0xbe8] sm:$0xff]
    %v6605 = vld [vmem:[#allocation2 + $0xbf0] sm:$0xff]
    %v6606 = vld [vmem:[#allocation2 + $0xbf8] sm:$0xff]
    %v6607 = vld [vmem:[#allocation2 + $0xc00] sm:$0xff]
    %v6608 = vld [vmem:[#allocation2 + $0xc08] sm:$0xff]
    %v6609 = vld [vmem:[#allocation2 + $0xc10] sm:$0xff]
    %v6610 = vld [vmem:[#allocation2 + $0xc18] sm:$0xff]
    %v6611 = vld [vmem:[#allocation2 + $0xc20] sm:$0xff]
    %v6612 = vld [vmem:[#allocation2 + $0xc28] sm:$0xff]
    %v6613 = vld [vmem:[#allocation2 + $0xc30] sm:$0xff]
    %v6614 = vld [vmem:[#allocation2 + $0xc38] sm:$0xff]
    %v6615 = vld [vmem:[#allocation2 + $0xc40] sm:$0xff]
    %v6616 = vld [vmem:[#allocation2 + $0xc48] sm:$0xff]
    %v6617 = vld [vmem:[#allocation2 + $0xc50] sm:$0xff]
    %v6618 = vld [vmem:[#allocation2 + $0xc58] sm:$0xff]
    %v6619 = vld [vmem:[#allocation2 + $0xc60] sm:$0xff]
    %v6620 = vld [vmem:[#allocation2 + $0xc68] sm:$0xff]
    %v6621 = vld [vmem:[#allocation2 + $0xc70] sm:$0xff]
    %v6622 = vld [vmem:[#allocation2 + $0xc78] sm:$0xff]
    %v6623 = vld [vmem:[#allocation2 + $0xc80] sm:$0xff]
    %v6624 = vld [vmem:[#allocation2 + $0xc88] sm:$0xff]
    %v6625 = vld [vmem:[#allocation2 + $0xc90] sm:$0xff]
    %v6626 = vld [vmem:[#allocation2 + $0xc98] sm:$0xff]
    %v6627 = vld [vmem:[#allocation2 + $0xca0] sm:$0xff]
    %v6628 = vld [vmem:[#allocation2 + $0xca8] sm:$0xff]
    %v6629 = vld [vmem:[#allocation2 + $0xcb0] sm:$0xff]
    %v6630 = vld [vmem:[#allocation2 + $0xcb8] sm:$0xff]
    %v6631 = vld [vmem:[#allocation2 + $0xcc0] sm:$0xff]
    %v6632 = vld [vmem:[#allocation2 + $0xcc8] sm:$0xff]
    %v6633 = vld [vmem:[#allocation2 + $0xcd0] sm:$0xff]
    %v6634 = vld [vmem:[#allocation2 + $0xcd8] sm:$0xff]
    %v6635 = vld [vmem:[#allocation2 + $0xce0] sm:$0xff]
    %v6636 = vld [vmem:[#allocation2 + $0xce8] sm:$0xff]
    %v6637 = vld [vmem:[#allocation2 + $0xcf0] sm:$0xff]
    %v6638 = vld [vmem:[#allocation2 + $0xcf8] sm:$0xff]
    %v6639 = vld [vmem:[#allocation2 + $0xd00] sm:$0xff]
    %v6640 = vld [vmem:[#allocation2 + $0xd08] sm:$0xff]
    %v6641 = vld [vmem:[#allocation2 + $0xd10] sm:$0xff]
    %v6642 = vld [vmem:[#allocation2 + $0xd18] sm:$0xff]
    %v6643 = vld [vmem:[#allocation2 + $0xd20] sm:$0xff]
    %v6644 = vld [vmem:[#allocation2 + $0xd28] sm:$0xff]
    %v6645 = vld [vmem:[#allocation2 + $0xd30] sm:$0xff]
    %v6646 = vld [vmem:[#allocation2 + $0xd38] sm:$0xff]
    %v6647 = vld [vmem:[#allocation2 + $0xd40] sm:$0xff]
    %v6648 = vld [vmem:[#allocation2 + $0xd48] sm:$0xff]
    %v6649 = vld [vmem:[#allocation2 + $0xd50] sm:$0xff]
    %v6650 = vld [vmem:[#allocation2 + $0xd58] sm:$0xff]
    %v6651 = vld [vmem:[#allocation2 + $0xd60] sm:$0xff]
    %v6652 = vld [vmem:[#allocation2 + $0xd68] sm:$0xff]
    %v6653 = vld [vmem:[#allocation2 + $0xd70] sm:$0xff]
    %v6654 = vld [vmem:[#allocation2 + $0xd78] sm:$0xff]
    %v6655 = vld [vmem:[#allocation2 + $0xd80] sm:$0xff]
    %v6656 = vld [vmem:[#allocation2 + $0xd88] sm:$0xff]
    %v6657 = vld [vmem:[#allocation2 + $0xd90] sm:$0xff]
    %v6658 = vld [vmem:[#allocation2 + $0xd98] sm:$0xff]
    %v6659 = vld [vmem:[#allocation2 + $0xda0] sm:$0xff]
    %v6660 = vld [vmem:[#allocation2 + $0xda8] sm:$0xff]
    %v6661 = vld [vmem:[#allocation2 + $0xdb0] sm:$0xff]
    %v6662 = vld [vmem:[#allocation2 + $0xdb8] sm:$0xff]
    %v6663 = vld [vmem:[#allocation2 + $0xdc0] sm:$0xff]
    %v6664 = vld [vmem:[#allocation2 + $0xdc8] sm:$0xff]
    %v6665 = vld [vmem:[#allocation2 + $0xdd0] sm:$0xff]
    %v6666 = vld [vmem:[#allocation2 + $0xdd8] sm:$0xff]
    %v6667 = vld [vmem:[#allocation2 + $0xde0] sm:$0xff]
    %v6668 = vld [vmem:[#allocation2 + $0xde8] sm:$0xff]
    %v6669 = vld [vmem:[#allocation2 + $0xdf0] sm:$0xff]
    %v6670 = vld [vmem:[#allocation2 + $0xdf8] sm:$0xff]
    %v6671 = vld [vmem:[#allocation17 + $0x20] sm:$0xff]
    %v6672 = vpack.c.bf16 %v6299, %v6299
    %v6673 = vpack.c.bf16 %v6538, %v6538
    %v6675 = vlaneseq
    %v6676 = vshrl.u32 %v6675, 7
    %v6677 = vsub.s32 0, %v6676
    %v6678 = vrot.slane %v6671, %v6677
    %v6679 = vlaneseq
    %v6680 = vshrl.u32 %v6679, 7
    %v6681 = vsub.s32 1, %v6680
    %v6682 = vrot.slane %v6671, %v6681
    %v6683 = vlaneseq
    %v6684 = vshrl.u32 %v6683, 7
    %v6685 = vsub.s32 2, %v6684
    %v6686 = vrot.slane %v6671, %v6685
    %v6687 = vlaneseq
    %v6688 = vshrl.u32 %v6687, 7
    %v6689 = vsub.s32 3, %v6688
    %v6690 = vrot.slane %v6671, %v6689
    %v6691 = vlaneseq
    %v6692 = vshrl.u32 %v6691, 7
    %v6693 = vsub.s32 4, %v6692
    %v6694 = vrot.slane %v6671, %v6693
    %v6695 = vlaneseq
    %v6696 = vshrl.u32 %v6695, 7
    %v6697 = vsub.s32 5, %v6696
    %v6698 = vrot.slane %v6671, %v6697
    %v6699 = vlaneseq
    %v6700 = vshrl.u32 %v6699, 7
    %v6701 = vsub.s32 6, %v6700
    %v6702 = vrot.slane %v6671, %v6701
    %v6703 = vlaneseq
    %v6704 = vshrl.u32 %v6703, 7
    %v6705 = vsub.s32 7, %v6704
    %v6706 = vrot.slane %v6671, %v6705
    %6715 = vmatprep.subr.bf16.mxu0 %v6544
    %6716 = vmatpush1.bf16.msra.mxu0 %v6543
    %6717 = vmatprep.subr.bf16.mxu0 %v6552
    %6718 = vmatpush1.bf16.msra.mxu0 %v6551
    %6719 = vmatprep.subr.bf16.mxu0 %v6560
    %6720 = vmatpush1.bf16.msra.mxu0 %v6559
    %6721 = vmatprep.subr.bf16.mxu0 %v6568
    %6722 = vmatpush1.bf16.msra.mxu0 %v6567
    %6723 = vmatprep.subr.bf16.mxu0 %v6576
    %6724 = vmatpush1.bf16.msra.mxu0 %v6575
    %6725 = vmatprep.subr.bf16.mxu0 %v6584
    %6726 = vmatpush1.bf16.msra.mxu0 %v6583
    %6727 = vmatprep.subr.bf16.mxu0 %v6592
    %6728 = vmatpush1.bf16.msra.mxu0 %v6591
    %6729 = vmatprep.subr.bf16.mxu0 %v6600
    %6730 = vmatpush1.bf16.msra.mxu0 %v6599
    %6731 = vmatprep.subr.bf16.mxu0 %v6608
    %6732 = vmatpush1.bf16.msra.mxu0 %v6607
    %6733 = vmatprep.subr.bf16.mxu0 %v6616
    %6734 = vmatpush1.bf16.msra.mxu0 %v6615
    %6735 = vmatprep.subr.bf16.mxu0 %v6624
    %6736 = vmatpush1.bf16.msra.mxu0 %v6623
    %6737 = vmatprep.subr.bf16.mxu0 %v6632
    %6738 = vmatpush1.bf16.msra.mxu0 %v6631
    %6739 = vmatprep.subr.bf16.mxu0 %v6640
    %6740 = vmatpush1.bf16.msra.mxu0 %v6639
    %6741 = vmatprep.subr.bf16.mxu0 %v6648
    %6742 = vmatpush1.bf16.msra.mxu0 %v6647
    %6743 = vmatprep.subr.bf16.mxu0 %v6656
    %6744 = vmatpush1.bf16.msra.mxu0 %v6655
    %6745 = vmatprep.subr.bf16.mxu0 %v6664
    %6746 = vmatpush1.bf16.msra.mxu0 %v6663
    %6747 = vmatprep.mubr.bf16.mxu0 %v6673
    %6748 = vmatmul.mubr.bf16.gmra.mrb[0].mxu0 %v6672
    %v6749 = vpop.f32.mrb[0].mxu0
    %v6750 = vadd.f32 %v6678, %v6749
    %v6751 = vpop.f32.mrb[0].mxu0
    %v6752 = vadd.f32 %v6682, %v6751
    %v6753 = vpop.f32.mrb[0].mxu0
    %v6754 = vpop.f32.mrb[0].mxu0
    %6755 = vdwg.mxu0
    %6756 = vmatprep.subr.bf16.mxu0 %v6546
    %6757 = vmatpush1.bf16.msra.mxu0 %v6545
    %6758 = vmatprep.subr.bf16.mxu0 %v6554
    %6759 = vmatpush1.bf16.msra.mxu0 %v6553
    %6760 = vmatprep.subr.bf16.mxu0 %v6562
    %6761 = vmatpush1.bf16.msra.mxu0 %v6561
    %6762 = vmatprep.subr.bf16.mxu0 %v6570
    %6763 = vmatpush1.bf16.msra.mxu0 %v6569
    %6764 = vmatprep.subr.bf16.mxu0 %v6578
    %6765 = vmatpush1.bf16.msra.mxu0 %v6577
    %6766 = vmatprep.subr.bf16.mxu0 %v6586
    %6767 = vmatpush1.bf16.msra.mxu0 %v6585
    %6768 = vmatprep.subr.bf16.mxu0 %v6594
    %6769 = vmatpush1.bf16.msra.mxu0 %v6593
    %6770 = vmatprep.subr.bf16.mxu0 %v6602
    %6771 = vmatpush1.bf16.msra.mxu0 %v6601
    %6772 = vmatprep.subr.bf16.mxu0 %v6610
    %6773 = vmatpush1.bf16.msra.mxu0 %v6609
    %6774 = vmatprep.subr.bf16.mxu0 %v6618
    %6775 = vmatpush1.bf16.msra.mxu0 %v6617
    %6776 = vmatprep.subr.bf16.mxu0 %v6626
    %6777 = vmatpush1.bf16.msra.mxu0 %v6625
    %6778 = vmatprep.subr.bf16.mxu0 %v6634
    %6779 = vmatpush1.bf16.msra.mxu0 %v6633
    %6780 = vmatprep.subr.bf16.mxu0 %v6642
    %6781 = vmatpush1.bf16.msra.mxu0 %v6641
    %6782 = vmatprep.subr.bf16.mxu0 %v6650
    %6783 = vmatpush1.bf16.msra.mxu0 %v6649
    %6784 = vmatprep.subr.bf16.mxu0 %v6658
    %6785 = vmatpush1.bf16.msra.mxu0 %v6657
    %6786 = vmatprep.subr.bf16.mxu0 %v6666
    %6787 = vmatpush1.bf16.msra.mxu0 %v6665
    %6788 = vmatprep.mubr.bf16.mxu0 %v6673
    %6789 = vmatmul.mubr.bf16.gmra.mrb[0].mxu0 %v6672
    %v6790 = vpop.f32.mrb[0].mxu0
    %v6791 = vadd.f32 %v6686, %v6790
    %v6792 = vpop.f32.mrb[0].mxu0
    %v6793 = vadd.f32 %v6690, %v6792
    %v6794 = vpop.f32.mrb[0].mxu0
    %v6795 = vpop.f32.mrb[0].mxu0
    %6796 = vdwg.mxu0
    %6797 = vmatprep.subr.bf16.mxu0 %v6548
    %6798 = vmatpush1.bf16.msra.mxu0 %v6547
    %6799 = vmatprep.subr.bf16.mxu0 %v6556
    %6800 = vmatpush1.bf16.msra.mxu0 %v6555
    %6801 = vmatprep.subr.bf16.mxu0 %v6564
    %6802 = vmatpush1.bf16.msra.mxu0 %v6563
    %6803 = vmatprep.subr.bf16.mxu0 %v6572
    %6804 = vmatpush1.bf16.msra.mxu0 %v6571
    %6805 = vmatprep.subr.bf16.mxu0 %v6580
    %6806 = vmatpush1.bf16.msra.mxu0 %v6579
    %6807 = vmatprep.subr.bf16.mxu0 %v6588
    %6808 = vmatpush1.bf16.msra.mxu0 %v6587
    %6809 = vmatprep.subr.bf16.mxu0 %v6596
    %6810 = vmatpush1.bf16.msra.mxu0 %v6595
    %6811 = vmatprep.subr.bf16.mxu0 %v6604
    %6812 = vmatpush1.bf16.msra.mxu0 %v6603
    %6813 = vmatprep.subr.bf16.mxu0 %v6612
    %6814 = vmatpush1.bf16.msra.mxu0 %v6611
    %6815 = vmatprep.subr.bf16.mxu0 %v6620
    %6816 = vmatpush1.bf16.msra.mxu0 %v6619
    %6817 = vmatprep.subr.bf16.mxu0 %v6628
    %6818 = vmatpush1.bf16.msra.mxu0 %v6627
    %6819 = vmatprep.subr.bf16.mxu0 %v6636
    %6820 = vmatpush1.bf16.msra.mxu0 %v6635
    %6821 = vmatprep.subr.bf16.mxu0 %v6644
    %6822 = vmatpush1.bf16.msra.mxu0 %v6643
    %6823 = vmatprep.subr.bf16.mxu0 %v6652
    %6824 = vmatpush1.bf16.msra.mxu0 %v6651
    %6825 = vmatprep.subr.bf16.mxu0 %v6660
    %6826 = vmatpush1.bf16.msra.mxu0 %v6659
    %6827 = vmatprep.subr.bf16.mxu0 %v6668
    %6828 = vmatpush1.bf16.msra.mxu0 %v6667
    %6829 = vmatprep.mubr.bf16.mxu0 %v6673
    %6830 = vmatmul.mubr.bf16.gmra.mrb[0].mxu0 %v6672
    %v6831 = vpop.f32.mrb[0].mxu0
    %v6832 = vadd.f32 %v6694, %v6831
    %v6833 = vpop.f32.mrb[0].mxu0
    %v6834 = vadd.f32 %v6698, %v6833
    %v6835 = vpop.f32.mrb[0].mxu0
    %v6836 = vpop.f32.mrb[0].mxu0
    %6837 = vdwg.mxu0
    %6838 = vmatprep.subr.bf16.mxu0 %v6550
    %6839 = vmatpush1.bf16.msra.mxu0 %v6549
    %6840 = vmatprep.subr.bf16.mxu0 %v6558
    %6841 = vmatpush1.bf16.msra.mxu0 %v6557
    %6842 = vmatprep.subr.bf16.mxu0 %v6566
    %6843 = vmatpush1.bf16.msra.mxu0 %v6565
    %6844 = vmatprep.subr.bf16.mxu0 %v6574
    %6845 = vmatpush1.bf16.msra.mxu0 %v6573
    %6846 = vmatprep.subr.bf16.mxu0 %v6582
    %6847 = vmatpush1.bf16.msra.mxu0 %v6581
    %6848 = vmatprep.subr.bf16.mxu0 %v6590
    %6849 = vmatpush1.bf16.msra.mxu0 %v6589
    %6850 = vmatprep.subr.bf16.mxu0 %v6598
    %6851 = vmatpush1.bf16.msra.mxu0 %v6597
    %6852 = vmatprep.subr.bf16.mxu0 %v6606
    %6853 = vmatpush1.bf16.msra.mxu0 %v6605
    %6854 = vmatprep.subr.bf16.mxu0 %v6614
    %6855 = vmatpush1.bf16.msra.mxu0 %v6613
    %6856 = vmatprep.subr.bf16.mxu0 %v6622
    %6857 = vmatpush1.bf16.msra.mxu0 %v6621
    %6858 = vmatprep.subr.bf16.mxu0 %v6630
    %6859 = vmatpush1.bf16.msra.mxu0 %v6629
    %6860 = vmatprep.subr.bf16.mxu0 %v6638
    %6861 = vmatpush1.bf16.msra.mxu0 %v6637
    %6862 = vmatprep.subr.bf16.mxu0 %v6646
    %6863 = vmatpush1.bf16.msra.mxu0 %v6645
    %6864 = vmatprep.subr.bf16.mxu0 %v6654
    %6865 = vmatpush1.bf16.msra.mxu0 %v6653
    %6866 = vmatprep.subr.bf16.mxu0 %v6662
    %6867 = vmatpush1.bf16.msra.mxu0 %v6661
    %6868 = vmatprep.subr.bf16.mxu0 %v6670
    %6869 = vmatpush1.bf16.msra.mxu0 %v6669
    %6870 = vmatprep.mubr.bf16.mxu0 %v6673
    %6871 = vmatmul.mubr.bf16.gmra.mrb[0].mxu0 %v6672
    %v6872 = vpop.f32.mrb[0].mxu0
    %v6873 = vadd.f32 %v6702, %v6872
    %v6874 = vpop.f32.mrb[0].mxu0
    %v6875 = vadd.f32 %v6706, %v6874
    %v6876 = vpop.f32.mrb[0].mxu0
    %v6877 = vpop.f32.mrb[0].mxu0
    %6878 = vdwg.mxu0
    %v6879 = vmax.f32 %v6750, 0.0
    %v6880 = vmax.f32 %v6752, 0.0
    %v6881 = vmax.f32 %v6791, 0.0
    %v6882 = vmax.f32 %v6793, 0.0
    %v6883 = vmax.f32 %v6832, 0.0
    %v6884 = vmax.f32 %v6834, 0.0
    %v6885 = vmax.f32 %v6873, 0.0
    %v6886 = vmax.f32 %v6875, 0.0
    %v6887 = vld [vmem:[%s186] sm:$0xff]
    %v6888 = vld [vmem:[%s186 + $0x8] sm:$0xff]
    %v6889 = vld [vmem:[%s186 + $0x10] sm:$0xff]
    %v6890 = vld [vmem:[%s186 + $0x18] sm:$0xff]
    %v6891 = vld [vmem:[%s186 + $0x40] sm:$0xff]
    %v6892 = vld [vmem:[%s186 + $0x48] sm:$0xff]
    %v6893 = vld [vmem:[%s186 + $0x50] sm:$0xff]
    %v6894 = vld [vmem:[%s186 + $0x58] sm:$0xff]
    %v6895 = vld [vmem:[%s186 + $0x80] sm:$0xff]
    %v6896 = vld [vmem:[%s186 + $0x88] sm:$0xff]
    %v6897 = vld [vmem:[%s186 + $0x90] sm:$0xff]
    %v6898 = vld [vmem:[%s186 + $0x98] sm:$0xff]
    %v6899 = vld [vmem:[%s186 + $0xc0] sm:$0xff]
    %v6900 = vld [vmem:[%s186 + $0xc8] sm:$0xff]
    %v6901 = vld [vmem:[%s186 + $0xd0] sm:$0xff]
    %v6902 = vld [vmem:[%s186 + $0xd8] sm:$0xff]
    %v6903 = vld [vmem:[%s186 + $0x100] sm:$0xff]
    %v6904 = vld [vmem:[%s186 + $0x108] sm:$0xff]
    %v6905 = vld [vmem:[%s186 + $0x110] sm:$0xff]
    %v6906 = vld [vmem:[%s186 + $0x118] sm:$0xff]
    %v6907 = vld [vmem:[%s186 + $0x140] sm:$0xff]
    %v6908 = vld [vmem:[%s186 + $0x148] sm:$0xff]
    %v6909 = vld [vmem:[%s186 + $0x150] sm:$0xff]
    %v6910 = vld [vmem:[%s186 + $0x158] sm:$0xff]
    %v6911 = vld [vmem:[%s186 + $0x180] sm:$0xff]
    %v6912 = vld [vmem:[%s186 + $0x188] sm:$0xff]
    %v6913 = vld [vmem:[%s186 + $0x190] sm:$0xff]
    %v6914 = vld [vmem:[%s186 + $0x198] sm:$0xff]
    %v6915 = vld [vmem:[%s186 + $0x1c0] sm:$0xff]
    %v6916 = vld [vmem:[%s186 + $0x1c8] sm:$0xff]
    %v6917 = vld [vmem:[%s186 + $0x1d0] sm:$0xff]
    %v6918 = vld [vmem:[%s186 + $0x1d8] sm:$0xff]
    %v6919 = vld [vmem:[%s186 + $0x200] sm:$0xff]
    %v6920 = vld [vmem:[%s186 + $0x208] sm:$0xff]
    %v6921 = vld [vmem:[%s186 + $0x210] sm:$0xff]
    %v6922 = vld [vmem:[%s186 + $0x218] sm:$0xff]
    %v6923 = vld [vmem:[%s186 + $0x240] sm:$0xff]
    %v6924 = vld [vmem:[%s186 + $0x248] sm:$0xff]
    %v6925 = vld [vmem:[%s186 + $0x250] sm:$0xff]
    %v6926 = vld [vmem:[%s186 + $0x258] sm:$0xff]
    %v6927 = vld [vmem:[%s186 + $0x280] sm:$0xff]
    %v6928 = vld [vmem:[%s186 + $0x288] sm:$0xff]
    %v6929 = vld [vmem:[%s186 + $0x290] sm:$0xff]
    %v6930 = vld [vmem:[%s186 + $0x298] sm:$0xff]
    %v6931 = vld [vmem:[%s186 + $0x2c0] sm:$0xff]
    %v6932 = vld [vmem:[%s186 + $0x2c8] sm:$0xff]
    %v6933 = vld [vmem:[%s186 + $0x2d0] sm:$0xff]
    %v6934 = vld [vmem:[%s186 + $0x2d8] sm:$0xff]
    %v6935 = vld [vmem:[%s186 + $0x300] sm:$0xff]
    %v6936 = vld [vmem:[%s186 + $0x308] sm:$0xff]
    %v6937 = vld [vmem:[%s186 + $0x310] sm:$0xff]
    %v6938 = vld [vmem:[%s186 + $0x318] sm:$0xff]
    %v6939 = vld [vmem:[%s186 + $0x340] sm:$0xff]
    %v6940 = vld [vmem:[%s186 + $0x348] sm:$0xff]
    %v6941 = vld [vmem:[%s186 + $0x350] sm:$0xff]
    %v6942 = vld [vmem:[%s186 + $0x358] sm:$0xff]
    %v6943 = vld [vmem:[%s186 + $0x380] sm:$0xff]
    %v6944 = vld [vmem:[%s186 + $0x388] sm:$0xff]
    %v6945 = vld [vmem:[%s186 + $0x390] sm:$0xff]
    %v6946 = vld [vmem:[%s186 + $0x398] sm:$0xff]
    %v6947 = vld [vmem:[%s186 + $0x3c0] sm:$0xff]
    %v6948 = vld [vmem:[%s186 + $0x3c8] sm:$0xff]
    %v6949 = vld [vmem:[%s186 + $0x3d0] sm:$0xff]
    %v6950 = vld [vmem:[%s186 + $0x3d8] sm:$0xff]
    %v6951 = vld [vmem:[%s186 + $0x400] sm:$0xff]
    %v6952 = vld [vmem:[%s186 + $0x408] sm:$0xff]
    %v6953 = vld [vmem:[%s186 + $0x410] sm:$0xff]
    %v6954 = vld [vmem:[%s186 + $0x418] sm:$0xff]
    %v6955 = vld [vmem:[%s186 + $0x440] sm:$0xff]
    %v6956 = vld [vmem:[%s186 + $0x448] sm:$0xff]
    %v6957 = vld [vmem:[%s186 + $0x450] sm:$0xff]
    %v6958 = vld [vmem:[%s186 + $0x458] sm:$0xff]
    %v6959 = vld [vmem:[%s186 + $0x480] sm:$0xff]
    %v6960 = vld [vmem:[%s186 + $0x488] sm:$0xff]
    %v6961 = vld [vmem:[%s186 + $0x490] sm:$0xff]
    %v6962 = vld [vmem:[%s186 + $0x498] sm:$0xff]
    %v6963 = vld [vmem:[%s186 + $0x4c0] sm:$0xff]
    %v6964 = vld [vmem:[%s186 + $0x4c8] sm:$0xff]
    %v6965 = vld [vmem:[%s186 + $0x4d0] sm:$0xff]
    %v6966 = vld [vmem:[%s186 + $0x4d8] sm:$0xff]
    %v6967 = vld [vmem:[%s186 + $0x500] sm:$0xff]
    %v6968 = vld [vmem:[%s186 + $0x508] sm:$0xff]
    %v6969 = vld [vmem:[%s186 + $0x510] sm:$0xff]
    %v6970 = vld [vmem:[%s186 + $0x518] sm:$0xff]
    %v6971 = vld [vmem:[%s186 + $0x540] sm:$0xff]
    %v6972 = vld [vmem:[%s186 + $0x548] sm:$0xff]
    %v6973 = vld [vmem:[%s186 + $0x550] sm:$0xff]
    %v6974 = vld [vmem:[%s186 + $0x558] sm:$0xff]
    %v6975 = vld [vmem:[%s186 + $0x580] sm:$0xff]
    %v6976 = vld [vmem:[%s186 + $0x588] sm:$0xff]
    %v6977 = vld [vmem:[%s186 + $0x590] sm:$0xff]
    %v6978 = vld [vmem:[%s186 + $0x598] sm:$0xff]
    %v6979 = vld [vmem:[%s186 + $0x5c0] sm:$0xff]
    %v6980 = vld [vmem:[%s186 + $0x5c8] sm:$0xff]
    %v6981 = vld [vmem:[%s186 + $0x5d0] sm:$0xff]
    %v6982 = vld [vmem:[%s186 + $0x5d8] sm:$0xff]
    %v6983 = vld [vmem:[%s186 + $0x600] sm:$0xff]
    %v6984 = vld [vmem:[%s186 + $0x608] sm:$0xff]
    %v6985 = vld [vmem:[%s186 + $0x610] sm:$0xff]
    %v6986 = vld [vmem:[%s186 + $0x618] sm:$0xff]
    %v6987 = vld [vmem:[%s186 + $0x640] sm:$0xff]
    %v6988 = vld [vmem:[%s186 + $0x648] sm:$0xff]
    %v6989 = vld [vmem:[%s186 + $0x650] sm:$0xff]
    %v6990 = vld [vmem:[%s186 + $0x658] sm:$0xff]
    %v6991 = vld [vmem:[%s186 + $0x680] sm:$0xff]
    %v6992 = vld [vmem:[%s186 + $0x688] sm:$0xff]
    %v6993 = vld [vmem:[%s186 + $0x690] sm:$0xff]
    %v6994 = vld [vmem:[%s186 + $0x698] sm:$0xff]
    %v6995 = vld [vmem:[%s186 + $0x6c0] sm:$0xff]
    %v6996 = vld [vmem:[%s186 + $0x6c8] sm:$0xff]
    %v6997 = vld [vmem:[%s186 + $0x6d0] sm:$0xff]
    %v6998 = vld [vmem:[%s186 + $0x6d8] sm:$0xff]
    %v6999 = vld [vmem:[%s186 + $0x700] sm:$0xff]
    %v7000 = vld [vmem:[%s186 + $0x708] sm:$0xff]
    %v7001 = vld [vmem:[%s186 + $0x710] sm:$0xff]
    %v7002 = vld [vmem:[%s186 + $0x718] sm:$0xff]
    %v7003 = vld [vmem:[%s186 + $0x740] sm:$0xff]
    %v7004 = vld [vmem:[%s186 + $0x748] sm:$0xff]
    %v7005 = vld [vmem:[%s186 + $0x750] sm:$0xff]
    %v7006 = vld [vmem:[%s186 + $0x758] sm:$0xff]
    %v7007 = vld [vmem:[%s186 + $0x780] sm:$0xff]
    %v7008 = vld [vmem:[%s186 + $0x788] sm:$0xff]
    %v7009 = vld [vmem:[%s186 + $0x790] sm:$0xff]
    %v7010 = vld [vmem:[%s186 + $0x798] sm:$0xff]
    %v7011 = vld [vmem:[%s186 + $0x7c0] sm:$0xff]
    %v7012 = vld [vmem:[%s186 + $0x7c8] sm:$0xff]
    %v7013 = vld [vmem:[%s186 + $0x7d0] sm:$0xff]
    %v7014 = vld [vmem:[%s186 + $0x7d8] sm:$0xff]
    %v7015 = vld [vmem:[%s186 + $0x800] sm:$0xff]
    %v7016 = vld [vmem:[%s186 + $0x808] sm:$0xff]
    %v7017 = vld [vmem:[%s186 + $0x810] sm:$0xff]
    %v7018 = vld [vmem:[%s186 + $0x818] sm:$0xff]
    %v7019 = vld [vmem:[%s186 + $0x840] sm:$0xff]
    %v7020 = vld [vmem:[%s186 + $0x848] sm:$0xff]
    %v7021 = vld [vmem:[%s186 + $0x850] sm:$0xff]
    %v7022 = vld [vmem:[%s186 + $0x858] sm:$0xff]
    %v7023 = vld [vmem:[%s186 + $0x880] sm:$0xff]
    %v7024 = vld [vmem:[%s186 + $0x888] sm:$0xff]
    %v7025 = vld [vmem:[%s186 + $0x890] sm:$0xff]
    %v7026 = vld [vmem:[%s186 + $0x898] sm:$0xff]
    %v7027 = vld [vmem:[%s186 + $0x8c0] sm:$0xff]
    %v7028 = vld [vmem:[%s186 + $0x8c8] sm:$0xff]
    %v7029 = vld [vmem:[%s186 + $0x8d0] sm:$0xff]
    %v7030 = vld [vmem:[%s186 + $0x8d8] sm:$0xff]
    %v7031 = vld [vmem:[%s186 + $0x900] sm:$0xff]
    %v7032 = vld [vmem:[%s186 + $0x908] sm:$0xff]
    %v7033 = vld [vmem:[%s186 + $0x910] sm:$0xff]
    %v7034 = vld [vmem:[%s186 + $0x918] sm:$0xff]
    %v7035 = vld [vmem:[%s186 + $0x940] sm:$0xff]
    %v7036 = vld [vmem:[%s186 + $0x948] sm:$0xff]
    %v7037 = vld [vmem:[%s186 + $0x950] sm:$0xff]
    %v7038 = vld [vmem:[%s186 + $0x958] sm:$0xff]
    %v7039 = vld [vmem:[%s186 + $0x980] sm:$0xff]
    %v7040 = vld [vmem:[%s186 + $0x988] sm:$0xff]
    %v7041 = vld [vmem:[%s186 + $0x990] sm:$0xff]
    %v7042 = vld [vmem:[%s186 + $0x998] sm:$0xff]
    %v7043 = vld [vmem:[%s186 + $0x9c0] sm:$0xff]
    %v7044 = vld [vmem:[%s186 + $0x9c8] sm:$0xff]
    %v7045 = vld [vmem:[%s186 + $0x9d0] sm:$0xff]
    %v7046 = vld [vmem:[%s186 + $0x9d8] sm:$0xff]
    %v7047 = vld [vmem:[%s186 + $0xa00] sm:$0xff]
    %v7048 = vld [vmem:[%s186 + $0xa08] sm:$0xff]
    %v7049 = vld [vmem:[%s186 + $0xa10] sm:$0xff]
    %v7050 = vld [vmem:[%s186 + $0xa18] sm:$0xff]
    %v7051 = vld [vmem:[%s186 + $0xa40] sm:$0xff]
    %v7052 = vld [vmem:[%s186 + $0xa48] sm:$0xff]
    %v7053 = vld [vmem:[%s186 + $0xa50] sm:$0xff]
    %v7054 = vld [vmem:[%s186 + $0xa58] sm:$0xff]
    %v7055 = vld [vmem:[%s186 + $0xa80] sm:$0xff]
    %v7056 = vld [vmem:[%s186 + $0xa88] sm:$0xff]
    %v7057 = vld [vmem:[%s186 + $0xa90] sm:$0xff]
    %v7058 = vld [vmem:[%s186 + $0xa98] sm:$0xff]
    %v7059 = vld [vmem:[%s186 + $0xac0] sm:$0xff]
    %v7060 = vld [vmem:[%s186 + $0xac8] sm:$0xff]
    %v7061 = vld [vmem:[%s186 + $0xad0] sm:$0xff]
    %v7062 = vld [vmem:[%s186 + $0xad8] sm:$0xff]
    %v7063 = vld [vmem:[%s186 + $0xb00] sm:$0xff]
    %v7064 = vld [vmem:[%s186 + $0xb08] sm:$0xff]
    %v7065 = vld [vmem:[%s186 + $0xb10] sm:$0xff]
    %v7066 = vld [vmem:[%s186 + $0xb18] sm:$0xff]
    %v7067 = vld [vmem:[%s186 + $0xb40] sm:$0xff]
    %v7068 = vld [vmem:[%s186 + $0xb48] sm:$0xff]
    %v7069 = vld [vmem:[%s186 + $0xb50] sm:$0xff]
    %v7070 = vld [vmem:[%s186 + $0xb58] sm:$0xff]
    %v7071 = vld [vmem:[%s186 + $0xb80] sm:$0xff]
    %v7072 = vld [vmem:[%s186 + $0xb88] sm:$0xff]
    %v7073 = vld [vmem:[%s186 + $0xb90] sm:$0xff]
    %v7074 = vld [vmem:[%s186 + $0xb98] sm:$0xff]
    %v7075 = vld [vmem:[%s186 + $0xbc0] sm:$0xff]
    %v7076 = vld [vmem:[%s186 + $0xbc8] sm:$0xff]
    %v7077 = vld [vmem:[%s186 + $0xbd0] sm:$0xff]
    %v7078 = vld [vmem:[%s186 + $0xbd8] sm:$0xff]
    %v7079 = vld [vmem:[%s186 + $0xc00] sm:$0xff]
    %v7080 = vld [vmem:[%s186 + $0xc08] sm:$0xff]
    %v7081 = vld [vmem:[%s186 + $0xc10] sm:$0xff]
    %v7082 = vld [vmem:[%s186 + $0xc18] sm:$0xff]
    %v7083 = vld [vmem:[%s186 + $0xc40] sm:$0xff]
    %v7084 = vld [vmem:[%s186 + $0xc48] sm:$0xff]
    %v7085 = vld [vmem:[%s186 + $0xc50] sm:$0xff]
    %v7086 = vld [vmem:[%s186 + $0xc58] sm:$0xff]
    %v7087 = vld [vmem:[%s186 + $0xc80] sm:$0xff]
    %v7088 = vld [vmem:[%s186 + $0xc88] sm:$0xff]
    %v7089 = vld [vmem:[%s186 + $0xc90] sm:$0xff]
    %v7090 = vld [vmem:[%s186 + $0xc98] sm:$0xff]
    %v7091 = vld [vmem:[%s186 + $0xcc0] sm:$0xff]
    %v7092 = vld [vmem:[%s186 + $0xcc8] sm:$0xff]
    %v7093 = vld [vmem:[%s186 + $0xcd0] sm:$0xff]
    %v7094 = vld [vmem:[%s186 + $0xcd8] sm:$0xff]
    %v7095 = vld [vmem:[%s186 + $0xd00] sm:$0xff]
    %v7096 = vld [vmem:[%s186 + $0xd08] sm:$0xff]
    %v7097 = vld [vmem:[%s186 + $0xd10] sm:$0xff]
    %v7098 = vld [vmem:[%s186 + $0xd18] sm:$0xff]
    %v7099 = vld [vmem:[%s186 + $0xd40] sm:$0xff]
    %v7100 = vld [vmem:[%s186 + $0xd48] sm:$0xff]
    %v7101 = vld [vmem:[%s186 + $0xd50] sm:$0xff]
    %v7102 = vld [vmem:[%s186 + $0xd58] sm:$0xff]
    %v7103 = vld [vmem:[%s186 + $0xd80] sm:$0xff]
    %v7104 = vld [vmem:[%s186 + $0xd88] sm:$0xff]
    %v7105 = vld [vmem:[%s186 + $0xd90] sm:$0xff]
    %v7106 = vld [vmem:[%s186 + $0xd98] sm:$0xff]
    %v7107 = vld [vmem:[%s186 + $0xdc0] sm:$0xff]
    %v7108 = vld [vmem:[%s186 + $0xdc8] sm:$0xff]
    %v7109 = vld [vmem:[%s186 + $0xdd0] sm:$0xff]
    %v7110 = vld [vmem:[%s186 + $0xdd8] sm:$0xff]
    %v7111 = vld [vmem:[%s186 + $0xe00] sm:$0xff]
    %v7112 = vld [vmem:[%s186 + $0xe08] sm:$0xff]
    %v7113 = vld [vmem:[%s186 + $0xe10] sm:$0xff]
    %v7114 = vld [vmem:[%s186 + $0xe18] sm:$0xff]
    %v7115 = vld [vmem:[%s186 + $0xe40] sm:$0xff]
    %v7116 = vld [vmem:[%s186 + $0xe48] sm:$0xff]
    %v7117 = vld [vmem:[%s186 + $0xe50] sm:$0xff]
    %v7118 = vld [vmem:[%s186 + $0xe58] sm:$0xff]
    %v7119 = vld [vmem:[%s186 + $0xe80] sm:$0xff]
    %v7120 = vld [vmem:[%s186 + $0xe88] sm:$0xff]
    %v7121 = vld [vmem:[%s186 + $0xe90] sm:$0xff]
    %v7122 = vld [vmem:[%s186 + $0xe98] sm:$0xff]
    %v7123 = vld [vmem:[%s186 + $0xec0] sm:$0xff]
    %v7124 = vld [vmem:[%s186 + $0xec8] sm:$0xff]
    %v7125 = vld [vmem:[%s186 + $0xed0] sm:$0xff]
    %v7126 = vld [vmem:[%s186 + $0xed8] sm:$0xff]
    %v7127 = vld [vmem:[%s186 + $0xf00] sm:$0xff]
    %v7128 = vld [vmem:[%s186 + $0xf08] sm:$0xff]
    %v7129 = vld [vmem:[%s186 + $0xf10] sm:$0xff]
    %v7130 = vld [vmem:[%s186 + $0xf18] sm:$0xff]
    %v7131 = vld [vmem:[%s186 + $0xf40] sm:$0xff]
    %v7132 = vld [vmem:[%s186 + $0xf48] sm:$0xff]
    %v7133 = vld [vmem:[%s186 + $0xf50] sm:$0xff]
    %v7134 = vld [vmem:[%s186 + $0xf58] sm:$0xff]
    %v7135 = vld [vmem:[%s186 + $0xf80] sm:$0xff]
    %v7136 = vld [vmem:[%s186 + $0xf88] sm:$0xff]
    %v7137 = vld [vmem:[%s186 + $0xf90] sm:$0xff]
    %v7138 = vld [vmem:[%s186 + $0xf98] sm:$0xff]
    %v7139 = vld [vmem:[%s186 + $0xfc0] sm:$0xff]
    %v7140 = vld [vmem:[%s186 + $0xfc8] sm:$0xff]
    %v7141 = vld [vmem:[%s186 + $0xfd0] sm:$0xff]
    %v7142 = vld [vmem:[%s186 + $0xfd8] sm:$0xff]
    %v7143 = vld [vmem:[#allocation17 + $0x28] sm:$0xf]
    %v7144 = vpack.c.bf16 %v6879, %v6879
    %v7145 = vpack.c.bf16 %v6880, %v6880
    %v7146 = vpack.c.bf16 %v6881, %v6881
    %v7147 = vpack.c.bf16 %v6882, %v6882
    %v7148 = vpack.c.bf16 %v6883, %v6883
    %v7149 = vpack.c.bf16 %v6884, %v6884
    %v7150 = vpack.c.bf16 %v6885, %v6885
    %v7151 = vpack.c.bf16 %v6886, %v6886
    %v7153 = vlaneseq
    %v7154 = vshrl.u32 %v7153, 7
    %v7155 = vsub.s32 0, %v7154
    %v7156 = vrot.slane %v7143, %v7155
    %v7157 = vlaneseq
    %v7158 = vshrl.u32 %v7157, 7
    %v7159 = vsub.s32 1, %v7158
    %v7160 = vrot.slane %v7143, %v7159
    %v7161 = vlaneseq
    %v7162 = vshrl.u32 %v7161, 7
    %v7163 = vsub.s32 2, %v7162
    %v7164 = vrot.slane %v7143, %v7163
    %v7165 = vlaneseq
    %v7166 = vshrl.u32 %v7165, 7
    %v7167 = vsub.s32 3, %v7166
    %v7168 = vrot.slane %v7143, %v7167
    %7173 = vmatprep.subr.bf16.mxu0 %v6888
    %7174 = vmatpush1.bf16.msra.mxu0 %v6887
    %7175 = vmatprep.subr.bf16.mxu0 %v6892
    %7176 = vmatpush1.bf16.msra.mxu0 %v6891
    %7177 = vmatprep.subr.bf16.mxu0 %v6896
    %7178 = vmatpush1.bf16.msra.mxu0 %v6895
    %7179 = vmatprep.subr.bf16.mxu0 %v6900
    %7180 = vmatpush1.bf16.msra.mxu0 %v6899
    %7181 = vmatprep.subr.bf16.mxu0 %v6904
    %7182 = vmatpush1.bf16.msra.mxu0 %v6903
    %7183 = vmatprep.subr.bf16.mxu0 %v6908
    %7184 = vmatpush1.bf16.msra.mxu0 %v6907
    %7185 = vmatprep.subr.bf16.mxu0 %v6912
    %7186 = vmatpush1.bf16.msra.mxu0 %v6911
    %7187 = vmatprep.subr.bf16.mxu0 %v6916
    %7188 = vmatpush1.bf16.msra.mxu0 %v6915
    %7189 = vmatprep.subr.bf16.mxu0 %v6920
    %7190 = vmatpush1.bf16.msra.mxu0 %v6919
    %7191 = vmatprep.subr.bf16.mxu0 %v6924
    %7192 = vmatpush1.bf16.msra.mxu0 %v6923
    %7193 = vmatprep.subr.bf16.mxu0 %v6928
    %7194 = vmatpush1.bf16.msra.mxu0 %v6927
    %7195 = vmatprep.subr.bf16.mxu0 %v6932
    %7196 = vmatpush1.bf16.msra.mxu0 %v6931
    %7197 = vmatprep.subr.bf16.mxu0 %v6936
    %7198 = vmatpush1.bf16.msra.mxu0 %v6935
    %7199 = vmatprep.subr.bf16.mxu0 %v6940
    %7200 = vmatpush1.bf16.msra.mxu0 %v6939
    %7201 = vmatprep.subr.bf16.mxu0 %v6944
    %7202 = vmatpush1.bf16.msra.mxu0 %v6943
    %7203 = vmatprep.subr.bf16.mxu0 %v6948
    %7204 = vmatpush1.bf16.msra.mxu0 %v6947
    %7205 = vmatprep.mubr.bf16.mxu0 %v7145
    %7206 = vmatmul.mubr.bf16.gmra.mrb[0].mxu0 %v7144
    %v7207 = vpop.f32.mrb[0].mxu0
    %v7208 = vadd.f32 %v7156, %v7207
    %v7209 = vpop.f32.mrb[0].mxu0
    %v7210 = vadd.f32 %v7160, %v7209
    %v7211 = vpop.f32.mrb[0].mxu0
    %v7212 = vpop.f32.mrb[0].mxu0
    %7213 = vdwg.mxu0
    %7214 = vmatprep.subr.bf16.mxu0 %v6952
    %7215 = vmatpush1.bf16.msra.mxu0 %v6951
    %7216 = vmatprep.subr.bf16.mxu0 %v6956
    %7217 = vmatpush1.bf16.msra.mxu0 %v6955
    %7218 = vmatprep.subr.bf16.mxu0 %v6960
    %7219 = vmatpush1.bf16.msra.mxu0 %v6959
    %7220 = vmatprep.subr.bf16.mxu0 %v6964
    %7221 = vmatpush1.bf16.msra.mxu0 %v6963
    %7222 = vmatprep.subr.bf16.mxu0 %v6968
    %7223 = vmatpush1.bf16.msra.mxu0 %v6967
    %7224 = vmatprep.subr.bf16.mxu0 %v6972
    %7225 = vmatpush1.bf16.msra.mxu0 %v6971
    %7226 = vmatprep.subr.bf16.mxu0 %v6976
    %7227 = vmatpush1.bf16.msra.mxu0 %v6975
    %7228 = vmatprep.subr.bf16.mxu0 %v6980
    %7229 = vmatpush1.bf16.msra.mxu0 %v6979
    %7230 = vmatprep.subr.bf16.mxu0 %v6984
    %7231 = vmatpush1.bf16.msra.mxu0 %v6983
    %7232 = vmatprep.subr.bf16.mxu0 %v6988
    %7233 = vmatpush1.bf16.msra.mxu0 %v6987
    %7234 = vmatprep.subr.bf16.mxu0 %v6992
    %7235 = vmatpush1.bf16.msra.mxu0 %v6991
    %7236 = vmatprep.subr.bf16.mxu0 %v6996
    %7237 = vmatpush1.bf16.msra.mxu0 %v6995
    %7238 = vmatprep.subr.bf16.mxu0 %v7000
    %7239 = vmatpush1.bf16.msra.mxu0 %v6999
    %7240 = vmatprep.subr.bf16.mxu0 %v7004
    %7241 = vmatpush1.bf16.msra.mxu0 %v7003
    %7242 = vmatprep.subr.bf16.mxu0 %v7008
    %7243 = vmatpush1.bf16.msra.mxu0 %v7007
    %7244 = vmatprep.subr.bf16.mxu0 %v7012
    %7245 = vmatpush1.bf16.msra.mxu0 %v7011
    %7246 = vmatprep.mubr.bf16.mxu0 %v7147
    %7247 = vmatmul.mubr.bf16.gmra.mrb[0].mxu0 %v7146
    %v7248 = vpop.f32.mrb[0].mxu0
    %v7249 = vadd.f32 %v7208, %v7248
    %v7250 = vpop.f32.mrb[0].mxu0
    %v7251 = vadd.f32 %v7210, %v7250
    %v7252 = vpop.f32.mrb[0].mxu0
    %v7253 = vpop.f32.mrb[0].mxu0
    %7254 = vdwg.mxu0
    %7255 = vmatprep.subr.bf16.mxu0 %v7016
    %7256 = vmatpush1.bf16.msra.mxu0 %v7015
    %7257 = vmatprep.subr.bf16.mxu0 %v7020
    %7258 = vmatpush1.bf16.msra.mxu0 %v7019
    %7259 = vmatprep.subr.bf16.mxu0 %v7024
    %7260 = vmatpush1.bf16.msra.mxu0 %v7023
    %7261 = vmatprep.subr.bf16.mxu0 %v7028
    %7262 = vmatpush1.bf16.msra.mxu0 %v7027
    %7263 = vmatprep.subr.bf16.mxu0 %v7032
    %7264 = vmatpush1.bf16.msra.mxu0 %v7031
    %7265 = vmatprep.subr.bf16.mxu0 %v7036
    %7266 = vmatpush1.bf16.msra.mxu0 %v7035
    %7267 = vmatprep.subr.bf16.mxu0 %v7040
    %7268 = vmatpush1.bf16.msra.mxu0 %v7039
    %7269 = vmatprep.subr.bf16.mxu0 %v7044
    %7270 = vmatpush1.bf16.msra.mxu0 %v7043
    %7271 = vmatprep.subr.bf16.mxu0 %v7048
    %7272 = vmatpush1.bf16.msra.mxu0 %v7047
    %7273 = vmatprep.subr.bf16.mxu0 %v7052
    %7274 = vmatpush1.bf16.msra.mxu0 %v7051
    %7275 = vmatprep.subr.bf16.mxu0 %v7056
    %7276 = vmatpush1.bf16.msra.mxu0 %v7055
    %7277 = vmatprep.subr.bf16.mxu0 %v7060
    %7278 = vmatpush1.bf16.msra.mxu0 %v7059
    %7279 = vmatprep.subr.bf16.mxu0 %v7064
    %7280 = vmatpush1.bf16.msra.mxu0 %v7063
    %7281 = vmatprep.subr.bf16.mxu0 %v7068
    %7282 = vmatpush1.bf16.msra.mxu0 %v7067
    %7283 = vmatprep.subr.bf16.mxu0 %v7072
    %7284 = vmatpush1.bf16.msra.mxu0 %v7071
    %7285 = vmatprep.subr.bf16.mxu0 %v7076
    %7286 = vmatpush1.bf16.msra.mxu0 %v7075
    %7287 = vmatprep.mubr.bf16.mxu0 %v7149
    %7288 = vmatmul.mubr.bf16.gmra.mrb[0].mxu0 %v7148
    %v7289 = vpop.f32.mrb[0].mxu0
    %v7290 = vadd.f32 %v7249, %v7289
    %v7291 = vpop.f32.mrb[0].mxu0
    %v7292 = vadd.f32 %v7251, %v7291
    %v7293 = vpop.f32.mrb[0].mxu0
    %v7294 = vpop.f32.mrb[0].mxu0
    %7295 = vdwg.mxu0
    %7296 = vmatprep.subr.bf16.mxu0 %v7080
    %7297 = vmatpush1.bf16.msra.mxu0 %v7079
    %7298 = vmatprep.subr.bf16.mxu0 %v7084
    %7299 = vmatpush1.bf16.msra.mxu0 %v7083
    %7300 = vmatprep.subr.bf16.mxu0 %v7088
    %7301 = vmatpush1.bf16.msra.mxu0 %v7087
    %7302 = vmatprep.subr.bf16.mxu0 %v7092
    %7303 = vmatpush1.bf16.msra.mxu0 %v7091
    %7304 = vmatprep.subr.bf16.mxu0 %v7096
    %7305 = vmatpush1.bf16.msra.mxu0 %v7095
    %7306 = vmatprep.subr.bf16.mxu0 %v7100
    %7307 = vmatpush1.bf16.msra.mxu0 %v7099
    %7308 = vmatprep.subr.bf16.mxu0 %v7104
    %7309 = vmatpush1.bf16.msra.mxu0 %v7103
    %7310 = vmatprep.subr.bf16.mxu0 %v7108
    %7311 = vmatpush1.bf16.msra.mxu0 %v7107
    %7312 = vmatprep.subr.bf16.mxu0 %v7112
    %7313 = vmatpush1.bf16.msra.mxu0 %v7111
    %7314 = vmatprep.subr.bf16.mxu0 %v7116
    %7315 = vmatpush1.bf16.msra.mxu0 %v7115
    %7316 = vmatprep.subr.bf16.mxu0 %v7120
    %7317 = vmatpush1.bf16.msra.mxu0 %v7119
    %7318 = vmatprep.subr.bf16.mxu0 %v7124
    %7319 = vmatpush1.bf16.msra.mxu0 %v7123
    %7320 = vmatprep.subr.bf16.mxu0 %v7128
    %7321 = vmatpush1.bf16.msra.mxu0 %v7127
    %7322 = vmatprep.subr.bf16.mxu0 %v7132
    %7323 = vmatpush1.bf16.msra.mxu0 %v7131
    %7324 = vmatprep.subr.bf16.mxu0 %v7136
    %7325 = vmatpush1.bf16.msra.mxu0 %v7135
    %7326 = vmatprep.subr.bf16.mxu0 %v7140
    %7327 = vmatpush1.bf16.msra.mxu0 %v7139
    %7328 = vmatprep.mubr.bf16.mxu0 %v7151
    %7329 = vmatmul.mubr.bf16.gmra.mrb[0].mxu0 %v7150
    %v7330 = vpop.f32.mrb[0].mxu0
    %v7331 = vadd.f32 %v7290, %v7330
    %v7332 = vpop.f32.mrb[0].mxu0
    %v7333 = vadd.f32 %v7292, %v7332
    %v7334 = vpop.f32.mrb[0].mxu0
    %v7335 = vpop.f32.mrb[0].mxu0
    %7336 = vdwg.mxu0
    %7337 = vmatprep.subr.bf16.mxu0 %v6890
    %7338 = vmatpush1.bf16.msra.mxu0 %v6889
    %7339 = vmatprep.subr.bf16.mxu0 %v6894
    %7340 = vmatpush1.bf16.msra.mxu0 %v6893
    %7341 = vmatprep.subr.bf16.mxu0 %v6898
    %7342 = vmatpush1.bf16.msra.mxu0 %v6897
    %7343 = vmatprep.subr.bf16.mxu0 %v6902
    %7344 = vmatpush1.bf16.msra.mxu0 %v6901
    %7345 = vmatprep.subr.bf16.mxu0 %v6906
    %7346 = vmatpush1.bf16.msra.mxu0 %v6905
    %7347 = vmatprep.subr.bf16.mxu0 %v6910
    %7348 = vmatpush1.bf16.msra.mxu0 %v6909
    %7349 = vmatprep.subr.bf16.mxu0 %v6914
    %7350 = vmatpush1.bf16.msra.mxu0 %v6913
    %7351 = vmatprep.subr.bf16.mxu0 %v6918
    %7352 = vmatpush1.bf16.msra.mxu0 %v6917
    %7353 = vmatprep.subr.bf16.mxu0 %v6922
    %7354 = vmatpush1.bf16.msra.mxu0 %v6921
    %7355 = vmatprep.subr.bf16.mxu0 %v6926
    %7356 = vmatpush1.bf16.msra.mxu0 %v6925
    %7357 = vmatprep.subr.bf16.mxu0 %v6930
    %7358 = vmatpush1.bf16.msra.mxu0 %v6929
    %7359 = vmatprep.subr.bf16.mxu0 %v6934
    %7360 = vmatpush1.bf16.msra.mxu0 %v6933
    %7361 = vmatprep.subr.bf16.mxu0 %v6938
    %7362 = vmatpush1.bf16.msra.mxu0 %v6937
    %7363 = vmatprep.subr.bf16.mxu0 %v6942
    %7364 = vmatpush1.bf16.msra.mxu0 %v6941
    %7365 = vmatprep.subr.bf16.mxu0 %v6946
    %7366 = vmatpush1.bf16.msra.mxu0 %v6945
    %7367 = vmatprep.subr.bf16.mxu0 %v6950
    %7368 = vmatpush1.bf16.msra.mxu0 %v6949
    %7369 = vmatprep.mubr.bf16.mxu0 %v7145
    %7370 = vmatmul.mubr.bf16.gmra.mrb[0].mxu0 %v7144
    %v7371 = vpop.f32.mrb[0].mxu0
    %v7372 = vadd.f32 %v7164, %v7371
    %v7373 = vpop.f32.mrb[0].mxu0
    %v7374 = vadd.f32 %v7168, %v7373
    %v7375 = vpop.f32.mrb[0].mxu0
    %v7376 = vpop.f32.mrb[0].mxu0
    %7377 = vdwg.mxu0
    %7378 = vmatprep.subr.bf16.mxu0 %v6954
    %7379 = vmatpush1.bf16.msra.mxu0 %v6953
    %7380 = vmatprep.subr.bf16.mxu0 %v6958
    %7381 = vmatpush1.bf16.msra.mxu0 %v6957
    %7382 = vmatprep.subr.bf16.mxu0 %v6962
    %7383 = vmatpush1.bf16.msra.mxu0 %v6961
    %7384 = vmatprep.subr.bf16.mxu0 %v6966
    %7385 = vmatpush1.bf16.msra.mxu0 %v6965
    %7386 = vmatprep.subr.bf16.mxu0 %v6970
    %7387 = vmatpush1.bf16.msra.mxu0 %v6969
    %7388 = vmatprep.subr.bf16.mxu0 %v6974
    %7389 = vmatpush1.bf16.msra.mxu0 %v6973
    %7390 = vmatprep.subr.bf16.mxu0 %v6978
    %7391 = vmatpush1.bf16.msra.mxu0 %v6977
    %7392 = vmatprep.subr.bf16.mxu0 %v6982
    %7393 = vmatpush1.bf16.msra.mxu0 %v6981
    %7394 = vmatprep.subr.bf16.mxu0 %v6986
    %7395 = vmatpush1.bf16.msra.mxu0 %v6985
    %7396 = vmatprep.subr.bf16.mxu0 %v6990
    %7397 = vmatpush1.bf16.msra.mxu0 %v6989
    %7398 = vmatprep.subr.bf16.mxu0 %v6994
    %7399 = vmatpush1.bf16.msra.mxu0 %v6993
    %7400 = vmatprep.subr.bf16.mxu0 %v6998
    %7401 = vmatpush1.bf16.msra.mxu0 %v6997
    %7402 = vmatprep.subr.bf16.mxu0 %v7002
    %7403 = vmatpush1.bf16.msra.mxu0 %v7001
    %7404 = vmatprep.subr.bf16.mxu0 %v7006
    %7405 = vmatpush1.bf16.msra.mxu0 %v7005
    %7406 = vmatprep.subr.bf16.mxu0 %v7010
    %7407 = vmatpush1.bf16.msra.mxu0 %v7009
    %7408 = vmatprep.subr.bf16.mxu0 %v7014
    %7409 = vmatpush1.bf16.msra.mxu0 %v7013
    %7410 = vmatprep.mubr.bf16.mxu0 %v7147
    %7411 = vmatmul.mubr.bf16.gmra.mrb[0].mxu0 %v7146
    %v7412 = vpop.f32.mrb[0].mxu0
    %v7413 = vadd.f32 %v7372, %v7412
    %v7414 = vpop.f32.mrb[0].mxu0
    %v7415 = vadd.f32 %v7374, %v7414
    %v7416 = vpop.f32.mrb[0].mxu0
    %v7417 = vpop.f32.mrb[0].mxu0
    %7418 = vdwg.mxu0
    %7419 = vmatprep.subr.bf16.mxu0 %v7018
    %7420 = vmatpush1.bf16.msra.mxu0 %v7017
    %7421 = vmatprep.subr.bf16.mxu0 %v7022
    %7422 = vmatpush1.bf16.msra.mxu0 %v7021
    %7423 = vmatprep.subr.bf16.mxu0 %v7026
    %7424 = vmatpush1.bf16.msra.mxu0 %v7025
    %7425 = vmatprep.subr.bf16.mxu0 %v7030
    %7426 = vmatpush1.bf16.msra.mxu0 %v7029
    %7427 = vmatprep.subr.bf16.mxu0 %v7034
    %7428 = vmatpush1.bf16.msra.mxu0 %v7033
    %7429 = vmatprep.subr.bf16.mxu0 %v7038
    %7430 = vmatpush1.bf16.msra.mxu0 %v7037
    %7431 = vmatprep.subr.bf16.mxu0 %v7042
    %7432 = vmatpush1.bf16.msra.mxu0 %v7041
    %7433 = vmatprep.subr.bf16.mxu0 %v7046
    %7434 = vmatpush1.bf16.msra.mxu0 %v7045
    %7435 = vmatprep.subr.bf16.mxu0 %v7050
    %7436 = vmatpush1.bf16.msra.mxu0 %v7049
    %7437 = vmatprep.subr.bf16.mxu0 %v7054
    %7438 = vmatpush1.bf16.msra.mxu0 %v7053
    %7439 = vmatprep.subr.bf16.mxu0 %v7058
    %7440 = vmatpush1.bf16.msra.mxu0 %v7057
    %7441 = vmatprep.subr.bf16.mxu0 %v7062
    %7442 = vmatpush1.bf16.msra.mxu0 %v7061
    %7443 = vmatprep.subr.bf16.mxu0 %v7066
    %7444 = vmatpush1.bf16.msra.mxu0 %v7065
    %7445 = vmatprep.subr.bf16.mxu0 %v7070
    %7446 = vmatpush1.bf16.msra.mxu0 %v7069
    %7447 = vmatprep.subr.bf16.mxu0 %v7074
    %7448 = vmatpush1.bf16.msra.mxu0 %v7073
    %7449 = vmatprep.subr.bf16.mxu0 %v7078
    %7450 = vmatpush1.bf16.msra.mxu0 %v7077
    %7451 = vmatprep.mubr.bf16.mxu0 %v7149
    %7452 = vmatmul.mubr.bf16.gmra.mrb[0].mxu0 %v7148
    %v7453 = vpop.f32.mrb[0].mxu0
    %v7454 = vadd.f32 %v7413, %v7453
    %v7455 = vpop.f32.mrb[0].mxu0
    %v7456 = vadd.f32 %v7415, %v7455
    %v7457 = vpop.f32.mrb[0].mxu0
    %v7458 = vpop.f32.mrb[0].mxu0
    %7459 = vdwg.mxu0
    %7460 = vmatprep.subr.bf16.mxu0 %v7082
    %7461 = vmatpush1.bf16.msra.mxu0 %v7081
    %7462 = vmatprep.subr.bf16.mxu0 %v7086
    %7463 = vmatpush1.bf16.msra.mxu0 %v7085
    %7464 = vmatprep.subr.bf16.mxu0 %v7090
    %7465 = vmatpush1.bf16.msra.mxu0 %v7089
    %7466 = vmatprep.subr.bf16.mxu0 %v7094
    %7467 = vmatpush1.bf16.msra.mxu0 %v7093
    %7468 = vmatprep.subr.bf16.mxu0 %v7098
    %7469 = vmatpush1.bf16.msra.mxu0 %v7097
    %7470 = vmatprep.subr.bf16.mxu0 %v7102
    %7471 = vmatpush1.bf16.msra.mxu0 %v7101
    %7472 = vmatprep.subr.bf16.mxu0 %v7106
    %7473 = vmatpush1.bf16.msra.mxu0 %v7105
    %7474 = vmatprep.subr.bf16.mxu0 %v7110
    %7475 = vmatpush1.bf16.msra.mxu0 %v7109
    %7476 = vmatprep.subr.bf16.mxu0 %v7114
    %7477 = vmatpush1.bf16.msra.mxu0 %v7113
    %7478 = vmatprep.subr.bf16.mxu0 %v7118
    %7479 = vmatpush1.bf16.msra.mxu0 %v7117
    %7480 = vmatprep.subr.bf16.mxu0 %v7122
    %7481 = vmatpush1.bf16.msra.mxu0 %v7121
    %7482 = vmatprep.subr.bf16.mxu0 %v7126
    %7483 = vmatpush1.bf16.msra.mxu0 %v7125
    %7484 = vmatprep.subr.bf16.mxu0 %v7130
    %7485 = vmatpush1.bf16.msra.mxu0 %v7129
    %7486 = vmatprep.subr.bf16.mxu0 %v7134
    %7487 = vmatpush1.bf16.msra.mxu0 %v7133
    %7488 = vmatprep.subr.bf16.mxu0 %v7138
    %7489 = vmatpush1.bf16.msra.mxu0 %v7137
    %7490 = vmatprep.subr.bf16.mxu0 %v7142
    %7491 = vmatpush1.bf16.msra.mxu0 %v7141
    %7492 = vmatprep.mubr.bf16.mxu0 %v7151
    %7493 = vmatmul.mubr.bf16.gmra.mrb[0].mxu0 %v7150
    %v7494 = vpop.f32.mrb[0].mxu0
    %v7495 = vadd.f32 %v7454, %v7494
    %v7496 = vpop.f32.mrb[0].mxu0
    %v7497 = vadd.f32 %v7456, %v7496
    %v7498 = vpop.f32.mrb[0].mxu0
    %v7499 = vpop.f32.mrb[0].mxu0
    %7500 = vdwg.mxu0
    %v7501 = vmax.f32 %v7331, 0.0
    %v7502 = vmax.f32 %v7333, 0.0
    %v7503 = vmax.f32 %v7495, 0.0
    %v7504 = vmax.f32 %v7497, 0.0
    %v7505 = vld [vmem:[%s186 + $0x30] sm:$0xff]
    %v7506 = vld [vmem:[%s186 + $0x70] sm:$0xff]
    %v7507 = vld [vmem:[%s186 + $0xb0] sm:$0xff]
    %v7508 = vld [vmem:[%s186 + $0xf0] sm:$0xff]
    %v7509 = vld [vmem:[%s186 + $0x130] sm:$0xff]
    %v7510 = vld [vmem:[%s186 + $0x170] sm:$0xff]
    %v7511 = vld [vmem:[%s186 + $0x1b0] sm:$0xff]
    %v7512 = vld [vmem:[%s186 + $0x1f0] sm:$0xff]
    %v7513 = vld [vmem:[%s186 + $0x230] sm:$0xff]
    %v7514 = vld [vmem:[%s186 + $0x270] sm:$0xff]
    %v7515 = vld [vmem:[%s186 + $0x2b0] sm:$0xff]
    %v7516 = vld [vmem:[%s186 + $0x2f0] sm:$0xff]
    %v7517 = vld [vmem:[%s186 + $0x330] sm:$0xff]
    %v7518 = vld [vmem:[%s186 + $0x370] sm:$0xff]
    %v7519 = vld [vmem:[%s186 + $0x3b0] sm:$0xff]
    %v7520 = vld [vmem:[%s186 + $0x3f0] sm:$0xff]
    %v7521 = vld [vmem:[%s186 + $0x430] sm:$0xff]
    %v7522 = vld [vmem:[%s186 + $0x470] sm:$0xff]
    %v7523 = vld [vmem:[%s186 + $0x4b0] sm:$0xff]
    %v7524 = vld [vmem:[%s186 + $0x4f0] sm:$0xff]
    %v7525 = vld [vmem:[%s186 + $0x530] sm:$0xff]
    %v7526 = vld [vmem:[%s186 + $0x570] sm:$0xff]
    %v7527 = vld [vmem:[%s186 + $0x5b0] sm:$0xff]
    %v7528 = vld [vmem:[%s186 + $0x5f0] sm:$0xff]
    %v7529 = vld [vmem:[%s186 + $0x630] sm:$0xff]
    %v7530 = vld [vmem:[%s186 + $0x670] sm:$0xff]
    %v7531 = vld [vmem:[%s186 + $0x6b0] sm:$0xff]
    %v7532 = vld [vmem:[%s186 + $0x6f0] sm:$0xff]
    %v7533 = vld [vmem:[%s186 + $0x730] sm:$0xff]
    %v7534 = vld [vmem:[%s186 + $0x770] sm:$0xff]
    %v7535 = vld [vmem:[%s186 + $0x7b0] sm:$0xff]
    %v7536 = vld [vmem:[%s186 + $0x7f0] sm:$0xff]
    %v7537 = vld [vmem:[#allocation17 + $0x2c] sm:$0x1]
    %v7538 = vpack.c.bf16 %v7501, %v7501
    %v7539 = vpack.c.bf16 %v7502, %v7502
    %v7540 = vpack.c.bf16 %v7503, %v7503
    %v7541 = vpack.c.bf16 %v7504, %v7504
    %v7543 = vlaneseq
    %v7544 = vshrl.u32 %v7543, 7
    %v7545 = vsub.s32 0, %v7544
    %v7546 = vrot.slane %v7537, %v7545
    %7548 = vmatprep.subr.bf16.mxu0 0
    %7549 = vmatpush1.bf16.msra.mxu0 %v7505
    %7550 = vmatprep.subr.bf16.mxu0 0
    %7551 = vmatpush1.bf16.msra.mxu0 %v7506
    %7552 = vmatprep.subr.bf16.mxu0 0
    %7553 = vmatpush1.bf16.msra.mxu0 %v7507
    %7554 = vmatprep.subr.bf16.mxu0 0
    %7555 = vmatpush1.bf16.msra.mxu0 %v7508
    %7556 = vmatprep.subr.bf16.mxu0 0
    %7557 = vmatpush1.bf16.msra.mxu0 %v7509
    %7558 = vmatprep.subr.bf16.mxu0 0
    %7559 = vmatpush1.bf16.msra.mxu0 %v7510
    %7560 = vmatprep.subr.bf16.mxu0 0
    %7561 = vmatpush1.bf16.msra.mxu0 %v7511
    %7562 = vmatprep.subr.bf16.mxu0 0
    %7563 = vmatpush1.bf16.msra.mxu0 %v7512
    %7564 = vmatprep.subr.bf16.mxu0 0
    %7565 = vmatpush1.bf16.msra.mxu0 %v7513
    %7566 = vmatprep.subr.bf16.mxu0 0
    %7567 = vmatpush1.bf16.msra.mxu0 %v7514
    %7568 = vmatprep.subr.bf16.mxu0 0
    %7569 = vmatpush1.bf16.msra.mxu0 %v7515
    %7570 = vmatprep.subr.bf16.mxu0 0
    %7571 = vmatpush1.bf16.msra.mxu0 %v7516
    %7572 = vmatprep.subr.bf16.mxu0 0
    %7573 = vmatpush1.bf16.msra.mxu0 %v7517
    %7574 = vmatprep.subr.bf16.mxu0 0
    %7575 = vmatpush1.bf16.msra.mxu0 %v7518
    %7576 = vmatprep.subr.bf16.mxu0 0
    %7577 = vmatpush1.bf16.msra.mxu0 %v7519
    %7578 = vmatprep.subr.bf16.mxu0 0
    %7579 = vmatpush1.bf16.msra.mxu0 %v7520
    %7580 = vmatprep.mubr.bf16.mxu0 %v7539
    %7581 = vmatmul.mubr.bf16.gmra.mrb[0].mxu0 %v7538
    %v7582 = vpop.f32.mrb[0].mxu0
    %v7583 = vadd.f32 %v7546, %v7582
    %v7584 = vpop.f32.mrb[0].mxu0
    %v7585 = vpop.f32.mrb[0].mxu0
    %v7586 = vpop.f32.mrb[0].mxu0
    %7587 = vdwg.mxu0
    %7588 = vmatprep.subr.bf16.mxu0 0
    %7589 = vmatpush1.bf16.msra.mxu0 %v7521
    %7590 = vmatprep.subr.bf16.mxu0 0
    %7591 = vmatpush1.bf16.msra.mxu0 %v7522
    %7592 = vmatprep.subr.bf16.mxu0 0
    %7593 = vmatpush1.bf16.msra.mxu0 %v7523
    %7594 = vmatprep.subr.bf16.mxu0 0
    %7595 = vmatpush1.bf16.msra.mxu0 %v7524
    %7596 = vmatprep.subr.bf16.mxu0 0
    %7597 = vmatpush1.bf16.msra.mxu0 %v7525
    %7598 = vmatprep.subr.bf16.mxu0 0
    %7599 = vmatpush1.bf16.msra.mxu0 %v7526
    %7600 = vmatprep.subr.bf16.mxu0 0
    %7601 = vmatpush1.bf16.msra.mxu0 %v7527
    %7602 = vmatprep.subr.bf16.mxu0 0
    %7603 = vmatpush1.bf16.msra.mxu0 %v7528
    %7604 = vmatprep.subr.bf16.mxu0 0
    %7605 = vmatpush1.bf16.msra.mxu0 %v7529
    %7606 = vmatprep.subr.bf16.mxu0 0
    %7607 = vmatpush1.bf16.msra.mxu0 %v7530
    %7608 = vmatprep.subr.bf16.mxu0 0
    %7609 = vmatpush1.bf16.msra.mxu0 %v7531
    %7610 = vmatprep.subr.bf16.mxu0 0
    %7611 = vmatpush1.bf16.msra.mxu0 %v7532
    %7612 = vmatprep.subr.bf16.mxu0 0
    %7613 = vmatpush1.bf16.msra.mxu0 %v7533
    %7614 = vmatprep.subr.bf16.mxu0 0
    %7615 = vmatpush1.bf16.msra.mxu0 %v7534
    %7616 = vmatprep.subr.bf16.mxu0 0
    %7617 = vmatpush1.bf16.msra.mxu0 %v7535
    %7618 = vmatprep.subr.bf16.mxu0 0
    %7619 = vmatpush1.bf16.msra.mxu0 %v7536
    %7620 = vmatprep.mubr.bf16.mxu0 %v7541
    %7621 = vmatmul.mubr.bf16.gmra.mrb[0].mxu0 %v7540
    %v7622 = vpop.f32.mrb[0].mxu0
    %v7623 = vadd.f32 %v7583, %v7622
    %v7624 = vpop.f32.mrb[0].mxu0
    %v7625 = vpop.f32.mrb[0].mxu0
    %v7626 = vpop.f32.mrb[0].mxu0
    %7627 = vdwg.mxu0
    %v7628 = vsub.f32 0.0, %v7623
    %v7629 = vmul.f32 %v7628, 1.442695
    %v7630 = vpow.pop %v7629
    %v7631 = vadd.f32 %v7630, 1.0
    %v7632 = vrcp.pop %v7631
    %v7633 = vmul.f32 1.0, %v7632
    %7634 = vst [vmem:[%s10] sm:$0xff] %v7633
    // Predicated region
    $region74: #{cpi_gat_forward.1} parent=1 // pred_check
      _
    $region75: #{cpi_gat_forward.1} parent=1 // pred_check_branch
      %7636 = sbr.rel (0) target = $region77
    $region76: #{cpi_gat_forward.1} parent=1 // pred_region
      _
    $region77: #{cpi_gat_forward.1} parent=1 // pred_fallthru
      _
    // Predicated region
    $region78: #{cpi_gat_forward.1} parent=1 // pred_check
      _
    $region79: #{cpi_gat_forward.1} parent=1 // pred_check_branch
      %7638 = sbr.rel (0) target = $region81
    $region80: #{cpi_gat_forward.1} parent=1 // pred_region
      _
    $region81: #{cpi_gat_forward.1} parent=1 // pred_fallthru
      _
    %7639 = vsyncpa [#allocation5], 1
    %7640 = vsyncpa [#allocation7], 1
    %7641 = vsyncpa [#allocation10], 1
    %7642 = vsyncpa [#allocation13], 1
    %7643 = vsyncpa [#allocation16], 1
  %7644 = vsyncmov [#allocation3]
  %s7645 = vpop.sfrf %7644
  %p7646 = scmp.eq.s32.totalorder %s7645, 0
  %p7647 = pneg %p7646
  %7649 = shalt.err (%p7647)
  %s7650 = scalar_lea.sflag [#allocation3], 1
  %7651 = vsyncmov %s7650
  %s7652 = vpop.sfrf %7651
  %p7653 = scmp.eq.s32.totalorder %s7652, 0
  %p7654 = pneg %p7653
  %7656 = shalt.err (%p7654)

</llo_original>
